<compile_context>
chip_gen: v7x
topology: tpu7x:2x2x1
jax: 0.10.0
libtpu: 0.0.40
codegen_flags: <defaults>
</compile_context>

<pallas_src>
import functools

import jax
import jax.numpy as jnp
from jax import lax
from jax.experimental import pallas as pl
from jax.experimental.pallas import tpu as pltpu


def _round_up(x, m):
    return -(-x // m) * m


def _mhgat_kernel(zq_ref, zk_ref, o_ref, m_ref, l_ref, acc_ref, *,
                  num_heads, out_dim, hd_pad, tk, ck, n_valid, need_mask,
                  exp_dtype):
    # zq_ref: (num_heads, tq, out_dim) bf16   projected query-node features
    # zk_ref: (num_heads, tk, out_dim) bf16   projected key-node features
    # o_ref : (tq, hd_pad)                    output, torch.cat head layout
    ki = pl.program_id(1)
    nk = pl.num_programs(1)

    @pl.when(ki == 0)
    def _init():
        m_ref[...] = jnp.full(m_ref.shape, -jnp.inf, jnp.float32)
        l_ref[...] = jnp.zeros(l_ref.shape, jnp.float32)
        acc_ref[...] = jnp.zeros(acc_ref.shape, jnp.float32)

    zq = zq_ref[...]                                          # (nh, tq, od) bf16

    # Static inner loop over lane-wide key sub-chunks: amortizes per-grid-step
    # overhead without growing the in-register (nh, tq, ck) score tile.
    for j in range(tk // ck):
        zk = zk_ref[:, j * ck:(j + 1) * ck, :]                # (nh, ck, od), static slice
        # scores, batched over heads; bf16 operands, f32 MXU accumulation
        s = jnp.einsum('hqd,hkd->hqk', zq, zk,
                       preferred_element_type=jnp.float32)    # (nh, tq, ck) f32
        if need_mask:
            col = (ki * tk + j * ck
                   + lax.broadcasted_iota(jnp.int32, (1, 1, ck), 2))
            s = jnp.where(col < n_valid, s, -jnp.inf)

        m_prev = m_ref[...]                                   # (nh, tq, 1)
        m_new = jnp.maximum(m_prev, jnp.max(s, axis=-1, keepdims=True))
        if need_mask:
            # Guard: a fully-padded key chunk gives m_new == -inf -> avoid NaN.
            m_safe = jnp.where(m_new == -jnp.inf, 0.0, m_new)
        else:
            m_safe = m_new
        a = jnp.exp(m_prev - m_safe)                          # rescale factor, f32
        # EUP-bound kernel: exponent in bf16 (2x EUP throughput on v6e/v7x).
        p = jnp.exp((s - m_safe).astype(exp_dtype))           # unnormalized probs
        l_ref[...] = a * l_ref[...] + jnp.sum(
            p.astype(jnp.float32), axis=-1, keepdims=True)
        acc_ref[...] = a * acc_ref[...] + jnp.einsum(
            'hqk,hkd->hqd', p.astype(jnp.bfloat16), zk,
            preferred_element_type=jnp.float32)
        m_ref[...] = m_new

    @pl.when(ki == nk - 1)
    def _finalize():
        # Exact softmax normalization (runs once per query tile -> free accuracy).
        out = acc_ref[...] / l_ref[...]                       # (nh, tq, od) f32
        tq = out.shape[1]
        heads = [out[h] for h in range(num_heads)]            # leading-axis slices
        if hd_pad > num_heads * out_dim:
            heads.append(jnp.zeros((tq, hd_pad - num_heads * out_dim),
                                   jnp.float32))
        # One lane-dense store already in torch.cat(head_outs, dim=1) layout.
        o_ref[...] = jnp.concatenate(heads, axis=-1).astype(o_ref.dtype)


def multi_head_gat_forward(h, weights, merge="cat", *,
                           exp_dtype=jnp.bfloat16,
                           out_dtype=jnp.float32):
    """
    h:        (N, in_dim) float32 node features
    weights:  (num_heads, out_dim, in_dim) float32 per-head nn.Linear weights
    exp_dtype: bf16 on v6e/v7x (bf16 EUP); use jnp.float32 on v5e.
    out_dtype: f32 matches the PyTorch module; bf16 halves output HBM traffic
               if downstream tolerates it.
    """
    N, in_dim = h.shape
    num_heads, out_dim, in_dim_w = weights.shape
    assert in_dim == in_dim_w
    hd_dim = num_heads * out_dim
    hd_pad = _round_up(hd_dim, 128)       # lane-dense output store

    # Projection precomputed once host-side, head-leading layout, bf16.
    z = jnp.einsum('ni,hoi->hno',
                   h.astype(jnp.bfloat16), weights.astype(jnp.bfloat16),
                   preferred_element_type=jnp.float32).astype(jnp.bfloat16)

    # --- tiling -------------------------------------------------------------
    if N < 128:
        blk = _round_up(N, 8)
        tq = tk = ck = blk
        n_pad = blk
    else:
        n_pad = _round_up(N, 128)
        ck = 128                                   # lane-wide key sub-chunk
        n_chunks = n_pad // ck
        m = 1
        for c in range(min(4, n_chunks), 0, -1):   # up to 4 sub-chunks per step
            if n_chunks % c == 0:
                m = c
                break
        tk = m * ck
        # keep >= 2 query tiles when possible (both v7x TensorCores busy)
        tq = 128 if n_pad // 128 >= 2 else 64

    need_mask = n_pad != N
    if need_mask:
        z = jnp.pad(z, ((0, 0), (0, n_pad - N), (0, 0)))

    nq, nk = n_pad // tq, n_pad // tk

    kernel = functools.partial(
        _mhgat_kernel, num_heads=num_heads, out_dim=out_dim, hd_pad=hd_pad,
        tk=tk, ck=ck, n_valid=N, need_mask=need_mask, exp_dtype=exp_dtype)

    out = pl.pallas_call(
        kernel,
        out_shape=jax.ShapeDtypeStruct((n_pad, hd_pad), out_dtype),
        grid_spec=pltpu.PrefetchScalarGridSpec(
            num_scalar_prefetch=0,
            grid=(nq, nk),
            in_specs=[
                pl.BlockSpec((num_heads, tq, out_dim),
                             lambda qi, ki: (0, qi, 0)),   # query Z tile
                pl.BlockSpec((num_heads, tk, out_dim),
                             lambda qi, ki: (0, ki, 0)),   # key/value Z tile
            ],
            out_specs=pl.BlockSpec((tq, hd_pad), lambda qi, ki: (qi, 0)),
            scratch_shapes=[
                pltpu.VMEM((num_heads, tq, 1), jnp.float32),        # running max
                pltpu.VMEM((num_heads, tq, 1), jnp.float32),        # running sum
                pltpu.VMEM((num_heads, tq, out_dim), jnp.float32),  # accumulator
            ],
        ),
        compiler_params=pltpu.CompilerParams(
            dimension_semantics=("parallel", "arbitrary"),
            vmem_limit_bytes=32 * 1024 * 1024,
        ),
    )(z, z)

    out = out[:N, :hd_dim]
    if merge == "cat":
        return out
    # torch.mean(torch.stack(head_outs)) -> scalar mean over all heads/entries.
    return jnp.mean(out)


def _reference(h, weights, merge="cat"):
    outs = []
    for hd in range(weights.shape[0]):
        z = h @ weights[hd].T
        e = z @ z.T
        alpha = jax.nn.softmax(e, axis=-1)
        outs.append(alpha @ z)
    if merge == "cat":
        return jnp.concatenate(outs, axis=1)
    return jnp.mean(jnp.stack(outs))


if __name__ == "__main__":
    # Small but multi-tile shapes: N=256 nodes (fully-connected, self-loops),
    # in_dim=16, out_dim=32, num_heads=4 -> 2 query tiles x 1 key tile with
    # 2 lane-wide key sub-chunks per step; hd_dim = 128 (lane-dense output).
    N, in_dim, out_dim, num_heads = 256, 16, 32, 4

    key = jax.random.PRNGKey(0)
    k_h, k_w = jax.random.split(key)
    h = jax.random.normal(k_h, (N, in_dim), dtype=jnp.float32)
    bound = 1.0 / (in_dim ** 0.5)
    weights = jax.random.uniform(
        k_w, (num_heads, out_dim, in_dim), dtype=jnp.float32,
        minval=-bound, maxval=bound,
    )

    out = multi_head_gat_forward(h, weights, merge="cat")
    out = jax.block_until_ready(out)

    ref = _reference(h, weights, merge="cat")
    assert out.shape == (N, num_heads * out_dim)
    # bf16 projection / MXU matmuls / bf16 exp -> loosened tolerance vs f32.
    err = float(jnp.max(jnp.abs(out - ref)))
    assert jnp.allclose(out, ref, atol=5e-2, rtol=5e-2), err

    print("KERNEL_OK")
</pallas_src>

<mosaic_0001>
module attributes {stable_mosaic.version = 11 : i64} {
  func.func @_mhgat_kernel(%arg0: i32, %arg1: i32, %arg2: memref<4x128x32xbf16, #tpu.memory_space<vmem>>, %arg3: memref<4x256x32xbf16, #tpu.memory_space<vmem>>, %arg4: memref<128x128xf32, #tpu.memory_space<vmem>>, %arg5: memref<4x128x1xf32, #tpu.memory_space<vmem>>, %arg6: memref<4x128x1xf32, #tpu.memory_space<vmem>>, %arg7: memref<4x128x32xf32, #tpu.memory_space<vmem>>) attributes {dimension_semantics = [#tpu.dimension_semantics<parallel>, #tpu.dimension_semantics<arbitrary>], iteration_bounds = array<i64: 2, 1>, scalar_prefetch = 0 : i64, scratch_operands = 3 : i64, tpu.core_type = #tpu.core_type<tc>, window_params = [{transform_indices = @transform_0, window_bounds = array<i64: 4, 128, 32>}, {transform_indices = @transform_1, window_bounds = array<i64: 4, 256, 32>}, {transform_indices = @transform_2, window_bounds = array<i64: 128, 128>}]} {
    %c0_i32 = arith.constant 0 : i32
    %0 = arith.cmpi eq, %arg1, %c0_i32 : i32
    %1 = arith.extui %0 : i1 to i32
    %c0_i32_0 = arith.constant 0 : i32
    %2 = arith.cmpi ne, %1, %c0_i32_0 : i32
    scf.if %2 {
      %cst_53 = arith.constant 0xFF800000 : f32
      %59 = vector.broadcast %cst_53 : f32 to vector<4x128x1xf32>
      %c0_54 = arith.constant 0 : index
      %c0_55 = arith.constant 0 : index
      %c0_56 = arith.constant 0 : index
      %60 = vector.load %arg5[%c0_54, %c0_55, %c0_56] : memref<4x128x1xf32, #tpu.memory_space<vmem>>, vector<4x128x1xf32>
      tpu.vector_store %arg5[%c0_54, %c0_55, %c0_56], %59 {strides = array<i32>} : memref<4x128x1xf32, #tpu.memory_space<vmem>>, vector<4x128x1xf32>,
      %cst_57 = arith.constant 0.000000e+00 : f32
      %61 = vector.broadcast %cst_57 : f32 to vector<4x128x1xf32>
      %c0_58 = arith.constant 0 : index
      %c0_59 = arith.constant 0 : index
      %c0_60 = arith.constant 0 : index
      %62 = vector.load %arg6[%c0_58, %c0_59, %c0_60] : memref<4x128x1xf32, #tpu.memory_space<vmem>>, vector<4x128x1xf32>
      tpu.vector_store %arg6[%c0_58, %c0_59, %c0_60], %61 {strides = array<i32>} : memref<4x128x1xf32, #tpu.memory_space<vmem>>, vector<4x128x1xf32>,
      %cst_61 = arith.constant 0.000000e+00 : f32
      %63 = vector.broadcast %cst_61 : f32 to vector<4x128x32xf32>
      %c0_62 = arith.constant 0 : index
      %c0_63 = arith.constant 0 : index
      %c0_64 = arith.constant 0 : index
      %64 = vector.load %arg7[%c0_62, %c0_63, %c0_64] : memref<4x128x32xf32, #tpu.memory_space<vmem>>, vector<4x128x32xf32>
      tpu.vector_store %arg7[%c0_62, %c0_63, %c0_64], %63 {strides = array<i32>} : memref<4x128x32xf32, #tpu.memory_space<vmem>>, vector<4x128x32xf32>,
    } else {
    }
    %c0 = arith.constant 0 : index
    %c0_1 = arith.constant 0 : index
    %c0_2 = arith.constant 0 : index
    %3 = vector.load %arg2[%c0, %c0_1, %c0_2] : memref<4x128x32xbf16, #tpu.memory_space<vmem>>, vector<4x128x32xbf16>
    %c0_3 = arith.constant 0 : index
    %c0_4 = arith.constant 0 : index
    %c0_5 = arith.constant 0 : index
    %4 = vector.load %arg3[%c0_3, %c0_4, %c0_5] : memref<4x256x32xbf16, #tpu.memory_space<vmem>>, vector<4x128x32xbf16>
    "tpu.trace_start"() <{level = 10 : i32, message = "hqd,hkd->hqk"}> : () -> ()
    %cst = arith.constant dense<0.000000e+00> : vector<4x128x128xf32>
    %5 = tpu.matmul %3, %4, %cst {dimension_numbers = #tpu.dot_dimension_numbers<[2], [2], [1], [1], [0, 0, 0, 1, 1, 1], [0], [0]>} : vector<4x128x32xbf16>, vector<4x128x32xbf16>, vector<4x128x128xf32> -> vector<4x128x128xf32>
    "tpu.trace_stop"() : () -> ()
    %c0_6 = arith.constant 0 : index
    %c0_7 = arith.constant 0 : index
    %c0_8 = arith.constant 0 : index
    %6 = vector.load %arg5[%c0_6, %c0_7, %c0_8] : memref<4x128x1xf32, #tpu.memory_space<vmem>>, vector<4x128x1xf32>
    %cst_9 = arith.constant dense<0xFF800000> : vector<4x128xf32>
    %7 = vector.multi_reduction <maximumf>, %5, %cst_9 [2] : vector<4x128x128xf32> to vector<4x128xf32>
    %8 = vector.shape_cast %7 : vector<4x128xf32> to vector<4x128x1xf32>
    %9 = arith.maximumf %6, %8 : vector<4x128x1xf32>
    %10 = arith.subf %6, %9 : vector<4x128x1xf32>
    %11 = math.exp %10 : vector<4x128x1xf32>
    %12 = vector.broadcast %9 : vector<4x128x1xf32> to vector<4x128x128xf32>
    %13 = arith.subf %5, %12 : vector<4x128x128xf32>
    %14 = arith.truncf %13 : vector<4x128x128xf32> to vector<4x128x128xbf16>
    %15 = math.exp %14 : vector<4x128x128xbf16>
    %c0_10 = arith.constant 0 : index
    %c0_11 = arith.constant 0 : index
    %c0_12 = arith.constant 0 : index
    %16 = vector.load %arg6[%c0_10, %c0_11, %c0_12] : memref<4x128x1xf32, #tpu.memory_space<vmem>>, vector<4x128x1xf32>
    %17 = arith.mulf %11, %16 : vector<4x128x1xf32>
    %18 = arith.extf %15 : vector<4x128x128xbf16> to vector<4x128x128xf32>
    %cst_13 = arith.constant dense<0.000000e+00> : vector<4x128xf32>
    %19 = vector.multi_reduction <add>, %18, %cst_13 [2] : vector<4x128x128xf32> to vector<4x128xf32>
    %20 = vector.shape_cast %19 : vector<4x128xf32> to vector<4x128x1xf32>
    %21 = arith.addf %17, %20 : vector<4x128x1xf32>
    %c0_14 = arith.constant 0 : index
    %c0_15 = arith.constant 0 : index
    %c0_16 = arith.constant 0 : index
    %22 = vector.load %arg6[%c0_14, %c0_15, %c0_16] : memref<4x128x1xf32, #tpu.memory_space<vmem>>, vector<4x128x1xf32>
    tpu.vector_store %arg6[%c0_14, %c0_15, %c0_16], %21 {strides = array<i32>} : memref<4x128x1xf32, #tpu.memory_space<vmem>>, vector<4x128x1xf32>,
    %c0_17 = arith.constant 0 : index
    %c0_18 = arith.constant 0 : index
    %c0_19 = arith.constant 0 : index
    %23 = vector.load %arg7[%c0_17, %c0_18, %c0_19] : memref<4x128x32xf32, #tpu.memory_space<vmem>>, vector<4x128x32xf32>
    %24 = vector.broadcast %11 : vector<4x128x1xf32> to vector<4x128x32xf32>
    %25 = arith.mulf %24, %23 : vector<4x128x32xf32>
    "tpu.trace_start"() <{level = 10 : i32, message = "hqk,hkd->hqd"}> : () -> ()
    %cst_20 = arith.constant dense<0.000000e+00> : vector<4x128x32xf32>
    %26 = tpu.matmul %15, %4, %cst_20 {dimension_numbers = #tpu.dot_dimension_numbers<[2], [1], [1], [2], [0, 0, 0, 1, 1, 2], [0], [0]>} : vector<4x128x128xbf16>, vector<4x128x32xbf16>, vector<4x128x32xf32> -> vector<4x128x32xf32>
    "tpu.trace_stop"() : () -> ()
    %27 = arith.addf %25, %26 : vector<4x128x32xf32>
    %c0_21 = arith.constant 0 : index
    %c0_22 = arith.constant 0 : index
    %c0_23 = arith.constant 0 : index
    %28 = vector.load %arg7[%c0_21, %c0_22, %c0_23] : memref<4x128x32xf32, #tpu.memory_space<vmem>>, vector<4x128x32xf32>
    tpu.vector_store %arg7[%c0_21, %c0_22, %c0_23], %27 {strides = array<i32>} : memref<4x128x32xf32, #tpu.memory_space<vmem>>, vector<4x128x32xf32>,
    %c0_24 = arith.constant 0 : index
    %c0_25 = arith.constant 0 : index
    %c0_26 = arith.constant 0 : index
    %29 = vector.load %arg5[%c0_24, %c0_25, %c0_26] : memref<4x128x1xf32, #tpu.memory_space<vmem>>, vector<4x128x1xf32>
    tpu.vector_store %arg5[%c0_24, %c0_25, %c0_26], %9 {strides = array<i32>} : memref<4x128x1xf32, #tpu.memory_space<vmem>>, vector<4x128x1xf32>,
    %c0_27 = arith.constant 0 : index
    %c128 = arith.constant 128 : index
    %c0_28 = arith.constant 0 : index
    %30 = vector.load %arg3[%c0_27, %c128, %c0_28] : memref<4x256x32xbf16, #tpu.memory_space<vmem>>, vector<4x128x32xbf16>
    "tpu.trace_start"() <{level = 10 : i32, message = "hqd,hkd->hqk"}> : () -> ()
    %cst_29 = arith.constant dense<0.000000e+00> : vector<4x128x128xf32>
    %31 = tpu.matmul %3, %30, %cst_29 {dimension_numbers = #tpu.dot_dimension_numbers<[2], [2], [1], [1], [0, 0, 0, 1, 1, 1], [0], [0]>} : vector<4x128x32xbf16>, vector<4x128x32xbf16>, vector<4x128x128xf32> -> vector<4x128x128xf32>
    "tpu.trace_stop"() : () -> ()
    %c0_30 = arith.constant 0 : index
    %c0_31 = arith.constant 0 : index
    %c0_32 = arith.constant 0 : index
    %32 = vector.load %arg5[%c0_30, %c0_31, %c0_32] : memref<4x128x1xf32, #tpu.memory_space<vmem>>, vector<4x128x1xf32>
    %cst_33 = arith.constant dense<0xFF800000> : vector<4x128xf32>
    %33 = vector.multi_reduction <maximumf>, %31, %cst_33 [2] : vector<4x128x128xf32> to vector<4x128xf32>
    %34 = vector.shape_cast %33 : vector<4x128xf32> to vector<4x128x1xf32>
    %35 = arith.maximumf %32, %34 : vector<4x128x1xf32>
    %36 = arith.subf %32, %35 : vector<4x128x1xf32>
    %37 = math.exp %36 : vector<4x128x1xf32>
    %38 = vector.broadcast %35 : vector<4x128x1xf32> to vector<4x128x128xf32>
    %39 = arith.subf %31, %38 : vector<4x128x128xf32>
    %40 = arith.truncf %39 : vector<4x128x128xf32> to vector<4x128x128xbf16>
    %41 = math.exp %40 : vector<4x128x128xbf16>
    %c0_34 = arith.constant 0 : index
    %c0_35 = arith.constant 0 : index
    %c0_36 = arith.constant 0 : index
    %42 = vector.load %arg6[%c0_34, %c0_35, %c0_36] : memref<4x128x1xf32, #tpu.memory_space<vmem>>, vector<4x128x1xf32>
    %43 = arith.mulf %37, %42 : vector<4x128x1xf32>
    %44 = arith.extf %41 : vector<4x128x128xbf16> to vector<4x128x128xf32>
    %cst_37 = arith.constant dense<0.000000e+00> : vector<4x128xf32>
    %45 = vector.multi_reduction <add>, %44, %cst_37 [2] : vector<4x128x128xf32> to vector<4x128xf32>
    %46 = vector.shape_cast %45 : vector<4x128xf32> to vector<4x128x1xf32>
    %47 = arith.addf %43, %46 : vector<4x128x1xf32>
    %c0_38 = arith.constant 0 : index
    %c0_39 = arith.constant 0 : index
    %c0_40 = arith.constant 0 : index
    %48 = vector.load %arg6[%c0_38, %c0_39, %c0_40] : memref<4x128x1xf32, #tpu.memory_space<vmem>>, vector<4x128x1xf32>
    tpu.vector_store %arg6[%c0_38, %c0_39, %c0_40], %47 {strides = array<i32>} : memref<4x128x1xf32, #tpu.memory_space<vmem>>, vector<4x128x1xf32>,
    %c0_41 = arith.constant 0 : index
    %c0_42 = arith.constant 0 : index
    %c0_43 = arith.constant 0 : index
    %49 = vector.load %arg7[%c0_41, %c0_42, %c0_43] : memref<4x128x32xf32, #tpu.memory_space<vmem>>, vector<4x128x32xf32>
    %50 = vector.broadcast %37 : vector<4x128x1xf32> to vector<4x128x32xf32>
    %51 = arith.mulf %50, %49 : vector<4x128x32xf32>
    "tpu.trace_start"() <{level = 10 : i32, message = "hqk,hkd->hqd"}> : () -> ()
    %cst_44 = arith.constant dense<0.000000e+00> : vector<4x128x32xf32>
    %52 = tpu.matmul %41, %30, %cst_44 {dimension_numbers = #tpu.dot_dimension_numbers<[2], [1], [1], [2], [0, 0, 0, 1, 1, 2], [0], [0]>} : vector<4x128x128xbf16>, vector<4x128x32xbf16>, vector<4x128x32xf32> -> vector<4x128x32xf32>
    "tpu.trace_stop"() : () -> ()
    %53 = arith.addf %51, %52 : vector<4x128x32xf32>
    %c0_45 = arith.constant 0 : index
    %c0_46 = arith.constant 0 : index
    %c0_47 = arith.constant 0 : index
    %54 = vector.load %arg7[%c0_45, %c0_46, %c0_47] : memref<4x128x32xf32, #tpu.memory_space<vmem>>, vector<4x128x32xf32>
    tpu.vector_store %arg7[%c0_45, %c0_46, %c0_47], %53 {strides = array<i32>} : memref<4x128x32xf32, #tpu.memory_space<vmem>>, vector<4x128x32xf32>,
    %c0_48 = arith.constant 0 : index
    %c0_49 = arith.constant 0 : index
    %c0_50 = arith.constant 0 : index
    %55 = vector.load %arg5[%c0_48, %c0_49, %c0_50] : memref<4x128x1xf32, #tpu.memory_space<vmem>>, vector<4x128x1xf32>
    tpu.vector_store %arg5[%c0_48, %c0_49, %c0_50], %35 {strides = array<i32>} : memref<4x128x1xf32, #tpu.memory_space<vmem>>, vector<4x128x1xf32>,
    %c0_i32_51 = arith.constant 0 : i32
    %56 = arith.cmpi eq, %arg1, %c0_i32_51 : i32
    %57 = arith.extui %56 : i1 to i32
    %c0_i32_52 = arith.constant 0 : i32
    %58 = arith.cmpi ne, %57, %c0_i32_52 : i32
    scf.if %58 {
      %c0_53 = arith.constant 0 : index
      %c0_54 = arith.constant 0 : index
      %c0_55 = arith.constant 0 : index
      %59 = vector.load %arg7[%c0_53, %c0_54, %c0_55] : memref<4x128x32xf32, #tpu.memory_space<vmem>>, vector<4x128x32xf32>
      %c0_56 = arith.constant 0 : index
      %c0_57 = arith.constant 0 : index
      %c0_58 = arith.constant 0 : index
      %60 = vector.load %arg6[%c0_56, %c0_57, %c0_58] : memref<4x128x1xf32, #tpu.memory_space<vmem>>, vector<4x128x1xf32>
      %61 = vector.broadcast %60 : vector<4x128x1xf32> to vector<4x128x32xf32>
      %62 = arith.divf %59, %61 : vector<4x128x32xf32>
      %63 = vector.extract_strided_slice %62 {offsets = [0, 0, 0], sizes = [1, 128, 32], strides = [1, 1, 1]} : vector<4x128x32xf32> to vector<1x128x32xf32>
      %64 = vector.shape_cast %63 : vector<1x128x32xf32> to vector<128x32xf32>
      %65 = vector.extract_strided_slice %62 {offsets = [1, 0, 0], sizes = [1, 128, 32], strides = [1, 1, 1]} : vector<4x128x32xf32> to vector<1x128x32xf32>
      %66 = vector.shape_cast %65 : vector<1x128x32xf32> to vector<128x32xf32>
      %67 = vector.extract_strided_slice %62 {offsets = [2, 0, 0], sizes = [1, 128, 32], strides = [1, 1, 1]} : vector<4x128x32xf32> to vector<1x128x32xf32>
      %68 = vector.shape_cast %67 : vector<1x128x32xf32> to vector<128x32xf32>
      %69 = vector.extract_strided_slice %62 {offsets = [3, 0, 0], sizes = [1, 128, 32], strides = [1, 1, 1]} : vector<4x128x32xf32> to vector<1x128x32xf32>
      %70 = vector.shape_cast %69 : vector<1x128x32xf32> to vector<128x32xf32>
      %71 = tpu.concatenate %64, %66, %68, %70 in 1 : vector<128x32xf32>, vector<128x32xf32>, vector<128x32xf32>, vector<128x32xf32> -> vector<128x128xf32>
      %c0_59 = arith.constant 0 : index
      %c0_60 = arith.constant 0 : index
      %72 = vector.load %arg4[%c0_59, %c0_60] : memref<128x128xf32, #tpu.memory_space<vmem>>, vector<128x128xf32>
      tpu.vector_store %arg4[%c0_59, %c0_60], %71 {strides = array<i32>} : memref<128x128xf32, #tpu.memory_space<vmem>>, vector<128x128xf32>,
    } else {
    }
    return
  }
  func.func @transform_0(%arg0: i32, %arg1: i32) -> (i32, i32, i32) {
    %c0_i32 = arith.constant 0 : i32
    %c0_i32_0 = arith.constant 0 : i32
    %c0_i32_1 = arith.constant 0 : i32
    return %c0_i32, %arg0, %c0_i32_0 : i32, i32, i32
  }
  func.func @transform_1(%arg0: i32, %arg1: i32) -> (i32, i32, i32) {
    %c0_i32 = arith.constant 0 : i32
    %c0_i32_0 = arith.constant 0 : i32
    %c0_i32_1 = arith.constant 0 : i32
    return %c0_i32, %arg1, %c0_i32_0 : i32, i32, i32
  }
  func.func @transform_2(%arg0: i32, %arg1: i32) -> (i32, i32) {
    %c0_i32 = arith.constant 0 : i32
    %c0_i32_0 = arith.constant 0 : i32
    return %arg0, %c0_i32 : i32, i32
  }
}

</mosaic_0001>

<llo_original>
// kernel: tpu_custom_call.1
$region0: #{tpu_custom_call.1}
  #allocation0 [shape = 'u32[]', space=smem, size = 0x4, offset = 0x4, fixed_abs, tag = 'smem constant byte address 0x4 - core index']
  #allocation1 [shape = 'u32[144,128]{1,0:T(1,128)}', space=vmem, size = 0x12000, scoped, tag = 'internal scratch']
  #allocation2 [shape = 'f32[4,128,1]{2,1,0:T(8,128)}', space=vmem, size = 0x40000, scoped, tag = 'scratch operand']
  #allocation3 [shape = 'f32[4,128,1]{2,1,0:T(8,128)}', space=vmem, size = 0x40000, scoped, tag = 'scratch operand']
  #allocation4 [shape = 'f32[4,128,32]{2,1,0:T(8,128)}', space=vmem, size = 0x40000, scoped, tag = 'scratch operand']
  %s0 = inlined_call_operand.vmem [shape: bf16[4,256,32], index: 0, kind: input, shape index: {}]
  %s1 = inlined_call_operand.vmem [shape: bf16[4,256,32], index: 1, kind: input, shape index: {}]
  %s2 = inlined_call_operand.hbm [shape: f32[256,128], index: 2, kind: output, shape index: {}]
  %s3 = sld [smem:[#allocation0]]
  $region90: #{tpu_custom_call.1} parent=0
    _
  %s5 = ssub.s32 1, %s3
  %s6 = scalar_select 0, %s5, %s3
  $region1: #{tpu_custom_call.1} parent=0
    #allocation5 [shape = 'u8[262144]{0}', space=vmem, size = 0x40000, scoped, tag = 'input window, operand 0']
    #allocation6 [shape = 'u8[131072]{0}', space=vmem, size = 0x20000, scoped, tag = 'output window, operand 0']
    #allocation7 [shape = 's32[2]{0}', space=sflag, size = 0x8, scoped, tag = 'scoped memory for tpu_custom_call.1']
    %7 = vsyncpa [#allocation7], 0
    %s8 = scalar_lea.sflag [#allocation7], 1
    %9 = vsyncpa %s8, 0
    loop: start=0, step=1, limit=4
    $region2: #{tpu_custom_call.1} parent=1 // loop_pre_header
      _
    $region3: #{tpu_custom_call.1} parent=1 // loop_header
      %s11 = sphi 0, %s15
      %p12 = scmp.ge.s32.totalorder %s11, 4
      %s18 = sphi 0, %s30
      %s19 = sphi 0, %s26
      %s20 = sphi 0, %s18
      %s21 = sphi 0, %s19
      %s22 = sphi 0, %s20
      %s23 = sphi 0, %s21
      %s33 = sphi 0, %s35
      %s36 = sphi 0, %s33
      %s37 = sphi 0, %s36
      %s53 = sphi 0, %s37
      %s59 = sphi 0, %s61
      %s62 = sphi 0, %s59
      %s63 = sphi 0, %s62
      %s79 = sphi 0, %s63
      %s85 = sphi 0, %s87
      %s88 = sphi 0, %s85
      %s89 = sphi 0, %s88
      %s105 = sphi 0, %s89
    $region4: #{tpu_custom_call.1} parent=1 // loop_header_branch
      %14 = sbr.rel (%p12) target = $region8
    $region5: #{tpu_custom_call.1} parent=1 // loop_body
      %s16 = ssub.s32 %s11, 1
      %s17 = ssub.s32 %s11, 2
      %s24 = sadd.s32 1, %s19
      %p25 = scmp.ge.s32.totalorder %s24, 1
      %s26 = scalar_select %p25, 0, %s24
      %s27 = sadd.s32 1, %s18
      %s28 = scalar_select %p25, %s27, %s18
      %p29 = scmp.ge.s32.totalorder %s28, 2
      %s30 = scalar_select %p29, 0, %s28
      %s31 = ssub.s32 %s18, %s30
      %p32 = scmp.eq.s32.totalorder %s31, 0
      %s34 = sadd.s32 %s33, 1
      %s35 = scalar_select %p32, %s33, %s34
      %p38 = pneg %p32
      %p39 = scmp.eq.s32.totalorder %s11, 1
      %p40 = por %p38, %p39
      %p41 = scmp.ne.s32.totalorder %s33, %s36
      %p42 = scmp.eq.s32.totalorder %s11, 0
      %p43 = por %p41, %p42
      %p44 = scmp.ne.s32.totalorder %s33, %s36
      %p45 = scmp.eq.s32.totalorder %s16, 1
      %p46 = por %p44, %p45
      %p47 = scmp.ne.s32.totalorder %s36, %s37
      %p48 = scmp.eq.s32.totalorder %s16, 0
      %p49 = por %p47, %p48
      %p50 = scmp.ne.s32.totalorder %s36, %s37
      %p51 = scmp.eq.s32.totalorder %s17, 1
      %p52 = por %p50, %p51
      %p54 = scmp.ne.s32.totalorder %s37, %s53
      %p55 = scmp.eq.s32.totalorder %s17, 0
      %p56 = por %p54, %p55
      %s57 = ssub.s32 %s19, %s26
      %p58 = scmp.eq.s32.totalorder %s57, 0
      %s60 = sadd.s32 %s59, 1
      %s61 = scalar_select %p58, %s59, %s60
      %p64 = pneg %p58
      %p65 = scmp.eq.s32.totalorder %s11, 1
      %p66 = por %p64, %p65
      %p67 = scmp.ne.s32.totalorder %s59, %s62
      %p68 = scmp.eq.s32.totalorder %s11, 0
      %p69 = por %p67, %p68
      %p70 = scmp.ne.s32.totalorder %s59, %s62
      %p71 = scmp.eq.s32.totalorder %s16, 1
      %p72 = por %p70, %p71
      %p73 = scmp.ne.s32.totalorder %s62, %s63
      %p74 = scmp.eq.s32.totalorder %s16, 0
      %p75 = por %p73, %p74
      %p76 = scmp.ne.s32.totalorder %s62, %s63
      %p77 = scmp.eq.s32.totalorder %s17, 1
      %p78 = por %p76, %p77
      %p80 = scmp.ne.s32.totalorder %s63, %s79
      %p81 = scmp.eq.s32.totalorder %s17, 0
      %p82 = por %p80, %p81
      %s83 = ssub.s32 %s18, %s30
      %p84 = scmp.eq.s32.totalorder %s83, 0
      %s86 = sadd.s32 %s85, 1
      %s87 = scalar_select %p84, %s85, %s86
      %p90 = pneg %p84
      %p91 = scmp.eq.s32.totalorder %s11, 1
      %p92 = por %p90, %p91
      %p93 = scmp.ne.s32.totalorder %s85, %s88
      %p94 = scmp.eq.s32.totalorder %s11, 0
      %p95 = por %p93, %p94
      %p96 = scmp.ne.s32.totalorder %s85, %s88
      %p97 = scmp.eq.s32.totalorder %s16, 1
      %p98 = por %p96, %p97
      %p99 = scmp.ne.s32.totalorder %s88, %s89
      %p100 = scmp.eq.s32.totalorder %s16, 0
      %p101 = por %p99, %p100
      %p102 = scmp.ne.s32.totalorder %s88, %s89
      %p103 = scmp.eq.s32.totalorder %s17, 1
      %p104 = por %p102, %p103
      %p106 = scmp.ne.s32.totalorder %s89, %s105
      %p107 = scmp.eq.s32.totalorder %s17, 0
      %p108 = por %p106, %p107
      %p109 = scmp.le.s32.totalorder 1, %s11
      %p110 = scmp.lt.s32.totalorder %s11, 3
      %p111 = pnand %p109, %p110
      %p112 = pneg %p111
      // Predicated region
      $region9: #{tpu_custom_call.1} parent=5 // pred_check
        _
      $region10: #{tpu_custom_call.1} parent=5 // pred_check_branch
        %114 = sbr.rel (%p111) target = $region12
      $region11: #{tpu_custom_call.1} parent=5 // pred_region
        %s115 = ssub.s32 %s11, 1
        // Predicated region
        $region13: #{tpu_custom_call.1} parent=11 // pred_check
          %p116 = pneg %p75
        $region14: #{tpu_custom_call.1} parent=11 // pred_check_branch
          %118 = sbr.rel (%p116) target = $region16
        $region15: #{tpu_custom_call.1} parent=11 // pred_region
          %s119 = smul.u32 32, %s21
          %p120 = scmp.lt.s32.totalorder %s119, 31
          %s121 = scalar_select %p120, %s119, 31
          %s122 = smul.addr %s121, 4
          %s123 = scalar_lea.vmem %s1, %s122
          %s124 = smul.u32 32, %s21
        $region16: #{tpu_custom_call.1} parent=11 // pred_fallthru
          _
      $region12: #{tpu_custom_call.1} parent=5 // pred_fallthru
        _
      %p125 = scmp.lt.s32.totalorder %s11, 2
      // Predicated region
      $region17: #{tpu_custom_call.1} parent=5 // pred_check
        %p126 = pneg %p125
      $region18: #{tpu_custom_call.1} parent=5 // pred_check_branch
        %128 = sbr.rel (%p126) target = $region20
      $region19: #{tpu_custom_call.1} parent=5 // pred_region
        // Predicated region
        $region21: #{tpu_custom_call.1} parent=19 // pred_check
          %p129 = pneg %p43
        $region22: #{tpu_custom_call.1} parent=19 // pred_check_branch
          %131 = sbr.rel (%p129) target = $region24
        $region23: #{tpu_custom_call.1} parent=19 // pred_region
          %s132 = sand.u32 %s33, 1
          %s133 = sand.u32 %s33, 1
          %s134 = smul.addr %s133, 256
          %s135 = scalar_lea.vmem [#allocation5], %s134
          %s136 = smul.u32 16, %s18
          %s137 = smul.addr %s136, 4
          %s138 = scalar_lea.vmem %s0, %s137
          // Predicated region
          $region25: #{tpu_custom_call.1} parent=23 // pred_check
            _
          $region26: #{tpu_custom_call.1} parent=23 // pred_check_branch
            %140 = sbr.rel (0) target = $region28
          $region27: #{tpu_custom_call.1} parent=23 // pred_region
            // Predicated region
            $region29: #{tpu_custom_call.1} parent=27 // pred_check
              _
            $region30: #{tpu_custom_call.1} parent=27 // pred_check_branch
              %142 = sbr.rel target = $region32
            $region31: #{tpu_custom_call.1} parent=27 // pred_region
              // Predicated region
              $region44: #{tpu_custom_call.1} parent=31 // pred_check
                _
              $region45: #{tpu_custom_call.1} parent=31 // pred_check_branch
                %283 = sbr.rel (0) target = $region47
              $region46: #{tpu_custom_call.1} parent=31 // pred_region
                loop: start=0, step=1, limit=1
                $region48: #{tpu_custom_call.1} parent=46 // loop_pre_header
                  _
                $region49: #{tpu_custom_call.1} parent=46 // loop_header
                  %s285 = sphi 0, %s289
                  %p286 = scmp.ge.s32.totalorder %s285, 1
                  %s290 = sphi %s138, %s138
                  %s291 = sphi %s135, %s135
                $region50: #{tpu_custom_call.1} parent=46 // loop_header_branch
                  %288 = sbr.rel (%p286) target = $region54
                $region51: #{tpu_custom_call.1} parent=46 // loop_body
                  _
                $region52: #{tpu_custom_call.1} parent=46 // loop_footer
                  %s289 = sadd.s32 1, %s285
                $region53: #{tpu_custom_call.1} parent=46 // loop_footer_branch
                  %284 = sbr.rel target = $region49
                $region54: #{tpu_custom_call.1} parent=46 // loop_exit
                  _
                loop: start=0, step=1, limit=1
                $region55: #{tpu_custom_call.1} parent=46 // loop_pre_header
                  _
                $region56: #{tpu_custom_call.1} parent=46 // loop_header
                  %s294 = sphi 0, %s298
                  %p295 = scmp.ge.s32.totalorder %s294, 1
                  %s299 = sphi %s138, %s138
                  %s300 = sphi %s135, %s135
                $region57: #{tpu_custom_call.1} parent=46 // loop_header_branch
                  %297 = sbr.rel (%p295) target = $region61
                $region58: #{tpu_custom_call.1} parent=46 // loop_body
                  %v301 = vld [vmem:[%s299] sm:$0xf]
                  %302 = vst [vmem:[%s300] sm:$0xf] %v301
                  %v303 = vld [vmem:[%s299 + $0x4] sm:$0xf]
                  %304 = vst [vmem:[%s300 + $0x4] sm:$0xf] %v303
                  %v305 = vld [vmem:[%s299 + $0x8] sm:$0xf]
                  %306 = vst [vmem:[%s300 + $0x8] sm:$0xf] %v305
                  %v307 = vld [vmem:[%s299 + $0xc] sm:$0xf]
                  %308 = vst [vmem:[%s300 + $0xc] sm:$0xf] %v307
                  %v309 = vld [vmem:[%s299 + $0x10] sm:$0xf]
                  %310 = vst [vmem:[%s300 + $0x10] sm:$0xf] %v309
                  %v311 = vld [vmem:[%s299 + $0x14] sm:$0xf]
                  %312 = vst [vmem:[%s300 + $0x14] sm:$0xf] %v311
                  %v313 = vld [vmem:[%s299 + $0x18] sm:$0xf]
                  %314 = vst [vmem:[%s300 + $0x18] sm:$0xf] %v313
                  %v315 = vld [vmem:[%s299 + $0x1c] sm:$0xf]
                  %316 = vst [vmem:[%s300 + $0x1c] sm:$0xf] %v315
                  %v317 = vld [vmem:[%s299 + $0x20] sm:$0xf]
                  %318 = vst [vmem:[%s300 + $0x20] sm:$0xf] %v317
                  %v319 = vld [vmem:[%s299 + $0x24] sm:$0xf]
                  %320 = vst [vmem:[%s300 + $0x24] sm:$0xf] %v319
                  %v321 = vld [vmem:[%s299 + $0x28] sm:$0xf]
                  %322 = vst [vmem:[%s300 + $0x28] sm:$0xf] %v321
                  %v323 = vld [vmem:[%s299 + $0x2c] sm:$0xf]
                  %324 = vst [vmem:[%s300 + $0x2c] sm:$0xf] %v323
                  %v325 = vld [vmem:[%s299 + $0x30] sm:$0xf]
                  %326 = vst [vmem:[%s300 + $0x30] sm:$0xf] %v325
                  %v327 = vld [vmem:[%s299 + $0x34] sm:$0xf]
                  %328 = vst [vmem:[%s300 + $0x34] sm:$0xf] %v327
                  %v329 = vld [vmem:[%s299 + $0x38] sm:$0xf]
                  %330 = vst [vmem:[%s300 + $0x38] sm:$0xf] %v329
                  %v331 = vld [vmem:[%s299 + $0x3c] sm:$0xf]
                  %332 = vst [vmem:[%s300 + $0x3c] sm:$0xf] %v331
                  %v333 = vld [vmem:[%s299 + $0x80] sm:$0xf]
                  %334 = vst [vmem:[%s300 + $0x40] sm:$0xf] %v333
                  %v335 = vld [vmem:[%s299 + $0x84] sm:$0xf]
                  %336 = vst [vmem:[%s300 + $0x44] sm:$0xf] %v335
                  %v337 = vld [vmem:[%s299 + $0x88] sm:$0xf]
                  %338 = vst [vmem:[%s300 + $0x48] sm:$0xf] %v337
                  %v339 = vld [vmem:[%s299 + $0x8c] sm:$0xf]
                  %340 = vst [vmem:[%s300 + $0x4c] sm:$0xf] %v339
                  %v341 = vld [vmem:[%s299 + $0x90] sm:$0xf]
                  %342 = vst [vmem:[%s300 + $0x50] sm:$0xf] %v341
                  %v343 = vld [vmem:[%s299 + $0x94] sm:$0xf]
                  %344 = vst [vmem:[%s300 + $0x54] sm:$0xf] %v343
                  %v345 = vld [vmem:[%s299 + $0x98] sm:$0xf]
                  %346 = vst [vmem:[%s300 + $0x58] sm:$0xf] %v345
                  %v347 = vld [vmem:[%s299 + $0x9c] sm:$0xf]
                  %348 = vst [vmem:[%s300 + $0x5c] sm:$0xf] %v347
                  %v349 = vld [vmem:[%s299 + $0xa0] sm:$0xf]
                  %350 = vst [vmem:[%s300 + $0x60] sm:$0xf] %v349
                  %v351 = vld [vmem:[%s299 + $0xa4] sm:$0xf]
                  %352 = vst [vmem:[%s300 + $0x64] sm:$0xf] %v351
                  %v353 = vld [vmem:[%s299 + $0xa8] sm:$0xf]
                  %354 = vst [vmem:[%s300 + $0x68] sm:$0xf] %v353
                  %v355 = vld [vmem:[%s299 + $0xac] sm:$0xf]
                  %356 = vst [vmem:[%s300 + $0x6c] sm:$0xf] %v355
                  %v357 = vld [vmem:[%s299 + $0xb0] sm:$0xf]
                  %358 = vst [vmem:[%s300 + $0x70] sm:$0xf] %v357
                  %v359 = vld [vmem:[%s299 + $0xb4] sm:$0xf]
                  %360 = vst [vmem:[%s300 + $0x74] sm:$0xf] %v359
                  %v361 = vld [vmem:[%s299 + $0xb8] sm:$0xf]
                  %362 = vst [vmem:[%s300 + $0x78] sm:$0xf] %v361
                  %v363 = vld [vmem:[%s299 + $0xbc] sm:$0xf]
                  %364 = vst [vmem:[%s300 + $0x7c] sm:$0xf] %v363
                  %v365 = vld [vmem:[%s299 + $0x100] sm:$0xf]
                  %366 = vst [vmem:[%s300 + $0x80] sm:$0xf] %v365
                  %v367 = vld [vmem:[%s299 + $0x104] sm:$0xf]
                  %368 = vst [vmem:[%s300 + $0x84] sm:$0xf] %v367
                  %v369 = vld [vmem:[%s299 + $0x108] sm:$0xf]
                  %370 = vst [vmem:[%s300 + $0x88] sm:$0xf] %v369
                  %v371 = vld [vmem:[%s299 + $0x10c] sm:$0xf]
                  %372 = vst [vmem:[%s300 + $0x8c] sm:$0xf] %v371
                  %v373 = vld [vmem:[%s299 + $0x110] sm:$0xf]
                  %374 = vst [vmem:[%s300 + $0x90] sm:$0xf] %v373
                  %v375 = vld [vmem:[%s299 + $0x114] sm:$0xf]
                  %376 = vst [vmem:[%s300 + $0x94] sm:$0xf] %v375
                  %v377 = vld [vmem:[%s299 + $0x118] sm:$0xf]
                  %378 = vst [vmem:[%s300 + $0x98] sm:$0xf] %v377
                  %v379 = vld [vmem:[%s299 + $0x11c] sm:$0xf]
                  %380 = vst [vmem:[%s300 + $0x9c] sm:$0xf] %v379
                  %v381 = vld [vmem:[%s299 + $0x120] sm:$0xf]
                  %382 = vst [vmem:[%s300 + $0xa0] sm:$0xf] %v381
                  %v383 = vld [vmem:[%s299 + $0x124] sm:$0xf]
                  %384 = vst [vmem:[%s300 + $0xa4] sm:$0xf] %v383
                  %v385 = vld [vmem:[%s299 + $0x128] sm:$0xf]
                  %386 = vst [vmem:[%s300 + $0xa8] sm:$0xf] %v385
                  %v387 = vld [vmem:[%s299 + $0x12c] sm:$0xf]
                  %388 = vst [vmem:[%s300 + $0xac] sm:$0xf] %v387
                  %v389 = vld [vmem:[%s299 + $0x130] sm:$0xf]
                  %390 = vst [vmem:[%s300 + $0xb0] sm:$0xf] %v389
                  %v391 = vld [vmem:[%s299 + $0x134] sm:$0xf]
                  %392 = vst [vmem:[%s300 + $0xb4] sm:$0xf] %v391
                  %v393 = vld [vmem:[%s299 + $0x138] sm:$0xf]
                  %394 = vst [vmem:[%s300 + $0xb8] sm:$0xf] %v393
                  %v395 = vld [vmem:[%s299 + $0x13c] sm:$0xf]
                  %396 = vst [vmem:[%s300 + $0xbc] sm:$0xf] %v395
                  %v397 = vld [vmem:[%s299 + $0x180] sm:$0xf]
                  %398 = vst [vmem:[%s300 + $0xc0] sm:$0xf] %v397
                  %v399 = vld [vmem:[%s299 + $0x184] sm:$0xf]
                  %400 = vst [vmem:[%s300 + $0xc4] sm:$0xf] %v399
                  %v401 = vld [vmem:[%s299 + $0x188] sm:$0xf]
                  %402 = vst [vmem:[%s300 + $0xc8] sm:$0xf] %v401
                  %v403 = vld [vmem:[%s299 + $0x18c] sm:$0xf]
                  %404 = vst [vmem:[%s300 + $0xcc] sm:$0xf] %v403
                  %v405 = vld [vmem:[%s299 + $0x190] sm:$0xf]
                  %406 = vst [vmem:[%s300 + $0xd0] sm:$0xf] %v405
                  %v407 = vld [vmem:[%s299 + $0x194] sm:$0xf]
                  %408 = vst [vmem:[%s300 + $0xd4] sm:$0xf] %v407
                  %v409 = vld [vmem:[%s299 + $0x198] sm:$0xf]
                  %410 = vst [vmem:[%s300 + $0xd8] sm:$0xf] %v409
                  %v411 = vld [vmem:[%s299 + $0x19c] sm:$0xf]
                  %412 = vst [vmem:[%s300 + $0xdc] sm:$0xf] %v411
                  %v413 = vld [vmem:[%s299 + $0x1a0] sm:$0xf]
                  %414 = vst [vmem:[%s300 + $0xe0] sm:$0xf] %v413
                  %v415 = vld [vmem:[%s299 + $0x1a4] sm:$0xf]
                  %416 = vst [vmem:[%s300 + $0xe4] sm:$0xf] %v415
                  %v417 = vld [vmem:[%s299 + $0x1a8] sm:$0xf]
                  %418 = vst [vmem:[%s300 + $0xe8] sm:$0xf] %v417
                  %v419 = vld [vmem:[%s299 + $0x1ac] sm:$0xf]
                  %420 = vst [vmem:[%s300 + $0xec] sm:$0xf] %v419
                  %v421 = vld [vmem:[%s299 + $0x1b0] sm:$0xf]
                  %422 = vst [vmem:[%s300 + $0xf0] sm:$0xf] %v421
                  %v423 = vld [vmem:[%s299 + $0x1b4] sm:$0xf]
                  %424 = vst [vmem:[%s300 + $0xf4] sm:$0xf] %v423
                  %v425 = vld [vmem:[%s299 + $0x1b8] sm:$0xf]
                  %426 = vst [vmem:[%s300 + $0xf8] sm:$0xf] %v425
                  %v427 = vld [vmem:[%s299 + $0x1bc] sm:$0xf]
                  %428 = vst [vmem:[%s300 + $0xfc] sm:$0xf] %v427
                $region59: #{tpu_custom_call.1} parent=46 // loop_footer
                  %s298 = sadd.s32 1, %s294
                $region60: #{tpu_custom_call.1} parent=46 // loop_footer_branch
                  %293 = sbr.rel target = $region56
                $region61: #{tpu_custom_call.1} parent=46 // loop_exit
                  _
              $region47: #{tpu_custom_call.1} parent=31 // pred_fallthru
                _
            $region32: #{tpu_custom_call.1} parent=27 // pred_fallthru
              _
            // Predicated region
            $region33: #{tpu_custom_call.1} parent=27 // pred_check
              _
            $region34: #{tpu_custom_call.1} parent=27 // pred_check_branch
              %144 = sbr.rel (0) target = $region36
            $region35: #{tpu_custom_call.1} parent=27 // pred_region
              loop: start=0, step=1, limit=1
              $region37: #{tpu_custom_call.1} parent=35 // loop_pre_header
                _
              $region38: #{tpu_custom_call.1} parent=35 // loop_header
                %s147 = sphi 0, %s151
                %p148 = scmp.ge.s32.totalorder %s147, 1
                %s152 = sphi %s138, %s138
                %s153 = sphi %s135, %s135
              $region39: #{tpu_custom_call.1} parent=35 // loop_header_branch
                %150 = sbr.rel (%p148) target = $region43
              $region40: #{tpu_custom_call.1} parent=35 // loop_body
                %v154 = vld [vmem:[%s152] sm:$0xf]
                %155 = vst [vmem:[%s153] sm:$0xf] %v154
                %v156 = vld [vmem:[%s152 + $0x4] sm:$0xf]
                %157 = vst [vmem:[%s153 + $0x4] sm:$0xf] %v156
                %v158 = vld [vmem:[%s152 + $0x8] sm:$0xf]
                %159 = vst [vmem:[%s153 + $0x8] sm:$0xf] %v158
                %v160 = vld [vmem:[%s152 + $0xc] sm:$0xf]
                %161 = vst [vmem:[%s153 + $0xc] sm:$0xf] %v160
                %v162 = vld [vmem:[%s152 + $0x10] sm:$0xf]
                %163 = vst [vmem:[%s153 + $0x10] sm:$0xf] %v162
                %v164 = vld [vmem:[%s152 + $0x14] sm:$0xf]
                %165 = vst [vmem:[%s153 + $0x14] sm:$0xf] %v164
                %v166 = vld [vmem:[%s152 + $0x18] sm:$0xf]
                %167 = vst [vmem:[%s153 + $0x18] sm:$0xf] %v166
                %v168 = vld [vmem:[%s152 + $0x1c] sm:$0xf]
                %169 = vst [vmem:[%s153 + $0x1c] sm:$0xf] %v168
                %v170 = vld [vmem:[%s152 + $0x20] sm:$0xf]
                %171 = vst [vmem:[%s153 + $0x20] sm:$0xf] %v170
                %v172 = vld [vmem:[%s152 + $0x24] sm:$0xf]
                %173 = vst [vmem:[%s153 + $0x24] sm:$0xf] %v172
                %v174 = vld [vmem:[%s152 + $0x28] sm:$0xf]
                %175 = vst [vmem:[%s153 + $0x28] sm:$0xf] %v174
                %v176 = vld [vmem:[%s152 + $0x2c] sm:$0xf]
                %177 = vst [vmem:[%s153 + $0x2c] sm:$0xf] %v176
                %v178 = vld [vmem:[%s152 + $0x30] sm:$0xf]
                %179 = vst [vmem:[%s153 + $0x30] sm:$0xf] %v178
                %v180 = vld [vmem:[%s152 + $0x34] sm:$0xf]
                %181 = vst [vmem:[%s153 + $0x34] sm:$0xf] %v180
                %v182 = vld [vmem:[%s152 + $0x38] sm:$0xf]
                %183 = vst [vmem:[%s153 + $0x38] sm:$0xf] %v182
                %v184 = vld [vmem:[%s152 + $0x3c] sm:$0xf]
                %185 = vst [vmem:[%s153 + $0x3c] sm:$0xf] %v184
                %v186 = vld [vmem:[%s152 + $0x80] sm:$0xf]
                %187 = vst [vmem:[%s153 + $0x40] sm:$0xf] %v186
                %v188 = vld [vmem:[%s152 + $0x84] sm:$0xf]
                %189 = vst [vmem:[%s153 + $0x44] sm:$0xf] %v188
                %v190 = vld [vmem:[%s152 + $0x88] sm:$0xf]
                %191 = vst [vmem:[%s153 + $0x48] sm:$0xf] %v190
                %v192 = vld [vmem:[%s152 + $0x8c] sm:$0xf]
                %193 = vst [vmem:[%s153 + $0x4c] sm:$0xf] %v192
                %v194 = vld [vmem:[%s152 + $0x90] sm:$0xf]
                %195 = vst [vmem:[%s153 + $0x50] sm:$0xf] %v194
                %v196 = vld [vmem:[%s152 + $0x94] sm:$0xf]
                %197 = vst [vmem:[%s153 + $0x54] sm:$0xf] %v196
                %v198 = vld [vmem:[%s152 + $0x98] sm:$0xf]
                %199 = vst [vmem:[%s153 + $0x58] sm:$0xf] %v198
                %v200 = vld [vmem:[%s152 + $0x9c] sm:$0xf]
                %201 = vst [vmem:[%s153 + $0x5c] sm:$0xf] %v200
                %v202 = vld [vmem:[%s152 + $0xa0] sm:$0xf]
                %203 = vst [vmem:[%s153 + $0x60] sm:$0xf] %v202
                %v204 = vld [vmem:[%s152 + $0xa4] sm:$0xf]
                %205 = vst [vmem:[%s153 + $0x64] sm:$0xf] %v204
                %v206 = vld [vmem:[%s152 + $0xa8] sm:$0xf]
                %207 = vst [vmem:[%s153 + $0x68] sm:$0xf] %v206
                %v208 = vld [vmem:[%s152 + $0xac] sm:$0xf]
                %209 = vst [vmem:[%s153 + $0x6c] sm:$0xf] %v208
                %v210 = vld [vmem:[%s152 + $0xb0] sm:$0xf]
                %211 = vst [vmem:[%s153 + $0x70] sm:$0xf] %v210
                %v212 = vld [vmem:[%s152 + $0xb4] sm:$0xf]
                %213 = vst [vmem:[%s153 + $0x74] sm:$0xf] %v212
                %v214 = vld [vmem:[%s152 + $0xb8] sm:$0xf]
                %215 = vst [vmem:[%s153 + $0x78] sm:$0xf] %v214
                %v216 = vld [vmem:[%s152 + $0xbc] sm:$0xf]
                %217 = vst [vmem:[%s153 + $0x7c] sm:$0xf] %v216
                %v218 = vld [vmem:[%s152 + $0x100] sm:$0xf]
                %219 = vst [vmem:[%s153 + $0x80] sm:$0xf] %v218
                %v220 = vld [vmem:[%s152 + $0x104] sm:$0xf]
                %221 = vst [vmem:[%s153 + $0x84] sm:$0xf] %v220
                %v222 = vld [vmem:[%s152 + $0x108] sm:$0xf]
                %223 = vst [vmem:[%s153 + $0x88] sm:$0xf] %v222
                %v224 = vld [vmem:[%s152 + $0x10c] sm:$0xf]
                %225 = vst [vmem:[%s153 + $0x8c] sm:$0xf] %v224
                %v226 = vld [vmem:[%s152 + $0x110] sm:$0xf]
                %227 = vst [vmem:[%s153 + $0x90] sm:$0xf] %v226
                %v228 = vld [vmem:[%s152 + $0x114] sm:$0xf]
                %229 = vst [vmem:[%s153 + $0x94] sm:$0xf] %v228
                %v230 = vld [vmem:[%s152 + $0x118] sm:$0xf]
                %231 = vst [vmem:[%s153 + $0x98] sm:$0xf] %v230
                %v232 = vld [vmem:[%s152 + $0x11c] sm:$0xf]
                %233 = vst [vmem:[%s153 + $0x9c] sm:$0xf] %v232
                %v234 = vld [vmem:[%s152 + $0x120] sm:$0xf]
                %235 = vst [vmem:[%s153 + $0xa0] sm:$0xf] %v234
                %v236 = vld [vmem:[%s152 + $0x124] sm:$0xf]
                %237 = vst [vmem:[%s153 + $0xa4] sm:$0xf] %v236
                %v238 = vld [vmem:[%s152 + $0x128] sm:$0xf]
                %239 = vst [vmem:[%s153 + $0xa8] sm:$0xf] %v238
                %v240 = vld [vmem:[%s152 + $0x12c] sm:$0xf]
                %241 = vst [vmem:[%s153 + $0xac] sm:$0xf] %v240
                %v242 = vld [vmem:[%s152 + $0x130] sm:$0xf]
                %243 = vst [vmem:[%s153 + $0xb0] sm:$0xf] %v242
                %v244 = vld [vmem:[%s152 + $0x134] sm:$0xf]
                %245 = vst [vmem:[%s153 + $0xb4] sm:$0xf] %v244
                %v246 = vld [vmem:[%s152 + $0x138] sm:$0xf]
                %247 = vst [vmem:[%s153 + $0xb8] sm:$0xf] %v246
                %v248 = vld [vmem:[%s152 + $0x13c] sm:$0xf]
                %249 = vst [vmem:[%s153 + $0xbc] sm:$0xf] %v248
                %v250 = vld [vmem:[%s152 + $0x180] sm:$0xf]
                %251 = vst [vmem:[%s153 + $0xc0] sm:$0xf] %v250
                %v252 = vld [vmem:[%s152 + $0x184] sm:$0xf]
                %253 = vst [vmem:[%s153 + $0xc4] sm:$0xf] %v252
                %v254 = vld [vmem:[%s152 + $0x188] sm:$0xf]
                %255 = vst [vmem:[%s153 + $0xc8] sm:$0xf] %v254
                %v256 = vld [vmem:[%s152 + $0x18c] sm:$0xf]
                %257 = vst [vmem:[%s153 + $0xcc] sm:$0xf] %v256
                %v258 = vld [vmem:[%s152 + $0x190] sm:$0xf]
                %259 = vst [vmem:[%s153 + $0xd0] sm:$0xf] %v258
                %v260 = vld [vmem:[%s152 + $0x194] sm:$0xf]
                %261 = vst [vmem:[%s153 + $0xd4] sm:$0xf] %v260
                %v262 = vld [vmem:[%s152 + $0x198] sm:$0xf]
                %263 = vst [vmem:[%s153 + $0xd8] sm:$0xf] %v262
                %v264 = vld [vmem:[%s152 + $0x19c] sm:$0xf]
                %265 = vst [vmem:[%s153 + $0xdc] sm:$0xf] %v264
                %v266 = vld [vmem:[%s152 + $0x1a0] sm:$0xf]
                %267 = vst [vmem:[%s153 + $0xe0] sm:$0xf] %v266
                %v268 = vld [vmem:[%s152 + $0x1a4] sm:$0xf]
                %269 = vst [vmem:[%s153 + $0xe4] sm:$0xf] %v268
                %v270 = vld [vmem:[%s152 + $0x1a8] sm:$0xf]
                %271 = vst [vmem:[%s153 + $0xe8] sm:$0xf] %v270
                %v272 = vld [vmem:[%s152 + $0x1ac] sm:$0xf]
                %273 = vst [vmem:[%s153 + $0xec] sm:$0xf] %v272
                %v274 = vld [vmem:[%s152 + $0x1b0] sm:$0xf]
                %275 = vst [vmem:[%s153 + $0xf0] sm:$0xf] %v274
                %v276 = vld [vmem:[%s152 + $0x1b4] sm:$0xf]
                %277 = vst [vmem:[%s153 + $0xf4] sm:$0xf] %v276
                %v278 = vld [vmem:[%s152 + $0x1b8] sm:$0xf]
                %279 = vst [vmem:[%s153 + $0xf8] sm:$0xf] %v278
                %v280 = vld [vmem:[%s152 + $0x1bc] sm:$0xf]
                %281 = vst [vmem:[%s153 + $0xfc] sm:$0xf] %v280
              $region41: #{tpu_custom_call.1} parent=35 // loop_footer
                %s151 = sadd.s32 1, %s147
              $region42: #{tpu_custom_call.1} parent=35 // loop_footer_branch
                %146 = sbr.rel target = $region38
              $region43: #{tpu_custom_call.1} parent=35 // loop_exit
                _
            $region36: #{tpu_custom_call.1} parent=27 // pred_fallthru
              _
          $region28: #{tpu_custom_call.1} parent=23 // pred_fallthru
            _
          %429 = vnop
        $region24: #{tpu_custom_call.1} parent=19 // pred_fallthru
          _
      $region20: #{tpu_custom_call.1} parent=5 // pred_fallthru
        _
      %p430 = scmp.le.s32.totalorder 1, %s11
      %p431 = scmp.lt.s32.totalorder %s11, 3
      %p432 = pnand %p430, %p431
      %p433 = pneg %p432
      // Predicated region
      $region62: #{tpu_custom_call.1} parent=5 // pred_check
        _
      $region63: #{tpu_custom_call.1} parent=5 // pred_check_branch
        %435 = sbr.rel (%p432) target = $region65
      $region64: #{tpu_custom_call.1} parent=5 // pred_region
        %s436 = ssub.s32 %s11, 1
        %s437 = sand.u32 %s36, 1
        %s438 = sand.u32 %s36, 1
        %s439 = smul.addr %s438, 256
        %s440 = scalar_lea.vmem [#allocation5], %s439
        // Predicated region
        $region66: #{tpu_custom_call.1} parent=64 // pred_check
          %p441 = pneg %p49
        $region67: #{tpu_custom_call.1} parent=64 // pred_check_branch
          %443 = sbr.rel (%p441) target = $region69
        $region68: #{tpu_custom_call.1} parent=64 // pred_region
          _
        $region69: #{tpu_custom_call.1} parent=64 // pred_fallthru
          _
        %s444 = sand.u32 %s36, 1
        %s445 = sand.u32 %s36, 1
        %s446 = smul.addr %s445, 256
        %s447 = scalar_lea.vmem [#allocation5], %s446
        %p448 = pneg %p49
        %p449 = pneg %p46
        %s450 = smul.u32 32, %s21
        %p451 = scmp.lt.s32.totalorder %s450, 31
        %s452 = scalar_select %p451, %s450, 31
        %s453 = smul.addr %s452, 4
        %s454 = scalar_lea.vmem %s1, %s453
        %p455 = pneg %p75
        %p456 = pneg %p72
        %p457 = pneg %p101
        %p458 = pneg %p98
        %s459 = sand.u32 %s88, 1
        %s460 = scalar_lea.sflag [#allocation7], %s459
        %s461 = sand.u32 %s88, 1
        %s462 = smul.addr %s461, 128
        %s463 = scalar_lea.vmem [#allocation6], %s462
        %s464 = smul.u32 16, %s20
        %s465 = smul.u32 32, %s21
        %p466 = scmp.lt.s32.totalorder %s465, 31
        %s467 = scalar_select %p466, %s465, 31
        %s468 = smul.addr %s467, 4
        %s469 = scalar_lea.vmem %s1, %s468
        %s470 = smul.u32 32, %s21
        %s471 = smul.u32 16, %s20
        %p473 = scmp.eq.s32.totalorder %s21, 0
        // Predicated region
        $region70: #{tpu_custom_call.1} parent=64 // pred_check
          %p474 = pneg %p473
        $region71: #{tpu_custom_call.1} parent=64 // pred_check_branch
          %476 = sbr.rel (%p474) target = $region73
        $region72: #{tpu_custom_call.1} parent=64 // pred_region
          %vm477 = vcmask 7168
          %478 = vst.msk [vmem:[#allocation2] sm:$0xff] %vm477, -inf
          %479 = vst.msk [vmem:[#allocation2 + $0x8] sm:$0xff] %vm477, -inf
          %480 = vst.msk [vmem:[#allocation2 + $0x10] sm:$0xff] %vm477, -inf
          %481 = vst.msk [vmem:[#allocation2 + $0x18] sm:$0xff] %vm477, -inf
          %482 = vst.msk [vmem:[#allocation2 + $0x20] sm:$0xff] %vm477, -inf
          %483 = vst.msk [vmem:[#allocation2 + $0x28] sm:$0xff] %vm477, -inf
          %484 = vst.msk [vmem:[#allocation2 + $0x30] sm:$0xff] %vm477, -inf
          %485 = vst.msk [vmem:[#allocation2 + $0x38] sm:$0xff] %vm477, -inf
          %486 = vst.msk [vmem:[#allocation2 + $0x40] sm:$0xff] %vm477, -inf
          %487 = vst.msk [vmem:[#allocation2 + $0x48] sm:$0xff] %vm477, -inf
          %488 = vst.msk [vmem:[#allocation2 + $0x50] sm:$0xff] %vm477, -inf
          %489 = vst.msk [vmem:[#allocation2 + $0x58] sm:$0xff] %vm477, -inf
          %490 = vst.msk [vmem:[#allocation2 + $0x60] sm:$0xff] %vm477, -inf
          %491 = vst.msk [vmem:[#allocation2 + $0x68] sm:$0xff] %vm477, -inf
          %492 = vst.msk [vmem:[#allocation2 + $0x70] sm:$0xff] %vm477, -inf
          %493 = vst.msk [vmem:[#allocation2 + $0x78] sm:$0xff] %vm477, -inf
          %494 = vst.msk [vmem:[#allocation2 + $0x80] sm:$0xff] %vm477, -inf
          %495 = vst.msk [vmem:[#allocation2 + $0x88] sm:$0xff] %vm477, -inf
          %496 = vst.msk [vmem:[#allocation2 + $0x90] sm:$0xff] %vm477, -inf
          %497 = vst.msk [vmem:[#allocation2 + $0x98] sm:$0xff] %vm477, -inf
          %498 = vst.msk [vmem:[#allocation2 + $0xa0] sm:$0xff] %vm477, -inf
          %499 = vst.msk [vmem:[#allocation2 + $0xa8] sm:$0xff] %vm477, -inf
          %500 = vst.msk [vmem:[#allocation2 + $0xb0] sm:$0xff] %vm477, -inf
          %501 = vst.msk [vmem:[#allocation2 + $0xb8] sm:$0xff] %vm477, -inf
          %502 = vst.msk [vmem:[#allocation2 + $0xc0] sm:$0xff] %vm477, -inf
          %503 = vst.msk [vmem:[#allocation2 + $0xc8] sm:$0xff] %vm477, -inf
          %504 = vst.msk [vmem:[#allocation2 + $0xd0] sm:$0xff] %vm477, -inf
          %505 = vst.msk [vmem:[#allocation2 + $0xd8] sm:$0xff] %vm477, -inf
          %506 = vst.msk [vmem:[#allocation2 + $0xe0] sm:$0xff] %vm477, -inf
          %507 = vst.msk [vmem:[#allocation2 + $0xe8] sm:$0xff] %vm477, -inf
          %508 = vst.msk [vmem:[#allocation2 + $0xf0] sm:$0xff] %vm477, -inf
          %509 = vst.msk [vmem:[#allocation2 + $0xf8] sm:$0xff] %vm477, -inf
          %510 = vst.msk [vmem:[#allocation2 + $0x100] sm:$0xff] %vm477, -inf
          %511 = vst.msk [vmem:[#allocation2 + $0x108] sm:$0xff] %vm477, -inf
          %512 = vst.msk [vmem:[#allocation2 + $0x110] sm:$0xff] %vm477, -inf
          %513 = vst.msk [vmem:[#allocation2 + $0x118] sm:$0xff] %vm477, -inf
          %514 = vst.msk [vmem:[#allocation2 + $0x120] sm:$0xff] %vm477, -inf
          %515 = vst.msk [vmem:[#allocation2 + $0x128] sm:$0xff] %vm477, -inf
          %516 = vst.msk [vmem:[#allocation2 + $0x130] sm:$0xff] %vm477, -inf
          %517 = vst.msk [vmem:[#allocation2 + $0x138] sm:$0xff] %vm477, -inf
          %518 = vst.msk [vmem:[#allocation2 + $0x140] sm:$0xff] %vm477, -inf
          %519 = vst.msk [vmem:[#allocation2 + $0x148] sm:$0xff] %vm477, -inf
          %520 = vst.msk [vmem:[#allocation2 + $0x150] sm:$0xff] %vm477, -inf
          %521 = vst.msk [vmem:[#allocation2 + $0x158] sm:$0xff] %vm477, -inf
          %522 = vst.msk [vmem:[#allocation2 + $0x160] sm:$0xff] %vm477, -inf
          %523 = vst.msk [vmem:[#allocation2 + $0x168] sm:$0xff] %vm477, -inf
          %524 = vst.msk [vmem:[#allocation2 + $0x170] sm:$0xff] %vm477, -inf
          %525 = vst.msk [vmem:[#allocation2 + $0x178] sm:$0xff] %vm477, -inf
          %526 = vst.msk [vmem:[#allocation2 + $0x180] sm:$0xff] %vm477, -inf
          %527 = vst.msk [vmem:[#allocation2 + $0x188] sm:$0xff] %vm477, -inf
          %528 = vst.msk [vmem:[#allocation2 + $0x190] sm:$0xff] %vm477, -inf
          %529 = vst.msk [vmem:[#allocation2 + $0x198] sm:$0xff] %vm477, -inf
          %530 = vst.msk [vmem:[#allocation2 + $0x1a0] sm:$0xff] %vm477, -inf
          %531 = vst.msk [vmem:[#allocation2 + $0x1a8] sm:$0xff] %vm477, -inf
          %532 = vst.msk [vmem:[#allocation2 + $0x1b0] sm:$0xff] %vm477, -inf
          %533 = vst.msk [vmem:[#allocation2 + $0x1b8] sm:$0xff] %vm477, -inf
          %534 = vst.msk [vmem:[#allocation2 + $0x1c0] sm:$0xff] %vm477, -inf
          %535 = vst.msk [vmem:[#allocation2 + $0x1c8] sm:$0xff] %vm477, -inf
          %536 = vst.msk [vmem:[#allocation2 + $0x1d0] sm:$0xff] %vm477, -inf
          %537 = vst.msk [vmem:[#allocation2 + $0x1d8] sm:$0xff] %vm477, -inf
          %538 = vst.msk [vmem:[#allocation2 + $0x1e0] sm:$0xff] %vm477, -inf
          %539 = vst.msk [vmem:[#allocation2 + $0x1e8] sm:$0xff] %vm477, -inf
          %540 = vst.msk [vmem:[#allocation2 + $0x1f0] sm:$0xff] %vm477, -inf
          %541 = vst.msk [vmem:[#allocation2 + $0x1f8] sm:$0xff] %vm477, -inf
          %542 = vst.msk [vmem:[#allocation3] sm:$0xff] %vm477, 0.0
          %543 = vst.msk [vmem:[#allocation3 + $0x8] sm:$0xff] %vm477, 0.0
          %544 = vst.msk [vmem:[#allocation3 + $0x10] sm:$0xff] %vm477, 0.0
          %545 = vst.msk [vmem:[#allocation3 + $0x18] sm:$0xff] %vm477, 0.0
          %546 = vst.msk [vmem:[#allocation3 + $0x20] sm:$0xff] %vm477, 0.0
          %547 = vst.msk [vmem:[#allocation3 + $0x28] sm:$0xff] %vm477, 0.0
          %548 = vst.msk [vmem:[#allocation3 + $0x30] sm:$0xff] %vm477, 0.0
          %549 = vst.msk [vmem:[#allocation3 + $0x38] sm:$0xff] %vm477, 0.0
          %550 = vst.msk [vmem:[#allocation3 + $0x40] sm:$0xff] %vm477, 0.0
          %551 = vst.msk [vmem:[#allocation3 + $0x48] sm:$0xff] %vm477, 0.0
          %552 = vst.msk [vmem:[#allocation3 + $0x50] sm:$0xff] %vm477, 0.0
          %553 = vst.msk [vmem:[#allocation3 + $0x58] sm:$0xff] %vm477, 0.0
          %554 = vst.msk [vmem:[#allocation3 + $0x60] sm:$0xff] %vm477, 0.0
          %555 = vst.msk [vmem:[#allocation3 + $0x68] sm:$0xff] %vm477, 0.0
          %556 = vst.msk [vmem:[#allocation3 + $0x70] sm:$0xff] %vm477, 0.0
          %557 = vst.msk [vmem:[#allocation3 + $0x78] sm:$0xff] %vm477, 0.0
          %558 = vst.msk [vmem:[#allocation3 + $0x80] sm:$0xff] %vm477, 0.0
          %559 = vst.msk [vmem:[#allocation3 + $0x88] sm:$0xff] %vm477, 0.0
          %560 = vst.msk [vmem:[#allocation3 + $0x90] sm:$0xff] %vm477, 0.0
          %561 = vst.msk [vmem:[#allocation3 + $0x98] sm:$0xff] %vm477, 0.0
          %562 = vst.msk [vmem:[#allocation3 + $0xa0] sm:$0xff] %vm477, 0.0
          %563 = vst.msk [vmem:[#allocation3 + $0xa8] sm:$0xff] %vm477, 0.0
          %564 = vst.msk [vmem:[#allocation3 + $0xb0] sm:$0xff] %vm477, 0.0
          %565 = vst.msk [vmem:[#allocation3 + $0xb8] sm:$0xff] %vm477, 0.0
          %566 = vst.msk [vmem:[#allocation3 + $0xc0] sm:$0xff] %vm477, 0.0
          %567 = vst.msk [vmem:[#allocation3 + $0xc8] sm:$0xff] %vm477, 0.0
          %568 = vst.msk [vmem:[#allocation3 + $0xd0] sm:$0xff] %vm477, 0.0
          %569 = vst.msk [vmem:[#allocation3 + $0xd8] sm:$0xff] %vm477, 0.0
          %570 = vst.msk [vmem:[#allocation3 + $0xe0] sm:$0xff] %vm477, 0.0
          %571 = vst.msk [vmem:[#allocation3 + $0xe8] sm:$0xff] %vm477, 0.0
          %572 = vst.msk [vmem:[#allocation3 + $0xf0] sm:$0xff] %vm477, 0.0
          %573 = vst.msk [vmem:[#allocation3 + $0xf8] sm:$0xff] %vm477, 0.0
          %574 = vst.msk [vmem:[#allocation3 + $0x100] sm:$0xff] %vm477, 0.0
          %575 = vst.msk [vmem:[#allocation3 + $0x108] sm:$0xff] %vm477, 0.0
          %576 = vst.msk [vmem:[#allocation3 + $0x110] sm:$0xff] %vm477, 0.0
          %577 = vst.msk [vmem:[#allocation3 + $0x118] sm:$0xff] %vm477, 0.0
          %578 = vst.msk [vmem:[#allocation3 + $0x120] sm:$0xff] %vm477, 0.0
          %579 = vst.msk [vmem:[#allocation3 + $0x128] sm:$0xff] %vm477, 0.0
          %580 = vst.msk [vmem:[#allocation3 + $0x130] sm:$0xff] %vm477, 0.0
          %581 = vst.msk [vmem:[#allocation3 + $0x138] sm:$0xff] %vm477, 0.0
          %582 = vst.msk [vmem:[#allocation3 + $0x140] sm:$0xff] %vm477, 0.0
          %583 = vst.msk [vmem:[#allocation3 + $0x148] sm:$0xff] %vm477, 0.0
          %584 = vst.msk [vmem:[#allocation3 + $0x150] sm:$0xff] %vm477, 0.0
          %585 = vst.msk [vmem:[#allocation3 + $0x158] sm:$0xff] %vm477, 0.0
          %586 = vst.msk [vmem:[#allocation3 + $0x160] sm:$0xff] %vm477, 0.0
          %587 = vst.msk [vmem:[#allocation3 + $0x168] sm:$0xff] %vm477, 0.0
          %588 = vst.msk [vmem:[#allocation3 + $0x170] sm:$0xff] %vm477, 0.0
          %589 = vst.msk [vmem:[#allocation3 + $0x178] sm:$0xff] %vm477, 0.0
          %590 = vst.msk [vmem:[#allocation3 + $0x180] sm:$0xff] %vm477, 0.0
          %591 = vst.msk [vmem:[#allocation3 + $0x188] sm:$0xff] %vm477, 0.0
          %592 = vst.msk [vmem:[#allocation3 + $0x190] sm:$0xff] %vm477, 0.0
          %593 = vst.msk [vmem:[#allocation3 + $0x198] sm:$0xff] %vm477, 0.0
          %594 = vst.msk [vmem:[#allocation3 + $0x1a0] sm:$0xff] %vm477, 0.0
          %595 = vst.msk [vmem:[#allocation3 + $0x1a8] sm:$0xff] %vm477, 0.0
          %596 = vst.msk [vmem:[#allocation3 + $0x1b0] sm:$0xff] %vm477, 0.0
          %597 = vst.msk [vmem:[#allocation3 + $0x1b8] sm:$0xff] %vm477, 0.0
          %598 = vst.msk [vmem:[#allocation3 + $0x1c0] sm:$0xff] %vm477, 0.0
          %599 = vst.msk [vmem:[#allocation3 + $0x1c8] sm:$0xff] %vm477, 0.0
          %600 = vst.msk [vmem:[#allocation3 + $0x1d0] sm:$0xff] %vm477, 0.0
          %601 = vst.msk [vmem:[#allocation3 + $0x1d8] sm:$0xff] %vm477, 0.0
          %602 = vst.msk [vmem:[#allocation3 + $0x1e0] sm:$0xff] %vm477, 0.0
          %603 = vst.msk [vmem:[#allocation3 + $0x1e8] sm:$0xff] %vm477, 0.0
          %604 = vst.msk [vmem:[#allocation3 + $0x1f0] sm:$0xff] %vm477, 0.0
          %605 = vst.msk [vmem:[#allocation3 + $0x1f8] sm:$0xff] %vm477, 0.0
          %vm606 = vcmask 261120
          %607 = vst.msk [vmem:[#allocation4] sm:$0xff] %vm606, 0.0
          %608 = vst.msk [vmem:[#allocation4 + $0x8] sm:$0xff] %vm606, 0.0
          %609 = vst.msk [vmem:[#allocation4 + $0x10] sm:$0xff] %vm606, 0.0
          %610 = vst.msk [vmem:[#allocation4 + $0x18] sm:$0xff] %vm606, 0.0
          %611 = vst.msk [vmem:[#allocation4 + $0x20] sm:$0xff] %vm606, 0.0
          %612 = vst.msk [vmem:[#allocation4 + $0x28] sm:$0xff] %vm606, 0.0
          %613 = vst.msk [vmem:[#allocation4 + $0x30] sm:$0xff] %vm606, 0.0
          %614 = vst.msk [vmem:[#allocation4 + $0x38] sm:$0xff] %vm606, 0.0
          %615 = vst.msk [vmem:[#allocation4 + $0x40] sm:$0xff] %vm606, 0.0
          %616 = vst.msk [vmem:[#allocation4 + $0x48] sm:$0xff] %vm606, 0.0
          %617 = vst.msk [vmem:[#allocation4 + $0x50] sm:$0xff] %vm606, 0.0
          %618 = vst.msk [vmem:[#allocation4 + $0x58] sm:$0xff] %vm606, 0.0
          %619 = vst.msk [vmem:[#allocation4 + $0x60] sm:$0xff] %vm606, 0.0
          %620 = vst.msk [vmem:[#allocation4 + $0x68] sm:$0xff] %vm606, 0.0
          %621 = vst.msk [vmem:[#allocation4 + $0x70] sm:$0xff] %vm606, 0.0
          %622 = vst.msk [vmem:[#allocation4 + $0x78] sm:$0xff] %vm606, 0.0
          %623 = vst.msk [vmem:[#allocation4 + $0x80] sm:$0xff] %vm606, 0.0
          %624 = vst.msk [vmem:[#allocation4 + $0x88] sm:$0xff] %vm606, 0.0
          %625 = vst.msk [vmem:[#allocation4 + $0x90] sm:$0xff] %vm606, 0.0
          %626 = vst.msk [vmem:[#allocation4 + $0x98] sm:$0xff] %vm606, 0.0
          %627 = vst.msk [vmem:[#allocation4 + $0xa0] sm:$0xff] %vm606, 0.0
          %628 = vst.msk [vmem:[#allocation4 + $0xa8] sm:$0xff] %vm606, 0.0
          %629 = vst.msk [vmem:[#allocation4 + $0xb0] sm:$0xff] %vm606, 0.0
          %630 = vst.msk [vmem:[#allocation4 + $0xb8] sm:$0xff] %vm606, 0.0
          %631 = vst.msk [vmem:[#allocation4 + $0xc0] sm:$0xff] %vm606, 0.0
          %632 = vst.msk [vmem:[#allocation4 + $0xc8] sm:$0xff] %vm606, 0.0
          %633 = vst.msk [vmem:[#allocation4 + $0xd0] sm:$0xff] %vm606, 0.0
          %634 = vst.msk [vmem:[#allocation4 + $0xd8] sm:$0xff] %vm606, 0.0
          %635 = vst.msk [vmem:[#allocation4 + $0xe0] sm:$0xff] %vm606, 0.0
          %636 = vst.msk [vmem:[#allocation4 + $0xe8] sm:$0xff] %vm606, 0.0
          %637 = vst.msk [vmem:[#allocation4 + $0xf0] sm:$0xff] %vm606, 0.0
          %638 = vst.msk [vmem:[#allocation4 + $0xf8] sm:$0xff] %vm606, 0.0
          %639 = vst.msk [vmem:[#allocation4 + $0x100] sm:$0xff] %vm606, 0.0
          %640 = vst.msk [vmem:[#allocation4 + $0x108] sm:$0xff] %vm606, 0.0
          %641 = vst.msk [vmem:[#allocation4 + $0x110] sm:$0xff] %vm606, 0.0
          %642 = vst.msk [vmem:[#allocation4 + $0x118] sm:$0xff] %vm606, 0.0
          %643 = vst.msk [vmem:[#allocation4 + $0x120] sm:$0xff] %vm606, 0.0
          %644 = vst.msk [vmem:[#allocation4 + $0x128] sm:$0xff] %vm606, 0.0
          %645 = vst.msk [vmem:[#allocation4 + $0x130] sm:$0xff] %vm606, 0.0
          %646 = vst.msk [vmem:[#allocation4 + $0x138] sm:$0xff] %vm606, 0.0
          %647 = vst.msk [vmem:[#allocation4 + $0x140] sm:$0xff] %vm606, 0.0
          %648 = vst.msk [vmem:[#allocation4 + $0x148] sm:$0xff] %vm606, 0.0
          %649 = vst.msk [vmem:[#allocation4 + $0x150] sm:$0xff] %vm606, 0.0
          %650 = vst.msk [vmem:[#allocation4 + $0x158] sm:$0xff] %vm606, 0.0
          %651 = vst.msk [vmem:[#allocation4 + $0x160] sm:$0xff] %vm606, 0.0
          %652 = vst.msk [vmem:[#allocation4 + $0x168] sm:$0xff] %vm606, 0.0
          %653 = vst.msk [vmem:[#allocation4 + $0x170] sm:$0xff] %vm606, 0.0
          %654 = vst.msk [vmem:[#allocation4 + $0x178] sm:$0xff] %vm606, 0.0
          %655 = vst.msk [vmem:[#allocation4 + $0x180] sm:$0xff] %vm606, 0.0
          %656 = vst.msk [vmem:[#allocation4 + $0x188] sm:$0xff] %vm606, 0.0
          %657 = vst.msk [vmem:[#allocation4 + $0x190] sm:$0xff] %vm606, 0.0
          %658 = vst.msk [vmem:[#allocation4 + $0x198] sm:$0xff] %vm606, 0.0
          %659 = vst.msk [vmem:[#allocation4 + $0x1a0] sm:$0xff] %vm606, 0.0
          %660 = vst.msk [vmem:[#allocation4 + $0x1a8] sm:$0xff] %vm606, 0.0
          %661 = vst.msk [vmem:[#allocation4 + $0x1b0] sm:$0xff] %vm606, 0.0
          %662 = vst.msk [vmem:[#allocation4 + $0x1b8] sm:$0xff] %vm606, 0.0
          %663 = vst.msk [vmem:[#allocation4 + $0x1c0] sm:$0xff] %vm606, 0.0
          %664 = vst.msk [vmem:[#allocation4 + $0x1c8] sm:$0xff] %vm606, 0.0
          %665 = vst.msk [vmem:[#allocation4 + $0x1d0] sm:$0xff] %vm606, 0.0
          %666 = vst.msk [vmem:[#allocation4 + $0x1d8] sm:$0xff] %vm606, 0.0
          %667 = vst.msk [vmem:[#allocation4 + $0x1e0] sm:$0xff] %vm606, 0.0
          %668 = vst.msk [vmem:[#allocation4 + $0x1e8] sm:$0xff] %vm606, 0.0
          %669 = vst.msk [vmem:[#allocation4 + $0x1f0] sm:$0xff] %vm606, 0.0
          %670 = vst.msk [vmem:[#allocation4 + $0x1f8] sm:$0xff] %vm606, 0.0
        $region73: #{tpu_custom_call.1} parent=64 // pred_fallthru
          _
        %v671 = vld [vmem:[%s440] sm:$0xf]
        %v672 = vld [vmem:[%s440 + $0x4] sm:$0xf]
        %v673 = vld [vmem:[%s440 + $0x8] sm:$0xf]
        %v674 = vld [vmem:[%s440 + $0xc] sm:$0xf]
        %v675 = vld [vmem:[%s440 + $0x10] sm:$0xf]
        %v676 = vld [vmem:[%s440 + $0x14] sm:$0xf]
        %v677 = vld [vmem:[%s440 + $0x18] sm:$0xf]
        %v678 = vld [vmem:[%s440 + $0x1c] sm:$0xf]
        %v679 = vld [vmem:[%s440 + $0x20] sm:$0xf]
        %v680 = vld [vmem:[%s440 + $0x24] sm:$0xf]
        %v681 = vld [vmem:[%s440 + $0x28] sm:$0xf]
        %v682 = vld [vmem:[%s440 + $0x2c] sm:$0xf]
        %v683 = vld [vmem:[%s440 + $0x30] sm:$0xf]
        %v684 = vld [vmem:[%s440 + $0x34] sm:$0xf]
        %v685 = vld [vmem:[%s440 + $0x38] sm:$0xf]
        %v686 = vld [vmem:[%s440 + $0x3c] sm:$0xf]
        %v687 = vld [vmem:[%s440 + $0x40] sm:$0xf]
        %v688 = vld [vmem:[%s440 + $0x44] sm:$0xf]
        %v689 = vld [vmem:[%s440 + $0x48] sm:$0xf]
        %v690 = vld [vmem:[%s440 + $0x4c] sm:$0xf]
        %v691 = vld [vmem:[%s440 + $0x50] sm:$0xf]
        %v692 = vld [vmem:[%s440 + $0x54] sm:$0xf]
        %v693 = vld [vmem:[%s440 + $0x58] sm:$0xf]
        %v694 = vld [vmem:[%s440 + $0x5c] sm:$0xf]
        %v695 = vld [vmem:[%s440 + $0x60] sm:$0xf]
        %v696 = vld [vmem:[%s440 + $0x64] sm:$0xf]
        %v697 = vld [vmem:[%s440 + $0x68] sm:$0xf]
        %v698 = vld [vmem:[%s440 + $0x6c] sm:$0xf]
        %v699 = vld [vmem:[%s440 + $0x70] sm:$0xf]
        %v700 = vld [vmem:[%s440 + $0x74] sm:$0xf]
        %v701 = vld [vmem:[%s440 + $0x78] sm:$0xf]
        %v702 = vld [vmem:[%s440 + $0x7c] sm:$0xf]
        %v703 = vld [vmem:[%s440 + $0x80] sm:$0xf]
        %v704 = vld [vmem:[%s440 + $0x84] sm:$0xf]
        %v705 = vld [vmem:[%s440 + $0x88] sm:$0xf]
        %v706 = vld [vmem:[%s440 + $0x8c] sm:$0xf]
        %v707 = vld [vmem:[%s440 + $0x90] sm:$0xf]
        %v708 = vld [vmem:[%s440 + $0x94] sm:$0xf]
        %v709 = vld [vmem:[%s440 + $0x98] sm:$0xf]
        %v710 = vld [vmem:[%s440 + $0x9c] sm:$0xf]
        %v711 = vld [vmem:[%s440 + $0xa0] sm:$0xf]
        %v712 = vld [vmem:[%s440 + $0xa4] sm:$0xf]
        %v713 = vld [vmem:[%s440 + $0xa8] sm:$0xf]
        %v714 = vld [vmem:[%s440 + $0xac] sm:$0xf]
        %v715 = vld [vmem:[%s440 + $0xb0] sm:$0xf]
        %v716 = vld [vmem:[%s440 + $0xb4] sm:$0xf]
        %v717 = vld [vmem:[%s440 + $0xb8] sm:$0xf]
        %v718 = vld [vmem:[%s440 + $0xbc] sm:$0xf]
        %v719 = vld [vmem:[%s440 + $0xc0] sm:$0xf]
        %v720 = vld [vmem:[%s440 + $0xc4] sm:$0xf]
        %v721 = vld [vmem:[%s440 + $0xc8] sm:$0xf]
        %v722 = vld [vmem:[%s440 + $0xcc] sm:$0xf]
        %v723 = vld [vmem:[%s440 + $0xd0] sm:$0xf]
        %v724 = vld [vmem:[%s440 + $0xd4] sm:$0xf]
        %v725 = vld [vmem:[%s440 + $0xd8] sm:$0xf]
        %v726 = vld [vmem:[%s440 + $0xdc] sm:$0xf]
        %v727 = vld [vmem:[%s440 + $0xe0] sm:$0xf]
        %v728 = vld [vmem:[%s440 + $0xe4] sm:$0xf]
        %v729 = vld [vmem:[%s440 + $0xe8] sm:$0xf]
        %v730 = vld [vmem:[%s440 + $0xec] sm:$0xf]
        %v731 = vld [vmem:[%s440 + $0xf0] sm:$0xf]
        %v732 = vld [vmem:[%s440 + $0xf4] sm:$0xf]
        %v733 = vld [vmem:[%s440 + $0xf8] sm:$0xf]
        %v734 = vld [vmem:[%s440 + $0xfc] sm:$0xf]
        %v735 = vld [vmem:[%s469] sm:$0xf]
        %v736 = vld [vmem:[%s469 + $0x4] sm:$0xf]
        %v737 = vld [vmem:[%s469 + $0x8] sm:$0xf]
        %v738 = vld [vmem:[%s469 + $0xc] sm:$0xf]
        %v739 = vld [vmem:[%s469 + $0x10] sm:$0xf]
        %v740 = vld [vmem:[%s469 + $0x14] sm:$0xf]
        %v741 = vld [vmem:[%s469 + $0x18] sm:$0xf]
        %v742 = vld [vmem:[%s469 + $0x1c] sm:$0xf]
        %v743 = vld [vmem:[%s469 + $0x20] sm:$0xf]
        %v744 = vld [vmem:[%s469 + $0x24] sm:$0xf]
        %v745 = vld [vmem:[%s469 + $0x28] sm:$0xf]
        %v746 = vld [vmem:[%s469 + $0x2c] sm:$0xf]
        %v747 = vld [vmem:[%s469 + $0x30] sm:$0xf]
        %v748 = vld [vmem:[%s469 + $0x34] sm:$0xf]
        %v749 = vld [vmem:[%s469 + $0x38] sm:$0xf]
        %v750 = vld [vmem:[%s469 + $0x3c] sm:$0xf]
        %v751 = vld [vmem:[%s469 + $0x80] sm:$0xf]
        %v752 = vld [vmem:[%s469 + $0x84] sm:$0xf]
        %v753 = vld [vmem:[%s469 + $0x88] sm:$0xf]
        %v754 = vld [vmem:[%s469 + $0x8c] sm:$0xf]
        %v755 = vld [vmem:[%s469 + $0x90] sm:$0xf]
        %v756 = vld [vmem:[%s469 + $0x94] sm:$0xf]
        %v757 = vld [vmem:[%s469 + $0x98] sm:$0xf]
        %v758 = vld [vmem:[%s469 + $0x9c] sm:$0xf]
        %v759 = vld [vmem:[%s469 + $0xa0] sm:$0xf]
        %v760 = vld [vmem:[%s469 + $0xa4] sm:$0xf]
        %v761 = vld [vmem:[%s469 + $0xa8] sm:$0xf]
        %v762 = vld [vmem:[%s469 + $0xac] sm:$0xf]
        %v763 = vld [vmem:[%s469 + $0xb0] sm:$0xf]
        %v764 = vld [vmem:[%s469 + $0xb4] sm:$0xf]
        %v765 = vld [vmem:[%s469 + $0xb8] sm:$0xf]
        %v766 = vld [vmem:[%s469 + $0xbc] sm:$0xf]
        %v767 = vld [vmem:[%s469 + $0x100] sm:$0xf]
        %v768 = vld [vmem:[%s469 + $0x104] sm:$0xf]
        %v769 = vld [vmem:[%s469 + $0x108] sm:$0xf]
        %v770 = vld [vmem:[%s469 + $0x10c] sm:$0xf]
        %v771 = vld [vmem:[%s469 + $0x110] sm:$0xf]
        %v772 = vld [vmem:[%s469 + $0x114] sm:$0xf]
        %v773 = vld [vmem:[%s469 + $0x118] sm:$0xf]
        %v774 = vld [vmem:[%s469 + $0x11c] sm:$0xf]
        %v775 = vld [vmem:[%s469 + $0x120] sm:$0xf]
        %v776 = vld [vmem:[%s469 + $0x124] sm:$0xf]
        %v777 = vld [vmem:[%s469 + $0x128] sm:$0xf]
        %v778 = vld [vmem:[%s469 + $0x12c] sm:$0xf]
        %v779 = vld [vmem:[%s469 + $0x130] sm:$0xf]
        %v780 = vld [vmem:[%s469 + $0x134] sm:$0xf]
        %v781 = vld [vmem:[%s469 + $0x138] sm:$0xf]
        %v782 = vld [vmem:[%s469 + $0x13c] sm:$0xf]
        %v783 = vld [vmem:[%s469 + $0x180] sm:$0xf]
        %v784 = vld [vmem:[%s469 + $0x184] sm:$0xf]
        %v785 = vld [vmem:[%s469 + $0x188] sm:$0xf]
        %v786 = vld [vmem:[%s469 + $0x18c] sm:$0xf]
        %v787 = vld [vmem:[%s469 + $0x190] sm:$0xf]
        %v788 = vld [vmem:[%s469 + $0x194] sm:$0xf]
        %v789 = vld [vmem:[%s469 + $0x198] sm:$0xf]
        %v790 = vld [vmem:[%s469 + $0x19c] sm:$0xf]
        %v791 = vld [vmem:[%s469 + $0x1a0] sm:$0xf]
        %v792 = vld [vmem:[%s469 + $0x1a4] sm:$0xf]
        %v793 = vld [vmem:[%s469 + $0x1a8] sm:$0xf]
        %v794 = vld [vmem:[%s469 + $0x1ac] sm:$0xf]
        %v795 = vld [vmem:[%s469 + $0x1b0] sm:$0xf]
        %v796 = vld [vmem:[%s469 + $0x1b4] sm:$0xf]
        %v797 = vld [vmem:[%s469 + $0x1b8] sm:$0xf]
        %v798 = vld [vmem:[%s469 + $0x1bc] sm:$0xf]
        %v815 = vunpack.c.l.b16 %v671
        %v816 = vunpack.c.l.b16 %v672
        %v817 = vunpack.c.l.b16 %v673
        %v818 = vunpack.c.l.b16 %v674
        %v819 = vunpack.c.l.b16 %v675
        %v820 = vunpack.c.l.b16 %v676
        %v821 = vunpack.c.l.b16 %v677
        %v822 = vunpack.c.l.b16 %v678
        %v823 = vunpack.c.l.b16 %v679
        %v824 = vunpack.c.l.b16 %v680
        %v825 = vunpack.c.l.b16 %v681
        %v826 = vunpack.c.l.b16 %v682
        %v827 = vunpack.c.l.b16 %v683
        %v828 = vunpack.c.l.b16 %v684
        %v829 = vunpack.c.l.b16 %v685
        %v830 = vunpack.c.l.b16 %v686
        %v831 = vpack.c.b16 %v816, %v815
        %v832 = vpack.c.b16 %v818, %v817
        %v833 = vpack.c.b16 %v820, %v819
        %v834 = vpack.c.b16 %v822, %v821
        %v835 = vpack.c.b16 %v824, %v823
        %v836 = vpack.c.b16 %v826, %v825
        %v837 = vpack.c.b16 %v828, %v827
        %v838 = vpack.c.b16 %v830, %v829
        %v855 = vunpack.c.l.b16 %v735
        %v856 = vunpack.c.l.b16 %v736
        %v857 = vunpack.c.l.b16 %v737
        %v858 = vunpack.c.l.b16 %v738
        %v859 = vunpack.c.l.b16 %v739
        %v860 = vunpack.c.l.b16 %v740
        %v861 = vunpack.c.l.b16 %v741
        %v862 = vunpack.c.l.b16 %v742
        %v863 = vunpack.c.l.b16 %v743
        %v864 = vunpack.c.l.b16 %v744
        %v865 = vunpack.c.l.b16 %v745
        %v866 = vunpack.c.l.b16 %v746
        %v867 = vunpack.c.l.b16 %v747
        %v868 = vunpack.c.l.b16 %v748
        %v869 = vunpack.c.l.b16 %v749
        %v870 = vunpack.c.l.b16 %v750
        %v871 = vpack.c.b16 %v856, %v855
        %v872 = vpack.c.b16 %v858, %v857
        %v873 = vpack.c.b16 %v860, %v859
        %v874 = vpack.c.b16 %v862, %v861
        %v875 = vpack.c.b16 %v864, %v863
        %v876 = vpack.c.b16 %v866, %v865
        %v877 = vpack.c.b16 %v868, %v867
        %v878 = vpack.c.b16 %v870, %v869
        %vm879 = vcmask 261120
        %v881 = vsel %vm879, %v831, 0
        %v884 = vsel %vm879, %v832, 0
        %v887 = vsel %vm879, %v833, 0
        %v890 = vsel %vm879, %v834, 0
        %v893 = vsel %vm879, %v835, 0
        %v896 = vsel %vm879, %v836, 0
        %v899 = vsel %vm879, %v837, 0
        %v902 = vsel %vm879, %v838, 0
        %v905 = vsel %vm879, %v871, 0
        %v908 = vsel %vm879, %v872, 0
        %v911 = vsel %vm879, %v873, 0
        %v914 = vsel %vm879, %v874, 0
        %v917 = vsel %vm879, %v875, 0
        %v920 = vsel %vm879, %v876, 0
        %v923 = vsel %vm879, %v877, 0
        %v926 = vsel %vm879, %v878, 0
        %928 = vmatprep.subr.bf16.mxu0 0
        %929 = vmatpush1.bf16.xpose.msra.mxu0 %v905
        %930 = vmatprep.subr.bf16.mxu0 0
        %931 = vmatpush1.bf16.xpose.msra.mxu0 %v908
        %932 = vmatprep.subr.bf16.mxu0 0
        %933 = vmatpush1.bf16.xpose.msra.mxu0 %v911
        %934 = vmatprep.subr.bf16.mxu0 0
        %935 = vmatpush1.bf16.xpose.msra.mxu0 %v914
        %936 = vmatprep.subr.bf16.mxu0 0
        %937 = vmatpush1.bf16.xpose.msra.mxu0 %v917
        %938 = vmatprep.subr.bf16.mxu0 0
        %939 = vmatpush1.bf16.xpose.msra.mxu0 %v920
        %940 = vmatprep.subr.bf16.mxu0 0
        %941 = vmatpush1.bf16.xpose.msra.mxu0 %v923
        %942 = vmatprep.subr.bf16.mxu0 0
        %943 = vmatpush1.bf16.xpose.msra.mxu0 %v926
        %944 = vmatprep.subr.bf16.mxu0 0
        %945 = vmatpush1.bf16.xpose.msra.mxu0 0
        %946 = vmatprep.subr.bf16.mxu0 0
        %947 = vmatpush1.bf16.xpose.msra.mxu0 0
        %948 = vmatprep.subr.bf16.mxu0 0
        %949 = vmatpush1.bf16.xpose.msra.mxu0 0
        %950 = vmatprep.subr.bf16.mxu0 0
        %951 = vmatpush1.bf16.xpose.msra.mxu0 0
        %952 = vmatprep.subr.bf16.mxu0 0
        %953 = vmatpush1.bf16.xpose.msra.mxu0 0
        %954 = vmatprep.subr.bf16.mxu0 0
        %955 = vmatpush1.bf16.xpose.msra.mxu0 0
        %956 = vmatprep.subr.bf16.mxu0 0
        %957 = vmatpush1.bf16.xpose.msra.mxu0 0
        %958 = vmatprep.subr.bf16.mxu0 0
        %959 = vmatpush1.bf16.xpose.msra.mxu0 0
        %960 = vmatprep.mubr.bf16.mxu0 0
        %961 = vmatmul.mubr.bf16.gmra.mrb[0].mxu0 %v881
        %v962 = vpop.f32.mrb[0].mxu0
        %v963 = vadd.f32 0.0, %v962
        %v964 = vpop.f32.mrb[0].mxu0
        %v965 = vpop.f32.mrb[0].mxu0
        %v966 = vadd.f32 0.0, %v965
        %v967 = vpop.f32.mrb[0].mxu0
        %968 = vmatprep.mubr.bf16.mxu0 0
        %969 = vmatmul.mubr.bf16.gmra.mrb[0].mxu0 %v884
        %v970 = vpop.f32.mrb[0].mxu0
        %v971 = vadd.f32 0.0, %v970
        %v972 = vpop.f32.mrb[0].mxu0
        %v973 = vpop.f32.mrb[0].mxu0
        %v974 = vadd.f32 0.0, %v973
        %v975 = vpop.f32.mrb[0].mxu0
        %976 = vmatprep.mubr.bf16.mxu0 0
        %977 = vmatmul.mubr.bf16.gmra.mrb[0].mxu0 %v887
        %v978 = vpop.f32.mrb[0].mxu0
        %v979 = vadd.f32 0.0, %v978
        %v980 = vpop.f32.mrb[0].mxu0
        %v981 = vpop.f32.mrb[0].mxu0
        %v982 = vadd.f32 0.0, %v981
        %v983 = vpop.f32.mrb[0].mxu0
        %984 = vmatprep.mubr.bf16.mxu0 0
        %985 = vmatmul.mubr.bf16.gmra.mrb[0].mxu0 %v890
        %v986 = vpop.f32.mrb[0].mxu0
        %v987 = vadd.f32 0.0, %v986
        %v988 = vpop.f32.mrb[0].mxu0
        %v989 = vpop.f32.mrb[0].mxu0
        %v990 = vadd.f32 0.0, %v989
        %v991 = vpop.f32.mrb[0].mxu0
        %992 = vmatprep.mubr.bf16.mxu0 0
        %993 = vmatmul.mubr.bf16.gmra.mrb[0].mxu0 %v893
        %v994 = vpop.f32.mrb[0].mxu0
        %v995 = vadd.f32 0.0, %v994
        %v996 = vpop.f32.mrb[0].mxu0
        %v997 = vpop.f32.mrb[0].mxu0
        %v998 = vadd.f32 0.0, %v997
        %v999 = vpop.f32.mrb[0].mxu0
        %1000 = vmatprep.mubr.bf16.mxu0 0
        %1001 = vmatmul.mubr.bf16.gmra.mrb[0].mxu0 %v896
        %v1002 = vpop.f32.mrb[0].mxu0
        %v1003 = vadd.f32 0.0, %v1002
        %v1004 = vpop.f32.mrb[0].mxu0
        %v1005 = vpop.f32.mrb[0].mxu0
        %v1006 = vadd.f32 0.0, %v1005
        %v1007 = vpop.f32.mrb[0].mxu0
        %1008 = vmatprep.mubr.bf16.mxu0 0
        %1009 = vmatmul.mubr.bf16.gmra.mrb[0].mxu0 %v899
        %v1010 = vpop.f32.mrb[0].mxu0
        %v1011 = vadd.f32 0.0, %v1010
        %v1012 = vpop.f32.mrb[0].mxu0
        %v1013 = vpop.f32.mrb[0].mxu0
        %v1014 = vadd.f32 0.0, %v1013
        %v1015 = vpop.f32.mrb[0].mxu0
        %1016 = vmatprep.mubr.bf16.mxu0 0
        %1017 = vmatmul.mubr.bf16.gmra.mrb[0].mxu0 %v902
        %v1018 = vpop.f32.mrb[0].mxu0
        %v1019 = vadd.f32 0.0, %v1018
        %v1020 = vpop.f32.mrb[0].mxu0
        %v1021 = vpop.f32.mrb[0].mxu0
        %v1022 = vadd.f32 0.0, %v1021
        %v1023 = vpop.f32.mrb[0].mxu0
        %1024 = vdwg.mxu0
        %v1041 = vunpack.c.l.b16 %v687
        %v1042 = vunpack.c.l.b16 %v688
        %v1043 = vunpack.c.l.b16 %v689
        %v1044 = vunpack.c.l.b16 %v690
        %v1045 = vunpack.c.l.b16 %v691
        %v1046 = vunpack.c.l.b16 %v692
        %v1047 = vunpack.c.l.b16 %v693
        %v1048 = vunpack.c.l.b16 %v694
        %v1049 = vunpack.c.l.b16 %v695
        %v1050 = vunpack.c.l.b16 %v696
        %v1051 = vunpack.c.l.b16 %v697
        %v1052 = vunpack.c.l.b16 %v698
        %v1053 = vunpack.c.l.b16 %v699
        %v1054 = vunpack.c.l.b16 %v700
        %v1055 = vunpack.c.l.b16 %v701
        %v1056 = vunpack.c.l.b16 %v702
        %v1057 = vpack.c.b16 %v1042, %v1041
        %v1058 = vpack.c.b16 %v1044, %v1043
        %v1059 = vpack.c.b16 %v1046, %v1045
        %v1060 = vpack.c.b16 %v1048, %v1047
        %v1061 = vpack.c.b16 %v1050, %v1049
        %v1062 = vpack.c.b16 %v1052, %v1051
        %v1063 = vpack.c.b16 %v1054, %v1053
        %v1064 = vpack.c.b16 %v1056, %v1055
        %v1081 = vunpack.c.l.b16 %v751
        %v1082 = vunpack.c.l.b16 %v752
        %v1083 = vunpack.c.l.b16 %v753
        %v1084 = vunpack.c.l.b16 %v754
        %v1085 = vunpack.c.l.b16 %v755
        %v1086 = vunpack.c.l.b16 %v756
        %v1087 = vunpack.c.l.b16 %v757
        %v1088 = vunpack.c.l.b16 %v758
        %v1089 = vunpack.c.l.b16 %v759
        %v1090 = vunpack.c.l.b16 %v760
        %v1091 = vunpack.c.l.b16 %v761
        %v1092 = vunpack.c.l.b16 %v762
        %v1093 = vunpack.c.l.b16 %v763
        %v1094 = vunpack.c.l.b16 %v764
        %v1095 = vunpack.c.l.b16 %v765
        %v1096 = vunpack.c.l.b16 %v766
        %v1097 = vpack.c.b16 %v1082, %v1081
        %v1098 = vpack.c.b16 %v1084, %v1083
        %v1099 = vpack.c.b16 %v1086, %v1085
        %v1100 = vpack.c.b16 %v1088, %v1087
        %v1101 = vpack.c.b16 %v1090, %v1089
        %v1102 = vpack.c.b16 %v1092, %v1091
        %v1103 = vpack.c.b16 %v1094, %v1093
        %v1104 = vpack.c.b16 %v1096, %v1095
        %v1106 = vsel %vm879, %v1057, 0
        %v1109 = vsel %vm879, %v1058, 0
        %v1112 = vsel %vm879, %v1059, 0
        %v1115 = vsel %vm879, %v1060, 0
        %v1118 = vsel %vm879, %v1061, 0
        %v1121 = vsel %vm879, %v1062, 0
        %v1124 = vsel %vm879, %v1063, 0
        %v1127 = vsel %vm879, %v1064, 0
        %v1130 = vsel %vm879, %v1097, 0
        %v1133 = vsel %vm879, %v1098, 0
        %v1136 = vsel %vm879, %v1099, 0
        %v1139 = vsel %vm879, %v1100, 0
        %v1142 = vsel %vm879, %v1101, 0
        %v1145 = vsel %vm879, %v1102, 0
        %v1148 = vsel %vm879, %v1103, 0
        %v1151 = vsel %vm879, %v1104, 0
        %1153 = vmatprep.subr.bf16.mxu0 0
        %1154 = vmatpush1.bf16.xpose.msra.mxu0 %v1130
        %1155 = vmatprep.subr.bf16.mxu0 0
        %1156 = vmatpush1.bf16.xpose.msra.mxu0 %v1133
        %1157 = vmatprep.subr.bf16.mxu0 0
        %1158 = vmatpush1.bf16.xpose.msra.mxu0 %v1136
        %1159 = vmatprep.subr.bf16.mxu0 0
        %1160 = vmatpush1.bf16.xpose.msra.mxu0 %v1139
        %1161 = vmatprep.subr.bf16.mxu0 0
        %1162 = vmatpush1.bf16.xpose.msra.mxu0 %v1142
        %1163 = vmatprep.subr.bf16.mxu0 0
        %1164 = vmatpush1.bf16.xpose.msra.mxu0 %v1145
        %1165 = vmatprep.subr.bf16.mxu0 0
        %1166 = vmatpush1.bf16.xpose.msra.mxu0 %v1148
        %1167 = vmatprep.subr.bf16.mxu0 0
        %1168 = vmatpush1.bf16.xpose.msra.mxu0 %v1151
        %1169 = vmatprep.subr.bf16.mxu0 0
        %1170 = vmatpush1.bf16.xpose.msra.mxu0 0
        %1171 = vmatprep.subr.bf16.mxu0 0
        %1172 = vmatpush1.bf16.xpose.msra.mxu0 0
        %1173 = vmatprep.subr.bf16.mxu0 0
        %1174 = vmatpush1.bf16.xpose.msra.mxu0 0
        %1175 = vmatprep.subr.bf16.mxu0 0
        %1176 = vmatpush1.bf16.xpose.msra.mxu0 0
        %1177 = vmatprep.subr.bf16.mxu0 0
        %1178 = vmatpush1.bf16.xpose.msra.mxu0 0
        %1179 = vmatprep.subr.bf16.mxu0 0
        %1180 = vmatpush1.bf16.xpose.msra.mxu0 0
        %1181 = vmatprep.subr.bf16.mxu0 0
        %1182 = vmatpush1.bf16.xpose.msra.mxu0 0
        %1183 = vmatprep.subr.bf16.mxu0 0
        %1184 = vmatpush1.bf16.xpose.msra.mxu0 0
        %1185 = vmatprep.mubr.bf16.mxu0 0
        %1186 = vmatmul.mubr.bf16.gmra.mrb[0].mxu0 %v1106
        %v1187 = vpop.f32.mrb[0].mxu0
        %v1188 = vadd.f32 0.0, %v1187
        %v1189 = vpop.f32.mrb[0].mxu0
        %v1190 = vpop.f32.mrb[0].mxu0
        %v1191 = vadd.f32 0.0, %v1190
        %v1192 = vpop.f32.mrb[0].mxu0
        %1193 = vmatprep.mubr.bf16.mxu0 0
        %1194 = vmatmul.mubr.bf16.gmra.mrb[0].mxu0 %v1109
        %v1195 = vpop.f32.mrb[0].mxu0
        %v1196 = vadd.f32 0.0, %v1195
        %v1197 = vpop.f32.mrb[0].mxu0
        %v1198 = vpop.f32.mrb[0].mxu0
        %v1199 = vadd.f32 0.0, %v1198
        %v1200 = vpop.f32.mrb[0].mxu0
        %1201 = vmatprep.mubr.bf16.mxu0 0
        %1202 = vmatmul.mubr.bf16.gmra.mrb[0].mxu0 %v1112
        %v1203 = vpop.f32.mrb[0].mxu0
        %v1204 = vadd.f32 0.0, %v1203
        %v1205 = vpop.f32.mrb[0].mxu0
        %v1206 = vpop.f32.mrb[0].mxu0
        %v1207 = vadd.f32 0.0, %v1206
        %v1208 = vpop.f32.mrb[0].mxu0
        %1209 = vmatprep.mubr.bf16.mxu0 0
        %1210 = vmatmul.mubr.bf16.gmra.mrb[0].mxu0 %v1115
        %v1211 = vpop.f32.mrb[0].mxu0
        %v1212 = vadd.f32 0.0, %v1211
        %v1213 = vpop.f32.mrb[0].mxu0
        %v1214 = vpop.f32.mrb[0].mxu0
        %v1215 = vadd.f32 0.0, %v1214
        %v1216 = vpop.f32.mrb[0].mxu0
        %1217 = vmatprep.mubr.bf16.mxu0 0
        %1218 = vmatmul.mubr.bf16.gmra.mrb[0].mxu0 %v1118
        %v1219 = vpop.f32.mrb[0].mxu0
        %v1220 = vadd.f32 0.0, %v1219
        %v1221 = vpop.f32.mrb[0].mxu0
        %v1222 = vpop.f32.mrb[0].mxu0
        %v1223 = vadd.f32 0.0, %v1222
        %v1224 = vpop.f32.mrb[0].mxu0
        %1225 = vmatprep.mubr.bf16.mxu0 0
        %1226 = vmatmul.mubr.bf16.gmra.mrb[0].mxu0 %v1121
        %v1227 = vpop.f32.mrb[0].mxu0
        %v1228 = vadd.f32 0.0, %v1227
        %v1229 = vpop.f32.mrb[0].mxu0
        %v1230 = vpop.f32.mrb[0].mxu0
        %v1231 = vadd.f32 0.0, %v1230
        %v1232 = vpop.f32.mrb[0].mxu0
        %1233 = vmatprep.mubr.bf16.mxu0 0
        %1234 = vmatmul.mubr.bf16.gmra.mrb[0].mxu0 %v1124
        %v1235 = vpop.f32.mrb[0].mxu0
        %v1236 = vadd.f32 0.0, %v1235
        %v1237 = vpop.f32.mrb[0].mxu0
        %v1238 = vpop.f32.mrb[0].mxu0
        %v1239 = vadd.f32 0.0, %v1238
        %v1240 = vpop.f32.mrb[0].mxu0
        %1241 = vmatprep.mubr.bf16.mxu0 0
        %1242 = vmatmul.mubr.bf16.gmra.mrb[0].mxu0 %v1127
        %v1243 = vpop.f32.mrb[0].mxu0
        %v1244 = vadd.f32 0.0, %v1243
        %v1245 = vpop.f32.mrb[0].mxu0
        %v1246 = vpop.f32.mrb[0].mxu0
        %v1247 = vadd.f32 0.0, %v1246
        %v1248 = vpop.f32.mrb[0].mxu0
        %1249 = vdwg.mxu0
        %v1266 = vunpack.c.l.b16 %v703
        %v1267 = vunpack.c.l.b16 %v704
        %v1268 = vunpack.c.l.b16 %v705
        %v1269 = vunpack.c.l.b16 %v706
        %v1270 = vunpack.c.l.b16 %v707
        %v1271 = vunpack.c.l.b16 %v708
        %v1272 = vunpack.c.l.b16 %v709
        %v1273 = vunpack.c.l.b16 %v710
        %v1274 = vunpack.c.l.b16 %v711
        %v1275 = vunpack.c.l.b16 %v712
        %v1276 = vunpack.c.l.b16 %v713
        %v1277 = vunpack.c.l.b16 %v714
        %v1278 = vunpack.c.l.b16 %v715
        %v1279 = vunpack.c.l.b16 %v716
        %v1280 = vunpack.c.l.b16 %v717
        %v1281 = vunpack.c.l.b16 %v718
        %v1282 = vpack.c.b16 %v1267, %v1266
        %v1283 = vpack.c.b16 %v1269, %v1268
        %v1284 = vpack.c.b16 %v1271, %v1270
        %v1285 = vpack.c.b16 %v1273, %v1272
        %v1286 = vpack.c.b16 %v1275, %v1274
        %v1287 = vpack.c.b16 %v1277, %v1276
        %v1288 = vpack.c.b16 %v1279, %v1278
        %v1289 = vpack.c.b16 %v1281, %v1280
        %v1306 = vunpack.c.l.b16 %v767
        %v1307 = vunpack.c.l.b16 %v768
        %v1308 = vunpack.c.l.b16 %v769
        %v1309 = vunpack.c.l.b16 %v770
        %v1310 = vunpack.c.l.b16 %v771
        %v1311 = vunpack.c.l.b16 %v772
        %v1312 = vunpack.c.l.b16 %v773
        %v1313 = vunpack.c.l.b16 %v774
        %v1314 = vunpack.c.l.b16 %v775
        %v1315 = vunpack.c.l.b16 %v776
        %v1316 = vunpack.c.l.b16 %v777
        %v1317 = vunpack.c.l.b16 %v778
        %v1318 = vunpack.c.l.b16 %v779
        %v1319 = vunpack.c.l.b16 %v780
        %v1320 = vunpack.c.l.b16 %v781
        %v1321 = vunpack.c.l.b16 %v782
        %v1322 = vpack.c.b16 %v1307, %v1306
        %v1323 = vpack.c.b16 %v1309, %v1308
        %v1324 = vpack.c.b16 %v1311, %v1310
        %v1325 = vpack.c.b16 %v1313, %v1312
        %v1326 = vpack.c.b16 %v1315, %v1314
        %v1327 = vpack.c.b16 %v1317, %v1316
        %v1328 = vpack.c.b16 %v1319, %v1318
        %v1329 = vpack.c.b16 %v1321, %v1320
        %v1331 = vsel %vm879, %v1282, 0
        %v1334 = vsel %vm879, %v1283, 0
        %v1337 = vsel %vm879, %v1284, 0
        %v1340 = vsel %vm879, %v1285, 0
        %v1343 = vsel %vm879, %v1286, 0
        %v1346 = vsel %vm879, %v1287, 0
        %v1349 = vsel %vm879, %v1288, 0
        %v1352 = vsel %vm879, %v1289, 0
        %v1355 = vsel %vm879, %v1322, 0
        %v1358 = vsel %vm879, %v1323, 0
        %v1361 = vsel %vm879, %v1324, 0
        %v1364 = vsel %vm879, %v1325, 0
        %v1367 = vsel %vm879, %v1326, 0
        %v1370 = vsel %vm879, %v1327, 0
        %v1373 = vsel %vm879, %v1328, 0
        %v1376 = vsel %vm879, %v1329, 0
        %1378 = vmatprep.subr.bf16.mxu0 0
        %1379 = vmatpush1.bf16.xpose.msra.mxu0 %v1355
        %1380 = vmatprep.subr.bf16.mxu0 0
        %1381 = vmatpush1.bf16.xpose.msra.mxu0 %v1358
        %1382 = vmatprep.subr.bf16.mxu0 0
        %1383 = vmatpush1.bf16.xpose.msra.mxu0 %v1361
        %1384 = vmatprep.subr.bf16.mxu0 0
        %1385 = vmatpush1.bf16.xpose.msra.mxu0 %v1364
        %1386 = vmatprep.subr.bf16.mxu0 0
        %1387 = vmatpush1.bf16.xpose.msra.mxu0 %v1367
        %1388 = vmatprep.subr.bf16.mxu0 0
        %1389 = vmatpush1.bf16.xpose.msra.mxu0 %v1370
        %1390 = vmatprep.subr.bf16.mxu0 0
        %1391 = vmatpush1.bf16.xpose.msra.mxu0 %v1373
        %1392 = vmatprep.subr.bf16.mxu0 0
        %1393 = vmatpush1.bf16.xpose.msra.mxu0 %v1376
        %1394 = vmatprep.subr.bf16.mxu0 0
        %1395 = vmatpush1.bf16.xpose.msra.mxu0 0
        %1396 = vmatprep.subr.bf16.mxu0 0
        %1397 = vmatpush1.bf16.xpose.msra.mxu0 0
        %1398 = vmatprep.subr.bf16.mxu0 0
        %1399 = vmatpush1.bf16.xpose.msra.mxu0 0
        %1400 = vmatprep.subr.bf16.mxu0 0
        %1401 = vmatpush1.bf16.xpose.msra.mxu0 0
        %1402 = vmatprep.subr.bf16.mxu0 0
        %1403 = vmatpush1.bf16.xpose.msra.mxu0 0
        %1404 = vmatprep.subr.bf16.mxu0 0
        %1405 = vmatpush1.bf16.xpose.msra.mxu0 0
        %1406 = vmatprep.subr.bf16.mxu0 0
        %1407 = vmatpush1.bf16.xpose.msra.mxu0 0
        %1408 = vmatprep.subr.bf16.mxu0 0
        %1409 = vmatpush1.bf16.xpose.msra.mxu0 0
        %1410 = vmatprep.mubr.bf16.mxu0 0
        %1411 = vmatmul.mubr.bf16.gmra.mrb[0].mxu0 %v1331
        %v1412 = vpop.f32.mrb[0].mxu0
        %v1413 = vadd.f32 0.0, %v1412
        %v1414 = vpop.f32.mrb[0].mxu0
        %v1415 = vpop.f32.mrb[0].mxu0
        %v1416 = vadd.f32 0.0, %v1415
        %v1417 = vpop.f32.mrb[0].mxu0
        %1418 = vmatprep.mubr.bf16.mxu0 0
        %1419 = vmatmul.mubr.bf16.gmra.mrb[0].mxu0 %v1334
        %v1420 = vpop.f32.mrb[0].mxu0
        %v1421 = vadd.f32 0.0, %v1420
        %v1422 = vpop.f32.mrb[0].mxu0
        %v1423 = vpop.f32.mrb[0].mxu0
        %v1424 = vadd.f32 0.0, %v1423
        %v1425 = vpop.f32.mrb[0].mxu0
        %1426 = vmatprep.mubr.bf16.mxu0 0
        %1427 = vmatmul.mubr.bf16.gmra.mrb[0].mxu0 %v1337
        %v1428 = vpop.f32.mrb[0].mxu0
        %v1429 = vadd.f32 0.0, %v1428
        %v1430 = vpop.f32.mrb[0].mxu0
        %v1431 = vpop.f32.mrb[0].mxu0
        %v1432 = vadd.f32 0.0, %v1431
        %v1433 = vpop.f32.mrb[0].mxu0
        %1434 = vmatprep.mubr.bf16.mxu0 0
        %1435 = vmatmul.mubr.bf16.gmra.mrb[0].mxu0 %v1340
        %v1436 = vpop.f32.mrb[0].mxu0
        %v1437 = vadd.f32 0.0, %v1436
        %v1438 = vpop.f32.mrb[0].mxu0
        %v1439 = vpop.f32.mrb[0].mxu0
        %v1440 = vadd.f32 0.0, %v1439
        %v1441 = vpop.f32.mrb[0].mxu0
        %1442 = vmatprep.mubr.bf16.mxu0 0
        %1443 = vmatmul.mubr.bf16.gmra.mrb[0].mxu0 %v1343
        %v1444 = vpop.f32.mrb[0].mxu0
        %v1445 = vadd.f32 0.0, %v1444
        %v1446 = vpop.f32.mrb[0].mxu0
        %v1447 = vpop.f32.mrb[0].mxu0
        %v1448 = vadd.f32 0.0, %v1447
        %v1449 = vpop.f32.mrb[0].mxu0
        %1450 = vmatprep.mubr.bf16.mxu0 0
        %1451 = vmatmul.mubr.bf16.gmra.mrb[0].mxu0 %v1346
        %v1452 = vpop.f32.mrb[0].mxu0
        %v1453 = vadd.f32 0.0, %v1452
        %v1454 = vpop.f32.mrb[0].mxu0
        %v1455 = vpop.f32.mrb[0].mxu0
        %v1456 = vadd.f32 0.0, %v1455
        %v1457 = vpop.f32.mrb[0].mxu0
        %1458 = vmatprep.mubr.bf16.mxu0 0
        %1459 = vmatmul.mubr.bf16.gmra.mrb[0].mxu0 %v1349
        %v1460 = vpop.f32.mrb[0].mxu0
        %v1461 = vadd.f32 0.0, %v1460
        %v1462 = vpop.f32.mrb[0].mxu0
        %v1463 = vpop.f32.mrb[0].mxu0
        %v1464 = vadd.f32 0.0, %v1463
        %v1465 = vpop.f32.mrb[0].mxu0
        %1466 = vmatprep.mubr.bf16.mxu0 0
        %1467 = vmatmul.mubr.bf16.gmra.mrb[0].mxu0 %v1352
        %v1468 = vpop.f32.mrb[0].mxu0
        %v1469 = vadd.f32 0.0, %v1468
        %v1470 = vpop.f32.mrb[0].mxu0
        %v1471 = vpop.f32.mrb[0].mxu0
        %v1472 = vadd.f32 0.0, %v1471
        %v1473 = vpop.f32.mrb[0].mxu0
        %1474 = vdwg.mxu0
        %v1491 = vunpack.c.l.b16 %v719
        %v1492 = vunpack.c.l.b16 %v720
        %v1493 = vunpack.c.l.b16 %v721
        %v1494 = vunpack.c.l.b16 %v722
        %v1495 = vunpack.c.l.b16 %v723
        %v1496 = vunpack.c.l.b16 %v724
        %v1497 = vunpack.c.l.b16 %v725
        %v1498 = vunpack.c.l.b16 %v726
        %v1499 = vunpack.c.l.b16 %v727
        %v1500 = vunpack.c.l.b16 %v728
        %v1501 = vunpack.c.l.b16 %v729
        %v1502 = vunpack.c.l.b16 %v730
        %v1503 = vunpack.c.l.b16 %v731
        %v1504 = vunpack.c.l.b16 %v732
        %v1505 = vunpack.c.l.b16 %v733
        %v1506 = vunpack.c.l.b16 %v734
        %v1507 = vpack.c.b16 %v1492, %v1491
        %v1508 = vpack.c.b16 %v1494, %v1493
        %v1509 = vpack.c.b16 %v1496, %v1495
        %v1510 = vpack.c.b16 %v1498, %v1497
        %v1511 = vpack.c.b16 %v1500, %v1499
        %v1512 = vpack.c.b16 %v1502, %v1501
        %v1513 = vpack.c.b16 %v1504, %v1503
        %v1514 = vpack.c.b16 %v1506, %v1505
        %v1531 = vunpack.c.l.b16 %v783
        %v1532 = vunpack.c.l.b16 %v784
        %v1533 = vunpack.c.l.b16 %v785
        %v1534 = vunpack.c.l.b16 %v786
        %v1535 = vunpack.c.l.b16 %v787
        %v1536 = vunpack.c.l.b16 %v788
        %v1537 = vunpack.c.l.b16 %v789
        %v1538 = vunpack.c.l.b16 %v790
        %v1539 = vunpack.c.l.b16 %v791
        %v1540 = vunpack.c.l.b16 %v792
        %v1541 = vunpack.c.l.b16 %v793
        %v1542 = vunpack.c.l.b16 %v794
        %v1543 = vunpack.c.l.b16 %v795
        %v1544 = vunpack.c.l.b16 %v796
        %v1545 = vunpack.c.l.b16 %v797
        %v1546 = vunpack.c.l.b16 %v798
        %v1547 = vpack.c.b16 %v1532, %v1531
        %v1548 = vpack.c.b16 %v1534, %v1533
        %v1549 = vpack.c.b16 %v1536, %v1535
        %v1550 = vpack.c.b16 %v1538, %v1537
        %v1551 = vpack.c.b16 %v1540, %v1539
        %v1552 = vpack.c.b16 %v1542, %v1541
        %v1553 = vpack.c.b16 %v1544, %v1543
        %v1554 = vpack.c.b16 %v1546, %v1545
        %v1556 = vsel %vm879, %v1507, 0
        %v1559 = vsel %vm879, %v1508, 0
        %v1562 = vsel %vm879, %v1509, 0
        %v1565 = vsel %vm879, %v1510, 0
        %v1568 = vsel %vm879, %v1511, 0
        %v1571 = vsel %vm879, %v1512, 0
        %v1574 = vsel %vm879, %v1513, 0
        %v1577 = vsel %vm879, %v1514, 0
        %v1580 = vsel %vm879, %v1547, 0
        %v1583 = vsel %vm879, %v1548, 0
        %v1586 = vsel %vm879, %v1549, 0
        %v1589 = vsel %vm879, %v1550, 0
        %v1592 = vsel %vm879, %v1551, 0
        %v1595 = vsel %vm879, %v1552, 0
        %v1598 = vsel %vm879, %v1553, 0
        %v1601 = vsel %vm879, %v1554, 0
        %1603 = vmatprep.subr.bf16.mxu0 0
        %1604 = vmatpush1.bf16.xpose.msra.mxu0 %v1580
        %1605 = vmatprep.subr.bf16.mxu0 0
        %1606 = vmatpush1.bf16.xpose.msra.mxu0 %v1583
        %1607 = vmatprep.subr.bf16.mxu0 0
        %1608 = vmatpush1.bf16.xpose.msra.mxu0 %v1586
        %1609 = vmatprep.subr.bf16.mxu0 0
        %1610 = vmatpush1.bf16.xpose.msra.mxu0 %v1589
        %1611 = vmatprep.subr.bf16.mxu0 0
        %1612 = vmatpush1.bf16.xpose.msra.mxu0 %v1592
        %1613 = vmatprep.subr.bf16.mxu0 0
        %1614 = vmatpush1.bf16.xpose.msra.mxu0 %v1595
        %1615 = vmatprep.subr.bf16.mxu0 0
        %1616 = vmatpush1.bf16.xpose.msra.mxu0 %v1598
        %1617 = vmatprep.subr.bf16.mxu0 0
        %1618 = vmatpush1.bf16.xpose.msra.mxu0 %v1601
        %1619 = vmatprep.subr.bf16.mxu0 0
        %1620 = vmatpush1.bf16.xpose.msra.mxu0 0
        %1621 = vmatprep.subr.bf16.mxu0 0
        %1622 = vmatpush1.bf16.xpose.msra.mxu0 0
        %1623 = vmatprep.subr.bf16.mxu0 0
        %1624 = vmatpush1.bf16.xpose.msra.mxu0 0
        %1625 = vmatprep.subr.bf16.mxu0 0
        %1626 = vmatpush1.bf16.xpose.msra.mxu0 0
        %1627 = vmatprep.subr.bf16.mxu0 0
        %1628 = vmatpush1.bf16.xpose.msra.mxu0 0
        %1629 = vmatprep.subr.bf16.mxu0 0
        %1630 = vmatpush1.bf16.xpose.msra.mxu0 0
        %1631 = vmatprep.subr.bf16.mxu0 0
        %1632 = vmatpush1.bf16.xpose.msra.mxu0 0
        %1633 = vmatprep.subr.bf16.mxu0 0
        %1634 = vmatpush1.bf16.xpose.msra.mxu0 0
        %1635 = vmatprep.mubr.bf16.mxu0 0
        %1636 = vmatmul.mubr.bf16.gmra.mrb[0].mxu0 %v1556
        %v1637 = vpop.f32.mrb[0].mxu0
        %v1638 = vadd.f32 0.0, %v1637
        %v1639 = vpop.f32.mrb[0].mxu0
        %v1640 = vpop.f32.mrb[0].mxu0
        %v1641 = vadd.f32 0.0, %v1640
        %v1642 = vpop.f32.mrb[0].mxu0
        %1643 = vmatprep.mubr.bf16.mxu0 0
        %1644 = vmatmul.mubr.bf16.gmra.mrb[0].mxu0 %v1559
        %v1645 = vpop.f32.mrb[0].mxu0
        %v1646 = vadd.f32 0.0, %v1645
        %v1647 = vpop.f32.mrb[0].mxu0
        %v1648 = vpop.f32.mrb[0].mxu0
        %v1649 = vadd.f32 0.0, %v1648
        %v1650 = vpop.f32.mrb[0].mxu0
        %1651 = vmatprep.mubr.bf16.mxu0 0
        %1652 = vmatmul.mubr.bf16.gmra.mrb[0].mxu0 %v1562
        %v1653 = vpop.f32.mrb[0].mxu0
        %v1654 = vadd.f32 0.0, %v1653
        %v1655 = vpop.f32.mrb[0].mxu0
        %v1656 = vpop.f32.mrb[0].mxu0
        %v1657 = vadd.f32 0.0, %v1656
        %v1658 = vpop.f32.mrb[0].mxu0
        %1659 = vmatprep.mubr.bf16.mxu0 0
        %1660 = vmatmul.mubr.bf16.gmra.mrb[0].mxu0 %v1565
        %v1661 = vpop.f32.mrb[0].mxu0
        %v1662 = vadd.f32 0.0, %v1661
        %v1663 = vpop.f32.mrb[0].mxu0
        %v1664 = vpop.f32.mrb[0].mxu0
        %v1665 = vadd.f32 0.0, %v1664
        %v1666 = vpop.f32.mrb[0].mxu0
        %1667 = vmatprep.mubr.bf16.mxu0 0
        %1668 = vmatmul.mubr.bf16.gmra.mrb[0].mxu0 %v1568
        %v1669 = vpop.f32.mrb[0].mxu0
        %v1670 = vadd.f32 0.0, %v1669
        %v1671 = vpop.f32.mrb[0].mxu0
        %v1672 = vpop.f32.mrb[0].mxu0
        %v1673 = vadd.f32 0.0, %v1672
        %v1674 = vpop.f32.mrb[0].mxu0
        %1675 = vmatprep.mubr.bf16.mxu0 0
        %1676 = vmatmul.mubr.bf16.gmra.mrb[0].mxu0 %v1571
        %v1677 = vpop.f32.mrb[0].mxu0
        %v1678 = vadd.f32 0.0, %v1677
        %v1679 = vpop.f32.mrb[0].mxu0
        %v1680 = vpop.f32.mrb[0].mxu0
        %v1681 = vadd.f32 0.0, %v1680
        %v1682 = vpop.f32.mrb[0].mxu0
        %1683 = vmatprep.mubr.bf16.mxu0 0
        %1684 = vmatmul.mubr.bf16.gmra.mrb[0].mxu0 %v1574
        %v1685 = vpop.f32.mrb[0].mxu0
        %v1686 = vadd.f32 0.0, %v1685
        %v1687 = vpop.f32.mrb[0].mxu0
        %v1688 = vpop.f32.mrb[0].mxu0
        %v1689 = vadd.f32 0.0, %v1688
        %v1690 = vpop.f32.mrb[0].mxu0
        %1691 = vmatprep.mubr.bf16.mxu0 0
        %1692 = vmatmul.mubr.bf16.gmra.mrb[0].mxu0 %v1577
        %v1693 = vpop.f32.mrb[0].mxu0
        %v1694 = vadd.f32 0.0, %v1693
        %v1695 = vpop.f32.mrb[0].mxu0
        %v1696 = vpop.f32.mrb[0].mxu0
        %v1697 = vadd.f32 0.0, %v1696
        %v1698 = vpop.f32.mrb[0].mxu0
        %1699 = vdwg.mxu0
        %v1700 = vld [vmem:[#allocation2] sm:$0xff]
        %v1701 = vld [vmem:[#allocation2 + $0x8] sm:$0xff]
        %v1702 = vld [vmem:[#allocation2 + $0x10] sm:$0xff]
        %v1703 = vld [vmem:[#allocation2 + $0x18] sm:$0xff]
        %v1704 = vld [vmem:[#allocation2 + $0x20] sm:$0xff]
        %v1705 = vld [vmem:[#allocation2 + $0x28] sm:$0xff]
        %v1706 = vld [vmem:[#allocation2 + $0x30] sm:$0xff]
        %v1707 = vld [vmem:[#allocation2 + $0x38] sm:$0xff]
        %v1708 = vld [vmem:[#allocation2 + $0x40] sm:$0xff]
        %v1709 = vld [vmem:[#allocation2 + $0x48] sm:$0xff]
        %v1710 = vld [vmem:[#allocation2 + $0x50] sm:$0xff]
        %v1711 = vld [vmem:[#allocation2 + $0x58] sm:$0xff]
        %v1712 = vld [vmem:[#allocation2 + $0x60] sm:$0xff]
        %v1713 = vld [vmem:[#allocation2 + $0x68] sm:$0xff]
        %v1714 = vld [vmem:[#allocation2 + $0x70] sm:$0xff]
        %v1715 = vld [vmem:[#allocation2 + $0x78] sm:$0xff]
        %v1716 = vld [vmem:[#allocation2 + $0x80] sm:$0xff]
        %v1717 = vld [vmem:[#allocation2 + $0x88] sm:$0xff]
        %v1718 = vld [vmem:[#allocation2 + $0x90] sm:$0xff]
        %v1719 = vld [vmem:[#allocation2 + $0x98] sm:$0xff]
        %v1720 = vld [vmem:[#allocation2 + $0xa0] sm:$0xff]
        %v1721 = vld [vmem:[#allocation2 + $0xa8] sm:$0xff]
        %v1722 = vld [vmem:[#allocation2 + $0xb0] sm:$0xff]
        %v1723 = vld [vmem:[#allocation2 + $0xb8] sm:$0xff]
        %v1724 = vld [vmem:[#allocation2 + $0xc0] sm:$0xff]
        %v1725 = vld [vmem:[#allocation2 + $0xc8] sm:$0xff]
        %v1726 = vld [vmem:[#allocation2 + $0xd0] sm:$0xff]
        %v1727 = vld [vmem:[#allocation2 + $0xd8] sm:$0xff]
        %v1728 = vld [vmem:[#allocation2 + $0xe0] sm:$0xff]
        %v1729 = vld [vmem:[#allocation2 + $0xe8] sm:$0xff]
        %v1730 = vld [vmem:[#allocation2 + $0xf0] sm:$0xff]
        %v1731 = vld [vmem:[#allocation2 + $0xf8] sm:$0xff]
        %v1732 = vld [vmem:[#allocation2 + $0x100] sm:$0xff]
        %v1733 = vld [vmem:[#allocation2 + $0x108] sm:$0xff]
        %v1734 = vld [vmem:[#allocation2 + $0x110] sm:$0xff]
        %v1735 = vld [vmem:[#allocation2 + $0x118] sm:$0xff]
        %v1736 = vld [vmem:[#allocation2 + $0x120] sm:$0xff]
        %v1737 = vld [vmem:[#allocation2 + $0x128] sm:$0xff]
        %v1738 = vld [vmem:[#allocation2 + $0x130] sm:$0xff]
        %v1739 = vld [vmem:[#allocation2 + $0x138] sm:$0xff]
        %v1740 = vld [vmem:[#allocation2 + $0x140] sm:$0xff]
        %v1741 = vld [vmem:[#allocation2 + $0x148] sm:$0xff]
        %v1742 = vld [vmem:[#allocation2 + $0x150] sm:$0xff]
        %v1743 = vld [vmem:[#allocation2 + $0x158] sm:$0xff]
        %v1744 = vld [vmem:[#allocation2 + $0x160] sm:$0xff]
        %v1745 = vld [vmem:[#allocation2 + $0x168] sm:$0xff]
        %v1746 = vld [vmem:[#allocation2 + $0x170] sm:$0xff]
        %v1747 = vld [vmem:[#allocation2 + $0x178] sm:$0xff]
        %v1748 = vld [vmem:[#allocation2 + $0x180] sm:$0xff]
        %v1749 = vld [vmem:[#allocation2 + $0x188] sm:$0xff]
        %v1750 = vld [vmem:[#allocation2 + $0x190] sm:$0xff]
        %v1751 = vld [vmem:[#allocation2 + $0x198] sm:$0xff]
        %v1752 = vld [vmem:[#allocation2 + $0x1a0] sm:$0xff]
        %v1753 = vld [vmem:[#allocation2 + $0x1a8] sm:$0xff]
        %v1754 = vld [vmem:[#allocation2 + $0x1b0] sm:$0xff]
        %v1755 = vld [vmem:[#allocation2 + $0x1b8] sm:$0xff]
        %v1756 = vld [vmem:[#allocation2 + $0x1c0] sm:$0xff]
        %v1757 = vld [vmem:[#allocation2 + $0x1c8] sm:$0xff]
        %v1758 = vld [vmem:[#allocation2 + $0x1d0] sm:$0xff]
        %v1759 = vld [vmem:[#allocation2 + $0x1d8] sm:$0xff]
        %v1760 = vld [vmem:[#allocation2 + $0x1e0] sm:$0xff]
        %v1761 = vld [vmem:[#allocation2 + $0x1e8] sm:$0xff]
        %v1762 = vld [vmem:[#allocation2 + $0x1f0] sm:$0xff]
        %v1763 = vld [vmem:[#allocation2 + $0x1f8] sm:$0xff]
        %1764 = vmax.xlane.f32.xlu0 %v963
        %v1765 = vpop.xlane.xlu0 %1764
        %1766 = vmax.xlane.f32.xlu0 %v966
        %v1767 = vpop.xlane.xlu0 %1766
        %1768 = vmax.xlane.f32.xlu0 %v971
        %v1769 = vpop.xlane.xlu0 %1768
        %1770 = vmax.xlane.f32.xlu0 %v974
        %v1771 = vpop.xlane.xlu0 %1770
        %1772 = vmax.xlane.f32.xlu0 %v979
        %v1773 = vpop.xlane.xlu0 %1772
        %1774 = vmax.xlane.f32.xlu0 %v982
        %v1775 = vpop.xlane.xlu0 %1774
        %1776 = vmax.xlane.f32.xlu0 %v987
        %v1777 = vpop.xlane.xlu0 %1776
        %1778 = vmax.xlane.f32.xlu0 %v990
        %v1779 = vpop.xlane.xlu0 %1778
        %1780 = vmax.xlane.f32.xlu0 %v995
        %v1781 = vpop.xlane.xlu0 %1780
        %1782 = vmax.xlane.f32.xlu0 %v998
        %v1783 = vpop.xlane.xlu0 %1782
        %1784 = vmax.xlane.f32.xlu0 %v1003
        %v1785 = vpop.xlane.xlu0 %1784
        %1786 = vmax.xlane.f32.xlu0 %v1006
        %v1787 = vpop.xlane.xlu0 %1786
        %1788 = vmax.xlane.f32.xlu0 %v1011
        %v1789 = vpop.xlane.xlu0 %1788
        %1790 = vmax.xlane.f32.xlu0 %v1014
        %v1791 = vpop.xlane.xlu0 %1790
        %1792 = vmax.xlane.f32.xlu0 %v1019
        %v1793 = vpop.xlane.xlu0 %1792
        %1794 = vmax.xlane.f32.xlu0 %v1022
        %v1795 = vpop.xlane.xlu0 %1794
        %1796 = vmax.xlane.f32.xlu0 %v1188
        %v1797 = vpop.xlane.xlu0 %1796
        %1798 = vmax.xlane.f32.xlu0 %v1191
        %v1799 = vpop.xlane.xlu0 %1798
        %1800 = vmax.xlane.f32.xlu0 %v1196
        %v1801 = vpop.xlane.xlu0 %1800
        %1802 = vmax.xlane.f32.xlu0 %v1199
        %v1803 = vpop.xlane.xlu0 %1802
        %1804 = vmax.xlane.f32.xlu0 %v1204
        %v1805 = vpop.xlane.xlu0 %1804
        %1806 = vmax.xlane.f32.xlu0 %v1207
        %v1807 = vpop.xlane.xlu0 %1806
        %1808 = vmax.xlane.f32.xlu0 %v1212
        %v1809 = vpop.xlane.xlu0 %1808
        %1810 = vmax.xlane.f32.xlu0 %v1215
        %v1811 = vpop.xlane.xlu0 %1810
        %1812 = vmax.xlane.f32.xlu0 %v1220
        %v1813 = vpop.xlane.xlu0 %1812
        %1814 = vmax.xlane.f32.xlu0 %v1223
        %v1815 = vpop.xlane.xlu0 %1814
        %1816 = vmax.xlane.f32.xlu0 %v1228
        %v1817 = vpop.xlane.xlu0 %1816
        %1818 = vmax.xlane.f32.xlu0 %v1231
        %v1819 = vpop.xlane.xlu0 %1818
        %1820 = vmax.xlane.f32.xlu0 %v1236
        %v1821 = vpop.xlane.xlu0 %1820
        %1822 = vmax.xlane.f32.xlu0 %v1239
        %v1823 = vpop.xlane.xlu0 %1822
        %1824 = vmax.xlane.f32.xlu0 %v1244
        %v1825 = vpop.xlane.xlu0 %1824
        %1826 = vmax.xlane.f32.xlu0 %v1247
        %v1827 = vpop.xlane.xlu0 %1826
        %1828 = vmax.xlane.f32.xlu0 %v1413
        %v1829 = vpop.xlane.xlu0 %1828
        %1830 = vmax.xlane.f32.xlu0 %v1416
        %v1831 = vpop.xlane.xlu0 %1830
        %1832 = vmax.xlane.f32.xlu0 %v1421
        %v1833 = vpop.xlane.xlu0 %1832
        %1834 = vmax.xlane.f32.xlu0 %v1424
        %v1835 = vpop.xlane.xlu0 %1834
        %1836 = vmax.xlane.f32.xlu0 %v1429
        %v1837 = vpop.xlane.xlu0 %1836
        %1838 = vmax.xlane.f32.xlu0 %v1432
        %v1839 = vpop.xlane.xlu0 %1838
        %1840 = vmax.xlane.f32.xlu0 %v1437
        %v1841 = vpop.xlane.xlu0 %1840
        %1842 = vmax.xlane.f32.xlu0 %v1440
        %v1843 = vpop.xlane.xlu0 %1842
        %1844 = vmax.xlane.f32.xlu0 %v1445
        %v1845 = vpop.xlane.xlu0 %1844
        %1846 = vmax.xlane.f32.xlu0 %v1448
        %v1847 = vpop.xlane.xlu0 %1846
        %1848 = vmax.xlane.f32.xlu0 %v1453
        %v1849 = vpop.xlane.xlu0 %1848
        %1850 = vmax.xlane.f32.xlu0 %v1456
        %v1851 = vpop.xlane.xlu0 %1850
        %1852 = vmax.xlane.f32.xlu0 %v1461
        %v1853 = vpop.xlane.xlu0 %1852
        %1854 = vmax.xlane.f32.xlu0 %v1464
        %v1855 = vpop.xlane.xlu0 %1854
        %1856 = vmax.xlane.f32.xlu0 %v1469
        %v1857 = vpop.xlane.xlu0 %1856
        %1858 = vmax.xlane.f32.xlu0 %v1472
        %v1859 = vpop.xlane.xlu0 %1858
        %1860 = vmax.xlane.f32.xlu0 %v1638
        %v1861 = vpop.xlane.xlu0 %1860
        %1862 = vmax.xlane.f32.xlu0 %v1641
        %v1863 = vpop.xlane.xlu0 %1862
        %1864 = vmax.xlane.f32.xlu0 %v1646
        %v1865 = vpop.xlane.xlu0 %1864
        %1866 = vmax.xlane.f32.xlu0 %v1649
        %v1867 = vpop.xlane.xlu0 %1866
        %1868 = vmax.xlane.f32.xlu0 %v1654
        %v1869 = vpop.xlane.xlu0 %1868
        %1870 = vmax.xlane.f32.xlu0 %v1657
        %v1871 = vpop.xlane.xlu0 %1870
        %1872 = vmax.xlane.f32.xlu0 %v1662
        %v1873 = vpop.xlane.xlu0 %1872
        %1874 = vmax.xlane.f32.xlu0 %v1665
        %v1875 = vpop.xlane.xlu0 %1874
        %1876 = vmax.xlane.f32.xlu0 %v1670
        %v1877 = vpop.xlane.xlu0 %1876
        %1878 = vmax.xlane.f32.xlu0 %v1673
        %v1879 = vpop.xlane.xlu0 %1878
        %1880 = vmax.xlane.f32.xlu0 %v1678
        %v1881 = vpop.xlane.xlu0 %1880
        %1882 = vmax.xlane.f32.xlu0 %v1681
        %v1883 = vpop.xlane.xlu0 %1882
        %1884 = vmax.xlane.f32.xlu0 %v1686
        %v1885 = vpop.xlane.xlu0 %1884
        %1886 = vmax.xlane.f32.xlu0 %v1689
        %v1887 = vpop.xlane.xlu0 %1886
        %1888 = vmax.xlane.f32.xlu0 %v1694
        %v1889 = vpop.xlane.xlu0 %1888
        %1890 = vmax.xlane.f32.xlu0 %v1697
        %v1891 = vpop.xlane.xlu0 %1890
        %v1892 = vmax.f32 %v1700, %v1765
        %v1893 = vmax.f32 %v1701, %v1767
        %v1894 = vmax.f32 %v1702, %v1769
        %v1895 = vmax.f32 %v1703, %v1771
        %v1896 = vmax.f32 %v1704, %v1773
        %v1897 = vmax.f32 %v1705, %v1775
        %v1898 = vmax.f32 %v1706, %v1777
        %v1899 = vmax.f32 %v1707, %v1779
        %v1900 = vmax.f32 %v1708, %v1781
        %v1901 = vmax.f32 %v1709, %v1783
        %v1902 = vmax.f32 %v1710, %v1785
        %v1903 = vmax.f32 %v1711, %v1787
        %v1904 = vmax.f32 %v1712, %v1789
        %v1905 = vmax.f32 %v1713, %v1791
        %v1906 = vmax.f32 %v1714, %v1793
        %v1907 = vmax.f32 %v1715, %v1795
        %v1908 = vmax.f32 %v1716, %v1797
        %v1909 = vmax.f32 %v1717, %v1799
        %v1910 = vmax.f32 %v1718, %v1801
        %v1911 = vmax.f32 %v1719, %v1803
        %v1912 = vmax.f32 %v1720, %v1805
        %v1913 = vmax.f32 %v1721, %v1807
        %v1914 = vmax.f32 %v1722, %v1809
        %v1915 = vmax.f32 %v1723, %v1811
        %v1916 = vmax.f32 %v1724, %v1813
        %v1917 = vmax.f32 %v1725, %v1815
        %v1918 = vmax.f32 %v1726, %v1817
        %v1919 = vmax.f32 %v1727, %v1819
        %v1920 = vmax.f32 %v1728, %v1821
        %v1921 = vmax.f32 %v1729, %v1823
        %v1922 = vmax.f32 %v1730, %v1825
        %v1923 = vmax.f32 %v1731, %v1827
        %v1924 = vmax.f32 %v1732, %v1829
        %v1925 = vmax.f32 %v1733, %v1831
        %v1926 = vmax.f32 %v1734, %v1833
        %v1927 = vmax.f32 %v1735, %v1835
        %v1928 = vmax.f32 %v1736, %v1837
        %v1929 = vmax.f32 %v1737, %v1839
        %v1930 = vmax.f32 %v1738, %v1841
        %v1931 = vmax.f32 %v1739, %v1843
        %v1932 = vmax.f32 %v1740, %v1845
        %v1933 = vmax.f32 %v1741, %v1847
        %v1934 = vmax.f32 %v1742, %v1849
        %v1935 = vmax.f32 %v1743, %v1851
        %v1936 = vmax.f32 %v1744, %v1853
        %v1937 = vmax.f32 %v1745, %v1855
        %v1938 = vmax.f32 %v1746, %v1857
        %v1939 = vmax.f32 %v1747, %v1859
        %v1940 = vmax.f32 %v1748, %v1861
        %v1941 = vmax.f32 %v1749, %v1863
        %v1942 = vmax.f32 %v1750, %v1865
        %v1943 = vmax.f32 %v1751, %v1867
        %v1944 = vmax.f32 %v1752, %v1869
        %v1945 = vmax.f32 %v1753, %v1871
        %v1946 = vmax.f32 %v1754, %v1873
        %v1947 = vmax.f32 %v1755, %v1875
        %v1948 = vmax.f32 %v1756, %v1877
        %v1949 = vmax.f32 %v1757, %v1879
        %v1950 = vmax.f32 %v1758, %v1881
        %v1951 = vmax.f32 %v1759, %v1883
        %v1952 = vmax.f32 %v1760, %v1885
        %v1953 = vmax.f32 %v1761, %v1887
        %v1954 = vmax.f32 %v1762, %v1889
        %v1955 = vmax.f32 %v1763, %v1891
        %v1956 = vsub.f32 %v1700, %v1892
        %v1957 = vsub.f32 %v1701, %v1893
        %v1958 = vsub.f32 %v1702, %v1894
        %v1959 = vsub.f32 %v1703, %v1895
        %v1960 = vsub.f32 %v1704, %v1896
        %v1961 = vsub.f32 %v1705, %v1897
        %v1962 = vsub.f32 %v1706, %v1898
        %v1963 = vsub.f32 %v1707, %v1899
        %v1964 = vsub.f32 %v1708, %v1900
        %v1965 = vsub.f32 %v1709, %v1901
        %v1966 = vsub.f32 %v1710, %v1902
        %v1967 = vsub.f32 %v1711, %v1903
        %v1968 = vsub.f32 %v1712, %v1904
        %v1969 = vsub.f32 %v1713, %v1905
        %v1970 = vsub.f32 %v1714, %v1906
        %v1971 = vsub.f32 %v1715, %v1907
        %v1972 = vsub.f32 %v1716, %v1908
        %v1973 = vsub.f32 %v1717, %v1909
        %v1974 = vsub.f32 %v1718, %v1910
        %v1975 = vsub.f32 %v1719, %v1911
        %v1976 = vsub.f32 %v1720, %v1912
        %v1977 = vsub.f32 %v1721, %v1913
        %v1978 = vsub.f32 %v1722, %v1914
        %v1979 = vsub.f32 %v1723, %v1915
        %v1980 = vsub.f32 %v1724, %v1916
        %v1981 = vsub.f32 %v1725, %v1917
        %v1982 = vsub.f32 %v1726, %v1918
        %v1983 = vsub.f32 %v1727, %v1919
        %v1984 = vsub.f32 %v1728, %v1920
        %v1985 = vsub.f32 %v1729, %v1921
        %v1986 = vsub.f32 %v1730, %v1922
        %v1987 = vsub.f32 %v1731, %v1923
        %v1988 = vsub.f32 %v1732, %v1924
        %v1989 = vsub.f32 %v1733, %v1925
        %v1990 = vsub.f32 %v1734, %v1926
        %v1991 = vsub.f32 %v1735, %v1927
        %v1992 = vsub.f32 %v1736, %v1928
        %v1993 = vsub.f32 %v1737, %v1929
        %v1994 = vsub.f32 %v1738, %v1930
        %v1995 = vsub.f32 %v1739, %v1931
        %v1996 = vsub.f32 %v1740, %v1932
        %v1997 = vsub.f32 %v1741, %v1933
        %v1998 = vsub.f32 %v1742, %v1934
        %v1999 = vsub.f32 %v1743, %v1935
        %v2000 = vsub.f32 %v1744, %v1936
        %v2001 = vsub.f32 %v1745, %v1937
        %v2002 = vsub.f32 %v1746, %v1938
        %v2003 = vsub.f32 %v1747, %v1939
        %v2004 = vsub.f32 %v1748, %v1940
        %v2005 = vsub.f32 %v1749, %v1941
        %v2006 = vsub.f32 %v1750, %v1942
        %v2007 = vsub.f32 %v1751, %v1943
        %v2008 = vsub.f32 %v1752, %v1944
        %v2009 = vsub.f32 %v1753, %v1945
        %v2010 = vsub.f32 %v1754, %v1946
        %v2011 = vsub.f32 %v1755, %v1947
        %v2012 = vsub.f32 %v1756, %v1948
        %v2013 = vsub.f32 %v1757, %v1949
        %v2014 = vsub.f32 %v1758, %v1950
        %v2015 = vsub.f32 %v1759, %v1951
        %v2016 = vsub.f32 %v1760, %v1952
        %v2017 = vsub.f32 %v1761, %v1953
        %v2018 = vsub.f32 %v1762, %v1954
        %v2019 = vsub.f32 %v1763, %v1955
        %v2020 = vmul.f32 %v1956, 1.442695
        %v2021 = vpow.pop %v2020
        %v2022 = vmul.f32 %v1957, 1.442695
        %v2023 = vpow.pop %v2022
        %v2024 = vmul.f32 %v1958, 1.442695
        %v2025 = vpow.pop %v2024
        %v2026 = vmul.f32 %v1959, 1.442695
        %v2027 = vpow.pop %v2026
        %v2028 = vmul.f32 %v1960, 1.442695
        %v2029 = vpow.pop %v2028
        %v2030 = vmul.f32 %v1961, 1.442695
        %v2031 = vpow.pop %v2030
        %v2032 = vmul.f32 %v1962, 1.442695
        %v2033 = vpow.pop %v2032
        %v2034 = vmul.f32 %v1963, 1.442695
        %v2035 = vpow.pop %v2034
        %v2036 = vmul.f32 %v1964, 1.442695
        %v2037 = vpow.pop %v2036
        %v2038 = vmul.f32 %v1965, 1.442695
        %v2039 = vpow.pop %v2038
        %v2040 = vmul.f32 %v1966, 1.442695
        %v2041 = vpow.pop %v2040
        %v2042 = vmul.f32 %v1967, 1.442695
        %v2043 = vpow.pop %v2042
        %v2044 = vmul.f32 %v1968, 1.442695
        %v2045 = vpow.pop %v2044
        %v2046 = vmul.f32 %v1969, 1.442695
        %v2047 = vpow.pop %v2046
        %v2048 = vmul.f32 %v1970, 1.442695
        %v2049 = vpow.pop %v2048
        %v2050 = vmul.f32 %v1971, 1.442695
        %v2051 = vpow.pop %v2050
        %v2052 = vmul.f32 %v1972, 1.442695
        %v2053 = vpow.pop %v2052
        %v2054 = vmul.f32 %v1973, 1.442695
        %v2055 = vpow.pop %v2054
        %v2056 = vmul.f32 %v1974, 1.442695
        %v2057 = vpow.pop %v2056
        %v2058 = vmul.f32 %v1975, 1.442695
        %v2059 = vpow.pop %v2058
        %v2060 = vmul.f32 %v1976, 1.442695
        %v2061 = vpow.pop %v2060
        %v2062 = vmul.f32 %v1977, 1.442695
        %v2063 = vpow.pop %v2062
        %v2064 = vmul.f32 %v1978, 1.442695
        %v2065 = vpow.pop %v2064
        %v2066 = vmul.f32 %v1979, 1.442695
        %v2067 = vpow.pop %v2066
        %v2068 = vmul.f32 %v1980, 1.442695
        %v2069 = vpow.pop %v2068
        %v2070 = vmul.f32 %v1981, 1.442695
        %v2071 = vpow.pop %v2070
        %v2072 = vmul.f32 %v1982, 1.442695
        %v2073 = vpow.pop %v2072
        %v2074 = vmul.f32 %v1983, 1.442695
        %v2075 = vpow.pop %v2074
        %v2076 = vmul.f32 %v1984, 1.442695
        %v2077 = vpow.pop %v2076
        %v2078 = vmul.f32 %v1985, 1.442695
        %v2079 = vpow.pop %v2078
        %v2080 = vmul.f32 %v1986, 1.442695
        %v2081 = vpow.pop %v2080
        %v2082 = vmul.f32 %v1987, 1.442695
        %v2083 = vpow.pop %v2082
        %v2084 = vmul.f32 %v1988, 1.442695
        %v2085 = vpow.pop %v2084
        %v2086 = vmul.f32 %v1989, 1.442695
        %v2087 = vpow.pop %v2086
        %v2088 = vmul.f32 %v1990, 1.442695
        %v2089 = vpow.pop %v2088
        %v2090 = vmul.f32 %v1991, 1.442695
        %v2091 = vpow.pop %v2090
        %v2092 = vmul.f32 %v1992, 1.442695
        %v2093 = vpow.pop %v2092
        %v2094 = vmul.f32 %v1993, 1.442695
        %v2095 = vpow.pop %v2094
        %v2096 = vmul.f32 %v1994, 1.442695
        %v2097 = vpow.pop %v2096
        %v2098 = vmul.f32 %v1995, 1.442695
        %v2099 = vpow.pop %v2098
        %v2100 = vmul.f32 %v1996, 1.442695
        %v2101 = vpow.pop %v2100
        %v2102 = vmul.f32 %v1997, 1.442695
        %v2103 = vpow.pop %v2102
        %v2104 = vmul.f32 %v1998, 1.442695
        %v2105 = vpow.pop %v2104
        %v2106 = vmul.f32 %v1999, 1.442695
        %v2107 = vpow.pop %v2106
        %v2108 = vmul.f32 %v2000, 1.442695
        %v2109 = vpow.pop %v2108
        %v2110 = vmul.f32 %v2001, 1.442695
        %v2111 = vpow.pop %v2110
        %v2112 = vmul.f32 %v2002, 1.442695
        %v2113 = vpow.pop %v2112
        %v2114 = vmul.f32 %v2003, 1.442695
        %v2115 = vpow.pop %v2114
        %v2116 = vmul.f32 %v2004, 1.442695
        %v2117 = vpow.pop %v2116
        %v2118 = vmul.f32 %v2005, 1.442695
        %v2119 = vpow.pop %v2118
        %v2120 = vmul.f32 %v2006, 1.442695
        %v2121 = vpow.pop %v2120
        %v2122 = vmul.f32 %v2007, 1.442695
        %v2123 = vpow.pop %v2122
        %v2124 = vmul.f32 %v2008, 1.442695
        %v2125 = vpow.pop %v2124
        %v2126 = vmul.f32 %v2009, 1.442695
        %v2127 = vpow.pop %v2126
        %v2128 = vmul.f32 %v2010, 1.442695
        %v2129 = vpow.pop %v2128
        %v2130 = vmul.f32 %v2011, 1.442695
        %v2131 = vpow.pop %v2130
        %v2132 = vmul.f32 %v2012, 1.442695
        %v2133 = vpow.pop %v2132
        %v2134 = vmul.f32 %v2013, 1.442695
        %v2135 = vpow.pop %v2134
        %v2136 = vmul.f32 %v2014, 1.442695
        %v2137 = vpow.pop %v2136
        %v2138 = vmul.f32 %v2015, 1.442695
        %v2139 = vpow.pop %v2138
        %v2140 = vmul.f32 %v2016, 1.442695
        %v2141 = vpow.pop %v2140
        %v2142 = vmul.f32 %v2017, 1.442695
        %v2143 = vpow.pop %v2142
        %v2144 = vmul.f32 %v2018, 1.442695
        %v2145 = vpow.pop %v2144
        %v2146 = vmul.f32 %v2019, 1.442695
        %v2147 = vpow.pop %v2146
        %2149 = vset.pattern.permute.xlu0 0
        %2150 = vperm.xlu0 %2149, %v1892
        %v2151 = vpop.permute.xlu0 %2150
        %2154 = vset.pattern.permute.xlu0 0
        %2155 = vperm.xlu0 %2154, %v1893
        %v2156 = vpop.permute.xlu0 %2155
        %2159 = vset.pattern.permute.xlu0 0
        %2160 = vperm.xlu0 %2159, %v1894
        %v2161 = vpop.permute.xlu0 %2160
        %2164 = vset.pattern.permute.xlu0 0
        %2165 = vperm.xlu0 %2164, %v1895
        %v2166 = vpop.permute.xlu0 %2165
        %2169 = vset.pattern.permute.xlu0 0
        %2170 = vperm.xlu0 %2169, %v1896
        %v2171 = vpop.permute.xlu0 %2170
        %2174 = vset.pattern.permute.xlu0 0
        %2175 = vperm.xlu0 %2174, %v1897
        %v2176 = vpop.permute.xlu0 %2175
        %2179 = vset.pattern.permute.xlu0 0
        %2180 = vperm.xlu0 %2179, %v1898
        %v2181 = vpop.permute.xlu0 %2180
        %2184 = vset.pattern.permute.xlu0 0
        %2185 = vperm.xlu0 %2184, %v1899
        %v2186 = vpop.permute.xlu0 %2185
        %2189 = vset.pattern.permute.xlu0 0
        %2190 = vperm.xlu0 %2189, %v1900
        %v2191 = vpop.permute.xlu0 %2190
        %2194 = vset.pattern.permute.xlu0 0
        %2195 = vperm.xlu0 %2194, %v1901
        %v2196 = vpop.permute.xlu0 %2195
        %2199 = vset.pattern.permute.xlu0 0
        %2200 = vperm.xlu0 %2199, %v1902
        %v2201 = vpop.permute.xlu0 %2200
        %2204 = vset.pattern.permute.xlu0 0
        %2205 = vperm.xlu0 %2204, %v1903
        %v2206 = vpop.permute.xlu0 %2205
        %2209 = vset.pattern.permute.xlu0 0
        %2210 = vperm.xlu0 %2209, %v1904
        %v2211 = vpop.permute.xlu0 %2210
        %2214 = vset.pattern.permute.xlu0 0
        %2215 = vperm.xlu0 %2214, %v1905
        %v2216 = vpop.permute.xlu0 %2215
        %2219 = vset.pattern.permute.xlu0 0
        %2220 = vperm.xlu0 %2219, %v1906
        %v2221 = vpop.permute.xlu0 %2220
        %2224 = vset.pattern.permute.xlu0 0
        %2225 = vperm.xlu0 %2224, %v1907
        %v2226 = vpop.permute.xlu0 %2225
        %2229 = vset.pattern.permute.xlu0 0
        %2230 = vperm.xlu0 %2229, %v1908
        %v2231 = vpop.permute.xlu0 %2230
        %2234 = vset.pattern.permute.xlu0 0
        %2235 = vperm.xlu0 %2234, %v1909
        %v2236 = vpop.permute.xlu0 %2235
        %2239 = vset.pattern.permute.xlu0 0
        %2240 = vperm.xlu0 %2239, %v1910
        %v2241 = vpop.permute.xlu0 %2240
        %2244 = vset.pattern.permute.xlu0 0
        %2245 = vperm.xlu0 %2244, %v1911
        %v2246 = vpop.permute.xlu0 %2245
        %2249 = vset.pattern.permute.xlu0 0
        %2250 = vperm.xlu0 %2249, %v1912
        %v2251 = vpop.permute.xlu0 %2250
        %2254 = vset.pattern.permute.xlu0 0
        %2255 = vperm.xlu0 %2254, %v1913
        %v2256 = vpop.permute.xlu0 %2255
        %2259 = vset.pattern.permute.xlu0 0
        %2260 = vperm.xlu0 %2259, %v1914
        %v2261 = vpop.permute.xlu0 %2260
        %2264 = vset.pattern.permute.xlu0 0
        %2265 = vperm.xlu0 %2264, %v1915
        %v2266 = vpop.permute.xlu0 %2265
        %2269 = vset.pattern.permute.xlu0 0
        %2270 = vperm.xlu0 %2269, %v1916
        %v2271 = vpop.permute.xlu0 %2270
        %2274 = vset.pattern.permute.xlu0 0
        %2275 = vperm.xlu0 %2274, %v1917
        %v2276 = vpop.permute.xlu0 %2275
        %2279 = vset.pattern.permute.xlu0 0
        %2280 = vperm.xlu0 %2279, %v1918
        %v2281 = vpop.permute.xlu0 %2280
        %2284 = vset.pattern.permute.xlu0 0
        %2285 = vperm.xlu0 %2284, %v1919
        %v2286 = vpop.permute.xlu0 %2285
        %2289 = vset.pattern.permute.xlu0 0
        %2290 = vperm.xlu0 %2289, %v1920
        %v2291 = vpop.permute.xlu0 %2290
        %2294 = vset.pattern.permute.xlu0 0
        %2295 = vperm.xlu0 %2294, %v1921
        %v2296 = vpop.permute.xlu0 %2295
        %2299 = vset.pattern.permute.xlu0 0
        %2300 = vperm.xlu0 %2299, %v1922
        %v2301 = vpop.permute.xlu0 %2300
        %2304 = vset.pattern.permute.xlu0 0
        %2305 = vperm.xlu0 %2304, %v1923
        %v2306 = vpop.permute.xlu0 %2305
        %2309 = vset.pattern.permute.xlu0 0
        %2310 = vperm.xlu0 %2309, %v1924
        %v2311 = vpop.permute.xlu0 %2310
        %2314 = vset.pattern.permute.xlu0 0
        %2315 = vperm.xlu0 %2314, %v1925
        %v2316 = vpop.permute.xlu0 %2315
        %2319 = vset.pattern.permute.xlu0 0
        %2320 = vperm.xlu0 %2319, %v1926
        %v2321 = vpop.permute.xlu0 %2320
        %2324 = vset.pattern.permute.xlu0 0
        %2325 = vperm.xlu0 %2324, %v1927
        %v2326 = vpop.permute.xlu0 %2325
        %2329 = vset.pattern.permute.xlu0 0
        %2330 = vperm.xlu0 %2329, %v1928
        %v2331 = vpop.permute.xlu0 %2330
        %2334 = vset.pattern.permute.xlu0 0
        %2335 = vperm.xlu0 %2334, %v1929
        %v2336 = vpop.permute.xlu0 %2335
        %2339 = vset.pattern.permute.xlu0 0
        %2340 = vperm.xlu0 %2339, %v1930
        %v2341 = vpop.permute.xlu0 %2340
        %2344 = vset.pattern.permute.xlu0 0
        %2345 = vperm.xlu0 %2344, %v1931
        %v2346 = vpop.permute.xlu0 %2345
        %2349 = vset.pattern.permute.xlu0 0
        %2350 = vperm.xlu0 %2349, %v1932
        %v2351 = vpop.permute.xlu0 %2350
        %2354 = vset.pattern.permute.xlu0 0
        %2355 = vperm.xlu0 %2354, %v1933
        %v2356 = vpop.permute.xlu0 %2355
        %2359 = vset.pattern.permute.xlu0 0
        %2360 = vperm.xlu0 %2359, %v1934
        %v2361 = vpop.permute.xlu0 %2360
        %2364 = vset.pattern.permute.xlu0 0
        %2365 = vperm.xlu0 %2364, %v1935
        %v2366 = vpop.permute.xlu0 %2365
        %2369 = vset.pattern.permute.xlu0 0
        %2370 = vperm.xlu0 %2369, %v1936
        %v2371 = vpop.permute.xlu0 %2370
        %2374 = vset.pattern.permute.xlu0 0
        %2375 = vperm.xlu0 %2374, %v1937
        %v2376 = vpop.permute.xlu0 %2375
        %2379 = vset.pattern.permute.xlu0 0
        %2380 = vperm.xlu0 %2379, %v1938
        %v2381 = vpop.permute.xlu0 %2380
        %2384 = vset.pattern.permute.xlu0 0
        %2385 = vperm.xlu0 %2384, %v1939
        %v2386 = vpop.permute.xlu0 %2385
        %2389 = vset.pattern.permute.xlu0 0
        %2390 = vperm.xlu0 %2389, %v1940
        %v2391 = vpop.permute.xlu0 %2390
        %2394 = vset.pattern.permute.xlu0 0
        %2395 = vperm.xlu0 %2394, %v1941
        %v2396 = vpop.permute.xlu0 %2395
        %2399 = vset.pattern.permute.xlu0 0
        %2400 = vperm.xlu0 %2399, %v1942
        %v2401 = vpop.permute.xlu0 %2400
        %2404 = vset.pattern.permute.xlu0 0
        %2405 = vperm.xlu0 %2404, %v1943
        %v2406 = vpop.permute.xlu0 %2405
        %2409 = vset.pattern.permute.xlu0 0
        %2410 = vperm.xlu0 %2409, %v1944
        %v2411 = vpop.permute.xlu0 %2410
        %2414 = vset.pattern.permute.xlu0 0
        %2415 = vperm.xlu0 %2414, %v1945
        %v2416 = vpop.permute.xlu0 %2415
        %2419 = vset.pattern.permute.xlu0 0
        %2420 = vperm.xlu0 %2419, %v1946
        %v2421 = vpop.permute.xlu0 %2420
        %2424 = vset.pattern.permute.xlu0 0
        %2425 = vperm.xlu0 %2424, %v1947
        %v2426 = vpop.permute.xlu0 %2425
        %2429 = vset.pattern.permute.xlu0 0
        %2430 = vperm.xlu0 %2429, %v1948
        %v2431 = vpop.permute.xlu0 %2430
        %2434 = vset.pattern.permute.xlu0 0
        %2435 = vperm.xlu0 %2434, %v1949
        %v2436 = vpop.permute.xlu0 %2435
        %2439 = vset.pattern.permute.xlu0 0
        %2440 = vperm.xlu0 %2439, %v1950
        %v2441 = vpop.permute.xlu0 %2440
        %2444 = vset.pattern.permute.xlu0 0
        %2445 = vperm.xlu0 %2444, %v1951
        %v2446 = vpop.permute.xlu0 %2445
        %2449 = vset.pattern.permute.xlu0 0
        %2450 = vperm.xlu0 %2449, %v1952
        %v2451 = vpop.permute.xlu0 %2450
        %2454 = vset.pattern.permute.xlu0 0
        %2455 = vperm.xlu0 %2454, %v1953
        %v2456 = vpop.permute.xlu0 %2455
        %2459 = vset.pattern.permute.xlu0 0
        %2460 = vperm.xlu0 %2459, %v1954
        %v2461 = vpop.permute.xlu0 %2460
        %2464 = vset.pattern.permute.xlu0 0
        %2465 = vperm.xlu0 %2464, %v1955
        %v2466 = vpop.permute.xlu0 %2465
        %v2468 = vsub.f32 %v963, %v2151
        %v2469 = vsub.f32 %v966, %v2156
        %v2470 = vsub.f32 %v971, %v2161
        %v2471 = vsub.f32 %v974, %v2166
        %v2472 = vsub.f32 %v979, %v2171
        %v2473 = vsub.f32 %v982, %v2176
        %v2474 = vsub.f32 %v987, %v2181
        %v2475 = vsub.f32 %v990, %v2186
        %v2476 = vsub.f32 %v995, %v2191
        %v2477 = vsub.f32 %v998, %v2196
        %v2478 = vsub.f32 %v1003, %v2201
        %v2479 = vsub.f32 %v1006, %v2206
        %v2480 = vsub.f32 %v1011, %v2211
        %v2481 = vsub.f32 %v1014, %v2216
        %v2482 = vsub.f32 %v1019, %v2221
        %v2483 = vsub.f32 %v1022, %v2226
        %v2484 = vsub.f32 %v1188, %v2231
        %v2485 = vsub.f32 %v1191, %v2236
        %v2486 = vsub.f32 %v1196, %v2241
        %v2487 = vsub.f32 %v1199, %v2246
        %v2488 = vsub.f32 %v1204, %v2251
        %v2489 = vsub.f32 %v1207, %v2256
        %v2490 = vsub.f32 %v1212, %v2261
        %v2491 = vsub.f32 %v1215, %v2266
        %v2492 = vsub.f32 %v1220, %v2271
        %v2493 = vsub.f32 %v1223, %v2276
        %v2494 = vsub.f32 %v1228, %v2281
        %v2495 = vsub.f32 %v1231, %v2286
        %v2496 = vsub.f32 %v1236, %v2291
        %v2497 = vsub.f32 %v1239, %v2296
        %v2498 = vsub.f32 %v1244, %v2301
        %v2499 = vsub.f32 %v1247, %v2306
        %v2500 = vsub.f32 %v1413, %v2311
        %v2501 = vsub.f32 %v1416, %v2316
        %v2502 = vsub.f32 %v1421, %v2321
        %v2503 = vsub.f32 %v1424, %v2326
        %v2504 = vsub.f32 %v1429, %v2331
        %v2505 = vsub.f32 %v1432, %v2336
        %v2506 = vsub.f32 %v1437, %v2341
        %v2507 = vsub.f32 %v1440, %v2346
        %v2508 = vsub.f32 %v1445, %v2351
        %v2509 = vsub.f32 %v1448, %v2356
        %v2510 = vsub.f32 %v1453, %v2361
        %v2511 = vsub.f32 %v1456, %v2366
        %v2512 = vsub.f32 %v1461, %v2371
        %v2513 = vsub.f32 %v1464, %v2376
        %v2514 = vsub.f32 %v1469, %v2381
        %v2515 = vsub.f32 %v1472, %v2386
        %v2516 = vsub.f32 %v1638, %v2391
        %v2517 = vsub.f32 %v1641, %v2396
        %v2518 = vsub.f32 %v1646, %v2401
        %v2519 = vsub.f32 %v1649, %v2406
        %v2520 = vsub.f32 %v1654, %v2411
        %v2521 = vsub.f32 %v1657, %v2416
        %v2522 = vsub.f32 %v1662, %v2421
        %v2523 = vsub.f32 %v1665, %v2426
        %v2524 = vsub.f32 %v1670, %v2431
        %v2525 = vsub.f32 %v1673, %v2436
        %v2526 = vsub.f32 %v1678, %v2441
        %v2527 = vsub.f32 %v1681, %v2446
        %v2528 = vsub.f32 %v1686, %v2451
        %v2529 = vsub.f32 %v1689, %v2456
        %v2530 = vsub.f32 %v1694, %v2461
        %v2531 = vsub.f32 %v1697, %v2466
        %v2532 = vpack.c.bf16 %v2469, %v2468
        %v2533 = vpack.c.bf16 %v2471, %v2470
        %v2534 = vpack.c.bf16 %v2473, %v2472
        %v2535 = vpack.c.bf16 %v2475, %v2474
        %v2536 = vpack.c.bf16 %v2477, %v2476
        %v2537 = vpack.c.bf16 %v2479, %v2478
        %v2538 = vpack.c.bf16 %v2481, %v2480
        %v2539 = vpack.c.bf16 %v2483, %v2482
        %v2540 = vpack.c.bf16 %v2485, %v2484
        %v2541 = vpack.c.bf16 %v2487, %v2486
        %v2542 = vpack.c.bf16 %v2489, %v2488
        %v2543 = vpack.c.bf16 %v2491, %v2490
        %v2544 = vpack.c.bf16 %v2493, %v2492
        %v2545 = vpack.c.bf16 %v2495, %v2494
        %v2546 = vpack.c.bf16 %v2497, %v2496
        %v2547 = vpack.c.bf16 %v2499, %v2498
        %v2548 = vpack.c.bf16 %v2501, %v2500
        %v2549 = vpack.c.bf16 %v2503, %v2502
        %v2550 = vpack.c.bf16 %v2505, %v2504
        %v2551 = vpack.c.bf16 %v2507, %v2506
        %v2552 = vpack.c.bf16 %v2509, %v2508
        %v2553 = vpack.c.bf16 %v2511, %v2510
        %v2554 = vpack.c.bf16 %v2513, %v2512
        %v2555 = vpack.c.bf16 %v2515, %v2514
        %v2556 = vpack.c.bf16 %v2517, %v2516
        %v2557 = vpack.c.bf16 %v2519, %v2518
        %v2558 = vpack.c.bf16 %v2521, %v2520
        %v2559 = vpack.c.bf16 %v2523, %v2522
        %v2560 = vpack.c.bf16 %v2525, %v2524
        %v2561 = vpack.c.bf16 %v2527, %v2526
        %v2562 = vpack.c.bf16 %v2529, %v2528
        %v2563 = vpack.c.bf16 %v2531, %v2530
        %v2565 = vmul.bf16 %v2532, 1069105081
        %v2566 = vpow.bf16.pop %v2565
        %v2568 = vmul.bf16 %v2533, 1069105081
        %v2569 = vpow.bf16.pop %v2568
        %v2571 = vmul.bf16 %v2534, 1069105081
        %v2572 = vpow.bf16.pop %v2571
        %v2574 = vmul.bf16 %v2535, 1069105081
        %v2575 = vpow.bf16.pop %v2574
        %v2577 = vmul.bf16 %v2536, 1069105081
        %v2578 = vpow.bf16.pop %v2577
        %v2580 = vmul.bf16 %v2537, 1069105081
        %v2581 = vpow.bf16.pop %v2580
        %v2583 = vmul.bf16 %v2538, 1069105081
        %v2584 = vpow.bf16.pop %v2583
        %v2586 = vmul.bf16 %v2539, 1069105081
        %v2587 = vpow.bf16.pop %v2586
        %v2589 = vmul.bf16 %v2540, 1069105081
        %v2590 = vpow.bf16.pop %v2589
        %v2592 = vmul.bf16 %v2541, 1069105081
        %v2593 = vpow.bf16.pop %v2592
        %v2595 = vmul.bf16 %v2542, 1069105081
        %v2596 = vpow.bf16.pop %v2595
        %v2598 = vmul.bf16 %v2543, 1069105081
        %v2599 = vpow.bf16.pop %v2598
        %v2601 = vmul.bf16 %v2544, 1069105081
        %v2602 = vpow.bf16.pop %v2601
        %v2604 = vmul.bf16 %v2545, 1069105081
        %v2605 = vpow.bf16.pop %v2604
        %v2607 = vmul.bf16 %v2546, 1069105081
        %v2608 = vpow.bf16.pop %v2607
        %v2610 = vmul.bf16 %v2547, 1069105081
        %v2611 = vpow.bf16.pop %v2610
        %v2613 = vmul.bf16 %v2548, 1069105081
        %v2614 = vpow.bf16.pop %v2613
        %v2616 = vmul.bf16 %v2549, 1069105081
        %v2617 = vpow.bf16.pop %v2616
        %v2619 = vmul.bf16 %v2550, 1069105081
        %v2620 = vpow.bf16.pop %v2619
        %v2622 = vmul.bf16 %v2551, 1069105081
        %v2623 = vpow.bf16.pop %v2622
        %v2625 = vmul.bf16 %v2552, 1069105081
        %v2626 = vpow.bf16.pop %v2625
        %v2628 = vmul.bf16 %v2553, 1069105081
        %v2629 = vpow.bf16.pop %v2628
        %v2631 = vmul.bf16 %v2554, 1069105081
        %v2632 = vpow.bf16.pop %v2631
        %v2634 = vmul.bf16 %v2555, 1069105081
        %v2635 = vpow.bf16.pop %v2634
        %v2637 = vmul.bf16 %v2556, 1069105081
        %v2638 = vpow.bf16.pop %v2637
        %v2640 = vmul.bf16 %v2557, 1069105081
        %v2641 = vpow.bf16.pop %v2640
        %v2643 = vmul.bf16 %v2558, 1069105081
        %v2644 = vpow.bf16.pop %v2643
        %v2646 = vmul.bf16 %v2559, 1069105081
        %v2647 = vpow.bf16.pop %v2646
        %v2649 = vmul.bf16 %v2560, 1069105081
        %v2650 = vpow.bf16.pop %v2649
        %v2652 = vmul.bf16 %v2561, 1069105081
        %v2653 = vpow.bf16.pop %v2652
        %v2655 = vmul.bf16 %v2562, 1069105081
        %v2656 = vpow.bf16.pop %v2655
        %v2658 = vmul.bf16 %v2563, 1069105081
        %v2659 = vpow.bf16.pop %v2658
        %v2660 = vld [vmem:[#allocation3] sm:$0xff]
        %v2661 = vld [vmem:[#allocation3 + $0x8] sm:$0xff]
        %v2662 = vld [vmem:[#allocation3 + $0x10] sm:$0xff]
        %v2663 = vld [vmem:[#allocation3 + $0x18] sm:$0xff]
        %v2664 = vld [vmem:[#allocation3 + $0x20] sm:$0xff]
        %v2665 = vld [vmem:[#allocation3 + $0x28] sm:$0xff]
        %v2666 = vld [vmem:[#allocation3 + $0x30] sm:$0xff]
        %v2667 = vld [vmem:[#allocation3 + $0x38] sm:$0xff]
        %v2668 = vld [vmem:[#allocation3 + $0x40] sm:$0xff]
        %v2669 = vld [vmem:[#allocation3 + $0x48] sm:$0xff]
        %v2670 = vld [vmem:[#allocation3 + $0x50] sm:$0xff]
        %v2671 = vld [vmem:[#allocation3 + $0x58] sm:$0xff]
        %v2672 = vld [vmem:[#allocation3 + $0x60] sm:$0xff]
        %v2673 = vld [vmem:[#allocation3 + $0x68] sm:$0xff]
        %v2674 = vld [vmem:[#allocation3 + $0x70] sm:$0xff]
        %v2675 = vld [vmem:[#allocation3 + $0x78] sm:$0xff]
        %v2676 = vld [vmem:[#allocation3 + $0x80] sm:$0xff]
        %v2677 = vld [vmem:[#allocation3 + $0x88] sm:$0xff]
        %v2678 = vld [vmem:[#allocation3 + $0x90] sm:$0xff]
        %v2679 = vld [vmem:[#allocation3 + $0x98] sm:$0xff]
        %v2680 = vld [vmem:[#allocation3 + $0xa0] sm:$0xff]
        %v2681 = vld [vmem:[#allocation3 + $0xa8] sm:$0xff]
        %v2682 = vld [vmem:[#allocation3 + $0xb0] sm:$0xff]
        %v2683 = vld [vmem:[#allocation3 + $0xb8] sm:$0xff]
        %v2684 = vld [vmem:[#allocation3 + $0xc0] sm:$0xff]
        %v2685 = vld [vmem:[#allocation3 + $0xc8] sm:$0xff]
        %v2686 = vld [vmem:[#allocation3 + $0xd0] sm:$0xff]
        %v2687 = vld [vmem:[#allocation3 + $0xd8] sm:$0xff]
        %v2688 = vld [vmem:[#allocation3 + $0xe0] sm:$0xff]
        %v2689 = vld [vmem:[#allocation3 + $0xe8] sm:$0xff]
        %v2690 = vld [vmem:[#allocation3 + $0xf0] sm:$0xff]
        %v2691 = vld [vmem:[#allocation3 + $0xf8] sm:$0xff]
        %v2692 = vld [vmem:[#allocation3 + $0x100] sm:$0xff]
        %v2693 = vld [vmem:[#allocation3 + $0x108] sm:$0xff]
        %v2694 = vld [vmem:[#allocation3 + $0x110] sm:$0xff]
        %v2695 = vld [vmem:[#allocation3 + $0x118] sm:$0xff]
        %v2696 = vld [vmem:[#allocation3 + $0x120] sm:$0xff]
        %v2697 = vld [vmem:[#allocation3 + $0x128] sm:$0xff]
        %v2698 = vld [vmem:[#allocation3 + $0x130] sm:$0xff]
        %v2699 = vld [vmem:[#allocation3 + $0x138] sm:$0xff]
        %v2700 = vld [vmem:[#allocation3 + $0x140] sm:$0xff]
        %v2701 = vld [vmem:[#allocation3 + $0x148] sm:$0xff]
        %v2702 = vld [vmem:[#allocation3 + $0x150] sm:$0xff]
        %v2703 = vld [vmem:[#allocation3 + $0x158] sm:$0xff]
        %v2704 = vld [vmem:[#allocation3 + $0x160] sm:$0xff]
        %v2705 = vld [vmem:[#allocation3 + $0x168] sm:$0xff]
        %v2706 = vld [vmem:[#allocation3 + $0x170] sm:$0xff]
        %v2707 = vld [vmem:[#allocation3 + $0x178] sm:$0xff]
        %v2708 = vld [vmem:[#allocation3 + $0x180] sm:$0xff]
        %v2709 = vld [vmem:[#allocation3 + $0x188] sm:$0xff]
        %v2710 = vld [vmem:[#allocation3 + $0x190] sm:$0xff]
        %v2711 = vld [vmem:[#allocation3 + $0x198] sm:$0xff]
        %v2712 = vld [vmem:[#allocation3 + $0x1a0] sm:$0xff]
        %v2713 = vld [vmem:[#allocation3 + $0x1a8] sm:$0xff]
        %v2714 = vld [vmem:[#allocation3 + $0x1b0] sm:$0xff]
        %v2715 = vld [vmem:[#allocation3 + $0x1b8] sm:$0xff]
        %v2716 = vld [vmem:[#allocation3 + $0x1c0] sm:$0xff]
        %v2717 = vld [vmem:[#allocation3 + $0x1c8] sm:$0xff]
        %v2718 = vld [vmem:[#allocation3 + $0x1d0] sm:$0xff]
        %v2719 = vld [vmem:[#allocation3 + $0x1d8] sm:$0xff]
        %v2720 = vld [vmem:[#allocation3 + $0x1e0] sm:$0xff]
        %v2721 = vld [vmem:[#allocation3 + $0x1e8] sm:$0xff]
        %v2722 = vld [vmem:[#allocation3 + $0x1f0] sm:$0xff]
        %v2723 = vld [vmem:[#allocation3 + $0x1f8] sm:$0xff]
        %v2724 = vmul.f32 %v2021, %v2660
        %v2725 = vmul.f32 %v2023, %v2661
        %v2726 = vmul.f32 %v2025, %v2662
        %v2727 = vmul.f32 %v2027, %v2663
        %v2728 = vmul.f32 %v2029, %v2664
        %v2729 = vmul.f32 %v2031, %v2665
        %v2730 = vmul.f32 %v2033, %v2666
        %v2731 = vmul.f32 %v2035, %v2667
        %v2732 = vmul.f32 %v2037, %v2668
        %v2733 = vmul.f32 %v2039, %v2669
        %v2734 = vmul.f32 %v2041, %v2670
        %v2735 = vmul.f32 %v2043, %v2671
        %v2736 = vmul.f32 %v2045, %v2672
        %v2737 = vmul.f32 %v2047, %v2673
        %v2738 = vmul.f32 %v2049, %v2674
        %v2739 = vmul.f32 %v2051, %v2675
        %v2740 = vmul.f32 %v2053, %v2676
        %v2741 = vmul.f32 %v2055, %v2677
        %v2742 = vmul.f32 %v2057, %v2678
        %v2743 = vmul.f32 %v2059, %v2679
        %v2744 = vmul.f32 %v2061, %v2680
        %v2745 = vmul.f32 %v2063, %v2681
        %v2746 = vmul.f32 %v2065, %v2682
        %v2747 = vmul.f32 %v2067, %v2683
        %v2748 = vmul.f32 %v2069, %v2684
        %v2749 = vmul.f32 %v2071, %v2685
        %v2750 = vmul.f32 %v2073, %v2686
        %v2751 = vmul.f32 %v2075, %v2687
        %v2752 = vmul.f32 %v2077, %v2688
        %v2753 = vmul.f32 %v2079, %v2689
        %v2754 = vmul.f32 %v2081, %v2690
        %v2755 = vmul.f32 %v2083, %v2691
        %v2756 = vmul.f32 %v2085, %v2692
        %v2757 = vmul.f32 %v2087, %v2693
        %v2758 = vmul.f32 %v2089, %v2694
        %v2759 = vmul.f32 %v2091, %v2695
        %v2760 = vmul.f32 %v2093, %v2696
        %v2761 = vmul.f32 %v2095, %v2697
        %v2762 = vmul.f32 %v2097, %v2698
        %v2763 = vmul.f32 %v2099, %v2699
        %v2764 = vmul.f32 %v2101, %v2700
        %v2765 = vmul.f32 %v2103, %v2701
        %v2766 = vmul.f32 %v2105, %v2702
        %v2767 = vmul.f32 %v2107, %v2703
        %v2768 = vmul.f32 %v2109, %v2704
        %v2769 = vmul.f32 %v2111, %v2705
        %v2770 = vmul.f32 %v2113, %v2706
        %v2771 = vmul.f32 %v2115, %v2707
        %v2772 = vmul.f32 %v2117, %v2708
        %v2773 = vmul.f32 %v2119, %v2709
        %v2774 = vmul.f32 %v2121, %v2710
        %v2775 = vmul.f32 %v2123, %v2711
        %v2776 = vmul.f32 %v2125, %v2712
        %v2777 = vmul.f32 %v2127, %v2713
        %v2778 = vmul.f32 %v2129, %v2714
        %v2779 = vmul.f32 %v2131, %v2715
        %v2780 = vmul.f32 %v2133, %v2716
        %v2781 = vmul.f32 %v2135, %v2717
        %v2782 = vmul.f32 %v2137, %v2718
        %v2783 = vmul.f32 %v2139, %v2719
        %v2784 = vmul.f32 %v2141, %v2720
        %v2785 = vmul.f32 %v2143, %v2721
        %v2786 = vmul.f32 %v2145, %v2722
        %v2787 = vmul.f32 %v2147, %v2723
        %v2788 = vunpack.c.l.bf16 %v2566
        %v2789 = vunpack.c.h.bf16 %v2566
        %v2790 = vunpack.c.l.bf16 %v2569
        %v2791 = vunpack.c.h.bf16 %v2569
        %v2792 = vunpack.c.l.bf16 %v2572
        %v2793 = vunpack.c.h.bf16 %v2572
        %v2794 = vunpack.c.l.bf16 %v2575
        %v2795 = vunpack.c.h.bf16 %v2575
        %v2796 = vunpack.c.l.bf16 %v2578
        %v2797 = vunpack.c.h.bf16 %v2578
        %v2798 = vunpack.c.l.bf16 %v2581
        %v2799 = vunpack.c.h.bf16 %v2581
        %v2800 = vunpack.c.l.bf16 %v2584
        %v2801 = vunpack.c.h.bf16 %v2584
        %v2802 = vunpack.c.l.bf16 %v2587
        %v2803 = vunpack.c.h.bf16 %v2587
        %v2804 = vunpack.c.l.bf16 %v2590
        %v2805 = vunpack.c.h.bf16 %v2590
        %v2806 = vunpack.c.l.bf16 %v2593
        %v2807 = vunpack.c.h.bf16 %v2593
        %v2808 = vunpack.c.l.bf16 %v2596
        %v2809 = vunpack.c.h.bf16 %v2596
        %v2810 = vunpack.c.l.bf16 %v2599
        %v2811 = vunpack.c.h.bf16 %v2599
        %v2812 = vunpack.c.l.bf16 %v2602
        %v2813 = vunpack.c.h.bf16 %v2602
        %v2814 = vunpack.c.l.bf16 %v2605
        %v2815 = vunpack.c.h.bf16 %v2605
        %v2816 = vunpack.c.l.bf16 %v2608
        %v2817 = vunpack.c.h.bf16 %v2608
        %v2818 = vunpack.c.l.bf16 %v2611
        %v2819 = vunpack.c.h.bf16 %v2611
        %v2820 = vunpack.c.l.bf16 %v2614
        %v2821 = vunpack.c.h.bf16 %v2614
        %v2822 = vunpack.c.l.bf16 %v2617
        %v2823 = vunpack.c.h.bf16 %v2617
        %v2824 = vunpack.c.l.bf16 %v2620
        %v2825 = vunpack.c.h.bf16 %v2620
        %v2826 = vunpack.c.l.bf16 %v2623
        %v2827 = vunpack.c.h.bf16 %v2623
        %v2828 = vunpack.c.l.bf16 %v2626
        %v2829 = vunpack.c.h.bf16 %v2626
        %v2830 = vunpack.c.l.bf16 %v2629
        %v2831 = vunpack.c.h.bf16 %v2629
        %v2832 = vunpack.c.l.bf16 %v2632
        %v2833 = vunpack.c.h.bf16 %v2632
        %v2834 = vunpack.c.l.bf16 %v2635
        %v2835 = vunpack.c.h.bf16 %v2635
        %v2836 = vunpack.c.l.bf16 %v2638
        %v2837 = vunpack.c.h.bf16 %v2638
        %v2838 = vunpack.c.l.bf16 %v2641
        %v2839 = vunpack.c.h.bf16 %v2641
        %v2840 = vunpack.c.l.bf16 %v2644
        %v2841 = vunpack.c.h.bf16 %v2644
        %v2842 = vunpack.c.l.bf16 %v2647
        %v2843 = vunpack.c.h.bf16 %v2647
        %v2844 = vunpack.c.l.bf16 %v2650
        %v2845 = vunpack.c.h.bf16 %v2650
        %v2846 = vunpack.c.l.bf16 %v2653
        %v2847 = vunpack.c.h.bf16 %v2653
        %v2848 = vunpack.c.l.bf16 %v2656
        %v2849 = vunpack.c.h.bf16 %v2656
        %v2850 = vunpack.c.l.bf16 %v2659
        %v2851 = vunpack.c.h.bf16 %v2659
        %2852 = vadd.xlane.f32.xlu0 %v2788
        %v2853 = vpop.xlane.xlu0 %2852
        %2854 = vadd.xlane.f32.xlu0 %v2789
        %v2855 = vpop.xlane.xlu0 %2854
        %2856 = vadd.xlane.f32.xlu0 %v2790
        %v2857 = vpop.xlane.xlu0 %2856
        %2858 = vadd.xlane.f32.xlu0 %v2791
        %v2859 = vpop.xlane.xlu0 %2858
        %2860 = vadd.xlane.f32.xlu0 %v2792
        %v2861 = vpop.xlane.xlu0 %2860
        %2862 = vadd.xlane.f32.xlu0 %v2793
        %v2863 = vpop.xlane.xlu0 %2862
        %2864 = vadd.xlane.f32.xlu0 %v2794
        %v2865 = vpop.xlane.xlu0 %2864
        %2866 = vadd.xlane.f32.xlu0 %v2795
        %v2867 = vpop.xlane.xlu0 %2866
        %2868 = vadd.xlane.f32.xlu0 %v2796
        %v2869 = vpop.xlane.xlu0 %2868
        %2870 = vadd.xlane.f32.xlu0 %v2797
        %v2871 = vpop.xlane.xlu0 %2870
        %2872 = vadd.xlane.f32.xlu0 %v2798
        %v2873 = vpop.xlane.xlu0 %2872
        %2874 = vadd.xlane.f32.xlu0 %v2799
        %v2875 = vpop.xlane.xlu0 %2874
        %2876 = vadd.xlane.f32.xlu0 %v2800
        %v2877 = vpop.xlane.xlu0 %2876
        %2878 = vadd.xlane.f32.xlu0 %v2801
        %v2879 = vpop.xlane.xlu0 %2878
        %2880 = vadd.xlane.f32.xlu0 %v2802
        %v2881 = vpop.xlane.xlu0 %2880
        %2882 = vadd.xlane.f32.xlu0 %v2803
        %v2883 = vpop.xlane.xlu0 %2882
        %2884 = vadd.xlane.f32.xlu0 %v2804
        %v2885 = vpop.xlane.xlu0 %2884
        %2886 = vadd.xlane.f32.xlu0 %v2805
        %v2887 = vpop.xlane.xlu0 %2886
        %2888 = vadd.xlane.f32.xlu0 %v2806
        %v2889 = vpop.xlane.xlu0 %2888
        %2890 = vadd.xlane.f32.xlu0 %v2807
        %v2891 = vpop.xlane.xlu0 %2890
        %2892 = vadd.xlane.f32.xlu0 %v2808
        %v2893 = vpop.xlane.xlu0 %2892
        %2894 = vadd.xlane.f32.xlu0 %v2809
        %v2895 = vpop.xlane.xlu0 %2894
        %2896 = vadd.xlane.f32.xlu0 %v2810
        %v2897 = vpop.xlane.xlu0 %2896
        %2898 = vadd.xlane.f32.xlu0 %v2811
        %v2899 = vpop.xlane.xlu0 %2898
        %2900 = vadd.xlane.f32.xlu0 %v2812
        %v2901 = vpop.xlane.xlu0 %2900
        %2902 = vadd.xlane.f32.xlu0 %v2813
        %v2903 = vpop.xlane.xlu0 %2902
        %2904 = vadd.xlane.f32.xlu0 %v2814
        %v2905 = vpop.xlane.xlu0 %2904
        %2906 = vadd.xlane.f32.xlu0 %v2815
        %v2907 = vpop.xlane.xlu0 %2906
        %2908 = vadd.xlane.f32.xlu0 %v2816
        %v2909 = vpop.xlane.xlu0 %2908
        %2910 = vadd.xlane.f32.xlu0 %v2817
        %v2911 = vpop.xlane.xlu0 %2910
        %2912 = vadd.xlane.f32.xlu0 %v2818
        %v2913 = vpop.xlane.xlu0 %2912
        %2914 = vadd.xlane.f32.xlu0 %v2819
        %v2915 = vpop.xlane.xlu0 %2914
        %2916 = vadd.xlane.f32.xlu0 %v2820
        %v2917 = vpop.xlane.xlu0 %2916
        %2918 = vadd.xlane.f32.xlu0 %v2821
        %v2919 = vpop.xlane.xlu0 %2918
        %2920 = vadd.xlane.f32.xlu0 %v2822
        %v2921 = vpop.xlane.xlu0 %2920
        %2922 = vadd.xlane.f32.xlu0 %v2823
        %v2923 = vpop.xlane.xlu0 %2922
        %2924 = vadd.xlane.f32.xlu0 %v2824
        %v2925 = vpop.xlane.xlu0 %2924
        %2926 = vadd.xlane.f32.xlu0 %v2825
        %v2927 = vpop.xlane.xlu0 %2926
        %2928 = vadd.xlane.f32.xlu0 %v2826
        %v2929 = vpop.xlane.xlu0 %2928
        %2930 = vadd.xlane.f32.xlu0 %v2827
        %v2931 = vpop.xlane.xlu0 %2930
        %2932 = vadd.xlane.f32.xlu0 %v2828
        %v2933 = vpop.xlane.xlu0 %2932
        %2934 = vadd.xlane.f32.xlu0 %v2829
        %v2935 = vpop.xlane.xlu0 %2934
        %2936 = vadd.xlane.f32.xlu0 %v2830
        %v2937 = vpop.xlane.xlu0 %2936
        %2938 = vadd.xlane.f32.xlu0 %v2831
        %v2939 = vpop.xlane.xlu0 %2938
        %2940 = vadd.xlane.f32.xlu0 %v2832
        %v2941 = vpop.xlane.xlu0 %2940
        %2942 = vadd.xlane.f32.xlu0 %v2833
        %v2943 = vpop.xlane.xlu0 %2942
        %2944 = vadd.xlane.f32.xlu0 %v2834
        %v2945 = vpop.xlane.xlu0 %2944
        %2946 = vadd.xlane.f32.xlu0 %v2835
        %v2947 = vpop.xlane.xlu0 %2946
        %2948 = vadd.xlane.f32.xlu0 %v2836
        %v2949 = vpop.xlane.xlu0 %2948
        %2950 = vadd.xlane.f32.xlu0 %v2837
        %v2951 = vpop.xlane.xlu0 %2950
        %2952 = vadd.xlane.f32.xlu0 %v2838
        %v2953 = vpop.xlane.xlu0 %2952
        %2954 = vadd.xlane.f32.xlu0 %v2839
        %v2955 = vpop.xlane.xlu0 %2954
        %2956 = vadd.xlane.f32.xlu0 %v2840
        %v2957 = vpop.xlane.xlu0 %2956
        %2958 = vadd.xlane.f32.xlu0 %v2841
        %v2959 = vpop.xlane.xlu0 %2958
        %2960 = vadd.xlane.f32.xlu0 %v2842
        %v2961 = vpop.xlane.xlu0 %2960
        %2962 = vadd.xlane.f32.xlu0 %v2843
        %v2963 = vpop.xlane.xlu0 %2962
        %2964 = vadd.xlane.f32.xlu0 %v2844
        %v2965 = vpop.xlane.xlu0 %2964
        %2966 = vadd.xlane.f32.xlu0 %v2845
        %v2967 = vpop.xlane.xlu0 %2966
        %2968 = vadd.xlane.f32.xlu0 %v2846
        %v2969 = vpop.xlane.xlu0 %2968
        %2970 = vadd.xlane.f32.xlu0 %v2847
        %v2971 = vpop.xlane.xlu0 %2970
        %2972 = vadd.xlane.f32.xlu0 %v2848
        %v2973 = vpop.xlane.xlu0 %2972
        %2974 = vadd.xlane.f32.xlu0 %v2849
        %v2975 = vpop.xlane.xlu0 %2974
        %2976 = vadd.xlane.f32.xlu0 %v2850
        %v2977 = vpop.xlane.xlu0 %2976
        %2978 = vadd.xlane.f32.xlu0 %v2851
        %v2979 = vpop.xlane.xlu0 %2978
        %v2980 = vadd.f32 %v2724, %v2853
        %v2981 = vadd.f32 %v2725, %v2855
        %v2982 = vadd.f32 %v2726, %v2857
        %v2983 = vadd.f32 %v2727, %v2859
        %v2984 = vadd.f32 %v2728, %v2861
        %v2985 = vadd.f32 %v2729, %v2863
        %v2986 = vadd.f32 %v2730, %v2865
        %v2987 = vadd.f32 %v2731, %v2867
        %v2988 = vadd.f32 %v2732, %v2869
        %v2989 = vadd.f32 %v2733, %v2871
        %v2990 = vadd.f32 %v2734, %v2873
        %v2991 = vadd.f32 %v2735, %v2875
        %v2992 = vadd.f32 %v2736, %v2877
        %v2993 = vadd.f32 %v2737, %v2879
        %v2994 = vadd.f32 %v2738, %v2881
        %v2995 = vadd.f32 %v2739, %v2883
        %v2996 = vadd.f32 %v2740, %v2885
        %v2997 = vadd.f32 %v2741, %v2887
        %v2998 = vadd.f32 %v2742, %v2889
        %v2999 = vadd.f32 %v2743, %v2891
        %v3000 = vadd.f32 %v2744, %v2893
        %v3001 = vadd.f32 %v2745, %v2895
        %v3002 = vadd.f32 %v2746, %v2897
        %v3003 = vadd.f32 %v2747, %v2899
        %v3004 = vadd.f32 %v2748, %v2901
        %v3005 = vadd.f32 %v2749, %v2903
        %v3006 = vadd.f32 %v2750, %v2905
        %v3007 = vadd.f32 %v2751, %v2907
        %v3008 = vadd.f32 %v2752, %v2909
        %v3009 = vadd.f32 %v2753, %v2911
        %v3010 = vadd.f32 %v2754, %v2913
        %v3011 = vadd.f32 %v2755, %v2915
        %v3012 = vadd.f32 %v2756, %v2917
        %v3013 = vadd.f32 %v2757, %v2919
        %v3014 = vadd.f32 %v2758, %v2921
        %v3015 = vadd.f32 %v2759, %v2923
        %v3016 = vadd.f32 %v2760, %v2925
        %v3017 = vadd.f32 %v2761, %v2927
        %v3018 = vadd.f32 %v2762, %v2929
        %v3019 = vadd.f32 %v2763, %v2931
        %v3020 = vadd.f32 %v2764, %v2933
        %v3021 = vadd.f32 %v2765, %v2935
        %v3022 = vadd.f32 %v2766, %v2937
        %v3023 = vadd.f32 %v2767, %v2939
        %v3024 = vadd.f32 %v2768, %v2941
        %v3025 = vadd.f32 %v2769, %v2943
        %v3026 = vadd.f32 %v2770, %v2945
        %v3027 = vadd.f32 %v2771, %v2947
        %v3028 = vadd.f32 %v2772, %v2949
        %v3029 = vadd.f32 %v2773, %v2951
        %v3030 = vadd.f32 %v2774, %v2953
        %v3031 = vadd.f32 %v2775, %v2955
        %v3032 = vadd.f32 %v2776, %v2957
        %v3033 = vadd.f32 %v2777, %v2959
        %v3034 = vadd.f32 %v2778, %v2961
        %v3035 = vadd.f32 %v2779, %v2963
        %v3036 = vadd.f32 %v2780, %v2965
        %v3037 = vadd.f32 %v2781, %v2967
        %v3038 = vadd.f32 %v2782, %v2969
        %v3039 = vadd.f32 %v2783, %v2971
        %v3040 = vadd.f32 %v2784, %v2973
        %v3041 = vadd.f32 %v2785, %v2975
        %v3042 = vadd.f32 %v2786, %v2977
        %v3043 = vadd.f32 %v2787, %v2979
        %vm3044 = vcmask 7168
        %3045 = vst.msk [vmem:[#allocation3] sm:$0xff] %vm3044, %v2980
        %3046 = vst.msk [vmem:[#allocation3 + $0x8] sm:$0xff] %vm3044, %v2981
        %3047 = vst.msk [vmem:[#allocation3 + $0x10] sm:$0xff] %vm3044, %v2982
        %3048 = vst.msk [vmem:[#allocation3 + $0x18] sm:$0xff] %vm3044, %v2983
        %3049 = vst.msk [vmem:[#allocation3 + $0x20] sm:$0xff] %vm3044, %v2984
        %3050 = vst.msk [vmem:[#allocation3 + $0x28] sm:$0xff] %vm3044, %v2985
        %3051 = vst.msk [vmem:[#allocation3 + $0x30] sm:$0xff] %vm3044, %v2986
        %3052 = vst.msk [vmem:[#allocation3 + $0x38] sm:$0xff] %vm3044, %v2987
        %3053 = vst.msk [vmem:[#allocation3 + $0x40] sm:$0xff] %vm3044, %v2988
        %3054 = vst.msk [vmem:[#allocation3 + $0x48] sm:$0xff] %vm3044, %v2989
        %3055 = vst.msk [vmem:[#allocation3 + $0x50] sm:$0xff] %vm3044, %v2990
        %3056 = vst.msk [vmem:[#allocation3 + $0x58] sm:$0xff] %vm3044, %v2991
        %3057 = vst.msk [vmem:[#allocation3 + $0x60] sm:$0xff] %vm3044, %v2992
        %3058 = vst.msk [vmem:[#allocation3 + $0x68] sm:$0xff] %vm3044, %v2993
        %3059 = vst.msk [vmem:[#allocation3 + $0x70] sm:$0xff] %vm3044, %v2994
        %3060 = vst.msk [vmem:[#allocation3 + $0x78] sm:$0xff] %vm3044, %v2995
        %3061 = vst.msk [vmem:[#allocation3 + $0x80] sm:$0xff] %vm3044, %v2996
        %3062 = vst.msk [vmem:[#allocation3 + $0x88] sm:$0xff] %vm3044, %v2997
        %3063 = vst.msk [vmem:[#allocation3 + $0x90] sm:$0xff] %vm3044, %v2998
        %3064 = vst.msk [vmem:[#allocation3 + $0x98] sm:$0xff] %vm3044, %v2999
        %3065 = vst.msk [vmem:[#allocation3 + $0xa0] sm:$0xff] %vm3044, %v3000
        %3066 = vst.msk [vmem:[#allocation3 + $0xa8] sm:$0xff] %vm3044, %v3001
        %3067 = vst.msk [vmem:[#allocation3 + $0xb0] sm:$0xff] %vm3044, %v3002
        %3068 = vst.msk [vmem:[#allocation3 + $0xb8] sm:$0xff] %vm3044, %v3003
        %3069 = vst.msk [vmem:[#allocation3 + $0xc0] sm:$0xff] %vm3044, %v3004
        %3070 = vst.msk [vmem:[#allocation3 + $0xc8] sm:$0xff] %vm3044, %v3005
        %3071 = vst.msk [vmem:[#allocation3 + $0xd0] sm:$0xff] %vm3044, %v3006
        %3072 = vst.msk [vmem:[#allocation3 + $0xd8] sm:$0xff] %vm3044, %v3007
        %3073 = vst.msk [vmem:[#allocation3 + $0xe0] sm:$0xff] %vm3044, %v3008
        %3074 = vst.msk [vmem:[#allocation3 + $0xe8] sm:$0xff] %vm3044, %v3009
        %3075 = vst.msk [vmem:[#allocation3 + $0xf0] sm:$0xff] %vm3044, %v3010
        %3076 = vst.msk [vmem:[#allocation3 + $0xf8] sm:$0xff] %vm3044, %v3011
        %3077 = vst.msk [vmem:[#allocation3 + $0x100] sm:$0xff] %vm3044, %v3012
        %3078 = vst.msk [vmem:[#allocation3 + $0x108] sm:$0xff] %vm3044, %v3013
        %3079 = vst.msk [vmem:[#allocation3 + $0x110] sm:$0xff] %vm3044, %v3014
        %3080 = vst.msk [vmem:[#allocation3 + $0x118] sm:$0xff] %vm3044, %v3015
        %3081 = vst.msk [vmem:[#allocation3 + $0x120] sm:$0xff] %vm3044, %v3016
        %3082 = vst.msk [vmem:[#allocation3 + $0x128] sm:$0xff] %vm3044, %v3017
        %3083 = vst.msk [vmem:[#allocation3 + $0x130] sm:$0xff] %vm3044, %v3018
        %3084 = vst.msk [vmem:[#allocation3 + $0x138] sm:$0xff] %vm3044, %v3019
        %3085 = vst.msk [vmem:[#allocation3 + $0x140] sm:$0xff] %vm3044, %v3020
        %3086 = vst.msk [vmem:[#allocation3 + $0x148] sm:$0xff] %vm3044, %v3021
        %3087 = vst.msk [vmem:[#allocation3 + $0x150] sm:$0xff] %vm3044, %v3022
        %3088 = vst.msk [vmem:[#allocation3 + $0x158] sm:$0xff] %vm3044, %v3023
        %3089 = vst.msk [vmem:[#allocation3 + $0x160] sm:$0xff] %vm3044, %v3024
        %3090 = vst.msk [vmem:[#allocation3 + $0x168] sm:$0xff] %vm3044, %v3025
        %3091 = vst.msk [vmem:[#allocation3 + $0x170] sm:$0xff] %vm3044, %v3026
        %3092 = vst.msk [vmem:[#allocation3 + $0x178] sm:$0xff] %vm3044, %v3027
        %3093 = vst.msk [vmem:[#allocation3 + $0x180] sm:$0xff] %vm3044, %v3028
        %3094 = vst.msk [vmem:[#allocation3 + $0x188] sm:$0xff] %vm3044, %v3029
        %3095 = vst.msk [vmem:[#allocation3 + $0x190] sm:$0xff] %vm3044, %v3030
        %3096 = vst.msk [vmem:[#allocation3 + $0x198] sm:$0xff] %vm3044, %v3031
        %3097 = vst.msk [vmem:[#allocation3 + $0x1a0] sm:$0xff] %vm3044, %v3032
        %3098 = vst.msk [vmem:[#allocation3 + $0x1a8] sm:$0xff] %vm3044, %v3033
        %3099 = vst.msk [vmem:[#allocation3 + $0x1b0] sm:$0xff] %vm3044, %v3034
        %3100 = vst.msk [vmem:[#allocation3 + $0x1b8] sm:$0xff] %vm3044, %v3035
        %3101 = vst.msk [vmem:[#allocation3 + $0x1c0] sm:$0xff] %vm3044, %v3036
        %3102 = vst.msk [vmem:[#allocation3 + $0x1c8] sm:$0xff] %vm3044, %v3037
        %3103 = vst.msk [vmem:[#allocation3 + $0x1d0] sm:$0xff] %vm3044, %v3038
        %3104 = vst.msk [vmem:[#allocation3 + $0x1d8] sm:$0xff] %vm3044, %v3039
        %3105 = vst.msk [vmem:[#allocation3 + $0x1e0] sm:$0xff] %vm3044, %v3040
        %3106 = vst.msk [vmem:[#allocation3 + $0x1e8] sm:$0xff] %vm3044, %v3041
        %3107 = vst.msk [vmem:[#allocation3 + $0x1f0] sm:$0xff] %vm3044, %v3042
        %3108 = vst.msk [vmem:[#allocation3 + $0x1f8] sm:$0xff] %vm3044, %v3043
        %v3109 = vld [vmem:[#allocation4] sm:$0xff]
        %v3110 = vld [vmem:[#allocation4 + $0x8] sm:$0xff]
        %v3111 = vld [vmem:[#allocation4 + $0x10] sm:$0xff]
        %v3112 = vld [vmem:[#allocation4 + $0x18] sm:$0xff]
        %v3113 = vld [vmem:[#allocation4 + $0x20] sm:$0xff]
        %v3114 = vld [vmem:[#allocation4 + $0x28] sm:$0xff]
        %v3115 = vld [vmem:[#allocation4 + $0x30] sm:$0xff]
        %v3116 = vld [vmem:[#allocation4 + $0x38] sm:$0xff]
        %v3117 = vld [vmem:[#allocation4 + $0x40] sm:$0xff]
        %v3118 = vld [vmem:[#allocation4 + $0x48] sm:$0xff]
        %v3119 = vld [vmem:[#allocation4 + $0x50] sm:$0xff]
        %v3120 = vld [vmem:[#allocation4 + $0x58] sm:$0xff]
        %v3121 = vld [vmem:[#allocation4 + $0x60] sm:$0xff]
        %v3122 = vld [vmem:[#allocation4 + $0x68] sm:$0xff]
        %v3123 = vld [vmem:[#allocation4 + $0x70] sm:$0xff]
        %v3124 = vld [vmem:[#allocation4 + $0x78] sm:$0xff]
        %v3125 = vld [vmem:[#allocation4 + $0x80] sm:$0xff]
        %v3126 = vld [vmem:[#allocation4 + $0x88] sm:$0xff]
        %v3127 = vld [vmem:[#allocation4 + $0x90] sm:$0xff]
        %v3128 = vld [vmem:[#allocation4 + $0x98] sm:$0xff]
        %v3129 = vld [vmem:[#allocation4 + $0xa0] sm:$0xff]
        %v3130 = vld [vmem:[#allocation4 + $0xa8] sm:$0xff]
        %v3131 = vld [vmem:[#allocation4 + $0xb0] sm:$0xff]
        %v3132 = vld [vmem:[#allocation4 + $0xb8] sm:$0xff]
        %v3133 = vld [vmem:[#allocation4 + $0xc0] sm:$0xff]
        %v3134 = vld [vmem:[#allocation4 + $0xc8] sm:$0xff]
        %v3135 = vld [vmem:[#allocation4 + $0xd0] sm:$0xff]
        %v3136 = vld [vmem:[#allocation4 + $0xd8] sm:$0xff]
        %v3137 = vld [vmem:[#allocation4 + $0xe0] sm:$0xff]
        %v3138 = vld [vmem:[#allocation4 + $0xe8] sm:$0xff]
        %v3139 = vld [vmem:[#allocation4 + $0xf0] sm:$0xff]
        %v3140 = vld [vmem:[#allocation4 + $0xf8] sm:$0xff]
        %v3141 = vld [vmem:[#allocation4 + $0x100] sm:$0xff]
        %v3142 = vld [vmem:[#allocation4 + $0x108] sm:$0xff]
        %v3143 = vld [vmem:[#allocation4 + $0x110] sm:$0xff]
        %v3144 = vld [vmem:[#allocation4 + $0x118] sm:$0xff]
        %v3145 = vld [vmem:[#allocation4 + $0x120] sm:$0xff]
        %v3146 = vld [vmem:[#allocation4 + $0x128] sm:$0xff]
        %v3147 = vld [vmem:[#allocation4 + $0x130] sm:$0xff]
        %v3148 = vld [vmem:[#allocation4 + $0x138] sm:$0xff]
        %v3149 = vld [vmem:[#allocation4 + $0x140] sm:$0xff]
        %v3150 = vld [vmem:[#allocation4 + $0x148] sm:$0xff]
        %v3151 = vld [vmem:[#allocation4 + $0x150] sm:$0xff]
        %v3152 = vld [vmem:[#allocation4 + $0x158] sm:$0xff]
        %v3153 = vld [vmem:[#allocation4 + $0x160] sm:$0xff]
        %v3154 = vld [vmem:[#allocation4 + $0x168] sm:$0xff]
        %v3155 = vld [vmem:[#allocation4 + $0x170] sm:$0xff]
        %v3156 = vld [vmem:[#allocation4 + $0x178] sm:$0xff]
        %v3157 = vld [vmem:[#allocation4 + $0x180] sm:$0xff]
        %v3158 = vld [vmem:[#allocation4 + $0x188] sm:$0xff]
        %v3159 = vld [vmem:[#allocation4 + $0x190] sm:$0xff]
        %v3160 = vld [vmem:[#allocation4 + $0x198] sm:$0xff]
        %v3161 = vld [vmem:[#allocation4 + $0x1a0] sm:$0xff]
        %v3162 = vld [vmem:[#allocation4 + $0x1a8] sm:$0xff]
        %v3163 = vld [vmem:[#allocation4 + $0x1b0] sm:$0xff]
        %v3164 = vld [vmem:[#allocation4 + $0x1b8] sm:$0xff]
        %v3165 = vld [vmem:[#allocation4 + $0x1c0] sm:$0xff]
        %v3166 = vld [vmem:[#allocation4 + $0x1c8] sm:$0xff]
        %v3167 = vld [vmem:[#allocation4 + $0x1d0] sm:$0xff]
        %v3168 = vld [vmem:[#allocation4 + $0x1d8] sm:$0xff]
        %v3169 = vld [vmem:[#allocation4 + $0x1e0] sm:$0xff]
        %v3170 = vld [vmem:[#allocation4 + $0x1e8] sm:$0xff]
        %v3171 = vld [vmem:[#allocation4 + $0x1f0] sm:$0xff]
        %v3172 = vld [vmem:[#allocation4 + $0x1f8] sm:$0xff]
        %3174 = vset.pattern.permute.xlu0 0
        %3175 = vperm.xlu0 %3174, %v2021
        %v3176 = vpop.permute.xlu0 %3175
        %3179 = vset.pattern.permute.xlu0 0
        %3180 = vperm.xlu0 %3179, %v2023
        %v3181 = vpop.permute.xlu0 %3180
        %3184 = vset.pattern.permute.xlu0 0
        %3185 = vperm.xlu0 %3184, %v2025
        %v3186 = vpop.permute.xlu0 %3185
        %3189 = vset.pattern.permute.xlu0 0
        %3190 = vperm.xlu0 %3189, %v2027
        %v3191 = vpop.permute.xlu0 %3190
        %3194 = vset.pattern.permute.xlu0 0
        %3195 = vperm.xlu0 %3194, %v2029
        %v3196 = vpop.permute.xlu0 %3195
        %3199 = vset.pattern.permute.xlu0 0
        %3200 = vperm.xlu0 %3199, %v2031
        %v3201 = vpop.permute.xlu0 %3200
        %3204 = vset.pattern.permute.xlu0 0
        %3205 = vperm.xlu0 %3204, %v2033
        %v3206 = vpop.permute.xlu0 %3205
        %3209 = vset.pattern.permute.xlu0 0
        %3210 = vperm.xlu0 %3209, %v2035
        %v3211 = vpop.permute.xlu0 %3210
        %3214 = vset.pattern.permute.xlu0 0
        %3215 = vperm.xlu0 %3214, %v2037
        %v3216 = vpop.permute.xlu0 %3215
        %3219 = vset.pattern.permute.xlu0 0
        %3220 = vperm.xlu0 %3219, %v2039
        %v3221 = vpop.permute.xlu0 %3220
        %3224 = vset.pattern.permute.xlu0 0
        %3225 = vperm.xlu0 %3224, %v2041
        %v3226 = vpop.permute.xlu0 %3225
        %3229 = vset.pattern.permute.xlu0 0
        %3230 = vperm.xlu0 %3229, %v2043
        %v3231 = vpop.permute.xlu0 %3230
        %3234 = vset.pattern.permute.xlu0 0
        %3235 = vperm.xlu0 %3234, %v2045
        %v3236 = vpop.permute.xlu0 %3235
        %3239 = vset.pattern.permute.xlu0 0
        %3240 = vperm.xlu0 %3239, %v2047
        %v3241 = vpop.permute.xlu0 %3240
        %3244 = vset.pattern.permute.xlu0 0
        %3245 = vperm.xlu0 %3244, %v2049
        %v3246 = vpop.permute.xlu0 %3245
        %3249 = vset.pattern.permute.xlu0 0
        %3250 = vperm.xlu0 %3249, %v2051
        %v3251 = vpop.permute.xlu0 %3250
        %3254 = vset.pattern.permute.xlu0 0
        %3255 = vperm.xlu0 %3254, %v2053
        %v3256 = vpop.permute.xlu0 %3255
        %3259 = vset.pattern.permute.xlu0 0
        %3260 = vperm.xlu0 %3259, %v2055
        %v3261 = vpop.permute.xlu0 %3260
        %3264 = vset.pattern.permute.xlu0 0
        %3265 = vperm.xlu0 %3264, %v2057
        %v3266 = vpop.permute.xlu0 %3265
        %3269 = vset.pattern.permute.xlu0 0
        %3270 = vperm.xlu0 %3269, %v2059
        %v3271 = vpop.permute.xlu0 %3270
        %3274 = vset.pattern.permute.xlu0 0
        %3275 = vperm.xlu0 %3274, %v2061
        %v3276 = vpop.permute.xlu0 %3275
        %3279 = vset.pattern.permute.xlu0 0
        %3280 = vperm.xlu0 %3279, %v2063
        %v3281 = vpop.permute.xlu0 %3280
        %3284 = vset.pattern.permute.xlu0 0
        %3285 = vperm.xlu0 %3284, %v2065
        %v3286 = vpop.permute.xlu0 %3285
        %3289 = vset.pattern.permute.xlu0 0
        %3290 = vperm.xlu0 %3289, %v2067
        %v3291 = vpop.permute.xlu0 %3290
        %3294 = vset.pattern.permute.xlu0 0
        %3295 = vperm.xlu0 %3294, %v2069
        %v3296 = vpop.permute.xlu0 %3295
        %3299 = vset.pattern.permute.xlu0 0
        %3300 = vperm.xlu0 %3299, %v2071
        %v3301 = vpop.permute.xlu0 %3300
        %3304 = vset.pattern.permute.xlu0 0
        %3305 = vperm.xlu0 %3304, %v2073
        %v3306 = vpop.permute.xlu0 %3305
        %3309 = vset.pattern.permute.xlu0 0
        %3310 = vperm.xlu0 %3309, %v2075
        %v3311 = vpop.permute.xlu0 %3310
        %3314 = vset.pattern.permute.xlu0 0
        %3315 = vperm.xlu0 %3314, %v2077
        %v3316 = vpop.permute.xlu0 %3315
        %3319 = vset.pattern.permute.xlu0 0
        %3320 = vperm.xlu0 %3319, %v2079
        %v3321 = vpop.permute.xlu0 %3320
        %3324 = vset.pattern.permute.xlu0 0
        %3325 = vperm.xlu0 %3324, %v2081
        %v3326 = vpop.permute.xlu0 %3325
        %3329 = vset.pattern.permute.xlu0 0
        %3330 = vperm.xlu0 %3329, %v2083
        %v3331 = vpop.permute.xlu0 %3330
        %3334 = vset.pattern.permute.xlu0 0
        %3335 = vperm.xlu0 %3334, %v2085
        %v3336 = vpop.permute.xlu0 %3335
        %3339 = vset.pattern.permute.xlu0 0
        %3340 = vperm.xlu0 %3339, %v2087
        %v3341 = vpop.permute.xlu0 %3340
        %3344 = vset.pattern.permute.xlu0 0
        %3345 = vperm.xlu0 %3344, %v2089
        %v3346 = vpop.permute.xlu0 %3345
        %3349 = vset.pattern.permute.xlu0 0
        %3350 = vperm.xlu0 %3349, %v2091
        %v3351 = vpop.permute.xlu0 %3350
        %3354 = vset.pattern.permute.xlu0 0
        %3355 = vperm.xlu0 %3354, %v2093
        %v3356 = vpop.permute.xlu0 %3355
        %3359 = vset.pattern.permute.xlu0 0
        %3360 = vperm.xlu0 %3359, %v2095
        %v3361 = vpop.permute.xlu0 %3360
        %3364 = vset.pattern.permute.xlu0 0
        %3365 = vperm.xlu0 %3364, %v2097
        %v3366 = vpop.permute.xlu0 %3365
        %3369 = vset.pattern.permute.xlu0 0
        %3370 = vperm.xlu0 %3369, %v2099
        %v3371 = vpop.permute.xlu0 %3370
        %3374 = vset.pattern.permute.xlu0 0
        %3375 = vperm.xlu0 %3374, %v2101
        %v3376 = vpop.permute.xlu0 %3375
        %3379 = vset.pattern.permute.xlu0 0
        %3380 = vperm.xlu0 %3379, %v2103
        %v3381 = vpop.permute.xlu0 %3380
        %3384 = vset.pattern.permute.xlu0 0
        %3385 = vperm.xlu0 %3384, %v2105
        %v3386 = vpop.permute.xlu0 %3385
        %3389 = vset.pattern.permute.xlu0 0
        %3390 = vperm.xlu0 %3389, %v2107
        %v3391 = vpop.permute.xlu0 %3390
        %3394 = vset.pattern.permute.xlu0 0
        %3395 = vperm.xlu0 %3394, %v2109
        %v3396 = vpop.permute.xlu0 %3395
        %3399 = vset.pattern.permute.xlu0 0
        %3400 = vperm.xlu0 %3399, %v2111
        %v3401 = vpop.permute.xlu0 %3400
        %3404 = vset.pattern.permute.xlu0 0
        %3405 = vperm.xlu0 %3404, %v2113
        %v3406 = vpop.permute.xlu0 %3405
        %3409 = vset.pattern.permute.xlu0 0
        %3410 = vperm.xlu0 %3409, %v2115
        %v3411 = vpop.permute.xlu0 %3410
        %3414 = vset.pattern.permute.xlu0 0
        %3415 = vperm.xlu0 %3414, %v2117
        %v3416 = vpop.permute.xlu0 %3415
        %3419 = vset.pattern.permute.xlu0 0
        %3420 = vperm.xlu0 %3419, %v2119
        %v3421 = vpop.permute.xlu0 %3420
        %3424 = vset.pattern.permute.xlu0 0
        %3425 = vperm.xlu0 %3424, %v2121
        %v3426 = vpop.permute.xlu0 %3425
        %3429 = vset.pattern.permute.xlu0 0
        %3430 = vperm.xlu0 %3429, %v2123
        %v3431 = vpop.permute.xlu0 %3430
        %3434 = vset.pattern.permute.xlu0 0
        %3435 = vperm.xlu0 %3434, %v2125
        %v3436 = vpop.permute.xlu0 %3435
        %3439 = vset.pattern.permute.xlu0 0
        %3440 = vperm.xlu0 %3439, %v2127
        %v3441 = vpop.permute.xlu0 %3440
        %3444 = vset.pattern.permute.xlu0 0
        %3445 = vperm.xlu0 %3444, %v2129
        %v3446 = vpop.permute.xlu0 %3445
        %3449 = vset.pattern.permute.xlu0 0
        %3450 = vperm.xlu0 %3449, %v2131
        %v3451 = vpop.permute.xlu0 %3450
        %3454 = vset.pattern.permute.xlu0 0
        %3455 = vperm.xlu0 %3454, %v2133
        %v3456 = vpop.permute.xlu0 %3455
        %3459 = vset.pattern.permute.xlu0 0
        %3460 = vperm.xlu0 %3459, %v2135
        %v3461 = vpop.permute.xlu0 %3460
        %3464 = vset.pattern.permute.xlu0 0
        %3465 = vperm.xlu0 %3464, %v2137
        %v3466 = vpop.permute.xlu0 %3465
        %3469 = vset.pattern.permute.xlu0 0
        %3470 = vperm.xlu0 %3469, %v2139
        %v3471 = vpop.permute.xlu0 %3470
        %3474 = vset.pattern.permute.xlu0 0
        %3475 = vperm.xlu0 %3474, %v2141
        %v3476 = vpop.permute.xlu0 %3475
        %3479 = vset.pattern.permute.xlu0 0
        %3480 = vperm.xlu0 %3479, %v2143
        %v3481 = vpop.permute.xlu0 %3480
        %3484 = vset.pattern.permute.xlu0 0
        %3485 = vperm.xlu0 %3484, %v2145
        %v3486 = vpop.permute.xlu0 %3485
        %3489 = vset.pattern.permute.xlu0 0
        %3490 = vperm.xlu0 %3489, %v2147
        %v3491 = vpop.permute.xlu0 %3490
        %v3493 = vmul.f32 %v3176, %v3109
        %v3494 = vmul.f32 %v3181, %v3110
        %v3495 = vmul.f32 %v3186, %v3111
        %v3496 = vmul.f32 %v3191, %v3112
        %v3497 = vmul.f32 %v3196, %v3113
        %v3498 = vmul.f32 %v3201, %v3114
        %v3499 = vmul.f32 %v3206, %v3115
        %v3500 = vmul.f32 %v3211, %v3116
        %v3501 = vmul.f32 %v3216, %v3117
        %v3502 = vmul.f32 %v3221, %v3118
        %v3503 = vmul.f32 %v3226, %v3119
        %v3504 = vmul.f32 %v3231, %v3120
        %v3505 = vmul.f32 %v3236, %v3121
        %v3506 = vmul.f32 %v3241, %v3122
        %v3507 = vmul.f32 %v3246, %v3123
        %v3508 = vmul.f32 %v3251, %v3124
        %v3509 = vmul.f32 %v3256, %v3125
        %v3510 = vmul.f32 %v3261, %v3126
        %v3511 = vmul.f32 %v3266, %v3127
        %v3512 = vmul.f32 %v3271, %v3128
        %v3513 = vmul.f32 %v3276, %v3129
        %v3514 = vmul.f32 %v3281, %v3130
        %v3515 = vmul.f32 %v3286, %v3131
        %v3516 = vmul.f32 %v3291, %v3132
        %v3517 = vmul.f32 %v3296, %v3133
        %v3518 = vmul.f32 %v3301, %v3134
        %v3519 = vmul.f32 %v3306, %v3135
        %v3520 = vmul.f32 %v3311, %v3136
        %v3521 = vmul.f32 %v3316, %v3137
        %v3522 = vmul.f32 %v3321, %v3138
        %v3523 = vmul.f32 %v3326, %v3139
        %v3524 = vmul.f32 %v3331, %v3140
        %v3525 = vmul.f32 %v3336, %v3141
        %v3526 = vmul.f32 %v3341, %v3142
        %v3527 = vmul.f32 %v3346, %v3143
        %v3528 = vmul.f32 %v3351, %v3144
        %v3529 = vmul.f32 %v3356, %v3145
        %v3530 = vmul.f32 %v3361, %v3146
        %v3531 = vmul.f32 %v3366, %v3147
        %v3532 = vmul.f32 %v3371, %v3148
        %v3533 = vmul.f32 %v3376, %v3149
        %v3534 = vmul.f32 %v3381, %v3150
        %v3535 = vmul.f32 %v3386, %v3151
        %v3536 = vmul.f32 %v3391, %v3152
        %v3537 = vmul.f32 %v3396, %v3153
        %v3538 = vmul.f32 %v3401, %v3154
        %v3539 = vmul.f32 %v3406, %v3155
        %v3540 = vmul.f32 %v3411, %v3156
        %v3541 = vmul.f32 %v3416, %v3157
        %v3542 = vmul.f32 %v3421, %v3158
        %v3543 = vmul.f32 %v3426, %v3159
        %v3544 = vmul.f32 %v3431, %v3160
        %v3545 = vmul.f32 %v3436, %v3161
        %v3546 = vmul.f32 %v3441, %v3162
        %v3547 = vmul.f32 %v3446, %v3163
        %v3548 = vmul.f32 %v3451, %v3164
        %v3549 = vmul.f32 %v3456, %v3165
        %v3550 = vmul.f32 %v3461, %v3166
        %v3551 = vmul.f32 %v3466, %v3167
        %v3552 = vmul.f32 %v3471, %v3168
        %v3553 = vmul.f32 %v3476, %v3169
        %v3554 = vmul.f32 %v3481, %v3170
        %v3555 = vmul.f32 %v3486, %v3171
        %v3556 = vmul.f32 %v3491, %v3172
        %3565 = vmatprep.subr.bf16.mxu0 0
        %3566 = vmatpush1.bf16.msra.mxu0 %v871
        %3567 = vmatprep.subr.bf16.mxu0 0
        %3568 = vmatpush1.bf16.msra.mxu0 %v872
        %3569 = vmatprep.subr.bf16.mxu0 0
        %3570 = vmatpush1.bf16.msra.mxu0 %v873
        %3571 = vmatprep.subr.bf16.mxu0 0
        %3572 = vmatpush1.bf16.msra.mxu0 %v874
        %3573 = vmatprep.subr.bf16.mxu0 0
        %3574 = vmatpush1.bf16.msra.mxu0 %v875
        %3575 = vmatprep.subr.bf16.mxu0 0
        %3576 = vmatpush1.bf16.msra.mxu0 %v876
        %3577 = vmatprep.subr.bf16.mxu0 0
        %3578 = vmatpush1.bf16.msra.mxu0 %v877
        %3579 = vmatprep.subr.bf16.mxu0 0
        %3580 = vmatpush1.bf16.msra.mxu0 %v878
        %3581 = vmatprep.subr.bf16.mxu0 0
        %3582 = vmatpush1.bf16.msra.mxu0 0
        %3583 = vmatprep.subr.bf16.mxu0 0
        %3584 = vmatpush1.bf16.msra.mxu0 0
        %3585 = vmatprep.subr.bf16.mxu0 0
        %3586 = vmatpush1.bf16.msra.mxu0 0
        %3587 = vmatprep.subr.bf16.mxu0 0
        %3588 = vmatpush1.bf16.msra.mxu0 0
        %3589 = vmatprep.subr.bf16.mxu0 0
        %3590 = vmatpush1.bf16.msra.mxu0 0
        %3591 = vmatprep.subr.bf16.mxu0 0
        %3592 = vmatpush1.bf16.msra.mxu0 0
        %3593 = vmatprep.subr.bf16.mxu0 0
        %3594 = vmatpush1.bf16.msra.mxu0 0
        %3595 = vmatprep.subr.bf16.mxu0 0
        %3596 = vmatpush1.bf16.msra.mxu0 0
        %3597 = vmatprep.mubr.bf16.mxu0 0
        %3598 = vmatmul.mubr.bf16.gmra.mrb[0].mxu0 %v2566
        %v3599 = vpop.f32.mrb[0].mxu0
        %v3600 = vadd.f32 0.0, %v3599
        %v3601 = vpop.f32.mrb[0].mxu0
        %v3602 = vpop.f32.mrb[0].mxu0
        %v3603 = vadd.f32 0.0, %v3602
        %v3604 = vpop.f32.mrb[0].mxu0
        %3605 = vmatprep.mubr.bf16.mxu0 0
        %3606 = vmatmul.mubr.bf16.gmra.mrb[0].mxu0 %v2569
        %v3607 = vpop.f32.mrb[0].mxu0
        %v3608 = vadd.f32 0.0, %v3607
        %v3609 = vpop.f32.mrb[0].mxu0
        %v3610 = vpop.f32.mrb[0].mxu0
        %v3611 = vadd.f32 0.0, %v3610
        %v3612 = vpop.f32.mrb[0].mxu0
        %3613 = vmatprep.mubr.bf16.mxu0 0
        %3614 = vmatmul.mubr.bf16.gmra.mrb[0].mxu0 %v2572
        %v3615 = vpop.f32.mrb[0].mxu0
        %v3616 = vadd.f32 0.0, %v3615
        %v3617 = vpop.f32.mrb[0].mxu0
        %v3618 = vpop.f32.mrb[0].mxu0
        %v3619 = vadd.f32 0.0, %v3618
        %v3620 = vpop.f32.mrb[0].mxu0
        %3621 = vmatprep.mubr.bf16.mxu0 0
        %3622 = vmatmul.mubr.bf16.gmra.mrb[0].mxu0 %v2575
        %v3623 = vpop.f32.mrb[0].mxu0
        %v3624 = vadd.f32 0.0, %v3623
        %v3625 = vpop.f32.mrb[0].mxu0
        %v3626 = vpop.f32.mrb[0].mxu0
        %v3627 = vadd.f32 0.0, %v3626
        %v3628 = vpop.f32.mrb[0].mxu0
        %3629 = vmatprep.mubr.bf16.mxu0 0
        %3630 = vmatmul.mubr.bf16.gmra.mrb[0].mxu0 %v2578
        %v3631 = vpop.f32.mrb[0].mxu0
        %v3632 = vadd.f32 0.0, %v3631
        %v3633 = vpop.f32.mrb[0].mxu0
        %v3634 = vpop.f32.mrb[0].mxu0
        %v3635 = vadd.f32 0.0, %v3634
        %v3636 = vpop.f32.mrb[0].mxu0
        %3637 = vmatprep.mubr.bf16.mxu0 0
        %3638 = vmatmul.mubr.bf16.gmra.mrb[0].mxu0 %v2581
        %v3639 = vpop.f32.mrb[0].mxu0
        %v3640 = vadd.f32 0.0, %v3639
        %v3641 = vpop.f32.mrb[0].mxu0
        %v3642 = vpop.f32.mrb[0].mxu0
        %v3643 = vadd.f32 0.0, %v3642
        %v3644 = vpop.f32.mrb[0].mxu0
        %3645 = vmatprep.mubr.bf16.mxu0 0
        %3646 = vmatmul.mubr.bf16.gmra.mrb[0].mxu0 %v2584
        %v3647 = vpop.f32.mrb[0].mxu0
        %v3648 = vadd.f32 0.0, %v3647
        %v3649 = vpop.f32.mrb[0].mxu0
        %v3650 = vpop.f32.mrb[0].mxu0
        %v3651 = vadd.f32 0.0, %v3650
        %v3652 = vpop.f32.mrb[0].mxu0
        %3653 = vmatprep.mubr.bf16.mxu0 0
        %3654 = vmatmul.mubr.bf16.gmra.mrb[0].mxu0 %v2587
        %v3655 = vpop.f32.mrb[0].mxu0
        %v3656 = vadd.f32 0.0, %v3655
        %v3657 = vpop.f32.mrb[0].mxu0
        %v3658 = vpop.f32.mrb[0].mxu0
        %v3659 = vadd.f32 0.0, %v3658
        %v3660 = vpop.f32.mrb[0].mxu0
        %3661 = vdwg.mxu0
        %3670 = vmatprep.subr.bf16.mxu0 0
        %3671 = vmatpush1.bf16.msra.mxu0 %v1097
        %3672 = vmatprep.subr.bf16.mxu0 0
        %3673 = vmatpush1.bf16.msra.mxu0 %v1098
        %3674 = vmatprep.subr.bf16.mxu0 0
        %3675 = vmatpush1.bf16.msra.mxu0 %v1099
        %3676 = vmatprep.subr.bf16.mxu0 0
        %3677 = vmatpush1.bf16.msra.mxu0 %v1100
        %3678 = vmatprep.subr.bf16.mxu0 0
        %3679 = vmatpush1.bf16.msra.mxu0 %v1101
        %3680 = vmatprep.subr.bf16.mxu0 0
        %3681 = vmatpush1.bf16.msra.mxu0 %v1102
        %3682 = vmatprep.subr.bf16.mxu0 0
        %3683 = vmatpush1.bf16.msra.mxu0 %v1103
        %3684 = vmatprep.subr.bf16.mxu0 0
        %3685 = vmatpush1.bf16.msra.mxu0 %v1104
        %3686 = vmatprep.subr.bf16.mxu0 0
        %3687 = vmatpush1.bf16.msra.mxu0 0
        %3688 = vmatprep.subr.bf16.mxu0 0
        %3689 = vmatpush1.bf16.msra.mxu0 0
        %3690 = vmatprep.subr.bf16.mxu0 0
        %3691 = vmatpush1.bf16.msra.mxu0 0
        %3692 = vmatprep.subr.bf16.mxu0 0
        %3693 = vmatpush1.bf16.msra.mxu0 0
        %3694 = vmatprep.subr.bf16.mxu0 0
        %3695 = vmatpush1.bf16.msra.mxu0 0
        %3696 = vmatprep.subr.bf16.mxu0 0
        %3697 = vmatpush1.bf16.msra.mxu0 0
        %3698 = vmatprep.subr.bf16.mxu0 0
        %3699 = vmatpush1.bf16.msra.mxu0 0
        %3700 = vmatprep.subr.bf16.mxu0 0
        %3701 = vmatpush1.bf16.msra.mxu0 0
        %3702 = vmatprep.mubr.bf16.mxu0 0
        %3703 = vmatmul.mubr.bf16.gmra.mrb[0].mxu0 %v2590
        %v3704 = vpop.f32.mrb[0].mxu0
        %v3705 = vadd.f32 0.0, %v3704
        %v3706 = vpop.f32.mrb[0].mxu0
        %v3707 = vpop.f32.mrb[0].mxu0
        %v3708 = vadd.f32 0.0, %v3707
        %v3709 = vpop.f32.mrb[0].mxu0
        %3710 = vmatprep.mubr.bf16.mxu0 0
        %3711 = vmatmul.mubr.bf16.gmra.mrb[0].mxu0 %v2593
        %v3712 = vpop.f32.mrb[0].mxu0
        %v3713 = vadd.f32 0.0, %v3712
        %v3714 = vpop.f32.mrb[0].mxu0
        %v3715 = vpop.f32.mrb[0].mxu0
        %v3716 = vadd.f32 0.0, %v3715
        %v3717 = vpop.f32.mrb[0].mxu0
        %3718 = vmatprep.mubr.bf16.mxu0 0
        %3719 = vmatmul.mubr.bf16.gmra.mrb[0].mxu0 %v2596
        %v3720 = vpop.f32.mrb[0].mxu0
        %v3721 = vadd.f32 0.0, %v3720
        %v3722 = vpop.f32.mrb[0].mxu0
        %v3723 = vpop.f32.mrb[0].mxu0
        %v3724 = vadd.f32 0.0, %v3723
        %v3725 = vpop.f32.mrb[0].mxu0
        %3726 = vmatprep.mubr.bf16.mxu0 0
        %3727 = vmatmul.mubr.bf16.gmra.mrb[0].mxu0 %v2599
        %v3728 = vpop.f32.mrb[0].mxu0
        %v3729 = vadd.f32 0.0, %v3728
        %v3730 = vpop.f32.mrb[0].mxu0
        %v3731 = vpop.f32.mrb[0].mxu0
        %v3732 = vadd.f32 0.0, %v3731
        %v3733 = vpop.f32.mrb[0].mxu0
        %3734 = vmatprep.mubr.bf16.mxu0 0
        %3735 = vmatmul.mubr.bf16.gmra.mrb[0].mxu0 %v2602
        %v3736 = vpop.f32.mrb[0].mxu0
        %v3737 = vadd.f32 0.0, %v3736
        %v3738 = vpop.f32.mrb[0].mxu0
        %v3739 = vpop.f32.mrb[0].mxu0
        %v3740 = vadd.f32 0.0, %v3739
        %v3741 = vpop.f32.mrb[0].mxu0
        %3742 = vmatprep.mubr.bf16.mxu0 0
        %3743 = vmatmul.mubr.bf16.gmra.mrb[0].mxu0 %v2605
        %v3744 = vpop.f32.mrb[0].mxu0
        %v3745 = vadd.f32 0.0, %v3744
        %v3746 = vpop.f32.mrb[0].mxu0
        %v3747 = vpop.f32.mrb[0].mxu0
        %v3748 = vadd.f32 0.0, %v3747
        %v3749 = vpop.f32.mrb[0].mxu0
        %3750 = vmatprep.mubr.bf16.mxu0 0
        %3751 = vmatmul.mubr.bf16.gmra.mrb[0].mxu0 %v2608
        %v3752 = vpop.f32.mrb[0].mxu0
        %v3753 = vadd.f32 0.0, %v3752
        %v3754 = vpop.f32.mrb[0].mxu0
        %v3755 = vpop.f32.mrb[0].mxu0
        %v3756 = vadd.f32 0.0, %v3755
        %v3757 = vpop.f32.mrb[0].mxu0
        %3758 = vmatprep.mubr.bf16.mxu0 0
        %3759 = vmatmul.mubr.bf16.gmra.mrb[0].mxu0 %v2611
        %v3760 = vpop.f32.mrb[0].mxu0
        %v3761 = vadd.f32 0.0, %v3760
        %v3762 = vpop.f32.mrb[0].mxu0
        %v3763 = vpop.f32.mrb[0].mxu0
        %v3764 = vadd.f32 0.0, %v3763
        %v3765 = vpop.f32.mrb[0].mxu0
        %3766 = vdwg.mxu0
        %3775 = vmatprep.subr.bf16.mxu0 0
        %3776 = vmatpush1.bf16.msra.mxu0 %v1322
        %3777 = vmatprep.subr.bf16.mxu0 0
        %3778 = vmatpush1.bf16.msra.mxu0 %v1323
        %3779 = vmatprep.subr.bf16.mxu0 0
        %3780 = vmatpush1.bf16.msra.mxu0 %v1324
        %3781 = vmatprep.subr.bf16.mxu0 0
        %3782 = vmatpush1.bf16.msra.mxu0 %v1325
        %3783 = vmatprep.subr.bf16.mxu0 0
        %3784 = vmatpush1.bf16.msra.mxu0 %v1326
        %3785 = vmatprep.subr.bf16.mxu0 0
        %3786 = vmatpush1.bf16.msra.mxu0 %v1327
        %3787 = vmatprep.subr.bf16.mxu0 0
        %3788 = vmatpush1.bf16.msra.mxu0 %v1328
        %3789 = vmatprep.subr.bf16.mxu0 0
        %3790 = vmatpush1.bf16.msra.mxu0 %v1329
        %3791 = vmatprep.subr.bf16.mxu0 0
        %3792 = vmatpush1.bf16.msra.mxu0 0
        %3793 = vmatprep.subr.bf16.mxu0 0
        %3794 = vmatpush1.bf16.msra.mxu0 0
        %3795 = vmatprep.subr.bf16.mxu0 0
        %3796 = vmatpush1.bf16.msra.mxu0 0
        %3797 = vmatprep.subr.bf16.mxu0 0
        %3798 = vmatpush1.bf16.msra.mxu0 0
        %3799 = vmatprep.subr.bf16.mxu0 0
        %3800 = vmatpush1.bf16.msra.mxu0 0
        %3801 = vmatprep.subr.bf16.mxu0 0
        %3802 = vmatpush1.bf16.msra.mxu0 0
        %3803 = vmatprep.subr.bf16.mxu0 0
        %3804 = vmatpush1.bf16.msra.mxu0 0
        %3805 = vmatprep.subr.bf16.mxu0 0
        %3806 = vmatpush1.bf16.msra.mxu0 0
        %3807 = vmatprep.mubr.bf16.mxu0 0
        %3808 = vmatmul.mubr.bf16.gmra.mrb[0].mxu0 %v2614
        %v3809 = vpop.f32.mrb[0].mxu0
        %v3810 = vadd.f32 0.0, %v3809
        %v3811 = vpop.f32.mrb[0].mxu0
        %v3812 = vpop.f32.mrb[0].mxu0
        %v3813 = vadd.f32 0.0, %v3812
        %v3814 = vpop.f32.mrb[0].mxu0
        %3815 = vmatprep.mubr.bf16.mxu0 0
        %3816 = vmatmul.mubr.bf16.gmra.mrb[0].mxu0 %v2617
        %v3817 = vpop.f32.mrb[0].mxu0
        %v3818 = vadd.f32 0.0, %v3817
        %v3819 = vpop.f32.mrb[0].mxu0
        %v3820 = vpop.f32.mrb[0].mxu0
        %v3821 = vadd.f32 0.0, %v3820
        %v3822 = vpop.f32.mrb[0].mxu0
        %3823 = vmatprep.mubr.bf16.mxu0 0
        %3824 = vmatmul.mubr.bf16.gmra.mrb[0].mxu0 %v2620
        %v3825 = vpop.f32.mrb[0].mxu0
        %v3826 = vadd.f32 0.0, %v3825
        %v3827 = vpop.f32.mrb[0].mxu0
        %v3828 = vpop.f32.mrb[0].mxu0
        %v3829 = vadd.f32 0.0, %v3828
        %v3830 = vpop.f32.mrb[0].mxu0
        %3831 = vmatprep.mubr.bf16.mxu0 0
        %3832 = vmatmul.mubr.bf16.gmra.mrb[0].mxu0 %v2623
        %v3833 = vpop.f32.mrb[0].mxu0
        %v3834 = vadd.f32 0.0, %v3833
        %v3835 = vpop.f32.mrb[0].mxu0
        %v3836 = vpop.f32.mrb[0].mxu0
        %v3837 = vadd.f32 0.0, %v3836
        %v3838 = vpop.f32.mrb[0].mxu0
        %3839 = vmatprep.mubr.bf16.mxu0 0
        %3840 = vmatmul.mubr.bf16.gmra.mrb[0].mxu0 %v2626
        %v3841 = vpop.f32.mrb[0].mxu0
        %v3842 = vadd.f32 0.0, %v3841
        %v3843 = vpop.f32.mrb[0].mxu0
        %v3844 = vpop.f32.mrb[0].mxu0
        %v3845 = vadd.f32 0.0, %v3844
        %v3846 = vpop.f32.mrb[0].mxu0
        %3847 = vmatprep.mubr.bf16.mxu0 0
        %3848 = vmatmul.mubr.bf16.gmra.mrb[0].mxu0 %v2629
        %v3849 = vpop.f32.mrb[0].mxu0
        %v3850 = vadd.f32 0.0, %v3849
        %v3851 = vpop.f32.mrb[0].mxu0
        %v3852 = vpop.f32.mrb[0].mxu0
        %v3853 = vadd.f32 0.0, %v3852
        %v3854 = vpop.f32.mrb[0].mxu0
        %3855 = vmatprep.mubr.bf16.mxu0 0
        %3856 = vmatmul.mubr.bf16.gmra.mrb[0].mxu0 %v2632
        %v3857 = vpop.f32.mrb[0].mxu0
        %v3858 = vadd.f32 0.0, %v3857
        %v3859 = vpop.f32.mrb[0].mxu0
        %v3860 = vpop.f32.mrb[0].mxu0
        %v3861 = vadd.f32 0.0, %v3860
        %v3862 = vpop.f32.mrb[0].mxu0
        %3863 = vmatprep.mubr.bf16.mxu0 0
        %3864 = vmatmul.mubr.bf16.gmra.mrb[0].mxu0 %v2635
        %v3865 = vpop.f32.mrb[0].mxu0
        %v3866 = vadd.f32 0.0, %v3865
        %v3867 = vpop.f32.mrb[0].mxu0
        %v3868 = vpop.f32.mrb[0].mxu0
        %v3869 = vadd.f32 0.0, %v3868
        %v3870 = vpop.f32.mrb[0].mxu0
        %3871 = vdwg.mxu0
        %3880 = vmatprep.subr.bf16.mxu0 0
        %3881 = vmatpush1.bf16.msra.mxu0 %v1547
        %3882 = vmatprep.subr.bf16.mxu0 0
        %3883 = vmatpush1.bf16.msra.mxu0 %v1548
        %3884 = vmatprep.subr.bf16.mxu0 0
        %3885 = vmatpush1.bf16.msra.mxu0 %v1549
        %3886 = vmatprep.subr.bf16.mxu0 0
        %3887 = vmatpush1.bf16.msra.mxu0 %v1550
        %3888 = vmatprep.subr.bf16.mxu0 0
        %3889 = vmatpush1.bf16.msra.mxu0 %v1551
        %3890 = vmatprep.subr.bf16.mxu0 0
        %3891 = vmatpush1.bf16.msra.mxu0 %v1552
        %3892 = vmatprep.subr.bf16.mxu0 0
        %3893 = vmatpush1.bf16.msra.mxu0 %v1553
        %3894 = vmatprep.subr.bf16.mxu0 0
        %3895 = vmatpush1.bf16.msra.mxu0 %v1554
        %3896 = vmatprep.subr.bf16.mxu0 0
        %3897 = vmatpush1.bf16.msra.mxu0 0
        %3898 = vmatprep.subr.bf16.mxu0 0
        %3899 = vmatpush1.bf16.msra.mxu0 0
        %3900 = vmatprep.subr.bf16.mxu0 0
        %3901 = vmatpush1.bf16.msra.mxu0 0
        %3902 = vmatprep.subr.bf16.mxu0 0
        %3903 = vmatpush1.bf16.msra.mxu0 0
        %3904 = vmatprep.subr.bf16.mxu0 0
        %3905 = vmatpush1.bf16.msra.mxu0 0
        %3906 = vmatprep.subr.bf16.mxu0 0
        %3907 = vmatpush1.bf16.msra.mxu0 0
        %3908 = vmatprep.subr.bf16.mxu0 0
        %3909 = vmatpush1.bf16.msra.mxu0 0
        %3910 = vmatprep.subr.bf16.mxu0 0
        %3911 = vmatpush1.bf16.msra.mxu0 0
        %3912 = vmatprep.mubr.bf16.mxu0 0
        %3913 = vmatmul.mubr.bf16.gmra.mrb[0].mxu0 %v2638
        %v3914 = vpop.f32.mrb[0].mxu0
        %v3915 = vadd.f32 0.0, %v3914
        %v3916 = vpop.f32.mrb[0].mxu0
        %v3917 = vpop.f32.mrb[0].mxu0
        %v3918 = vadd.f32 0.0, %v3917
        %v3919 = vpop.f32.mrb[0].mxu0
        %3920 = vmatprep.mubr.bf16.mxu0 0
        %3921 = vmatmul.mubr.bf16.gmra.mrb[0].mxu0 %v2641
        %v3922 = vpop.f32.mrb[0].mxu0
        %v3923 = vadd.f32 0.0, %v3922
        %v3924 = vpop.f32.mrb[0].mxu0
        %v3925 = vpop.f32.mrb[0].mxu0
        %v3926 = vadd.f32 0.0, %v3925
        %v3927 = vpop.f32.mrb[0].mxu0
        %3928 = vmatprep.mubr.bf16.mxu0 0
        %3929 = vmatmul.mubr.bf16.gmra.mrb[0].mxu0 %v2644
        %v3930 = vpop.f32.mrb[0].mxu0
        %v3931 = vadd.f32 0.0, %v3930
        %v3932 = vpop.f32.mrb[0].mxu0
        %v3933 = vpop.f32.mrb[0].mxu0
        %v3934 = vadd.f32 0.0, %v3933
        %v3935 = vpop.f32.mrb[0].mxu0
        %3936 = vmatprep.mubr.bf16.mxu0 0
        %3937 = vmatmul.mubr.bf16.gmra.mrb[0].mxu0 %v2647
        %v3938 = vpop.f32.mrb[0].mxu0
        %v3939 = vadd.f32 0.0, %v3938
        %v3940 = vpop.f32.mrb[0].mxu0
        %v3941 = vpop.f32.mrb[0].mxu0
        %v3942 = vadd.f32 0.0, %v3941
        %v3943 = vpop.f32.mrb[0].mxu0
        %3944 = vmatprep.mubr.bf16.mxu0 0
        %3945 = vmatmul.mubr.bf16.gmra.mrb[0].mxu0 %v2650
        %v3946 = vpop.f32.mrb[0].mxu0
        %v3947 = vadd.f32 0.0, %v3946
        %v3948 = vpop.f32.mrb[0].mxu0
        %v3949 = vpop.f32.mrb[0].mxu0
        %v3950 = vadd.f32 0.0, %v3949
        %v3951 = vpop.f32.mrb[0].mxu0
        %3952 = vmatprep.mubr.bf16.mxu0 0
        %3953 = vmatmul.mubr.bf16.gmra.mrb[0].mxu0 %v2653
        %v3954 = vpop.f32.mrb[0].mxu0
        %v3955 = vadd.f32 0.0, %v3954
        %v3956 = vpop.f32.mrb[0].mxu0
        %v3957 = vpop.f32.mrb[0].mxu0
        %v3958 = vadd.f32 0.0, %v3957
        %v3959 = vpop.f32.mrb[0].mxu0
        %3960 = vmatprep.mubr.bf16.mxu0 0
        %3961 = vmatmul.mubr.bf16.gmra.mrb[0].mxu0 %v2656
        %v3962 = vpop.f32.mrb[0].mxu0
        %v3963 = vadd.f32 0.0, %v3962
        %v3964 = vpop.f32.mrb[0].mxu0
        %v3965 = vpop.f32.mrb[0].mxu0
        %v3966 = vadd.f32 0.0, %v3965
        %v3967 = vpop.f32.mrb[0].mxu0
        %3968 = vmatprep.mubr.bf16.mxu0 0
        %3969 = vmatmul.mubr.bf16.gmra.mrb[0].mxu0 %v2659
        %v3970 = vpop.f32.mrb[0].mxu0
        %v3971 = vadd.f32 0.0, %v3970
        %v3972 = vpop.f32.mrb[0].mxu0
        %v3973 = vpop.f32.mrb[0].mxu0
        %v3974 = vadd.f32 0.0, %v3973
        %v3975 = vpop.f32.mrb[0].mxu0
        %3976 = vdwg.mxu0
        %v3977 = vadd.f32 %v3493, %v3600
        %v3978 = vadd.f32 %v3494, %v3603
        %v3979 = vadd.f32 %v3495, %v3608
        %v3980 = vadd.f32 %v3496, %v3611
        %v3981 = vadd.f32 %v3497, %v3616
        %v3982 = vadd.f32 %v3498, %v3619
        %v3983 = vadd.f32 %v3499, %v3624
        %v3984 = vadd.f32 %v3500, %v3627
        %v3985 = vadd.f32 %v3501, %v3632
        %v3986 = vadd.f32 %v3502, %v3635
        %v3987 = vadd.f32 %v3503, %v3640
        %v3988 = vadd.f32 %v3504, %v3643
        %v3989 = vadd.f32 %v3505, %v3648
        %v3990 = vadd.f32 %v3506, %v3651
        %v3991 = vadd.f32 %v3507, %v3656
        %v3992 = vadd.f32 %v3508, %v3659
        %v3993 = vadd.f32 %v3509, %v3705
        %v3994 = vadd.f32 %v3510, %v3708
        %v3995 = vadd.f32 %v3511, %v3713
        %v3996 = vadd.f32 %v3512, %v3716
        %v3997 = vadd.f32 %v3513, %v3721
        %v3998 = vadd.f32 %v3514, %v3724
        %v3999 = vadd.f32 %v3515, %v3729
        %v4000 = vadd.f32 %v3516, %v3732
        %v4001 = vadd.f32 %v3517, %v3737
        %v4002 = vadd.f32 %v3518, %v3740
        %v4003 = vadd.f32 %v3519, %v3745
        %v4004 = vadd.f32 %v3520, %v3748
        %v4005 = vadd.f32 %v3521, %v3753
        %v4006 = vadd.f32 %v3522, %v3756
        %v4007 = vadd.f32 %v3523, %v3761
        %v4008 = vadd.f32 %v3524, %v3764
        %v4009 = vadd.f32 %v3525, %v3810
        %v4010 = vadd.f32 %v3526, %v3813
        %v4011 = vadd.f32 %v3527, %v3818
        %v4012 = vadd.f32 %v3528, %v3821
        %v4013 = vadd.f32 %v3529, %v3826
        %v4014 = vadd.f32 %v3530, %v3829
        %v4015 = vadd.f32 %v3531, %v3834
        %v4016 = vadd.f32 %v3532, %v3837
        %v4017 = vadd.f32 %v3533, %v3842
        %v4018 = vadd.f32 %v3534, %v3845
        %v4019 = vadd.f32 %v3535, %v3850
        %v4020 = vadd.f32 %v3536, %v3853
        %v4021 = vadd.f32 %v3537, %v3858
        %v4022 = vadd.f32 %v3538, %v3861
        %v4023 = vadd.f32 %v3539, %v3866
        %v4024 = vadd.f32 %v3540, %v3869
        %v4025 = vadd.f32 %v3541, %v3915
        %v4026 = vadd.f32 %v3542, %v3918
        %v4027 = vadd.f32 %v3543, %v3923
        %v4028 = vadd.f32 %v3544, %v3926
        %v4029 = vadd.f32 %v3545, %v3931
        %v4030 = vadd.f32 %v3546, %v3934
        %v4031 = vadd.f32 %v3547, %v3939
        %v4032 = vadd.f32 %v3548, %v3942
        %v4033 = vadd.f32 %v3549, %v3947
        %v4034 = vadd.f32 %v3550, %v3950
        %v4035 = vadd.f32 %v3551, %v3955
        %v4036 = vadd.f32 %v3552, %v3958
        %v4037 = vadd.f32 %v3553, %v3963
        %v4038 = vadd.f32 %v3554, %v3966
        %v4039 = vadd.f32 %v3555, %v3971
        %v4040 = vadd.f32 %v3556, %v3974
        %4041 = vst.msk [vmem:[#allocation4] sm:$0xff] %vm879, %v3977
        %4042 = vst.msk [vmem:[#allocation4 + $0x8] sm:$0xff] %vm879, %v3978
        %4043 = vst.msk [vmem:[#allocation4 + $0x10] sm:$0xff] %vm879, %v3979
        %4044 = vst.msk [vmem:[#allocation4 + $0x18] sm:$0xff] %vm879, %v3980
        %4045 = vst.msk [vmem:[#allocation4 + $0x20] sm:$0xff] %vm879, %v3981
        %4046 = vst.msk [vmem:[#allocation4 + $0x28] sm:$0xff] %vm879, %v3982
        %4047 = vst.msk [vmem:[#allocation4 + $0x30] sm:$0xff] %vm879, %v3983
        %4048 = vst.msk [vmem:[#allocation4 + $0x38] sm:$0xff] %vm879, %v3984
        %4049 = vst.msk [vmem:[#allocation4 + $0x40] sm:$0xff] %vm879, %v3985
        %4050 = vst.msk [vmem:[#allocation4 + $0x48] sm:$0xff] %vm879, %v3986
        %4051 = vst.msk [vmem:[#allocation4 + $0x50] sm:$0xff] %vm879, %v3987
        %4052 = vst.msk [vmem:[#allocation4 + $0x58] sm:$0xff] %vm879, %v3988
        %4053 = vst.msk [vmem:[#allocation4 + $0x60] sm:$0xff] %vm879, %v3989
        %4054 = vst.msk [vmem:[#allocation4 + $0x68] sm:$0xff] %vm879, %v3990
        %4055 = vst.msk [vmem:[#allocation4 + $0x70] sm:$0xff] %vm879, %v3991
        %4056 = vst.msk [vmem:[#allocation4 + $0x78] sm:$0xff] %vm879, %v3992
        %4057 = vst.msk [vmem:[#allocation4 + $0x80] sm:$0xff] %vm879, %v3993
        %4058 = vst.msk [vmem:[#allocation4 + $0x88] sm:$0xff] %vm879, %v3994
        %4059 = vst.msk [vmem:[#allocation4 + $0x90] sm:$0xff] %vm879, %v3995
        %4060 = vst.msk [vmem:[#allocation4 + $0x98] sm:$0xff] %vm879, %v3996
        %4061 = vst.msk [vmem:[#allocation4 + $0xa0] sm:$0xff] %vm879, %v3997
        %4062 = vst.msk [vmem:[#allocation4 + $0xa8] sm:$0xff] %vm879, %v3998
        %4063 = vst.msk [vmem:[#allocation4 + $0xb0] sm:$0xff] %vm879, %v3999
        %4064 = vst.msk [vmem:[#allocation4 + $0xb8] sm:$0xff] %vm879, %v4000
        %4065 = vst.msk [vmem:[#allocation4 + $0xc0] sm:$0xff] %vm879, %v4001
        %4066 = vst.msk [vmem:[#allocation4 + $0xc8] sm:$0xff] %vm879, %v4002
        %4067 = vst.msk [vmem:[#allocation4 + $0xd0] sm:$0xff] %vm879, %v4003
        %4068 = vst.msk [vmem:[#allocation4 + $0xd8] sm:$0xff] %vm879, %v4004
        %4069 = vst.msk [vmem:[#allocation4 + $0xe0] sm:$0xff] %vm879, %v4005
        %4070 = vst.msk [vmem:[#allocation4 + $0xe8] sm:$0xff] %vm879, %v4006
        %4071 = vst.msk [vmem:[#allocation4 + $0xf0] sm:$0xff] %vm879, %v4007
        %4072 = vst.msk [vmem:[#allocation4 + $0xf8] sm:$0xff] %vm879, %v4008
        %4073 = vst.msk [vmem:[#allocation4 + $0x100] sm:$0xff] %vm879, %v4009
        %4074 = vst.msk [vmem:[#allocation4 + $0x108] sm:$0xff] %vm879, %v4010
        %4075 = vst.msk [vmem:[#allocation4 + $0x110] sm:$0xff] %vm879, %v4011
        %4076 = vst.msk [vmem:[#allocation4 + $0x118] sm:$0xff] %vm879, %v4012
        %4077 = vst.msk [vmem:[#allocation4 + $0x120] sm:$0xff] %vm879, %v4013
        %4078 = vst.msk [vmem:[#allocation4 + $0x128] sm:$0xff] %vm879, %v4014
        %4079 = vst.msk [vmem:[#allocation4 + $0x130] sm:$0xff] %vm879, %v4015
        %4080 = vst.msk [vmem:[#allocation4 + $0x138] sm:$0xff] %vm879, %v4016
        %4081 = vst.msk [vmem:[#allocation4 + $0x140] sm:$0xff] %vm879, %v4017
        %4082 = vst.msk [vmem:[#allocation4 + $0x148] sm:$0xff] %vm879, %v4018
        %4083 = vst.msk [vmem:[#allocation4 + $0x150] sm:$0xff] %vm879, %v4019
        %4084 = vst.msk [vmem:[#allocation4 + $0x158] sm:$0xff] %vm879, %v4020
        %4085 = vst.msk [vmem:[#allocation4 + $0x160] sm:$0xff] %vm879, %v4021
        %4086 = vst.msk [vmem:[#allocation4 + $0x168] sm:$0xff] %vm879, %v4022
        %4087 = vst.msk [vmem:[#allocation4 + $0x170] sm:$0xff] %vm879, %v4023
        %4088 = vst.msk [vmem:[#allocation4 + $0x178] sm:$0xff] %vm879, %v4024
        %4089 = vst.msk [vmem:[#allocation4 + $0x180] sm:$0xff] %vm879, %v4025
        %4090 = vst.msk [vmem:[#allocation4 + $0x188] sm:$0xff] %vm879, %v4026
        %4091 = vst.msk [vmem:[#allocation4 + $0x190] sm:$0xff] %vm879, %v4027
        %4092 = vst.msk [vmem:[#allocation4 + $0x198] sm:$0xff] %vm879, %v4028
        %4093 = vst.msk [vmem:[#allocation4 + $0x1a0] sm:$0xff] %vm879, %v4029
        %4094 = vst.msk [vmem:[#allocation4 + $0x1a8] sm:$0xff] %vm879, %v4030
        %4095 = vst.msk [vmem:[#allocation4 + $0x1b0] sm:$0xff] %vm879, %v4031
        %4096 = vst.msk [vmem:[#allocation4 + $0x1b8] sm:$0xff] %vm879, %v4032
        %4097 = vst.msk [vmem:[#allocation4 + $0x1c0] sm:$0xff] %vm879, %v4033
        %4098 = vst.msk [vmem:[#allocation4 + $0x1c8] sm:$0xff] %vm879, %v4034
        %4099 = vst.msk [vmem:[#allocation4 + $0x1d0] sm:$0xff] %vm879, %v4035
        %4100 = vst.msk [vmem:[#allocation4 + $0x1d8] sm:$0xff] %vm879, %v4036
        %4101 = vst.msk [vmem:[#allocation4 + $0x1e0] sm:$0xff] %vm879, %v4037
        %4102 = vst.msk [vmem:[#allocation4 + $0x1e8] sm:$0xff] %vm879, %v4038
        %4103 = vst.msk [vmem:[#allocation4 + $0x1f0] sm:$0xff] %vm879, %v4039
        %4104 = vst.msk [vmem:[#allocation4 + $0x1f8] sm:$0xff] %vm879, %v4040
        %4105 = vst.msk [vmem:[#allocation2] sm:$0xff] %vm3044, %v1892
        %4106 = vst.msk [vmem:[#allocation2 + $0x8] sm:$0xff] %vm3044, %v1893
        %4107 = vst.msk [vmem:[#allocation2 + $0x10] sm:$0xff] %vm3044, %v1894
        %4108 = vst.msk [vmem:[#allocation2 + $0x18] sm:$0xff] %vm3044, %v1895
        %4109 = vst.msk [vmem:[#allocation2 + $0x20] sm:$0xff] %vm3044, %v1896
        %4110 = vst.msk [vmem:[#allocation2 + $0x28] sm:$0xff] %vm3044, %v1897
        %4111 = vst.msk [vmem:[#allocation2 + $0x30] sm:$0xff] %vm3044, %v1898
        %4112 = vst.msk [vmem:[#allocation2 + $0x38] sm:$0xff] %vm3044, %v1899
        %4113 = vst.msk [vmem:[#allocation2 + $0x40] sm:$0xff] %vm3044, %v1900
        %4114 = vst.msk [vmem:[#allocation2 + $0x48] sm:$0xff] %vm3044, %v1901
        %4115 = vst.msk [vmem:[#allocation2 + $0x50] sm:$0xff] %vm3044, %v1902
        %4116 = vst.msk [vmem:[#allocation2 + $0x58] sm:$0xff] %vm3044, %v1903
        %4117 = vst.msk [vmem:[#allocation2 + $0x60] sm:$0xff] %vm3044, %v1904
        %4118 = vst.msk [vmem:[#allocation2 + $0x68] sm:$0xff] %vm3044, %v1905
        %4119 = vst.msk [vmem:[#allocation2 + $0x70] sm:$0xff] %vm3044, %v1906
        %4120 = vst.msk [vmem:[#allocation2 + $0x78] sm:$0xff] %vm3044, %v1907
        %4121 = vst.msk [vmem:[#allocation2 + $0x80] sm:$0xff] %vm3044, %v1908
        %4122 = vst.msk [vmem:[#allocation2 + $0x88] sm:$0xff] %vm3044, %v1909
        %4123 = vst.msk [vmem:[#allocation2 + $0x90] sm:$0xff] %vm3044, %v1910
        %4124 = vst.msk [vmem:[#allocation2 + $0x98] sm:$0xff] %vm3044, %v1911
        %4125 = vst.msk [vmem:[#allocation2 + $0xa0] sm:$0xff] %vm3044, %v1912
        %4126 = vst.msk [vmem:[#allocation2 + $0xa8] sm:$0xff] %vm3044, %v1913
        %4127 = vst.msk [vmem:[#allocation2 + $0xb0] sm:$0xff] %vm3044, %v1914
        %4128 = vst.msk [vmem:[#allocation2 + $0xb8] sm:$0xff] %vm3044, %v1915
        %4129 = vst.msk [vmem:[#allocation2 + $0xc0] sm:$0xff] %vm3044, %v1916
        %4130 = vst.msk [vmem:[#allocation2 + $0xc8] sm:$0xff] %vm3044, %v1917
        %4131 = vst.msk [vmem:[#allocation2 + $0xd0] sm:$0xff] %vm3044, %v1918
        %4132 = vst.msk [vmem:[#allocation2 + $0xd8] sm:$0xff] %vm3044, %v1919
        %4133 = vst.msk [vmem:[#allocation2 + $0xe0] sm:$0xff] %vm3044, %v1920
        %4134 = vst.msk [vmem:[#allocation2 + $0xe8] sm:$0xff] %vm3044, %v1921
        %4135 = vst.msk [vmem:[#allocation2 + $0xf0] sm:$0xff] %vm3044, %v1922
        %4136 = vst.msk [vmem:[#allocation2 + $0xf8] sm:$0xff] %vm3044, %v1923
        %4137 = vst.msk [vmem:[#allocation2 + $0x100] sm:$0xff] %vm3044, %v1924
        %4138 = vst.msk [vmem:[#allocation2 + $0x108] sm:$0xff] %vm3044, %v1925
        %4139 = vst.msk [vmem:[#allocation2 + $0x110] sm:$0xff] %vm3044, %v1926
        %4140 = vst.msk [vmem:[#allocation2 + $0x118] sm:$0xff] %vm3044, %v1927
        %4141 = vst.msk [vmem:[#allocation2 + $0x120] sm:$0xff] %vm3044, %v1928
        %4142 = vst.msk [vmem:[#allocation2 + $0x128] sm:$0xff] %vm3044, %v1929
        %4143 = vst.msk [vmem:[#allocation2 + $0x130] sm:$0xff] %vm3044, %v1930
        %4144 = vst.msk [vmem:[#allocation2 + $0x138] sm:$0xff] %vm3044, %v1931
        %4145 = vst.msk [vmem:[#allocation2 + $0x140] sm:$0xff] %vm3044, %v1932
        %4146 = vst.msk [vmem:[#allocation2 + $0x148] sm:$0xff] %vm3044, %v1933
        %4147 = vst.msk [vmem:[#allocation2 + $0x150] sm:$0xff] %vm3044, %v1934
        %4148 = vst.msk [vmem:[#allocation2 + $0x158] sm:$0xff] %vm3044, %v1935
        %4149 = vst.msk [vmem:[#allocation2 + $0x160] sm:$0xff] %vm3044, %v1936
        %4150 = vst.msk [vmem:[#allocation2 + $0x168] sm:$0xff] %vm3044, %v1937
        %4151 = vst.msk [vmem:[#allocation2 + $0x170] sm:$0xff] %vm3044, %v1938
        %4152 = vst.msk [vmem:[#allocation2 + $0x178] sm:$0xff] %vm3044, %v1939
        %4153 = vst.msk [vmem:[#allocation2 + $0x180] sm:$0xff] %vm3044, %v1940
        %4154 = vst.msk [vmem:[#allocation2 + $0x188] sm:$0xff] %vm3044, %v1941
        %4155 = vst.msk [vmem:[#allocation2 + $0x190] sm:$0xff] %vm3044, %v1942
        %4156 = vst.msk [vmem:[#allocation2 + $0x198] sm:$0xff] %vm3044, %v1943
        %4157 = vst.msk [vmem:[#allocation2 + $0x1a0] sm:$0xff] %vm3044, %v1944
        %4158 = vst.msk [vmem:[#allocation2 + $0x1a8] sm:$0xff] %vm3044, %v1945
        %4159 = vst.msk [vmem:[#allocation2 + $0x1b0] sm:$0xff] %vm3044, %v1946
        %4160 = vst.msk [vmem:[#allocation2 + $0x1b8] sm:$0xff] %vm3044, %v1947
        %4161 = vst.msk [vmem:[#allocation2 + $0x1c0] sm:$0xff] %vm3044, %v1948
        %4162 = vst.msk [vmem:[#allocation2 + $0x1c8] sm:$0xff] %vm3044, %v1949
        %4163 = vst.msk [vmem:[#allocation2 + $0x1d0] sm:$0xff] %vm3044, %v1950
        %4164 = vst.msk [vmem:[#allocation2 + $0x1d8] sm:$0xff] %vm3044, %v1951
        %4165 = vst.msk [vmem:[#allocation2 + $0x1e0] sm:$0xff] %vm3044, %v1952
        %4166 = vst.msk [vmem:[#allocation2 + $0x1e8] sm:$0xff] %vm3044, %v1953
        %4167 = vst.msk [vmem:[#allocation2 + $0x1f0] sm:$0xff] %vm3044, %v1954
        %4168 = vst.msk [vmem:[#allocation2 + $0x1f8] sm:$0xff] %vm3044, %v1955
        %v4169 = vld [vmem:[%s469 + $0x40] sm:$0xf]
        %v4170 = vld [vmem:[%s469 + $0x44] sm:$0xf]
        %v4171 = vld [vmem:[%s469 + $0x48] sm:$0xf]
        %v4172 = vld [vmem:[%s469 + $0x4c] sm:$0xf]
        %v4173 = vld [vmem:[%s469 + $0x50] sm:$0xf]
        %v4174 = vld [vmem:[%s469 + $0x54] sm:$0xf]
        %v4175 = vld [vmem:[%s469 + $0x58] sm:$0xf]
        %v4176 = vld [vmem:[%s469 + $0x5c] sm:$0xf]
        %v4177 = vld [vmem:[%s469 + $0x60] sm:$0xf]
        %v4178 = vld [vmem:[%s469 + $0x64] sm:$0xf]
        %v4179 = vld [vmem:[%s469 + $0x68] sm:$0xf]
        %v4180 = vld [vmem:[%s469 + $0x6c] sm:$0xf]
        %v4181 = vld [vmem:[%s469 + $0x70] sm:$0xf]
        %v4182 = vld [vmem:[%s469 + $0x74] sm:$0xf]
        %v4183 = vld [vmem:[%s469 + $0x78] sm:$0xf]
        %v4184 = vld [vmem:[%s469 + $0x7c] sm:$0xf]
        %v4185 = vld [vmem:[%s469 + $0xc0] sm:$0xf]
        %v4186 = vld [vmem:[%s469 + $0xc4] sm:$0xf]
        %v4187 = vld [vmem:[%s469 + $0xc8] sm:$0xf]
        %v4188 = vld [vmem:[%s469 + $0xcc] sm:$0xf]
        %v4189 = vld [vmem:[%s469 + $0xd0] sm:$0xf]
        %v4190 = vld [vmem:[%s469 + $0xd4] sm:$0xf]
        %v4191 = vld [vmem:[%s469 + $0xd8] sm:$0xf]
        %v4192 = vld [vmem:[%s469 + $0xdc] sm:$0xf]
        %v4193 = vld [vmem:[%s469 + $0xe0] sm:$0xf]
        %v4194 = vld [vmem:[%s469 + $0xe4] sm:$0xf]
        %v4195 = vld [vmem:[%s469 + $0xe8] sm:$0xf]
        %v4196 = vld [vmem:[%s469 + $0xec] sm:$0xf]
        %v4197 = vld [vmem:[%s469 + $0xf0] sm:$0xf]
        %v4198 = vld [vmem:[%s469 + $0xf4] sm:$0xf]
        %v4199 = vld [vmem:[%s469 + $0xf8] sm:$0xf]
        %v4200 = vld [vmem:[%s469 + $0xfc] sm:$0xf]
        %v4201 = vld [vmem:[%s469 + $0x140] sm:$0xf]
        %v4202 = vld [vmem:[%s469 + $0x144] sm:$0xf]
        %v4203 = vld [vmem:[%s469 + $0x148] sm:$0xf]
        %v4204 = vld [vmem:[%s469 + $0x14c] sm:$0xf]
        %v4205 = vld [vmem:[%s469 + $0x150] sm:$0xf]
        %v4206 = vld [vmem:[%s469 + $0x154] sm:$0xf]
        %v4207 = vld [vmem:[%s469 + $0x158] sm:$0xf]
        %v4208 = vld [vmem:[%s469 + $0x15c] sm:$0xf]
        %v4209 = vld [vmem:[%s469 + $0x160] sm:$0xf]
        %v4210 = vld [vmem:[%s469 + $0x164] sm:$0xf]
        %v4211 = vld [vmem:[%s469 + $0x168] sm:$0xf]
        %v4212 = vld [vmem:[%s469 + $0x16c] sm:$0xf]
        %v4213 = vld [vmem:[%s469 + $0x170] sm:$0xf]
        %v4214 = vld [vmem:[%s469 + $0x174] sm:$0xf]
        %v4215 = vld [vmem:[%s469 + $0x178] sm:$0xf]
        %v4216 = vld [vmem:[%s469 + $0x17c] sm:$0xf]
        %v4217 = vld [vmem:[%s469 + $0x1c0] sm:$0xf]
        %v4218 = vld [vmem:[%s469 + $0x1c4] sm:$0xf]
        %v4219 = vld [vmem:[%s469 + $0x1c8] sm:$0xf]
        %v4220 = vld [vmem:[%s469 + $0x1cc] sm:$0xf]
        %v4221 = vld [vmem:[%s469 + $0x1d0] sm:$0xf]
        %v4222 = vld [vmem:[%s469 + $0x1d4] sm:$0xf]
        %v4223 = vld [vmem:[%s469 + $0x1d8] sm:$0xf]
        %v4224 = vld [vmem:[%s469 + $0x1dc] sm:$0xf]
        %v4225 = vld [vmem:[%s469 + $0x1e0] sm:$0xf]
        %v4226 = vld [vmem:[%s469 + $0x1e4] sm:$0xf]
        %v4227 = vld [vmem:[%s469 + $0x1e8] sm:$0xf]
        %v4228 = vld [vmem:[%s469 + $0x1ec] sm:$0xf]
        %v4229 = vld [vmem:[%s469 + $0x1f0] sm:$0xf]
        %v4230 = vld [vmem:[%s469 + $0x1f4] sm:$0xf]
        %v4231 = vld [vmem:[%s469 + $0x1f8] sm:$0xf]
        %v4232 = vld [vmem:[%s469 + $0x1fc] sm:$0xf]
        %v4249 = vunpack.c.l.b16 %v4169
        %v4250 = vunpack.c.l.b16 %v4170
        %v4251 = vunpack.c.l.b16 %v4171
        %v4252 = vunpack.c.l.b16 %v4172
        %v4253 = vunpack.c.l.b16 %v4173
        %v4254 = vunpack.c.l.b16 %v4174
        %v4255 = vunpack.c.l.b16 %v4175
        %v4256 = vunpack.c.l.b16 %v4176
        %v4257 = vunpack.c.l.b16 %v4177
        %v4258 = vunpack.c.l.b16 %v4178
        %v4259 = vunpack.c.l.b16 %v4179
        %v4260 = vunpack.c.l.b16 %v4180
        %v4261 = vunpack.c.l.b16 %v4181
        %v4262 = vunpack.c.l.b16 %v4182
        %v4263 = vunpack.c.l.b16 %v4183
        %v4264 = vunpack.c.l.b16 %v4184
        %v4265 = vpack.c.b16 %v4250, %v4249
        %v4266 = vpack.c.b16 %v4252, %v4251
        %v4267 = vpack.c.b16 %v4254, %v4253
        %v4268 = vpack.c.b16 %v4256, %v4255
        %v4269 = vpack.c.b16 %v4258, %v4257
        %v4270 = vpack.c.b16 %v4260, %v4259
        %v4271 = vpack.c.b16 %v4262, %v4261
        %v4272 = vpack.c.b16 %v4264, %v4263
        %v4274 = vsel %vm879, %v4265, 0
        %v4277 = vsel %vm879, %v4266, 0
        %v4280 = vsel %vm879, %v4267, 0
        %v4283 = vsel %vm879, %v4268, 0
        %v4286 = vsel %vm879, %v4269, 0
        %v4289 = vsel %vm879, %v4270, 0
        %v4292 = vsel %vm879, %v4271, 0
        %v4295 = vsel %vm879, %v4272, 0
        %4297 = vmatprep.subr.bf16.mxu0 0
        %4298 = vmatpush1.bf16.xpose.msra.mxu0 %v4274
        %4299 = vmatprep.subr.bf16.mxu0 0
        %4300 = vmatpush1.bf16.xpose.msra.mxu0 %v4277
        %4301 = vmatprep.subr.bf16.mxu0 0
        %4302 = vmatpush1.bf16.xpose.msra.mxu0 %v4280
        %4303 = vmatprep.subr.bf16.mxu0 0
        %4304 = vmatpush1.bf16.xpose.msra.mxu0 %v4283
        %4305 = vmatprep.subr.bf16.mxu0 0
        %4306 = vmatpush1.bf16.xpose.msra.mxu0 %v4286
        %4307 = vmatprep.subr.bf16.mxu0 0
        %4308 = vmatpush1.bf16.xpose.msra.mxu0 %v4289
        %4309 = vmatprep.subr.bf16.mxu0 0
        %4310 = vmatpush1.bf16.xpose.msra.mxu0 %v4292
        %4311 = vmatprep.subr.bf16.mxu0 0
        %4312 = vmatpush1.bf16.xpose.msra.mxu0 %v4295
        %4313 = vmatprep.subr.bf16.mxu0 0
        %4314 = vmatpush1.bf16.xpose.msra.mxu0 0
        %4315 = vmatprep.subr.bf16.mxu0 0
        %4316 = vmatpush1.bf16.xpose.msra.mxu0 0
        %4317 = vmatprep.subr.bf16.mxu0 0
        %4318 = vmatpush1.bf16.xpose.msra.mxu0 0
        %4319 = vmatprep.subr.bf16.mxu0 0
        %4320 = vmatpush1.bf16.xpose.msra.mxu0 0
        %4321 = vmatprep.subr.bf16.mxu0 0
        %4322 = vmatpush1.bf16.xpose.msra.mxu0 0
        %4323 = vmatprep.subr.bf16.mxu0 0
        %4324 = vmatpush1.bf16.xpose.msra.mxu0 0
        %4325 = vmatprep.subr.bf16.mxu0 0
        %4326 = vmatpush1.bf16.xpose.msra.mxu0 0
        %4327 = vmatprep.subr.bf16.mxu0 0
        %4328 = vmatpush1.bf16.xpose.msra.mxu0 0
        %4329 = vmatprep.mubr.bf16.mxu0 0
        %4330 = vmatmul.mubr.bf16.gmra.mrb[0].mxu0 %v881
        %v4331 = vpop.f32.mrb[0].mxu0
        %v4332 = vadd.f32 0.0, %v4331
        %v4333 = vpop.f32.mrb[0].mxu0
        %v4334 = vpop.f32.mrb[0].mxu0
        %v4335 = vadd.f32 0.0, %v4334
        %v4336 = vpop.f32.mrb[0].mxu0
        %4337 = vmatprep.mubr.bf16.mxu0 0
        %4338 = vmatmul.mubr.bf16.gmra.mrb[0].mxu0 %v884
        %v4339 = vpop.f32.mrb[0].mxu0
        %v4340 = vadd.f32 0.0, %v4339
        %v4341 = vpop.f32.mrb[0].mxu0
        %v4342 = vpop.f32.mrb[0].mxu0
        %v4343 = vadd.f32 0.0, %v4342
        %v4344 = vpop.f32.mrb[0].mxu0
        %4345 = vmatprep.mubr.bf16.mxu0 0
        %4346 = vmatmul.mubr.bf16.gmra.mrb[0].mxu0 %v887
        %v4347 = vpop.f32.mrb[0].mxu0
        %v4348 = vadd.f32 0.0, %v4347
        %v4349 = vpop.f32.mrb[0].mxu0
        %v4350 = vpop.f32.mrb[0].mxu0
        %v4351 = vadd.f32 0.0, %v4350
        %v4352 = vpop.f32.mrb[0].mxu0
        %4353 = vmatprep.mubr.bf16.mxu0 0
        %4354 = vmatmul.mubr.bf16.gmra.mrb[0].mxu0 %v890
        %v4355 = vpop.f32.mrb[0].mxu0
        %v4356 = vadd.f32 0.0, %v4355
        %v4357 = vpop.f32.mrb[0].mxu0
        %v4358 = vpop.f32.mrb[0].mxu0
        %v4359 = vadd.f32 0.0, %v4358
        %v4360 = vpop.f32.mrb[0].mxu0
        %4361 = vmatprep.mubr.bf16.mxu0 0
        %4362 = vmatmul.mubr.bf16.gmra.mrb[0].mxu0 %v893
        %v4363 = vpop.f32.mrb[0].mxu0
        %v4364 = vadd.f32 0.0, %v4363
        %v4365 = vpop.f32.mrb[0].mxu0
        %v4366 = vpop.f32.mrb[0].mxu0
        %v4367 = vadd.f32 0.0, %v4366
        %v4368 = vpop.f32.mrb[0].mxu0
        %4369 = vmatprep.mubr.bf16.mxu0 0
        %4370 = vmatmul.mubr.bf16.gmra.mrb[0].mxu0 %v896
        %v4371 = vpop.f32.mrb[0].mxu0
        %v4372 = vadd.f32 0.0, %v4371
        %v4373 = vpop.f32.mrb[0].mxu0
        %v4374 = vpop.f32.mrb[0].mxu0
        %v4375 = vadd.f32 0.0, %v4374
        %v4376 = vpop.f32.mrb[0].mxu0
        %4377 = vmatprep.mubr.bf16.mxu0 0
        %4378 = vmatmul.mubr.bf16.gmra.mrb[0].mxu0 %v899
        %v4379 = vpop.f32.mrb[0].mxu0
        %v4380 = vadd.f32 0.0, %v4379
        %v4381 = vpop.f32.mrb[0].mxu0
        %v4382 = vpop.f32.mrb[0].mxu0
        %v4383 = vadd.f32 0.0, %v4382
        %v4384 = vpop.f32.mrb[0].mxu0
        %4385 = vmatprep.mubr.bf16.mxu0 0
        %4386 = vmatmul.mubr.bf16.gmra.mrb[0].mxu0 %v902
        %v4387 = vpop.f32.mrb[0].mxu0
        %v4388 = vadd.f32 0.0, %v4387
        %v4389 = vpop.f32.mrb[0].mxu0
        %v4390 = vpop.f32.mrb[0].mxu0
        %v4391 = vadd.f32 0.0, %v4390
        %v4392 = vpop.f32.mrb[0].mxu0
        %4393 = vdwg.mxu0
        %v4410 = vunpack.c.l.b16 %v4185
        %v4411 = vunpack.c.l.b16 %v4186
        %v4412 = vunpack.c.l.b16 %v4187
        %v4413 = vunpack.c.l.b16 %v4188
        %v4414 = vunpack.c.l.b16 %v4189
        %v4415 = vunpack.c.l.b16 %v4190
        %v4416 = vunpack.c.l.b16 %v4191
        %v4417 = vunpack.c.l.b16 %v4192
        %v4418 = vunpack.c.l.b16 %v4193
        %v4419 = vunpack.c.l.b16 %v4194
        %v4420 = vunpack.c.l.b16 %v4195
        %v4421 = vunpack.c.l.b16 %v4196
        %v4422 = vunpack.c.l.b16 %v4197
        %v4423 = vunpack.c.l.b16 %v4198
        %v4424 = vunpack.c.l.b16 %v4199
        %v4425 = vunpack.c.l.b16 %v4200
        %v4426 = vpack.c.b16 %v4411, %v4410
        %v4427 = vpack.c.b16 %v4413, %v4412
        %v4428 = vpack.c.b16 %v4415, %v4414
        %v4429 = vpack.c.b16 %v4417, %v4416
        %v4430 = vpack.c.b16 %v4419, %v4418
        %v4431 = vpack.c.b16 %v4421, %v4420
        %v4432 = vpack.c.b16 %v4423, %v4422
        %v4433 = vpack.c.b16 %v4425, %v4424
        %v4435 = vsel %vm879, %v4426, 0
        %v4438 = vsel %vm879, %v4427, 0
        %v4441 = vsel %vm879, %v4428, 0
        %v4444 = vsel %vm879, %v4429, 0
        %v4447 = vsel %vm879, %v4430, 0
        %v4450 = vsel %vm879, %v4431, 0
        %v4453 = vsel %vm879, %v4432, 0
        %v4456 = vsel %vm879, %v4433, 0
        %4458 = vmatprep.subr.bf16.mxu0 0
        %4459 = vmatpush1.bf16.xpose.msra.mxu0 %v4435
        %4460 = vmatprep.subr.bf16.mxu0 0
        %4461 = vmatpush1.bf16.xpose.msra.mxu0 %v4438
        %4462 = vmatprep.subr.bf16.mxu0 0
        %4463 = vmatpush1.bf16.xpose.msra.mxu0 %v4441
        %4464 = vmatprep.subr.bf16.mxu0 0
        %4465 = vmatpush1.bf16.xpose.msra.mxu0 %v4444
        %4466 = vmatprep.subr.bf16.mxu0 0
        %4467 = vmatpush1.bf16.xpose.msra.mxu0 %v4447
        %4468 = vmatprep.subr.bf16.mxu0 0
        %4469 = vmatpush1.bf16.xpose.msra.mxu0 %v4450
        %4470 = vmatprep.subr.bf16.mxu0 0
        %4471 = vmatpush1.bf16.xpose.msra.mxu0 %v4453
        %4472 = vmatprep.subr.bf16.mxu0 0
        %4473 = vmatpush1.bf16.xpose.msra.mxu0 %v4456
        %4474 = vmatprep.subr.bf16.mxu0 0
        %4475 = vmatpush1.bf16.xpose.msra.mxu0 0
        %4476 = vmatprep.subr.bf16.mxu0 0
        %4477 = vmatpush1.bf16.xpose.msra.mxu0 0
        %4478 = vmatprep.subr.bf16.mxu0 0
        %4479 = vmatpush1.bf16.xpose.msra.mxu0 0
        %4480 = vmatprep.subr.bf16.mxu0 0
        %4481 = vmatpush1.bf16.xpose.msra.mxu0 0
        %4482 = vmatprep.subr.bf16.mxu0 0
        %4483 = vmatpush1.bf16.xpose.msra.mxu0 0
        %4484 = vmatprep.subr.bf16.mxu0 0
        %4485 = vmatpush1.bf16.xpose.msra.mxu0 0
        %4486 = vmatprep.subr.bf16.mxu0 0
        %4487 = vmatpush1.bf16.xpose.msra.mxu0 0
        %4488 = vmatprep.subr.bf16.mxu0 0
        %4489 = vmatpush1.bf16.xpose.msra.mxu0 0
        %4490 = vmatprep.mubr.bf16.mxu0 0
        %4491 = vmatmul.mubr.bf16.gmra.mrb[0].mxu0 %v1106
        %v4492 = vpop.f32.mrb[0].mxu0
        %v4493 = vadd.f32 0.0, %v4492
        %v4494 = vpop.f32.mrb[0].mxu0
        %v4495 = vpop.f32.mrb[0].mxu0
        %v4496 = vadd.f32 0.0, %v4495
        %v4497 = vpop.f32.mrb[0].mxu0
        %4498 = vmatprep.mubr.bf16.mxu0 0
        %4499 = vmatmul.mubr.bf16.gmra.mrb[0].mxu0 %v1109
        %v4500 = vpop.f32.mrb[0].mxu0
        %v4501 = vadd.f32 0.0, %v4500
        %v4502 = vpop.f32.mrb[0].mxu0
        %v4503 = vpop.f32.mrb[0].mxu0
        %v4504 = vadd.f32 0.0, %v4503
        %v4505 = vpop.f32.mrb[0].mxu0
        %4506 = vmatprep.mubr.bf16.mxu0 0
        %4507 = vmatmul.mubr.bf16.gmra.mrb[0].mxu0 %v1112
        %v4508 = vpop.f32.mrb[0].mxu0
        %v4509 = vadd.f32 0.0, %v4508
        %v4510 = vpop.f32.mrb[0].mxu0
        %v4511 = vpop.f32.mrb[0].mxu0
        %v4512 = vadd.f32 0.0, %v4511
        %v4513 = vpop.f32.mrb[0].mxu0
        %4514 = vmatprep.mubr.bf16.mxu0 0
        %4515 = vmatmul.mubr.bf16.gmra.mrb[0].mxu0 %v1115
        %v4516 = vpop.f32.mrb[0].mxu0
        %v4517 = vadd.f32 0.0, %v4516
        %v4518 = vpop.f32.mrb[0].mxu0
        %v4519 = vpop.f32.mrb[0].mxu0
        %v4520 = vadd.f32 0.0, %v4519
        %v4521 = vpop.f32.mrb[0].mxu0
        %4522 = vmatprep.mubr.bf16.mxu0 0
        %4523 = vmatmul.mubr.bf16.gmra.mrb[0].mxu0 %v1118
        %v4524 = vpop.f32.mrb[0].mxu0
        %v4525 = vadd.f32 0.0, %v4524
        %v4526 = vpop.f32.mrb[0].mxu0
        %v4527 = vpop.f32.mrb[0].mxu0
        %v4528 = vadd.f32 0.0, %v4527
        %v4529 = vpop.f32.mrb[0].mxu0
        %4530 = vmatprep.mubr.bf16.mxu0 0
        %4531 = vmatmul.mubr.bf16.gmra.mrb[0].mxu0 %v1121
        %v4532 = vpop.f32.mrb[0].mxu0
        %v4533 = vadd.f32 0.0, %v4532
        %v4534 = vpop.f32.mrb[0].mxu0
        %v4535 = vpop.f32.mrb[0].mxu0
        %v4536 = vadd.f32 0.0, %v4535
        %v4537 = vpop.f32.mrb[0].mxu0
        %4538 = vmatprep.mubr.bf16.mxu0 0
        %4539 = vmatmul.mubr.bf16.gmra.mrb[0].mxu0 %v1124
        %v4540 = vpop.f32.mrb[0].mxu0
        %v4541 = vadd.f32 0.0, %v4540
        %v4542 = vpop.f32.mrb[0].mxu0
        %v4543 = vpop.f32.mrb[0].mxu0
        %v4544 = vadd.f32 0.0, %v4543
        %v4545 = vpop.f32.mrb[0].mxu0
        %4546 = vmatprep.mubr.bf16.mxu0 0
        %4547 = vmatmul.mubr.bf16.gmra.mrb[0].mxu0 %v1127
        %v4548 = vpop.f32.mrb[0].mxu0
        %v4549 = vadd.f32 0.0, %v4548
        %v4550 = vpop.f32.mrb[0].mxu0
        %v4551 = vpop.f32.mrb[0].mxu0
        %v4552 = vadd.f32 0.0, %v4551
        %v4553 = vpop.f32.mrb[0].mxu0
        %4554 = vdwg.mxu0
        %v4571 = vunpack.c.l.b16 %v4201
        %v4572 = vunpack.c.l.b16 %v4202
        %v4573 = vunpack.c.l.b16 %v4203
        %v4574 = vunpack.c.l.b16 %v4204
        %v4575 = vunpack.c.l.b16 %v4205
        %v4576 = vunpack.c.l.b16 %v4206
        %v4577 = vunpack.c.l.b16 %v4207
        %v4578 = vunpack.c.l.b16 %v4208
        %v4579 = vunpack.c.l.b16 %v4209
        %v4580 = vunpack.c.l.b16 %v4210
        %v4581 = vunpack.c.l.b16 %v4211
        %v4582 = vunpack.c.l.b16 %v4212
        %v4583 = vunpack.c.l.b16 %v4213
        %v4584 = vunpack.c.l.b16 %v4214
        %v4585 = vunpack.c.l.b16 %v4215
        %v4586 = vunpack.c.l.b16 %v4216
        %v4587 = vpack.c.b16 %v4572, %v4571
        %v4588 = vpack.c.b16 %v4574, %v4573
        %v4589 = vpack.c.b16 %v4576, %v4575
        %v4590 = vpack.c.b16 %v4578, %v4577
        %v4591 = vpack.c.b16 %v4580, %v4579
        %v4592 = vpack.c.b16 %v4582, %v4581
        %v4593 = vpack.c.b16 %v4584, %v4583
        %v4594 = vpack.c.b16 %v4586, %v4585
        %v4596 = vsel %vm879, %v4587, 0
        %v4599 = vsel %vm879, %v4588, 0
        %v4602 = vsel %vm879, %v4589, 0
        %v4605 = vsel %vm879, %v4590, 0
        %v4608 = vsel %vm879, %v4591, 0
        %v4611 = vsel %vm879, %v4592, 0
        %v4614 = vsel %vm879, %v4593, 0
        %v4617 = vsel %vm879, %v4594, 0
        %4619 = vmatprep.subr.bf16.mxu0 0
        %4620 = vmatpush1.bf16.xpose.msra.mxu0 %v4596
        %4621 = vmatprep.subr.bf16.mxu0 0
        %4622 = vmatpush1.bf16.xpose.msra.mxu0 %v4599
        %4623 = vmatprep.subr.bf16.mxu0 0
        %4624 = vmatpush1.bf16.xpose.msra.mxu0 %v4602
        %4625 = vmatprep.subr.bf16.mxu0 0
        %4626 = vmatpush1.bf16.xpose.msra.mxu0 %v4605
        %4627 = vmatprep.subr.bf16.mxu0 0
        %4628 = vmatpush1.bf16.xpose.msra.mxu0 %v4608
        %4629 = vmatprep.subr.bf16.mxu0 0
        %4630 = vmatpush1.bf16.xpose.msra.mxu0 %v4611
        %4631 = vmatprep.subr.bf16.mxu0 0
        %4632 = vmatpush1.bf16.xpose.msra.mxu0 %v4614
        %4633 = vmatprep.subr.bf16.mxu0 0
        %4634 = vmatpush1.bf16.xpose.msra.mxu0 %v4617
        %4635 = vmatprep.subr.bf16.mxu0 0
        %4636 = vmatpush1.bf16.xpose.msra.mxu0 0
        %4637 = vmatprep.subr.bf16.mxu0 0
        %4638 = vmatpush1.bf16.xpose.msra.mxu0 0
        %4639 = vmatprep.subr.bf16.mxu0 0
        %4640 = vmatpush1.bf16.xpose.msra.mxu0 0
        %4641 = vmatprep.subr.bf16.mxu0 0
        %4642 = vmatpush1.bf16.xpose.msra.mxu0 0
        %4643 = vmatprep.subr.bf16.mxu0 0
        %4644 = vmatpush1.bf16.xpose.msra.mxu0 0
        %4645 = vmatprep.subr.bf16.mxu0 0
        %4646 = vmatpush1.bf16.xpose.msra.mxu0 0
        %4647 = vmatprep.subr.bf16.mxu0 0
        %4648 = vmatpush1.bf16.xpose.msra.mxu0 0
        %4649 = vmatprep.subr.bf16.mxu0 0
        %4650 = vmatpush1.bf16.xpose.msra.mxu0 0
        %4651 = vmatprep.mubr.bf16.mxu0 0
        %4652 = vmatmul.mubr.bf16.gmra.mrb[0].mxu0 %v1331
        %v4653 = vpop.f32.mrb[0].mxu0
        %v4654 = vadd.f32 0.0, %v4653
        %v4655 = vpop.f32.mrb[0].mxu0
        %v4656 = vpop.f32.mrb[0].mxu0
        %v4657 = vadd.f32 0.0, %v4656
        %v4658 = vpop.f32.mrb[0].mxu0
        %4659 = vmatprep.mubr.bf16.mxu0 0
        %4660 = vmatmul.mubr.bf16.gmra.mrb[0].mxu0 %v1334
        %v4661 = vpop.f32.mrb[0].mxu0
        %v4662 = vadd.f32 0.0, %v4661
        %v4663 = vpop.f32.mrb[0].mxu0
        %v4664 = vpop.f32.mrb[0].mxu0
        %v4665 = vadd.f32 0.0, %v4664
        %v4666 = vpop.f32.mrb[0].mxu0
        %4667 = vmatprep.mubr.bf16.mxu0 0
        %4668 = vmatmul.mubr.bf16.gmra.mrb[0].mxu0 %v1337
        %v4669 = vpop.f32.mrb[0].mxu0
        %v4670 = vadd.f32 0.0, %v4669
        %v4671 = vpop.f32.mrb[0].mxu0
        %v4672 = vpop.f32.mrb[0].mxu0
        %v4673 = vadd.f32 0.0, %v4672
        %v4674 = vpop.f32.mrb[0].mxu0
        %4675 = vmatprep.mubr.bf16.mxu0 0
        %4676 = vmatmul.mubr.bf16.gmra.mrb[0].mxu0 %v1340
        %v4677 = vpop.f32.mrb[0].mxu0
        %v4678 = vadd.f32 0.0, %v4677
        %v4679 = vpop.f32.mrb[0].mxu0
        %v4680 = vpop.f32.mrb[0].mxu0
        %v4681 = vadd.f32 0.0, %v4680
        %v4682 = vpop.f32.mrb[0].mxu0
        %4683 = vmatprep.mubr.bf16.mxu0 0
        %4684 = vmatmul.mubr.bf16.gmra.mrb[0].mxu0 %v1343
        %v4685 = vpop.f32.mrb[0].mxu0
        %v4686 = vadd.f32 0.0, %v4685
        %v4687 = vpop.f32.mrb[0].mxu0
        %v4688 = vpop.f32.mrb[0].mxu0
        %v4689 = vadd.f32 0.0, %v4688
        %v4690 = vpop.f32.mrb[0].mxu0
        %4691 = vmatprep.mubr.bf16.mxu0 0
        %4692 = vmatmul.mubr.bf16.gmra.mrb[0].mxu0 %v1346
        %v4693 = vpop.f32.mrb[0].mxu0
        %v4694 = vadd.f32 0.0, %v4693
        %v4695 = vpop.f32.mrb[0].mxu0
        %v4696 = vpop.f32.mrb[0].mxu0
        %v4697 = vadd.f32 0.0, %v4696
        %v4698 = vpop.f32.mrb[0].mxu0
        %4699 = vmatprep.mubr.bf16.mxu0 0
        %4700 = vmatmul.mubr.bf16.gmra.mrb[0].mxu0 %v1349
        %v4701 = vpop.f32.mrb[0].mxu0
        %v4702 = vadd.f32 0.0, %v4701
        %v4703 = vpop.f32.mrb[0].mxu0
        %v4704 = vpop.f32.mrb[0].mxu0
        %v4705 = vadd.f32 0.0, %v4704
        %v4706 = vpop.f32.mrb[0].mxu0
        %4707 = vmatprep.mubr.bf16.mxu0 0
        %4708 = vmatmul.mubr.bf16.gmra.mrb[0].mxu0 %v1352
        %v4709 = vpop.f32.mrb[0].mxu0
        %v4710 = vadd.f32 0.0, %v4709
        %v4711 = vpop.f32.mrb[0].mxu0
        %v4712 = vpop.f32.mrb[0].mxu0
        %v4713 = vadd.f32 0.0, %v4712
        %v4714 = vpop.f32.mrb[0].mxu0
        %4715 = vdwg.mxu0
        %v4732 = vunpack.c.l.b16 %v4217
        %v4733 = vunpack.c.l.b16 %v4218
        %v4734 = vunpack.c.l.b16 %v4219
        %v4735 = vunpack.c.l.b16 %v4220
        %v4736 = vunpack.c.l.b16 %v4221
        %v4737 = vunpack.c.l.b16 %v4222
        %v4738 = vunpack.c.l.b16 %v4223
        %v4739 = vunpack.c.l.b16 %v4224
        %v4740 = vunpack.c.l.b16 %v4225
        %v4741 = vunpack.c.l.b16 %v4226
        %v4742 = vunpack.c.l.b16 %v4227
        %v4743 = vunpack.c.l.b16 %v4228
        %v4744 = vunpack.c.l.b16 %v4229
        %v4745 = vunpack.c.l.b16 %v4230
        %v4746 = vunpack.c.l.b16 %v4231
        %v4747 = vunpack.c.l.b16 %v4232
        %v4748 = vpack.c.b16 %v4733, %v4732
        %v4749 = vpack.c.b16 %v4735, %v4734
        %v4750 = vpack.c.b16 %v4737, %v4736
        %v4751 = vpack.c.b16 %v4739, %v4738
        %v4752 = vpack.c.b16 %v4741, %v4740
        %v4753 = vpack.c.b16 %v4743, %v4742
        %v4754 = vpack.c.b16 %v4745, %v4744
        %v4755 = vpack.c.b16 %v4747, %v4746
        %v4757 = vsel %vm879, %v4748, 0
        %v4760 = vsel %vm879, %v4749, 0
        %v4763 = vsel %vm879, %v4750, 0
        %v4766 = vsel %vm879, %v4751, 0
        %v4769 = vsel %vm879, %v4752, 0
        %v4772 = vsel %vm879, %v4753, 0
        %v4775 = vsel %vm879, %v4754, 0
        %v4778 = vsel %vm879, %v4755, 0
        %4780 = vmatprep.subr.bf16.mxu0 0
        %4781 = vmatpush1.bf16.xpose.msra.mxu0 %v4757
        %4782 = vmatprep.subr.bf16.mxu0 0
        %4783 = vmatpush1.bf16.xpose.msra.mxu0 %v4760
        %4784 = vmatprep.subr.bf16.mxu0 0
        %4785 = vmatpush1.bf16.xpose.msra.mxu0 %v4763
        %4786 = vmatprep.subr.bf16.mxu0 0
        %4787 = vmatpush1.bf16.xpose.msra.mxu0 %v4766
        %4788 = vmatprep.subr.bf16.mxu0 0
        %4789 = vmatpush1.bf16.xpose.msra.mxu0 %v4769
        %4790 = vmatprep.subr.bf16.mxu0 0
        %4791 = vmatpush1.bf16.xpose.msra.mxu0 %v4772
        %4792 = vmatprep.subr.bf16.mxu0 0
        %4793 = vmatpush1.bf16.xpose.msra.mxu0 %v4775
        %4794 = vmatprep.subr.bf16.mxu0 0
        %4795 = vmatpush1.bf16.xpose.msra.mxu0 %v4778
        %4796 = vmatprep.subr.bf16.mxu0 0
        %4797 = vmatpush1.bf16.xpose.msra.mxu0 0
        %4798 = vmatprep.subr.bf16.mxu0 0
        %4799 = vmatpush1.bf16.xpose.msra.mxu0 0
        %4800 = vmatprep.subr.bf16.mxu0 0
        %4801 = vmatpush1.bf16.xpose.msra.mxu0 0
        %4802 = vmatprep.subr.bf16.mxu0 0
        %4803 = vmatpush1.bf16.xpose.msra.mxu0 0
        %4804 = vmatprep.subr.bf16.mxu0 0
        %4805 = vmatpush1.bf16.xpose.msra.mxu0 0
        %4806 = vmatprep.subr.bf16.mxu0 0
        %4807 = vmatpush1.bf16.xpose.msra.mxu0 0
        %4808 = vmatprep.subr.bf16.mxu0 0
        %4809 = vmatpush1.bf16.xpose.msra.mxu0 0
        %4810 = vmatprep.subr.bf16.mxu0 0
        %4811 = vmatpush1.bf16.xpose.msra.mxu0 0
        %4812 = vmatprep.mubr.bf16.mxu0 0
        %4813 = vmatmul.mubr.bf16.gmra.mrb[0].mxu0 %v1556
        %v4814 = vpop.f32.mrb[0].mxu0
        %v4815 = vadd.f32 0.0, %v4814
        %v4816 = vpop.f32.mrb[0].mxu0
        %v4817 = vpop.f32.mrb[0].mxu0
        %v4818 = vadd.f32 0.0, %v4817
        %v4819 = vpop.f32.mrb[0].mxu0
        %4820 = vmatprep.mubr.bf16.mxu0 0
        %4821 = vmatmul.mubr.bf16.gmra.mrb[0].mxu0 %v1559
        %v4822 = vpop.f32.mrb[0].mxu0
        %v4823 = vadd.f32 0.0, %v4822
        %v4824 = vpop.f32.mrb[0].mxu0
        %v4825 = vpop.f32.mrb[0].mxu0
        %v4826 = vadd.f32 0.0, %v4825
        %v4827 = vpop.f32.mrb[0].mxu0
        %4828 = vmatprep.mubr.bf16.mxu0 0
        %4829 = vmatmul.mubr.bf16.gmra.mrb[0].mxu0 %v1562
        %v4830 = vpop.f32.mrb[0].mxu0
        %v4831 = vadd.f32 0.0, %v4830
        %v4832 = vpop.f32.mrb[0].mxu0
        %v4833 = vpop.f32.mrb[0].mxu0
        %v4834 = vadd.f32 0.0, %v4833
        %v4835 = vpop.f32.mrb[0].mxu0
        %4836 = vmatprep.mubr.bf16.mxu0 0
        %4837 = vmatmul.mubr.bf16.gmra.mrb[0].mxu0 %v1565
        %v4838 = vpop.f32.mrb[0].mxu0
        %v4839 = vadd.f32 0.0, %v4838
        %v4840 = vpop.f32.mrb[0].mxu0
        %v4841 = vpop.f32.mrb[0].mxu0
        %v4842 = vadd.f32 0.0, %v4841
        %v4843 = vpop.f32.mrb[0].mxu0
        %4844 = vmatprep.mubr.bf16.mxu0 0
        %4845 = vmatmul.mubr.bf16.gmra.mrb[0].mxu0 %v1568
        %v4846 = vpop.f32.mrb[0].mxu0
        %v4847 = vadd.f32 0.0, %v4846
        %v4848 = vpop.f32.mrb[0].mxu0
        %v4849 = vpop.f32.mrb[0].mxu0
        %v4850 = vadd.f32 0.0, %v4849
        %v4851 = vpop.f32.mrb[0].mxu0
        %4852 = vmatprep.mubr.bf16.mxu0 0
        %4853 = vmatmul.mubr.bf16.gmra.mrb[0].mxu0 %v1571
        %v4854 = vpop.f32.mrb[0].mxu0
        %v4855 = vadd.f32 0.0, %v4854
        %v4856 = vpop.f32.mrb[0].mxu0
        %v4857 = vpop.f32.mrb[0].mxu0
        %v4858 = vadd.f32 0.0, %v4857
        %v4859 = vpop.f32.mrb[0].mxu0
        %4860 = vmatprep.mubr.bf16.mxu0 0
        %4861 = vmatmul.mubr.bf16.gmra.mrb[0].mxu0 %v1574
        %v4862 = vpop.f32.mrb[0].mxu0
        %v4863 = vadd.f32 0.0, %v4862
        %v4864 = vpop.f32.mrb[0].mxu0
        %v4865 = vpop.f32.mrb[0].mxu0
        %v4866 = vadd.f32 0.0, %v4865
        %v4867 = vpop.f32.mrb[0].mxu0
        %4868 = vmatprep.mubr.bf16.mxu0 0
        %4869 = vmatmul.mubr.bf16.gmra.mrb[0].mxu0 %v1577
        %v4870 = vpop.f32.mrb[0].mxu0
        %v4871 = vadd.f32 0.0, %v4870
        %v4872 = vpop.f32.mrb[0].mxu0
        %v4873 = vpop.f32.mrb[0].mxu0
        %v4874 = vadd.f32 0.0, %v4873
        %v4875 = vpop.f32.mrb[0].mxu0
        %4876 = vdwg.mxu0
        %v4877 = vld [vmem:[#allocation2] sm:$0xff]
        %v4878 = vld [vmem:[#allocation2 + $0x8] sm:$0xff]
        %v4879 = vld [vmem:[#allocation2 + $0x10] sm:$0xff]
        %v4880 = vld [vmem:[#allocation2 + $0x18] sm:$0xff]
        %v4881 = vld [vmem:[#allocation2 + $0x20] sm:$0xff]
        %v4882 = vld [vmem:[#allocation2 + $0x28] sm:$0xff]
        %v4883 = vld [vmem:[#allocation2 + $0x30] sm:$0xff]
        %v4884 = vld [vmem:[#allocation2 + $0x38] sm:$0xff]
        %v4885 = vld [vmem:[#allocation2 + $0x40] sm:$0xff]
        %v4886 = vld [vmem:[#allocation2 + $0x48] sm:$0xff]
        %v4887 = vld [vmem:[#allocation2 + $0x50] sm:$0xff]
        %v4888 = vld [vmem:[#allocation2 + $0x58] sm:$0xff]
        %v4889 = vld [vmem:[#allocation2 + $0x60] sm:$0xff]
        %v4890 = vld [vmem:[#allocation2 + $0x68] sm:$0xff]
        %v4891 = vld [vmem:[#allocation2 + $0x70] sm:$0xff]
        %v4892 = vld [vmem:[#allocation2 + $0x78] sm:$0xff]
        %v4893 = vld [vmem:[#allocation2 + $0x80] sm:$0xff]
        %v4894 = vld [vmem:[#allocation2 + $0x88] sm:$0xff]
        %v4895 = vld [vmem:[#allocation2 + $0x90] sm:$0xff]
        %v4896 = vld [vmem:[#allocation2 + $0x98] sm:$0xff]
        %v4897 = vld [vmem:[#allocation2 + $0xa0] sm:$0xff]
        %v4898 = vld [vmem:[#allocation2 + $0xa8] sm:$0xff]
        %v4899 = vld [vmem:[#allocation2 + $0xb0] sm:$0xff]
        %v4900 = vld [vmem:[#allocation2 + $0xb8] sm:$0xff]
        %v4901 = vld [vmem:[#allocation2 + $0xc0] sm:$0xff]
        %v4902 = vld [vmem:[#allocation2 + $0xc8] sm:$0xff]
        %v4903 = vld [vmem:[#allocation2 + $0xd0] sm:$0xff]
        %v4904 = vld [vmem:[#allocation2 + $0xd8] sm:$0xff]
        %v4905 = vld [vmem:[#allocation2 + $0xe0] sm:$0xff]
        %v4906 = vld [vmem:[#allocation2 + $0xe8] sm:$0xff]
        %v4907 = vld [vmem:[#allocation2 + $0xf0] sm:$0xff]
        %v4908 = vld [vmem:[#allocation2 + $0xf8] sm:$0xff]
        %v4909 = vld [vmem:[#allocation2 + $0x100] sm:$0xff]
        %v4910 = vld [vmem:[#allocation2 + $0x108] sm:$0xff]
        %v4911 = vld [vmem:[#allocation2 + $0x110] sm:$0xff]
        %v4912 = vld [vmem:[#allocation2 + $0x118] sm:$0xff]
        %v4913 = vld [vmem:[#allocation2 + $0x120] sm:$0xff]
        %v4914 = vld [vmem:[#allocation2 + $0x128] sm:$0xff]
        %v4915 = vld [vmem:[#allocation2 + $0x130] sm:$0xff]
        %v4916 = vld [vmem:[#allocation2 + $0x138] sm:$0xff]
        %v4917 = vld [vmem:[#allocation2 + $0x140] sm:$0xff]
        %v4918 = vld [vmem:[#allocation2 + $0x148] sm:$0xff]
        %v4919 = vld [vmem:[#allocation2 + $0x150] sm:$0xff]
        %v4920 = vld [vmem:[#allocation2 + $0x158] sm:$0xff]
        %v4921 = vld [vmem:[#allocation2 + $0x160] sm:$0xff]
        %v4922 = vld [vmem:[#allocation2 + $0x168] sm:$0xff]
        %v4923 = vld [vmem:[#allocation2 + $0x170] sm:$0xff]
        %v4924 = vld [vmem:[#allocation2 + $0x178] sm:$0xff]
        %v4925 = vld [vmem:[#allocation2 + $0x180] sm:$0xff]
        %v4926 = vld [vmem:[#allocation2 + $0x188] sm:$0xff]
        %v4927 = vld [vmem:[#allocation2 + $0x190] sm:$0xff]
        %v4928 = vld [vmem:[#allocation2 + $0x198] sm:$0xff]
        %v4929 = vld [vmem:[#allocation2 + $0x1a0] sm:$0xff]
        %v4930 = vld [vmem:[#allocation2 + $0x1a8] sm:$0xff]
        %v4931 = vld [vmem:[#allocation2 + $0x1b0] sm:$0xff]
        %v4932 = vld [vmem:[#allocation2 + $0x1b8] sm:$0xff]
        %v4933 = vld [vmem:[#allocation2 + $0x1c0] sm:$0xff]
        %v4934 = vld [vmem:[#allocation2 + $0x1c8] sm:$0xff]
        %v4935 = vld [vmem:[#allocation2 + $0x1d0] sm:$0xff]
        %v4936 = vld [vmem:[#allocation2 + $0x1d8] sm:$0xff]
        %v4937 = vld [vmem:[#allocation2 + $0x1e0] sm:$0xff]
        %v4938 = vld [vmem:[#allocation2 + $0x1e8] sm:$0xff]
        %v4939 = vld [vmem:[#allocation2 + $0x1f0] sm:$0xff]
        %v4940 = vld [vmem:[#allocation2 + $0x1f8] sm:$0xff]
        %4941 = vmax.xlane.f32.xlu0 %v4332
        %v4942 = vpop.xlane.xlu0 %4941
        %4943 = vmax.xlane.f32.xlu0 %v4335
        %v4944 = vpop.xlane.xlu0 %4943
        %4945 = vmax.xlane.f32.xlu0 %v4340
        %v4946 = vpop.xlane.xlu0 %4945
        %4947 = vmax.xlane.f32.xlu0 %v4343
        %v4948 = vpop.xlane.xlu0 %4947
        %4949 = vmax.xlane.f32.xlu0 %v4348
        %v4950 = vpop.xlane.xlu0 %4949
        %4951 = vmax.xlane.f32.xlu0 %v4351
        %v4952 = vpop.xlane.xlu0 %4951
        %4953 = vmax.xlane.f32.xlu0 %v4356
        %v4954 = vpop.xlane.xlu0 %4953
        %4955 = vmax.xlane.f32.xlu0 %v4359
        %v4956 = vpop.xlane.xlu0 %4955
        %4957 = vmax.xlane.f32.xlu0 %v4364
        %v4958 = vpop.xlane.xlu0 %4957
        %4959 = vmax.xlane.f32.xlu0 %v4367
        %v4960 = vpop.xlane.xlu0 %4959
        %4961 = vmax.xlane.f32.xlu0 %v4372
        %v4962 = vpop.xlane.xlu0 %4961
        %4963 = vmax.xlane.f32.xlu0 %v4375
        %v4964 = vpop.xlane.xlu0 %4963
        %4965 = vmax.xlane.f32.xlu0 %v4380
        %v4966 = vpop.xlane.xlu0 %4965
        %4967 = vmax.xlane.f32.xlu0 %v4383
        %v4968 = vpop.xlane.xlu0 %4967
        %4969 = vmax.xlane.f32.xlu0 %v4388
        %v4970 = vpop.xlane.xlu0 %4969
        %4971 = vmax.xlane.f32.xlu0 %v4391
        %v4972 = vpop.xlane.xlu0 %4971
        %4973 = vmax.xlane.f32.xlu0 %v4493
        %v4974 = vpop.xlane.xlu0 %4973
        %4975 = vmax.xlane.f32.xlu0 %v4496
        %v4976 = vpop.xlane.xlu0 %4975
        %4977 = vmax.xlane.f32.xlu0 %v4501
        %v4978 = vpop.xlane.xlu0 %4977
        %4979 = vmax.xlane.f32.xlu0 %v4504
        %v4980 = vpop.xlane.xlu0 %4979
        %4981 = vmax.xlane.f32.xlu0 %v4509
        %v4982 = vpop.xlane.xlu0 %4981
        %4983 = vmax.xlane.f32.xlu0 %v4512
        %v4984 = vpop.xlane.xlu0 %4983
        %4985 = vmax.xlane.f32.xlu0 %v4517
        %v4986 = vpop.xlane.xlu0 %4985
        %4987 = vmax.xlane.f32.xlu0 %v4520
        %v4988 = vpop.xlane.xlu0 %4987
        %4989 = vmax.xlane.f32.xlu0 %v4525
        %v4990 = vpop.xlane.xlu0 %4989
        %4991 = vmax.xlane.f32.xlu0 %v4528
        %v4992 = vpop.xlane.xlu0 %4991
        %4993 = vmax.xlane.f32.xlu0 %v4533
        %v4994 = vpop.xlane.xlu0 %4993
        %4995 = vmax.xlane.f32.xlu0 %v4536
        %v4996 = vpop.xlane.xlu0 %4995
        %4997 = vmax.xlane.f32.xlu0 %v4541
        %v4998 = vpop.xlane.xlu0 %4997
        %4999 = vmax.xlane.f32.xlu0 %v4544
        %v5000 = vpop.xlane.xlu0 %4999
        %5001 = vmax.xlane.f32.xlu0 %v4549
        %v5002 = vpop.xlane.xlu0 %5001
        %5003 = vmax.xlane.f32.xlu0 %v4552
        %v5004 = vpop.xlane.xlu0 %5003
        %5005 = vmax.xlane.f32.xlu0 %v4654
        %v5006 = vpop.xlane.xlu0 %5005
        %5007 = vmax.xlane.f32.xlu0 %v4657
        %v5008 = vpop.xlane.xlu0 %5007
        %5009 = vmax.xlane.f32.xlu0 %v4662
        %v5010 = vpop.xlane.xlu0 %5009
        %5011 = vmax.xlane.f32.xlu0 %v4665
        %v5012 = vpop.xlane.xlu0 %5011
        %5013 = vmax.xlane.f32.xlu0 %v4670
        %v5014 = vpop.xlane.xlu0 %5013
        %5015 = vmax.xlane.f32.xlu0 %v4673
        %v5016 = vpop.xlane.xlu0 %5015
        %5017 = vmax.xlane.f32.xlu0 %v4678
        %v5018 = vpop.xlane.xlu0 %5017
        %5019 = vmax.xlane.f32.xlu0 %v4681
        %v5020 = vpop.xlane.xlu0 %5019
        %5021 = vmax.xlane.f32.xlu0 %v4686
        %v5022 = vpop.xlane.xlu0 %5021
        %5023 = vmax.xlane.f32.xlu0 %v4689
        %v5024 = vpop.xlane.xlu0 %5023
        %5025 = vmax.xlane.f32.xlu0 %v4694
        %v5026 = vpop.xlane.xlu0 %5025
        %5027 = vmax.xlane.f32.xlu0 %v4697
        %v5028 = vpop.xlane.xlu0 %5027
        %5029 = vmax.xlane.f32.xlu0 %v4702
        %v5030 = vpop.xlane.xlu0 %5029
        %5031 = vmax.xlane.f32.xlu0 %v4705
        %v5032 = vpop.xlane.xlu0 %5031
        %5033 = vmax.xlane.f32.xlu0 %v4710
        %v5034 = vpop.xlane.xlu0 %5033
        %5035 = vmax.xlane.f32.xlu0 %v4713
        %v5036 = vpop.xlane.xlu0 %5035
        %5037 = vmax.xlane.f32.xlu0 %v4815
        %v5038 = vpop.xlane.xlu0 %5037
        %5039 = vmax.xlane.f32.xlu0 %v4818
        %v5040 = vpop.xlane.xlu0 %5039
        %5041 = vmax.xlane.f32.xlu0 %v4823
        %v5042 = vpop.xlane.xlu0 %5041
        %5043 = vmax.xlane.f32.xlu0 %v4826
        %v5044 = vpop.xlane.xlu0 %5043
        %5045 = vmax.xlane.f32.xlu0 %v4831
        %v5046 = vpop.xlane.xlu0 %5045
        %5047 = vmax.xlane.f32.xlu0 %v4834
        %v5048 = vpop.xlane.xlu0 %5047
        %5049 = vmax.xlane.f32.xlu0 %v4839
        %v5050 = vpop.xlane.xlu0 %5049
        %5051 = vmax.xlane.f32.xlu0 %v4842
        %v5052 = vpop.xlane.xlu0 %5051
        %5053 = vmax.xlane.f32.xlu0 %v4847
        %v5054 = vpop.xlane.xlu0 %5053
        %5055 = vmax.xlane.f32.xlu0 %v4850
        %v5056 = vpop.xlane.xlu0 %5055
        %5057 = vmax.xlane.f32.xlu0 %v4855
        %v5058 = vpop.xlane.xlu0 %5057
        %5059 = vmax.xlane.f32.xlu0 %v4858
        %v5060 = vpop.xlane.xlu0 %5059
        %5061 = vmax.xlane.f32.xlu0 %v4863
        %v5062 = vpop.xlane.xlu0 %5061
        %5063 = vmax.xlane.f32.xlu0 %v4866
        %v5064 = vpop.xlane.xlu0 %5063
        %5065 = vmax.xlane.f32.xlu0 %v4871
        %v5066 = vpop.xlane.xlu0 %5065
        %5067 = vmax.xlane.f32.xlu0 %v4874
        %v5068 = vpop.xlane.xlu0 %5067
        %v5069 = vmax.f32 %v4877, %v4942
        %v5070 = vmax.f32 %v4878, %v4944
        %v5071 = vmax.f32 %v4879, %v4946
        %v5072 = vmax.f32 %v4880, %v4948
        %v5073 = vmax.f32 %v4881, %v4950
        %v5074 = vmax.f32 %v4882, %v4952
        %v5075 = vmax.f32 %v4883, %v4954
        %v5076 = vmax.f32 %v4884, %v4956
        %v5077 = vmax.f32 %v4885, %v4958
        %v5078 = vmax.f32 %v4886, %v4960
        %v5079 = vmax.f32 %v4887, %v4962
        %v5080 = vmax.f32 %v4888, %v4964
        %v5081 = vmax.f32 %v4889, %v4966
        %v5082 = vmax.f32 %v4890, %v4968
        %v5083 = vmax.f32 %v4891, %v4970
        %v5084 = vmax.f32 %v4892, %v4972
        %v5085 = vmax.f32 %v4893, %v4974
        %v5086 = vmax.f32 %v4894, %v4976
        %v5087 = vmax.f32 %v4895, %v4978
        %v5088 = vmax.f32 %v4896, %v4980
        %v5089 = vmax.f32 %v4897, %v4982
        %v5090 = vmax.f32 %v4898, %v4984
        %v5091 = vmax.f32 %v4899, %v4986
        %v5092 = vmax.f32 %v4900, %v4988
        %v5093 = vmax.f32 %v4901, %v4990
        %v5094 = vmax.f32 %v4902, %v4992
        %v5095 = vmax.f32 %v4903, %v4994
        %v5096 = vmax.f32 %v4904, %v4996
        %v5097 = vmax.f32 %v4905, %v4998
        %v5098 = vmax.f32 %v4906, %v5000
        %v5099 = vmax.f32 %v4907, %v5002
        %v5100 = vmax.f32 %v4908, %v5004
        %v5101 = vmax.f32 %v4909, %v5006
        %v5102 = vmax.f32 %v4910, %v5008
        %v5103 = vmax.f32 %v4911, %v5010
        %v5104 = vmax.f32 %v4912, %v5012
        %v5105 = vmax.f32 %v4913, %v5014
        %v5106 = vmax.f32 %v4914, %v5016
        %v5107 = vmax.f32 %v4915, %v5018
        %v5108 = vmax.f32 %v4916, %v5020
        %v5109 = vmax.f32 %v4917, %v5022
        %v5110 = vmax.f32 %v4918, %v5024
        %v5111 = vmax.f32 %v4919, %v5026
        %v5112 = vmax.f32 %v4920, %v5028
        %v5113 = vmax.f32 %v4921, %v5030
        %v5114 = vmax.f32 %v4922, %v5032
        %v5115 = vmax.f32 %v4923, %v5034
        %v5116 = vmax.f32 %v4924, %v5036
        %v5117 = vmax.f32 %v4925, %v5038
        %v5118 = vmax.f32 %v4926, %v5040
        %v5119 = vmax.f32 %v4927, %v5042
        %v5120 = vmax.f32 %v4928, %v5044
        %v5121 = vmax.f32 %v4929, %v5046
        %v5122 = vmax.f32 %v4930, %v5048
        %v5123 = vmax.f32 %v4931, %v5050
        %v5124 = vmax.f32 %v4932, %v5052
        %v5125 = vmax.f32 %v4933, %v5054
        %v5126 = vmax.f32 %v4934, %v5056
        %v5127 = vmax.f32 %v4935, %v5058
        %v5128 = vmax.f32 %v4936, %v5060
        %v5129 = vmax.f32 %v4937, %v5062
        %v5130 = vmax.f32 %v4938, %v5064
        %v5131 = vmax.f32 %v4939, %v5066
        %v5132 = vmax.f32 %v4940, %v5068
        %v5133 = vsub.f32 %v4877, %v5069
        %v5134 = vsub.f32 %v4878, %v5070
        %v5135 = vsub.f32 %v4879, %v5071
        %v5136 = vsub.f32 %v4880, %v5072
        %v5137 = vsub.f32 %v4881, %v5073
        %v5138 = vsub.f32 %v4882, %v5074
        %v5139 = vsub.f32 %v4883, %v5075
        %v5140 = vsub.f32 %v4884, %v5076
        %v5141 = vsub.f32 %v4885, %v5077
        %v5142 = vsub.f32 %v4886, %v5078
        %v5143 = vsub.f32 %v4887, %v5079
        %v5144 = vsub.f32 %v4888, %v5080
        %v5145 = vsub.f32 %v4889, %v5081
        %v5146 = vsub.f32 %v4890, %v5082
        %v5147 = vsub.f32 %v4891, %v5083
        %v5148 = vsub.f32 %v4892, %v5084
        %v5149 = vsub.f32 %v4893, %v5085
        %v5150 = vsub.f32 %v4894, %v5086
        %v5151 = vsub.f32 %v4895, %v5087
        %v5152 = vsub.f32 %v4896, %v5088
        %v5153 = vsub.f32 %v4897, %v5089
        %v5154 = vsub.f32 %v4898, %v5090
        %v5155 = vsub.f32 %v4899, %v5091
        %v5156 = vsub.f32 %v4900, %v5092
        %v5157 = vsub.f32 %v4901, %v5093
        %v5158 = vsub.f32 %v4902, %v5094
        %v5159 = vsub.f32 %v4903, %v5095
        %v5160 = vsub.f32 %v4904, %v5096
        %v5161 = vsub.f32 %v4905, %v5097
        %v5162 = vsub.f32 %v4906, %v5098
        %v5163 = vsub.f32 %v4907, %v5099
        %v5164 = vsub.f32 %v4908, %v5100
        %v5165 = vsub.f32 %v4909, %v5101
        %v5166 = vsub.f32 %v4910, %v5102
        %v5167 = vsub.f32 %v4911, %v5103
        %v5168 = vsub.f32 %v4912, %v5104
        %v5169 = vsub.f32 %v4913, %v5105
        %v5170 = vsub.f32 %v4914, %v5106
        %v5171 = vsub.f32 %v4915, %v5107
        %v5172 = vsub.f32 %v4916, %v5108
        %v5173 = vsub.f32 %v4917, %v5109
        %v5174 = vsub.f32 %v4918, %v5110
        %v5175 = vsub.f32 %v4919, %v5111
        %v5176 = vsub.f32 %v4920, %v5112
        %v5177 = vsub.f32 %v4921, %v5113
        %v5178 = vsub.f32 %v4922, %v5114
        %v5179 = vsub.f32 %v4923, %v5115
        %v5180 = vsub.f32 %v4924, %v5116
        %v5181 = vsub.f32 %v4925, %v5117
        %v5182 = vsub.f32 %v4926, %v5118
        %v5183 = vsub.f32 %v4927, %v5119
        %v5184 = vsub.f32 %v4928, %v5120
        %v5185 = vsub.f32 %v4929, %v5121
        %v5186 = vsub.f32 %v4930, %v5122
        %v5187 = vsub.f32 %v4931, %v5123
        %v5188 = vsub.f32 %v4932, %v5124
        %v5189 = vsub.f32 %v4933, %v5125
        %v5190 = vsub.f32 %v4934, %v5126
        %v5191 = vsub.f32 %v4935, %v5127
        %v5192 = vsub.f32 %v4936, %v5128
        %v5193 = vsub.f32 %v4937, %v5129
        %v5194 = vsub.f32 %v4938, %v5130
        %v5195 = vsub.f32 %v4939, %v5131
        %v5196 = vsub.f32 %v4940, %v5132
        %v5197 = vmul.f32 %v5133, 1.442695
        %v5198 = vpow.pop %v5197
        %v5199 = vmul.f32 %v5134, 1.442695
        %v5200 = vpow.pop %v5199
        %v5201 = vmul.f32 %v5135, 1.442695
        %v5202 = vpow.pop %v5201
        %v5203 = vmul.f32 %v5136, 1.442695
        %v5204 = vpow.pop %v5203
        %v5205 = vmul.f32 %v5137, 1.442695
        %v5206 = vpow.pop %v5205
        %v5207 = vmul.f32 %v5138, 1.442695
        %v5208 = vpow.pop %v5207
        %v5209 = vmul.f32 %v5139, 1.442695
        %v5210 = vpow.pop %v5209
        %v5211 = vmul.f32 %v5140, 1.442695
        %v5212 = vpow.pop %v5211
        %v5213 = vmul.f32 %v5141, 1.442695
        %v5214 = vpow.pop %v5213
        %v5215 = vmul.f32 %v5142, 1.442695
        %v5216 = vpow.pop %v5215
        %v5217 = vmul.f32 %v5143, 1.442695
        %v5218 = vpow.pop %v5217
        %v5219 = vmul.f32 %v5144, 1.442695
        %v5220 = vpow.pop %v5219
        %v5221 = vmul.f32 %v5145, 1.442695
        %v5222 = vpow.pop %v5221
        %v5223 = vmul.f32 %v5146, 1.442695
        %v5224 = vpow.pop %v5223
        %v5225 = vmul.f32 %v5147, 1.442695
        %v5226 = vpow.pop %v5225
        %v5227 = vmul.f32 %v5148, 1.442695
        %v5228 = vpow.pop %v5227
        %v5229 = vmul.f32 %v5149, 1.442695
        %v5230 = vpow.pop %v5229
        %v5231 = vmul.f32 %v5150, 1.442695
        %v5232 = vpow.pop %v5231
        %v5233 = vmul.f32 %v5151, 1.442695
        %v5234 = vpow.pop %v5233
        %v5235 = vmul.f32 %v5152, 1.442695
        %v5236 = vpow.pop %v5235
        %v5237 = vmul.f32 %v5153, 1.442695
        %v5238 = vpow.pop %v5237
        %v5239 = vmul.f32 %v5154, 1.442695
        %v5240 = vpow.pop %v5239
        %v5241 = vmul.f32 %v5155, 1.442695
        %v5242 = vpow.pop %v5241
        %v5243 = vmul.f32 %v5156, 1.442695
        %v5244 = vpow.pop %v5243
        %v5245 = vmul.f32 %v5157, 1.442695
        %v5246 = vpow.pop %v5245
        %v5247 = vmul.f32 %v5158, 1.442695
        %v5248 = vpow.pop %v5247
        %v5249 = vmul.f32 %v5159, 1.442695
        %v5250 = vpow.pop %v5249
        %v5251 = vmul.f32 %v5160, 1.442695
        %v5252 = vpow.pop %v5251
        %v5253 = vmul.f32 %v5161, 1.442695
        %v5254 = vpow.pop %v5253
        %v5255 = vmul.f32 %v5162, 1.442695
        %v5256 = vpow.pop %v5255
        %v5257 = vmul.f32 %v5163, 1.442695
        %v5258 = vpow.pop %v5257
        %v5259 = vmul.f32 %v5164, 1.442695
        %v5260 = vpow.pop %v5259
        %v5261 = vmul.f32 %v5165, 1.442695
        %v5262 = vpow.pop %v5261
        %v5263 = vmul.f32 %v5166, 1.442695
        %v5264 = vpow.pop %v5263
        %v5265 = vmul.f32 %v5167, 1.442695
        %v5266 = vpow.pop %v5265
        %v5267 = vmul.f32 %v5168, 1.442695
        %v5268 = vpow.pop %v5267
        %v5269 = vmul.f32 %v5169, 1.442695
        %v5270 = vpow.pop %v5269
        %v5271 = vmul.f32 %v5170, 1.442695
        %v5272 = vpow.pop %v5271
        %v5273 = vmul.f32 %v5171, 1.442695
        %v5274 = vpow.pop %v5273
        %v5275 = vmul.f32 %v5172, 1.442695
        %v5276 = vpow.pop %v5275
        %v5277 = vmul.f32 %v5173, 1.442695
        %v5278 = vpow.pop %v5277
        %v5279 = vmul.f32 %v5174, 1.442695
        %v5280 = vpow.pop %v5279
        %v5281 = vmul.f32 %v5175, 1.442695
        %v5282 = vpow.pop %v5281
        %v5283 = vmul.f32 %v5176, 1.442695
        %v5284 = vpow.pop %v5283
        %v5285 = vmul.f32 %v5177, 1.442695
        %v5286 = vpow.pop %v5285
        %v5287 = vmul.f32 %v5178, 1.442695
        %v5288 = vpow.pop %v5287
        %v5289 = vmul.f32 %v5179, 1.442695
        %v5290 = vpow.pop %v5289
        %v5291 = vmul.f32 %v5180, 1.442695
        %v5292 = vpow.pop %v5291
        %v5293 = vmul.f32 %v5181, 1.442695
        %v5294 = vpow.pop %v5293
        %v5295 = vmul.f32 %v5182, 1.442695
        %v5296 = vpow.pop %v5295
        %v5297 = vmul.f32 %v5183, 1.442695
        %v5298 = vpow.pop %v5297
        %v5299 = vmul.f32 %v5184, 1.442695
        %v5300 = vpow.pop %v5299
        %v5301 = vmul.f32 %v5185, 1.442695
        %v5302 = vpow.pop %v5301
        %v5303 = vmul.f32 %v5186, 1.442695
        %v5304 = vpow.pop %v5303
        %v5305 = vmul.f32 %v5187, 1.442695
        %v5306 = vpow.pop %v5305
        %v5307 = vmul.f32 %v5188, 1.442695
        %v5308 = vpow.pop %v5307
        %v5309 = vmul.f32 %v5189, 1.442695
        %v5310 = vpow.pop %v5309
        %v5311 = vmul.f32 %v5190, 1.442695
        %v5312 = vpow.pop %v5311
        %v5313 = vmul.f32 %v5191, 1.442695
        %v5314 = vpow.pop %v5313
        %v5315 = vmul.f32 %v5192, 1.442695
        %v5316 = vpow.pop %v5315
        %v5317 = vmul.f32 %v5193, 1.442695
        %v5318 = vpow.pop %v5317
        %v5319 = vmul.f32 %v5194, 1.442695
        %v5320 = vpow.pop %v5319
        %v5321 = vmul.f32 %v5195, 1.442695
        %v5322 = vpow.pop %v5321
        %v5323 = vmul.f32 %v5196, 1.442695
        %v5324 = vpow.pop %v5323
        %5326 = vset.pattern.permute.xlu0 0
        %5327 = vperm.xlu0 %5326, %v5069
        %v5328 = vpop.permute.xlu0 %5327
        %5331 = vset.pattern.permute.xlu0 0
        %5332 = vperm.xlu0 %5331, %v5070
        %v5333 = vpop.permute.xlu0 %5332
        %5336 = vset.pattern.permute.xlu0 0
        %5337 = vperm.xlu0 %5336, %v5071
        %v5338 = vpop.permute.xlu0 %5337
        %5341 = vset.pattern.permute.xlu0 0
        %5342 = vperm.xlu0 %5341, %v5072
        %v5343 = vpop.permute.xlu0 %5342
        %5346 = vset.pattern.permute.xlu0 0
        %5347 = vperm.xlu0 %5346, %v5073
        %v5348 = vpop.permute.xlu0 %5347
        %5351 = vset.pattern.permute.xlu0 0
        %5352 = vperm.xlu0 %5351, %v5074
        %v5353 = vpop.permute.xlu0 %5352
        %5356 = vset.pattern.permute.xlu0 0
        %5357 = vperm.xlu0 %5356, %v5075
        %v5358 = vpop.permute.xlu0 %5357
        %5361 = vset.pattern.permute.xlu0 0
        %5362 = vperm.xlu0 %5361, %v5076
        %v5363 = vpop.permute.xlu0 %5362
        %5366 = vset.pattern.permute.xlu0 0
        %5367 = vperm.xlu0 %5366, %v5077
        %v5368 = vpop.permute.xlu0 %5367
        %5371 = vset.pattern.permute.xlu0 0
        %5372 = vperm.xlu0 %5371, %v5078
        %v5373 = vpop.permute.xlu0 %5372
        %5376 = vset.pattern.permute.xlu0 0
        %5377 = vperm.xlu0 %5376, %v5079
        %v5378 = vpop.permute.xlu0 %5377
        %5381 = vset.pattern.permute.xlu0 0
        %5382 = vperm.xlu0 %5381, %v5080
        %v5383 = vpop.permute.xlu0 %5382
        %5386 = vset.pattern.permute.xlu0 0
        %5387 = vperm.xlu0 %5386, %v5081
        %v5388 = vpop.permute.xlu0 %5387
        %5391 = vset.pattern.permute.xlu0 0
        %5392 = vperm.xlu0 %5391, %v5082
        %v5393 = vpop.permute.xlu0 %5392
        %5396 = vset.pattern.permute.xlu0 0
        %5397 = vperm.xlu0 %5396, %v5083
        %v5398 = vpop.permute.xlu0 %5397
        %5401 = vset.pattern.permute.xlu0 0
        %5402 = vperm.xlu0 %5401, %v5084
        %v5403 = vpop.permute.xlu0 %5402
        %5406 = vset.pattern.permute.xlu0 0
        %5407 = vperm.xlu0 %5406, %v5085
        %v5408 = vpop.permute.xlu0 %5407
        %5411 = vset.pattern.permute.xlu0 0
        %5412 = vperm.xlu0 %5411, %v5086
        %v5413 = vpop.permute.xlu0 %5412
        %5416 = vset.pattern.permute.xlu0 0
        %5417 = vperm.xlu0 %5416, %v5087
        %v5418 = vpop.permute.xlu0 %5417
        %5421 = vset.pattern.permute.xlu0 0
        %5422 = vperm.xlu0 %5421, %v5088
        %v5423 = vpop.permute.xlu0 %5422
        %5426 = vset.pattern.permute.xlu0 0
        %5427 = vperm.xlu0 %5426, %v5089
        %v5428 = vpop.permute.xlu0 %5427
        %5431 = vset.pattern.permute.xlu0 0
        %5432 = vperm.xlu0 %5431, %v5090
        %v5433 = vpop.permute.xlu0 %5432
        %5436 = vset.pattern.permute.xlu0 0
        %5437 = vperm.xlu0 %5436, %v5091
        %v5438 = vpop.permute.xlu0 %5437
        %5441 = vset.pattern.permute.xlu0 0
        %5442 = vperm.xlu0 %5441, %v5092
        %v5443 = vpop.permute.xlu0 %5442
        %5446 = vset.pattern.permute.xlu0 0
        %5447 = vperm.xlu0 %5446, %v5093
        %v5448 = vpop.permute.xlu0 %5447
        %5451 = vset.pattern.permute.xlu0 0
        %5452 = vperm.xlu0 %5451, %v5094
        %v5453 = vpop.permute.xlu0 %5452
        %5456 = vset.pattern.permute.xlu0 0
        %5457 = vperm.xlu0 %5456, %v5095
        %v5458 = vpop.permute.xlu0 %5457
        %5461 = vset.pattern.permute.xlu0 0
        %5462 = vperm.xlu0 %5461, %v5096
        %v5463 = vpop.permute.xlu0 %5462
        %5466 = vset.pattern.permute.xlu0 0
        %5467 = vperm.xlu0 %5466, %v5097
        %v5468 = vpop.permute.xlu0 %5467
        %5471 = vset.pattern.permute.xlu0 0
        %5472 = vperm.xlu0 %5471, %v5098
        %v5473 = vpop.permute.xlu0 %5472
        %5476 = vset.pattern.permute.xlu0 0
        %5477 = vperm.xlu0 %5476, %v5099
        %v5478 = vpop.permute.xlu0 %5477
        %5481 = vset.pattern.permute.xlu0 0
        %5482 = vperm.xlu0 %5481, %v5100
        %v5483 = vpop.permute.xlu0 %5482
        %5486 = vset.pattern.permute.xlu0 0
        %5487 = vperm.xlu0 %5486, %v5101
        %v5488 = vpop.permute.xlu0 %5487
        %5491 = vset.pattern.permute.xlu0 0
        %5492 = vperm.xlu0 %5491, %v5102
        %v5493 = vpop.permute.xlu0 %5492
        %5496 = vset.pattern.permute.xlu0 0
        %5497 = vperm.xlu0 %5496, %v5103
        %v5498 = vpop.permute.xlu0 %5497
        %5501 = vset.pattern.permute.xlu0 0
        %5502 = vperm.xlu0 %5501, %v5104
        %v5503 = vpop.permute.xlu0 %5502
        %5506 = vset.pattern.permute.xlu0 0
        %5507 = vperm.xlu0 %5506, %v5105
        %v5508 = vpop.permute.xlu0 %5507
        %5511 = vset.pattern.permute.xlu0 0
        %5512 = vperm.xlu0 %5511, %v5106
        %v5513 = vpop.permute.xlu0 %5512
        %5516 = vset.pattern.permute.xlu0 0
        %5517 = vperm.xlu0 %5516, %v5107
        %v5518 = vpop.permute.xlu0 %5517
        %5521 = vset.pattern.permute.xlu0 0
        %5522 = vperm.xlu0 %5521, %v5108
        %v5523 = vpop.permute.xlu0 %5522
        %5526 = vset.pattern.permute.xlu0 0
        %5527 = vperm.xlu0 %5526, %v5109
        %v5528 = vpop.permute.xlu0 %5527
        %5531 = vset.pattern.permute.xlu0 0
        %5532 = vperm.xlu0 %5531, %v5110
        %v5533 = vpop.permute.xlu0 %5532
        %5536 = vset.pattern.permute.xlu0 0
        %5537 = vperm.xlu0 %5536, %v5111
        %v5538 = vpop.permute.xlu0 %5537
        %5541 = vset.pattern.permute.xlu0 0
        %5542 = vperm.xlu0 %5541, %v5112
        %v5543 = vpop.permute.xlu0 %5542
        %5546 = vset.pattern.permute.xlu0 0
        %5547 = vperm.xlu0 %5546, %v5113
        %v5548 = vpop.permute.xlu0 %5547
        %5551 = vset.pattern.permute.xlu0 0
        %5552 = vperm.xlu0 %5551, %v5114
        %v5553 = vpop.permute.xlu0 %5552
        %5556 = vset.pattern.permute.xlu0 0
        %5557 = vperm.xlu0 %5556, %v5115
        %v5558 = vpop.permute.xlu0 %5557
        %5561 = vset.pattern.permute.xlu0 0
        %5562 = vperm.xlu0 %5561, %v5116
        %v5563 = vpop.permute.xlu0 %5562
        %5566 = vset.pattern.permute.xlu0 0
        %5567 = vperm.xlu0 %5566, %v5117
        %v5568 = vpop.permute.xlu0 %5567
        %5571 = vset.pattern.permute.xlu0 0
        %5572 = vperm.xlu0 %5571, %v5118
        %v5573 = vpop.permute.xlu0 %5572
        %5576 = vset.pattern.permute.xlu0 0
        %5577 = vperm.xlu0 %5576, %v5119
        %v5578 = vpop.permute.xlu0 %5577
        %5581 = vset.pattern.permute.xlu0 0
        %5582 = vperm.xlu0 %5581, %v5120
        %v5583 = vpop.permute.xlu0 %5582
        %5586 = vset.pattern.permute.xlu0 0
        %5587 = vperm.xlu0 %5586, %v5121
        %v5588 = vpop.permute.xlu0 %5587
        %5591 = vset.pattern.permute.xlu0 0
        %5592 = vperm.xlu0 %5591, %v5122
        %v5593 = vpop.permute.xlu0 %5592
        %5596 = vset.pattern.permute.xlu0 0
        %5597 = vperm.xlu0 %5596, %v5123
        %v5598 = vpop.permute.xlu0 %5597
        %5601 = vset.pattern.permute.xlu0 0
        %5602 = vperm.xlu0 %5601, %v5124
        %v5603 = vpop.permute.xlu0 %5602
        %5606 = vset.pattern.permute.xlu0 0
        %5607 = vperm.xlu0 %5606, %v5125
        %v5608 = vpop.permute.xlu0 %5607
        %5611 = vset.pattern.permute.xlu0 0
        %5612 = vperm.xlu0 %5611, %v5126
        %v5613 = vpop.permute.xlu0 %5612
        %5616 = vset.pattern.permute.xlu0 0
        %5617 = vperm.xlu0 %5616, %v5127
        %v5618 = vpop.permute.xlu0 %5617
        %5621 = vset.pattern.permute.xlu0 0
        %5622 = vperm.xlu0 %5621, %v5128
        %v5623 = vpop.permute.xlu0 %5622
        %5626 = vset.pattern.permute.xlu0 0
        %5627 = vperm.xlu0 %5626, %v5129
        %v5628 = vpop.permute.xlu0 %5627
        %5631 = vset.pattern.permute.xlu0 0
        %5632 = vperm.xlu0 %5631, %v5130
        %v5633 = vpop.permute.xlu0 %5632
        %5636 = vset.pattern.permute.xlu0 0
        %5637 = vperm.xlu0 %5636, %v5131
        %v5638 = vpop.permute.xlu0 %5637
        %5641 = vset.pattern.permute.xlu0 0
        %5642 = vperm.xlu0 %5641, %v5132
        %v5643 = vpop.permute.xlu0 %5642
        %v5645 = vsub.f32 %v4332, %v5328
        %v5646 = vsub.f32 %v4335, %v5333
        %v5647 = vsub.f32 %v4340, %v5338
        %v5648 = vsub.f32 %v4343, %v5343
        %v5649 = vsub.f32 %v4348, %v5348
        %v5650 = vsub.f32 %v4351, %v5353
        %v5651 = vsub.f32 %v4356, %v5358
        %v5652 = vsub.f32 %v4359, %v5363
        %v5653 = vsub.f32 %v4364, %v5368
        %v5654 = vsub.f32 %v4367, %v5373
        %v5655 = vsub.f32 %v4372, %v5378
        %v5656 = vsub.f32 %v4375, %v5383
        %v5657 = vsub.f32 %v4380, %v5388
        %v5658 = vsub.f32 %v4383, %v5393
        %v5659 = vsub.f32 %v4388, %v5398
        %v5660 = vsub.f32 %v4391, %v5403
        %v5661 = vsub.f32 %v4493, %v5408
        %v5662 = vsub.f32 %v4496, %v5413
        %v5663 = vsub.f32 %v4501, %v5418
        %v5664 = vsub.f32 %v4504, %v5423
        %v5665 = vsub.f32 %v4509, %v5428
        %v5666 = vsub.f32 %v4512, %v5433
        %v5667 = vsub.f32 %v4517, %v5438
        %v5668 = vsub.f32 %v4520, %v5443
        %v5669 = vsub.f32 %v4525, %v5448
        %v5670 = vsub.f32 %v4528, %v5453
        %v5671 = vsub.f32 %v4533, %v5458
        %v5672 = vsub.f32 %v4536, %v5463
        %v5673 = vsub.f32 %v4541, %v5468
        %v5674 = vsub.f32 %v4544, %v5473
        %v5675 = vsub.f32 %v4549, %v5478
        %v5676 = vsub.f32 %v4552, %v5483
        %v5677 = vsub.f32 %v4654, %v5488
        %v5678 = vsub.f32 %v4657, %v5493
        %v5679 = vsub.f32 %v4662, %v5498
        %v5680 = vsub.f32 %v4665, %v5503
        %v5681 = vsub.f32 %v4670, %v5508
        %v5682 = vsub.f32 %v4673, %v5513
        %v5683 = vsub.f32 %v4678, %v5518
        %v5684 = vsub.f32 %v4681, %v5523
        %v5685 = vsub.f32 %v4686, %v5528
        %v5686 = vsub.f32 %v4689, %v5533
        %v5687 = vsub.f32 %v4694, %v5538
        %v5688 = vsub.f32 %v4697, %v5543
        %v5689 = vsub.f32 %v4702, %v5548
        %v5690 = vsub.f32 %v4705, %v5553
        %v5691 = vsub.f32 %v4710, %v5558
        %v5692 = vsub.f32 %v4713, %v5563
        %v5693 = vsub.f32 %v4815, %v5568
        %v5694 = vsub.f32 %v4818, %v5573
        %v5695 = vsub.f32 %v4823, %v5578
        %v5696 = vsub.f32 %v4826, %v5583
        %v5697 = vsub.f32 %v4831, %v5588
        %v5698 = vsub.f32 %v4834, %v5593
        %v5699 = vsub.f32 %v4839, %v5598
        %v5700 = vsub.f32 %v4842, %v5603
        %v5701 = vsub.f32 %v4847, %v5608
        %v5702 = vsub.f32 %v4850, %v5613
        %v5703 = vsub.f32 %v4855, %v5618
        %v5704 = vsub.f32 %v4858, %v5623
        %v5705 = vsub.f32 %v4863, %v5628
        %v5706 = vsub.f32 %v4866, %v5633
        %v5707 = vsub.f32 %v4871, %v5638
        %v5708 = vsub.f32 %v4874, %v5643
        %v5709 = vpack.c.bf16 %v5646, %v5645
        %v5710 = vpack.c.bf16 %v5648, %v5647
        %v5711 = vpack.c.bf16 %v5650, %v5649
        %v5712 = vpack.c.bf16 %v5652, %v5651
        %v5713 = vpack.c.bf16 %v5654, %v5653
        %v5714 = vpack.c.bf16 %v5656, %v5655
        %v5715 = vpack.c.bf16 %v5658, %v5657
        %v5716 = vpack.c.bf16 %v5660, %v5659
        %v5717 = vpack.c.bf16 %v5662, %v5661
        %v5718 = vpack.c.bf16 %v5664, %v5663
        %v5719 = vpack.c.bf16 %v5666, %v5665
        %v5720 = vpack.c.bf16 %v5668, %v5667
        %v5721 = vpack.c.bf16 %v5670, %v5669
        %v5722 = vpack.c.bf16 %v5672, %v5671
        %v5723 = vpack.c.bf16 %v5674, %v5673
        %v5724 = vpack.c.bf16 %v5676, %v5675
        %v5725 = vpack.c.bf16 %v5678, %v5677
        %v5726 = vpack.c.bf16 %v5680, %v5679
        %v5727 = vpack.c.bf16 %v5682, %v5681
        %v5728 = vpack.c.bf16 %v5684, %v5683
        %v5729 = vpack.c.bf16 %v5686, %v5685
        %v5730 = vpack.c.bf16 %v5688, %v5687
        %v5731 = vpack.c.bf16 %v5690, %v5689
        %v5732 = vpack.c.bf16 %v5692, %v5691
        %v5733 = vpack.c.bf16 %v5694, %v5693
        %v5734 = vpack.c.bf16 %v5696, %v5695
        %v5735 = vpack.c.bf16 %v5698, %v5697
        %v5736 = vpack.c.bf16 %v5700, %v5699
        %v5737 = vpack.c.bf16 %v5702, %v5701
        %v5738 = vpack.c.bf16 %v5704, %v5703
        %v5739 = vpack.c.bf16 %v5706, %v5705
        %v5740 = vpack.c.bf16 %v5708, %v5707
        %v5742 = vmul.bf16 %v5709, 1069105081
        %v5743 = vpow.bf16.pop %v5742
        %v5745 = vmul.bf16 %v5710, 1069105081
        %v5746 = vpow.bf16.pop %v5745
        %v5748 = vmul.bf16 %v5711, 1069105081
        %v5749 = vpow.bf16.pop %v5748
        %v5751 = vmul.bf16 %v5712, 1069105081
        %v5752 = vpow.bf16.pop %v5751
        %v5754 = vmul.bf16 %v5713, 1069105081
        %v5755 = vpow.bf16.pop %v5754
        %v5757 = vmul.bf16 %v5714, 1069105081
        %v5758 = vpow.bf16.pop %v5757
        %v5760 = vmul.bf16 %v5715, 1069105081
        %v5761 = vpow.bf16.pop %v5760
        %v5763 = vmul.bf16 %v5716, 1069105081
        %v5764 = vpow.bf16.pop %v5763
        %v5766 = vmul.bf16 %v5717, 1069105081
        %v5767 = vpow.bf16.pop %v5766
        %v5769 = vmul.bf16 %v5718, 1069105081
        %v5770 = vpow.bf16.pop %v5769
        %v5772 = vmul.bf16 %v5719, 1069105081
        %v5773 = vpow.bf16.pop %v5772
        %v5775 = vmul.bf16 %v5720, 1069105081
        %v5776 = vpow.bf16.pop %v5775
        %v5778 = vmul.bf16 %v5721, 1069105081
        %v5779 = vpow.bf16.pop %v5778
        %v5781 = vmul.bf16 %v5722, 1069105081
        %v5782 = vpow.bf16.pop %v5781
        %v5784 = vmul.bf16 %v5723, 1069105081
        %v5785 = vpow.bf16.pop %v5784
        %v5787 = vmul.bf16 %v5724, 1069105081
        %v5788 = vpow.bf16.pop %v5787
        %v5790 = vmul.bf16 %v5725, 1069105081
        %v5791 = vpow.bf16.pop %v5790
        %v5793 = vmul.bf16 %v5726, 1069105081
        %v5794 = vpow.bf16.pop %v5793
        %v5796 = vmul.bf16 %v5727, 1069105081
        %v5797 = vpow.bf16.pop %v5796
        %v5799 = vmul.bf16 %v5728, 1069105081
        %v5800 = vpow.bf16.pop %v5799
        %v5802 = vmul.bf16 %v5729, 1069105081
        %v5803 = vpow.bf16.pop %v5802
        %v5805 = vmul.bf16 %v5730, 1069105081
        %v5806 = vpow.bf16.pop %v5805
        %v5808 = vmul.bf16 %v5731, 1069105081
        %v5809 = vpow.bf16.pop %v5808
        %v5811 = vmul.bf16 %v5732, 1069105081
        %v5812 = vpow.bf16.pop %v5811
        %v5814 = vmul.bf16 %v5733, 1069105081
        %v5815 = vpow.bf16.pop %v5814
        %v5817 = vmul.bf16 %v5734, 1069105081
        %v5818 = vpow.bf16.pop %v5817
        %v5820 = vmul.bf16 %v5735, 1069105081
        %v5821 = vpow.bf16.pop %v5820
        %v5823 = vmul.bf16 %v5736, 1069105081
        %v5824 = vpow.bf16.pop %v5823
        %v5826 = vmul.bf16 %v5737, 1069105081
        %v5827 = vpow.bf16.pop %v5826
        %v5829 = vmul.bf16 %v5738, 1069105081
        %v5830 = vpow.bf16.pop %v5829
        %v5832 = vmul.bf16 %v5739, 1069105081
        %v5833 = vpow.bf16.pop %v5832
        %v5835 = vmul.bf16 %v5740, 1069105081
        %v5836 = vpow.bf16.pop %v5835
        %v5837 = vld [vmem:[#allocation3] sm:$0xff]
        %v5838 = vld [vmem:[#allocation3 + $0x8] sm:$0xff]
        %v5839 = vld [vmem:[#allocation3 + $0x10] sm:$0xff]
        %v5840 = vld [vmem:[#allocation3 + $0x18] sm:$0xff]
        %v5841 = vld [vmem:[#allocation3 + $0x20] sm:$0xff]
        %v5842 = vld [vmem:[#allocation3 + $0x28] sm:$0xff]
        %v5843 = vld [vmem:[#allocation3 + $0x30] sm:$0xff]
        %v5844 = vld [vmem:[#allocation3 + $0x38] sm:$0xff]
        %v5845 = vld [vmem:[#allocation3 + $0x40] sm:$0xff]
        %v5846 = vld [vmem:[#allocation3 + $0x48] sm:$0xff]
        %v5847 = vld [vmem:[#allocation3 + $0x50] sm:$0xff]
        %v5848 = vld [vmem:[#allocation3 + $0x58] sm:$0xff]
        %v5849 = vld [vmem:[#allocation3 + $0x60] sm:$0xff]
        %v5850 = vld [vmem:[#allocation3 + $0x68] sm:$0xff]
        %v5851 = vld [vmem:[#allocation3 + $0x70] sm:$0xff]
        %v5852 = vld [vmem:[#allocation3 + $0x78] sm:$0xff]
        %v5853 = vld [vmem:[#allocation3 + $0x80] sm:$0xff]
        %v5854 = vld [vmem:[#allocation3 + $0x88] sm:$0xff]
        %v5855 = vld [vmem:[#allocation3 + $0x90] sm:$0xff]
        %v5856 = vld [vmem:[#allocation3 + $0x98] sm:$0xff]
        %v5857 = vld [vmem:[#allocation3 + $0xa0] sm:$0xff]
        %v5858 = vld [vmem:[#allocation3 + $0xa8] sm:$0xff]
        %v5859 = vld [vmem:[#allocation3 + $0xb0] sm:$0xff]
        %v5860 = vld [vmem:[#allocation3 + $0xb8] sm:$0xff]
        %v5861 = vld [vmem:[#allocation3 + $0xc0] sm:$0xff]
        %v5862 = vld [vmem:[#allocation3 + $0xc8] sm:$0xff]
        %v5863 = vld [vmem:[#allocation3 + $0xd0] sm:$0xff]
        %v5864 = vld [vmem:[#allocation3 + $0xd8] sm:$0xff]
        %v5865 = vld [vmem:[#allocation3 + $0xe0] sm:$0xff]
        %v5866 = vld [vmem:[#allocation3 + $0xe8] sm:$0xff]
        %v5867 = vld [vmem:[#allocation3 + $0xf0] sm:$0xff]
        %v5868 = vld [vmem:[#allocation3 + $0xf8] sm:$0xff]
        %v5869 = vld [vmem:[#allocation3 + $0x100] sm:$0xff]
        %v5870 = vld [vmem:[#allocation3 + $0x108] sm:$0xff]
        %v5871 = vld [vmem:[#allocation3 + $0x110] sm:$0xff]
        %v5872 = vld [vmem:[#allocation3 + $0x118] sm:$0xff]
        %v5873 = vld [vmem:[#allocation3 + $0x120] sm:$0xff]
        %v5874 = vld [vmem:[#allocation3 + $0x128] sm:$0xff]
        %v5875 = vld [vmem:[#allocation3 + $0x130] sm:$0xff]
        %v5876 = vld [vmem:[#allocation3 + $0x138] sm:$0xff]
        %v5877 = vld [vmem:[#allocation3 + $0x140] sm:$0xff]
        %v5878 = vld [vmem:[#allocation3 + $0x148] sm:$0xff]
        %v5879 = vld [vmem:[#allocation3 + $0x150] sm:$0xff]
        %v5880 = vld [vmem:[#allocation3 + $0x158] sm:$0xff]
        %v5881 = vld [vmem:[#allocation3 + $0x160] sm:$0xff]
        %v5882 = vld [vmem:[#allocation3 + $0x168] sm:$0xff]
        %v5883 = vld [vmem:[#allocation3 + $0x170] sm:$0xff]
        %v5884 = vld [vmem:[#allocation3 + $0x178] sm:$0xff]
        %v5885 = vld [vmem:[#allocation3 + $0x180] sm:$0xff]
        %v5886 = vld [vmem:[#allocation3 + $0x188] sm:$0xff]
        %v5887 = vld [vmem:[#allocation3 + $0x190] sm:$0xff]
        %v5888 = vld [vmem:[#allocation3 + $0x198] sm:$0xff]
        %v5889 = vld [vmem:[#allocation3 + $0x1a0] sm:$0xff]
        %v5890 = vld [vmem:[#allocation3 + $0x1a8] sm:$0xff]
        %v5891 = vld [vmem:[#allocation3 + $0x1b0] sm:$0xff]
        %v5892 = vld [vmem:[#allocation3 + $0x1b8] sm:$0xff]
        %v5893 = vld [vmem:[#allocation3 + $0x1c0] sm:$0xff]
        %v5894 = vld [vmem:[#allocation3 + $0x1c8] sm:$0xff]
        %v5895 = vld [vmem:[#allocation3 + $0x1d0] sm:$0xff]
        %v5896 = vld [vmem:[#allocation3 + $0x1d8] sm:$0xff]
        %v5897 = vld [vmem:[#allocation3 + $0x1e0] sm:$0xff]
        %v5898 = vld [vmem:[#allocation3 + $0x1e8] sm:$0xff]
        %v5899 = vld [vmem:[#allocation3 + $0x1f0] sm:$0xff]
        %v5900 = vld [vmem:[#allocation3 + $0x1f8] sm:$0xff]
        %v5901 = vmul.f32 %v5198, %v5837
        %v5902 = vmul.f32 %v5200, %v5838
        %v5903 = vmul.f32 %v5202, %v5839
        %v5904 = vmul.f32 %v5204, %v5840
        %v5905 = vmul.f32 %v5206, %v5841
        %v5906 = vmul.f32 %v5208, %v5842
        %v5907 = vmul.f32 %v5210, %v5843
        %v5908 = vmul.f32 %v5212, %v5844
        %v5909 = vmul.f32 %v5214, %v5845
        %v5910 = vmul.f32 %v5216, %v5846
        %v5911 = vmul.f32 %v5218, %v5847
        %v5912 = vmul.f32 %v5220, %v5848
        %v5913 = vmul.f32 %v5222, %v5849
        %v5914 = vmul.f32 %v5224, %v5850
        %v5915 = vmul.f32 %v5226, %v5851
        %v5916 = vmul.f32 %v5228, %v5852
        %v5917 = vmul.f32 %v5230, %v5853
        %v5918 = vmul.f32 %v5232, %v5854
        %v5919 = vmul.f32 %v5234, %v5855
        %v5920 = vmul.f32 %v5236, %v5856
        %v5921 = vmul.f32 %v5238, %v5857
        %v5922 = vmul.f32 %v5240, %v5858
        %v5923 = vmul.f32 %v5242, %v5859
        %v5924 = vmul.f32 %v5244, %v5860
        %v5925 = vmul.f32 %v5246, %v5861
        %v5926 = vmul.f32 %v5248, %v5862
        %v5927 = vmul.f32 %v5250, %v5863
        %v5928 = vmul.f32 %v5252, %v5864
        %v5929 = vmul.f32 %v5254, %v5865
        %v5930 = vmul.f32 %v5256, %v5866
        %v5931 = vmul.f32 %v5258, %v5867
        %v5932 = vmul.f32 %v5260, %v5868
        %v5933 = vmul.f32 %v5262, %v5869
        %v5934 = vmul.f32 %v5264, %v5870
        %v5935 = vmul.f32 %v5266, %v5871
        %v5936 = vmul.f32 %v5268, %v5872
        %v5937 = vmul.f32 %v5270, %v5873
        %v5938 = vmul.f32 %v5272, %v5874
        %v5939 = vmul.f32 %v5274, %v5875
        %v5940 = vmul.f32 %v5276, %v5876
        %v5941 = vmul.f32 %v5278, %v5877
        %v5942 = vmul.f32 %v5280, %v5878
        %v5943 = vmul.f32 %v5282, %v5879
        %v5944 = vmul.f32 %v5284, %v5880
        %v5945 = vmul.f32 %v5286, %v5881
        %v5946 = vmul.f32 %v5288, %v5882
        %v5947 = vmul.f32 %v5290, %v5883
        %v5948 = vmul.f32 %v5292, %v5884
        %v5949 = vmul.f32 %v5294, %v5885
        %v5950 = vmul.f32 %v5296, %v5886
        %v5951 = vmul.f32 %v5298, %v5887
        %v5952 = vmul.f32 %v5300, %v5888
        %v5953 = vmul.f32 %v5302, %v5889
        %v5954 = vmul.f32 %v5304, %v5890
        %v5955 = vmul.f32 %v5306, %v5891
        %v5956 = vmul.f32 %v5308, %v5892
        %v5957 = vmul.f32 %v5310, %v5893
        %v5958 = vmul.f32 %v5312, %v5894
        %v5959 = vmul.f32 %v5314, %v5895
        %v5960 = vmul.f32 %v5316, %v5896
        %v5961 = vmul.f32 %v5318, %v5897
        %v5962 = vmul.f32 %v5320, %v5898
        %v5963 = vmul.f32 %v5322, %v5899
        %v5964 = vmul.f32 %v5324, %v5900
        %v5965 = vunpack.c.l.bf16 %v5743
        %v5966 = vunpack.c.h.bf16 %v5743
        %v5967 = vunpack.c.l.bf16 %v5746
        %v5968 = vunpack.c.h.bf16 %v5746
        %v5969 = vunpack.c.l.bf16 %v5749
        %v5970 = vunpack.c.h.bf16 %v5749
        %v5971 = vunpack.c.l.bf16 %v5752
        %v5972 = vunpack.c.h.bf16 %v5752
        %v5973 = vunpack.c.l.bf16 %v5755
        %v5974 = vunpack.c.h.bf16 %v5755
        %v5975 = vunpack.c.l.bf16 %v5758
        %v5976 = vunpack.c.h.bf16 %v5758
        %v5977 = vunpack.c.l.bf16 %v5761
        %v5978 = vunpack.c.h.bf16 %v5761
        %v5979 = vunpack.c.l.bf16 %v5764
        %v5980 = vunpack.c.h.bf16 %v5764
        %v5981 = vunpack.c.l.bf16 %v5767
        %v5982 = vunpack.c.h.bf16 %v5767
        %v5983 = vunpack.c.l.bf16 %v5770
        %v5984 = vunpack.c.h.bf16 %v5770
        %v5985 = vunpack.c.l.bf16 %v5773
        %v5986 = vunpack.c.h.bf16 %v5773
        %v5987 = vunpack.c.l.bf16 %v5776
        %v5988 = vunpack.c.h.bf16 %v5776
        %v5989 = vunpack.c.l.bf16 %v5779
        %v5990 = vunpack.c.h.bf16 %v5779
        %v5991 = vunpack.c.l.bf16 %v5782
        %v5992 = vunpack.c.h.bf16 %v5782
        %v5993 = vunpack.c.l.bf16 %v5785
        %v5994 = vunpack.c.h.bf16 %v5785
        %v5995 = vunpack.c.l.bf16 %v5788
        %v5996 = vunpack.c.h.bf16 %v5788
        %v5997 = vunpack.c.l.bf16 %v5791
        %v5998 = vunpack.c.h.bf16 %v5791
        %v5999 = vunpack.c.l.bf16 %v5794
        %v6000 = vunpack.c.h.bf16 %v5794
        %v6001 = vunpack.c.l.bf16 %v5797
        %v6002 = vunpack.c.h.bf16 %v5797
        %v6003 = vunpack.c.l.bf16 %v5800
        %v6004 = vunpack.c.h.bf16 %v5800
        %v6005 = vunpack.c.l.bf16 %v5803
        %v6006 = vunpack.c.h.bf16 %v5803
        %v6007 = vunpack.c.l.bf16 %v5806
        %v6008 = vunpack.c.h.bf16 %v5806
        %v6009 = vunpack.c.l.bf16 %v5809
        %v6010 = vunpack.c.h.bf16 %v5809
        %v6011 = vunpack.c.l.bf16 %v5812
        %v6012 = vunpack.c.h.bf16 %v5812
        %v6013 = vunpack.c.l.bf16 %v5815
        %v6014 = vunpack.c.h.bf16 %v5815
        %v6015 = vunpack.c.l.bf16 %v5818
        %v6016 = vunpack.c.h.bf16 %v5818
        %v6017 = vunpack.c.l.bf16 %v5821
        %v6018 = vunpack.c.h.bf16 %v5821
        %v6019 = vunpack.c.l.bf16 %v5824
        %v6020 = vunpack.c.h.bf16 %v5824
        %v6021 = vunpack.c.l.bf16 %v5827
        %v6022 = vunpack.c.h.bf16 %v5827
        %v6023 = vunpack.c.l.bf16 %v5830
        %v6024 = vunpack.c.h.bf16 %v5830
        %v6025 = vunpack.c.l.bf16 %v5833
        %v6026 = vunpack.c.h.bf16 %v5833
        %v6027 = vunpack.c.l.bf16 %v5836
        %v6028 = vunpack.c.h.bf16 %v5836
        %6029 = vadd.xlane.f32.xlu0 %v5965
        %v6030 = vpop.xlane.xlu0 %6029
        %6031 = vadd.xlane.f32.xlu0 %v5966
        %v6032 = vpop.xlane.xlu0 %6031
        %6033 = vadd.xlane.f32.xlu0 %v5967
        %v6034 = vpop.xlane.xlu0 %6033
        %6035 = vadd.xlane.f32.xlu0 %v5968
        %v6036 = vpop.xlane.xlu0 %6035
        %6037 = vadd.xlane.f32.xlu0 %v5969
        %v6038 = vpop.xlane.xlu0 %6037
        %6039 = vadd.xlane.f32.xlu0 %v5970
        %v6040 = vpop.xlane.xlu0 %6039
        %6041 = vadd.xlane.f32.xlu0 %v5971
        %v6042 = vpop.xlane.xlu0 %6041
        %6043 = vadd.xlane.f32.xlu0 %v5972
        %v6044 = vpop.xlane.xlu0 %6043
        %6045 = vadd.xlane.f32.xlu0 %v5973
        %v6046 = vpop.xlane.xlu0 %6045
        %6047 = vadd.xlane.f32.xlu0 %v5974
        %v6048 = vpop.xlane.xlu0 %6047
        %6049 = vadd.xlane.f32.xlu0 %v5975
        %v6050 = vpop.xlane.xlu0 %6049
        %6051 = vadd.xlane.f32.xlu0 %v5976
        %v6052 = vpop.xlane.xlu0 %6051
        %6053 = vadd.xlane.f32.xlu0 %v5977
        %v6054 = vpop.xlane.xlu0 %6053
        %6055 = vadd.xlane.f32.xlu0 %v5978
        %v6056 = vpop.xlane.xlu0 %6055
        %6057 = vadd.xlane.f32.xlu0 %v5979
        %v6058 = vpop.xlane.xlu0 %6057
        %6059 = vadd.xlane.f32.xlu0 %v5980
        %v6060 = vpop.xlane.xlu0 %6059
        %6061 = vadd.xlane.f32.xlu0 %v5981
        %v6062 = vpop.xlane.xlu0 %6061
        %6063 = vadd.xlane.f32.xlu0 %v5982
        %v6064 = vpop.xlane.xlu0 %6063
        %6065 = vadd.xlane.f32.xlu0 %v5983
        %v6066 = vpop.xlane.xlu0 %6065
        %6067 = vadd.xlane.f32.xlu0 %v5984
        %v6068 = vpop.xlane.xlu0 %6067
        %6069 = vadd.xlane.f32.xlu0 %v5985
        %v6070 = vpop.xlane.xlu0 %6069
        %6071 = vadd.xlane.f32.xlu0 %v5986
        %v6072 = vpop.xlane.xlu0 %6071
        %6073 = vadd.xlane.f32.xlu0 %v5987
        %v6074 = vpop.xlane.xlu0 %6073
        %6075 = vadd.xlane.f32.xlu0 %v5988
        %v6076 = vpop.xlane.xlu0 %6075
        %6077 = vadd.xlane.f32.xlu0 %v5989
        %v6078 = vpop.xlane.xlu0 %6077
        %6079 = vadd.xlane.f32.xlu0 %v5990
        %v6080 = vpop.xlane.xlu0 %6079
        %6081 = vadd.xlane.f32.xlu0 %v5991
        %v6082 = vpop.xlane.xlu0 %6081
        %6083 = vadd.xlane.f32.xlu0 %v5992
        %v6084 = vpop.xlane.xlu0 %6083
        %6085 = vadd.xlane.f32.xlu0 %v5993
        %v6086 = vpop.xlane.xlu0 %6085
        %6087 = vadd.xlane.f32.xlu0 %v5994
        %v6088 = vpop.xlane.xlu0 %6087
        %6089 = vadd.xlane.f32.xlu0 %v5995
        %v6090 = vpop.xlane.xlu0 %6089
        %6091 = vadd.xlane.f32.xlu0 %v5996
        %v6092 = vpop.xlane.xlu0 %6091
        %6093 = vadd.xlane.f32.xlu0 %v5997
        %v6094 = vpop.xlane.xlu0 %6093
        %6095 = vadd.xlane.f32.xlu0 %v5998
        %v6096 = vpop.xlane.xlu0 %6095
        %6097 = vadd.xlane.f32.xlu0 %v5999
        %v6098 = vpop.xlane.xlu0 %6097
        %6099 = vadd.xlane.f32.xlu0 %v6000
        %v6100 = vpop.xlane.xlu0 %6099
        %6101 = vadd.xlane.f32.xlu0 %v6001
        %v6102 = vpop.xlane.xlu0 %6101
        %6103 = vadd.xlane.f32.xlu0 %v6002
        %v6104 = vpop.xlane.xlu0 %6103
        %6105 = vadd.xlane.f32.xlu0 %v6003
        %v6106 = vpop.xlane.xlu0 %6105
        %6107 = vadd.xlane.f32.xlu0 %v6004
        %v6108 = vpop.xlane.xlu0 %6107
        %6109 = vadd.xlane.f32.xlu0 %v6005
        %v6110 = vpop.xlane.xlu0 %6109
        %6111 = vadd.xlane.f32.xlu0 %v6006
        %v6112 = vpop.xlane.xlu0 %6111
        %6113 = vadd.xlane.f32.xlu0 %v6007
        %v6114 = vpop.xlane.xlu0 %6113
        %6115 = vadd.xlane.f32.xlu0 %v6008
        %v6116 = vpop.xlane.xlu0 %6115
        %6117 = vadd.xlane.f32.xlu0 %v6009
        %v6118 = vpop.xlane.xlu0 %6117
        %6119 = vadd.xlane.f32.xlu0 %v6010
        %v6120 = vpop.xlane.xlu0 %6119
        %6121 = vadd.xlane.f32.xlu0 %v6011
        %v6122 = vpop.xlane.xlu0 %6121
        %6123 = vadd.xlane.f32.xlu0 %v6012
        %v6124 = vpop.xlane.xlu0 %6123
        %6125 = vadd.xlane.f32.xlu0 %v6013
        %v6126 = vpop.xlane.xlu0 %6125
        %6127 = vadd.xlane.f32.xlu0 %v6014
        %v6128 = vpop.xlane.xlu0 %6127
        %6129 = vadd.xlane.f32.xlu0 %v6015
        %v6130 = vpop.xlane.xlu0 %6129
        %6131 = vadd.xlane.f32.xlu0 %v6016
        %v6132 = vpop.xlane.xlu0 %6131
        %6133 = vadd.xlane.f32.xlu0 %v6017
        %v6134 = vpop.xlane.xlu0 %6133
        %6135 = vadd.xlane.f32.xlu0 %v6018
        %v6136 = vpop.xlane.xlu0 %6135
        %6137 = vadd.xlane.f32.xlu0 %v6019
        %v6138 = vpop.xlane.xlu0 %6137
        %6139 = vadd.xlane.f32.xlu0 %v6020
        %v6140 = vpop.xlane.xlu0 %6139
        %6141 = vadd.xlane.f32.xlu0 %v6021
        %v6142 = vpop.xlane.xlu0 %6141
        %6143 = vadd.xlane.f32.xlu0 %v6022
        %v6144 = vpop.xlane.xlu0 %6143
        %6145 = vadd.xlane.f32.xlu0 %v6023
        %v6146 = vpop.xlane.xlu0 %6145
        %6147 = vadd.xlane.f32.xlu0 %v6024
        %v6148 = vpop.xlane.xlu0 %6147
        %6149 = vadd.xlane.f32.xlu0 %v6025
        %v6150 = vpop.xlane.xlu0 %6149
        %6151 = vadd.xlane.f32.xlu0 %v6026
        %v6152 = vpop.xlane.xlu0 %6151
        %6153 = vadd.xlane.f32.xlu0 %v6027
        %v6154 = vpop.xlane.xlu0 %6153
        %6155 = vadd.xlane.f32.xlu0 %v6028
        %v6156 = vpop.xlane.xlu0 %6155
        %v6157 = vadd.f32 %v5901, %v6030
        %v6158 = vadd.f32 %v5902, %v6032
        %v6159 = vadd.f32 %v5903, %v6034
        %v6160 = vadd.f32 %v5904, %v6036
        %v6161 = vadd.f32 %v5905, %v6038
        %v6162 = vadd.f32 %v5906, %v6040
        %v6163 = vadd.f32 %v5907, %v6042
        %v6164 = vadd.f32 %v5908, %v6044
        %v6165 = vadd.f32 %v5909, %v6046
        %v6166 = vadd.f32 %v5910, %v6048
        %v6167 = vadd.f32 %v5911, %v6050
        %v6168 = vadd.f32 %v5912, %v6052
        %v6169 = vadd.f32 %v5913, %v6054
        %v6170 = vadd.f32 %v5914, %v6056
        %v6171 = vadd.f32 %v5915, %v6058
        %v6172 = vadd.f32 %v5916, %v6060
        %v6173 = vadd.f32 %v5917, %v6062
        %v6174 = vadd.f32 %v5918, %v6064
        %v6175 = vadd.f32 %v5919, %v6066
        %v6176 = vadd.f32 %v5920, %v6068
        %v6177 = vadd.f32 %v5921, %v6070
        %v6178 = vadd.f32 %v5922, %v6072
        %v6179 = vadd.f32 %v5923, %v6074
        %v6180 = vadd.f32 %v5924, %v6076
        %v6181 = vadd.f32 %v5925, %v6078
        %v6182 = vadd.f32 %v5926, %v6080
        %v6183 = vadd.f32 %v5927, %v6082
        %v6184 = vadd.f32 %v5928, %v6084
        %v6185 = vadd.f32 %v5929, %v6086
        %v6186 = vadd.f32 %v5930, %v6088
        %v6187 = vadd.f32 %v5931, %v6090
        %v6188 = vadd.f32 %v5932, %v6092
        %v6189 = vadd.f32 %v5933, %v6094
        %v6190 = vadd.f32 %v5934, %v6096
        %v6191 = vadd.f32 %v5935, %v6098
        %v6192 = vadd.f32 %v5936, %v6100
        %v6193 = vadd.f32 %v5937, %v6102
        %v6194 = vadd.f32 %v5938, %v6104
        %v6195 = vadd.f32 %v5939, %v6106
        %v6196 = vadd.f32 %v5940, %v6108
        %v6197 = vadd.f32 %v5941, %v6110
        %v6198 = vadd.f32 %v5942, %v6112
        %v6199 = vadd.f32 %v5943, %v6114
        %v6200 = vadd.f32 %v5944, %v6116
        %v6201 = vadd.f32 %v5945, %v6118
        %v6202 = vadd.f32 %v5946, %v6120
        %v6203 = vadd.f32 %v5947, %v6122
        %v6204 = vadd.f32 %v5948, %v6124
        %v6205 = vadd.f32 %v5949, %v6126
        %v6206 = vadd.f32 %v5950, %v6128
        %v6207 = vadd.f32 %v5951, %v6130
        %v6208 = vadd.f32 %v5952, %v6132
        %v6209 = vadd.f32 %v5953, %v6134
        %v6210 = vadd.f32 %v5954, %v6136
        %v6211 = vadd.f32 %v5955, %v6138
        %v6212 = vadd.f32 %v5956, %v6140
        %v6213 = vadd.f32 %v5957, %v6142
        %v6214 = vadd.f32 %v5958, %v6144
        %v6215 = vadd.f32 %v5959, %v6146
        %v6216 = vadd.f32 %v5960, %v6148
        %v6217 = vadd.f32 %v5961, %v6150
        %v6218 = vadd.f32 %v5962, %v6152
        %v6219 = vadd.f32 %v5963, %v6154
        %v6220 = vadd.f32 %v5964, %v6156
        %6221 = vst.msk [vmem:[#allocation3] sm:$0xff] %vm3044, %v6157
        %6222 = vst.msk [vmem:[#allocation3 + $0x8] sm:$0xff] %vm3044, %v6158
        %6223 = vst.msk [vmem:[#allocation3 + $0x10] sm:$0xff] %vm3044, %v6159
        %6224 = vst.msk [vmem:[#allocation3 + $0x18] sm:$0xff] %vm3044, %v6160
        %6225 = vst.msk [vmem:[#allocation3 + $0x20] sm:$0xff] %vm3044, %v6161
        %6226 = vst.msk [vmem:[#allocation3 + $0x28] sm:$0xff] %vm3044, %v6162
        %6227 = vst.msk [vmem:[#allocation3 + $0x30] sm:$0xff] %vm3044, %v6163
        %6228 = vst.msk [vmem:[#allocation3 + $0x38] sm:$0xff] %vm3044, %v6164
        %6229 = vst.msk [vmem:[#allocation3 + $0x40] sm:$0xff] %vm3044, %v6165
        %6230 = vst.msk [vmem:[#allocation3 + $0x48] sm:$0xff] %vm3044, %v6166
        %6231 = vst.msk [vmem:[#allocation3 + $0x50] sm:$0xff] %vm3044, %v6167
        %6232 = vst.msk [vmem:[#allocation3 + $0x58] sm:$0xff] %vm3044, %v6168
        %6233 = vst.msk [vmem:[#allocation3 + $0x60] sm:$0xff] %vm3044, %v6169
        %6234 = vst.msk [vmem:[#allocation3 + $0x68] sm:$0xff] %vm3044, %v6170
        %6235 = vst.msk [vmem:[#allocation3 + $0x70] sm:$0xff] %vm3044, %v6171
        %6236 = vst.msk [vmem:[#allocation3 + $0x78] sm:$0xff] %vm3044, %v6172
        %6237 = vst.msk [vmem:[#allocation3 + $0x80] sm:$0xff] %vm3044, %v6173
        %6238 = vst.msk [vmem:[#allocation3 + $0x88] sm:$0xff] %vm3044, %v6174
        %6239 = vst.msk [vmem:[#allocation3 + $0x90] sm:$0xff] %vm3044, %v6175
        %6240 = vst.msk [vmem:[#allocation3 + $0x98] sm:$0xff] %vm3044, %v6176
        %6241 = vst.msk [vmem:[#allocation3 + $0xa0] sm:$0xff] %vm3044, %v6177
        %6242 = vst.msk [vmem:[#allocation3 + $0xa8] sm:$0xff] %vm3044, %v6178
        %6243 = vst.msk [vmem:[#allocation3 + $0xb0] sm:$0xff] %vm3044, %v6179
        %6244 = vst.msk [vmem:[#allocation3 + $0xb8] sm:$0xff] %vm3044, %v6180
        %6245 = vst.msk [vmem:[#allocation3 + $0xc0] sm:$0xff] %vm3044, %v6181
        %6246 = vst.msk [vmem:[#allocation3 + $0xc8] sm:$0xff] %vm3044, %v6182
        %6247 = vst.msk [vmem:[#allocation3 + $0xd0] sm:$0xff] %vm3044, %v6183
        %6248 = vst.msk [vmem:[#allocation3 + $0xd8] sm:$0xff] %vm3044, %v6184
        %6249 = vst.msk [vmem:[#allocation3 + $0xe0] sm:$0xff] %vm3044, %v6185
        %6250 = vst.msk [vmem:[#allocation3 + $0xe8] sm:$0xff] %vm3044, %v6186
        %6251 = vst.msk [vmem:[#allocation3 + $0xf0] sm:$0xff] %vm3044, %v6187
        %6252 = vst.msk [vmem:[#allocation3 + $0xf8] sm:$0xff] %vm3044, %v6188
        %6253 = vst.msk [vmem:[#allocation3 + $0x100] sm:$0xff] %vm3044, %v6189
        %6254 = vst.msk [vmem:[#allocation3 + $0x108] sm:$0xff] %vm3044, %v6190
        %6255 = vst.msk [vmem:[#allocation3 + $0x110] sm:$0xff] %vm3044, %v6191
        %6256 = vst.msk [vmem:[#allocation3 + $0x118] sm:$0xff] %vm3044, %v6192
        %6257 = vst.msk [vmem:[#allocation3 + $0x120] sm:$0xff] %vm3044, %v6193
        %6258 = vst.msk [vmem:[#allocation3 + $0x128] sm:$0xff] %vm3044, %v6194
        %6259 = vst.msk [vmem:[#allocation3 + $0x130] sm:$0xff] %vm3044, %v6195
        %6260 = vst.msk [vmem:[#allocation3 + $0x138] sm:$0xff] %vm3044, %v6196
        %6261 = vst.msk [vmem:[#allocation3 + $0x140] sm:$0xff] %vm3044, %v6197
        %6262 = vst.msk [vmem:[#allocation3 + $0x148] sm:$0xff] %vm3044, %v6198
        %6263 = vst.msk [vmem:[#allocation3 + $0x150] sm:$0xff] %vm3044, %v6199
        %6264 = vst.msk [vmem:[#allocation3 + $0x158] sm:$0xff] %vm3044, %v6200
        %6265 = vst.msk [vmem:[#allocation3 + $0x160] sm:$0xff] %vm3044, %v6201
        %6266 = vst.msk [vmem:[#allocation3 + $0x168] sm:$0xff] %vm3044, %v6202
        %6267 = vst.msk [vmem:[#allocation3 + $0x170] sm:$0xff] %vm3044, %v6203
        %6268 = vst.msk [vmem:[#allocation3 + $0x178] sm:$0xff] %vm3044, %v6204
        %6269 = vst.msk [vmem:[#allocation3 + $0x180] sm:$0xff] %vm3044, %v6205
        %6270 = vst.msk [vmem:[#allocation3 + $0x188] sm:$0xff] %vm3044, %v6206
        %6271 = vst.msk [vmem:[#allocation3 + $0x190] sm:$0xff] %vm3044, %v6207
        %6272 = vst.msk [vmem:[#allocation3 + $0x198] sm:$0xff] %vm3044, %v6208
        %6273 = vst.msk [vmem:[#allocation3 + $0x1a0] sm:$0xff] %vm3044, %v6209
        %6274 = vst.msk [vmem:[#allocation3 + $0x1a8] sm:$0xff] %vm3044, %v6210
        %6275 = vst.msk [vmem:[#allocation3 + $0x1b0] sm:$0xff] %vm3044, %v6211
        %6276 = vst.msk [vmem:[#allocation3 + $0x1b8] sm:$0xff] %vm3044, %v6212
        %6277 = vst.msk [vmem:[#allocation3 + $0x1c0] sm:$0xff] %vm3044, %v6213
        %6278 = vst.msk [vmem:[#allocation3 + $0x1c8] sm:$0xff] %vm3044, %v6214
        %6279 = vst.msk [vmem:[#allocation3 + $0x1d0] sm:$0xff] %vm3044, %v6215
        %6280 = vst.msk [vmem:[#allocation3 + $0x1d8] sm:$0xff] %vm3044, %v6216
        %6281 = vst.msk [vmem:[#allocation3 + $0x1e0] sm:$0xff] %vm3044, %v6217
        %6282 = vst.msk [vmem:[#allocation3 + $0x1e8] sm:$0xff] %vm3044, %v6218
        %6283 = vst.msk [vmem:[#allocation3 + $0x1f0] sm:$0xff] %vm3044, %v6219
        %6284 = vst.msk [vmem:[#allocation3 + $0x1f8] sm:$0xff] %vm3044, %v6220
        %v6285 = vld [vmem:[#allocation4] sm:$0xff]
        %v6286 = vld [vmem:[#allocation4 + $0x8] sm:$0xff]
        %v6287 = vld [vmem:[#allocation4 + $0x10] sm:$0xff]
        %v6288 = vld [vmem:[#allocation4 + $0x18] sm:$0xff]
        %v6289 = vld [vmem:[#allocation4 + $0x20] sm:$0xff]
        %v6290 = vld [vmem:[#allocation4 + $0x28] sm:$0xff]
        %v6291 = vld [vmem:[#allocation4 + $0x30] sm:$0xff]
        %v6292 = vld [vmem:[#allocation4 + $0x38] sm:$0xff]
        %v6293 = vld [vmem:[#allocation4 + $0x40] sm:$0xff]
        %v6294 = vld [vmem:[#allocation4 + $0x48] sm:$0xff]
        %v6295 = vld [vmem:[#allocation4 + $0x50] sm:$0xff]
        %v6296 = vld [vmem:[#allocation4 + $0x58] sm:$0xff]
        %v6297 = vld [vmem:[#allocation4 + $0x60] sm:$0xff]
        %v6298 = vld [vmem:[#allocation4 + $0x68] sm:$0xff]
        %v6299 = vld [vmem:[#allocation4 + $0x70] sm:$0xff]
        %v6300 = vld [vmem:[#allocation4 + $0x78] sm:$0xff]
        %v6301 = vld [vmem:[#allocation4 + $0x80] sm:$0xff]
        %v6302 = vld [vmem:[#allocation4 + $0x88] sm:$0xff]
        %v6303 = vld [vmem:[#allocation4 + $0x90] sm:$0xff]
        %v6304 = vld [vmem:[#allocation4 + $0x98] sm:$0xff]
        %v6305 = vld [vmem:[#allocation4 + $0xa0] sm:$0xff]
        %v6306 = vld [vmem:[#allocation4 + $0xa8] sm:$0xff]
        %v6307 = vld [vmem:[#allocation4 + $0xb0] sm:$0xff]
        %v6308 = vld [vmem:[#allocation4 + $0xb8] sm:$0xff]
        %v6309 = vld [vmem:[#allocation4 + $0xc0] sm:$0xff]
        %v6310 = vld [vmem:[#allocation4 + $0xc8] sm:$0xff]
        %v6311 = vld [vmem:[#allocation4 + $0xd0] sm:$0xff]
        %v6312 = vld [vmem:[#allocation4 + $0xd8] sm:$0xff]
        %v6313 = vld [vmem:[#allocation4 + $0xe0] sm:$0xff]
        %v6314 = vld [vmem:[#allocation4 + $0xe8] sm:$0xff]
        %v6315 = vld [vmem:[#allocation4 + $0xf0] sm:$0xff]
        %v6316 = vld [vmem:[#allocation4 + $0xf8] sm:$0xff]
        %v6317 = vld [vmem:[#allocation4 + $0x100] sm:$0xff]
        %v6318 = vld [vmem:[#allocation4 + $0x108] sm:$0xff]
        %v6319 = vld [vmem:[#allocation4 + $0x110] sm:$0xff]
        %v6320 = vld [vmem:[#allocation4 + $0x118] sm:$0xff]
        %v6321 = vld [vmem:[#allocation4 + $0x120] sm:$0xff]
        %v6322 = vld [vmem:[#allocation4 + $0x128] sm:$0xff]
        %v6323 = vld [vmem:[#allocation4 + $0x130] sm:$0xff]
        %v6324 = vld [vmem:[#allocation4 + $0x138] sm:$0xff]
        %v6325 = vld [vmem:[#allocation4 + $0x140] sm:$0xff]
        %v6326 = vld [vmem:[#allocation4 + $0x148] sm:$0xff]
        %v6327 = vld [vmem:[#allocation4 + $0x150] sm:$0xff]
        %v6328 = vld [vmem:[#allocation4 + $0x158] sm:$0xff]
        %v6329 = vld [vmem:[#allocation4 + $0x160] sm:$0xff]
        %v6330 = vld [vmem:[#allocation4 + $0x168] sm:$0xff]
        %v6331 = vld [vmem:[#allocation4 + $0x170] sm:$0xff]
        %v6332 = vld [vmem:[#allocation4 + $0x178] sm:$0xff]
        %v6333 = vld [vmem:[#allocation4 + $0x180] sm:$0xff]
        %v6334 = vld [vmem:[#allocation4 + $0x188] sm:$0xff]
        %v6335 = vld [vmem:[#allocation4 + $0x190] sm:$0xff]
        %v6336 = vld [vmem:[#allocation4 + $0x198] sm:$0xff]
        %v6337 = vld [vmem:[#allocation4 + $0x1a0] sm:$0xff]
        %v6338 = vld [vmem:[#allocation4 + $0x1a8] sm:$0xff]
        %v6339 = vld [vmem:[#allocation4 + $0x1b0] sm:$0xff]
        %v6340 = vld [vmem:[#allocation4 + $0x1b8] sm:$0xff]
        %v6341 = vld [vmem:[#allocation4 + $0x1c0] sm:$0xff]
        %v6342 = vld [vmem:[#allocation4 + $0x1c8] sm:$0xff]
        %v6343 = vld [vmem:[#allocation4 + $0x1d0] sm:$0xff]
        %v6344 = vld [vmem:[#allocation4 + $0x1d8] sm:$0xff]
        %v6345 = vld [vmem:[#allocation4 + $0x1e0] sm:$0xff]
        %v6346 = vld [vmem:[#allocation4 + $0x1e8] sm:$0xff]
        %v6347 = vld [vmem:[#allocation4 + $0x1f0] sm:$0xff]
        %v6348 = vld [vmem:[#allocation4 + $0x1f8] sm:$0xff]
        %6350 = vset.pattern.permute.xlu0 0
        %6351 = vperm.xlu0 %6350, %v5198
        %v6352 = vpop.permute.xlu0 %6351
        %6355 = vset.pattern.permute.xlu0 0
        %6356 = vperm.xlu0 %6355, %v5200
        %v6357 = vpop.permute.xlu0 %6356
        %6360 = vset.pattern.permute.xlu0 0
        %6361 = vperm.xlu0 %6360, %v5202
        %v6362 = vpop.permute.xlu0 %6361
        %6365 = vset.pattern.permute.xlu0 0
        %6366 = vperm.xlu0 %6365, %v5204
        %v6367 = vpop.permute.xlu0 %6366
        %6370 = vset.pattern.permute.xlu0 0
        %6371 = vperm.xlu0 %6370, %v5206
        %v6372 = vpop.permute.xlu0 %6371
        %6375 = vset.pattern.permute.xlu0 0
        %6376 = vperm.xlu0 %6375, %v5208
        %v6377 = vpop.permute.xlu0 %6376
        %6380 = vset.pattern.permute.xlu0 0
        %6381 = vperm.xlu0 %6380, %v5210
        %v6382 = vpop.permute.xlu0 %6381
        %6385 = vset.pattern.permute.xlu0 0
        %6386 = vperm.xlu0 %6385, %v5212
        %v6387 = vpop.permute.xlu0 %6386
        %6390 = vset.pattern.permute.xlu0 0
        %6391 = vperm.xlu0 %6390, %v5214
        %v6392 = vpop.permute.xlu0 %6391
        %6395 = vset.pattern.permute.xlu0 0
        %6396 = vperm.xlu0 %6395, %v5216
        %v6397 = vpop.permute.xlu0 %6396
        %6400 = vset.pattern.permute.xlu0 0
        %6401 = vperm.xlu0 %6400, %v5218
        %v6402 = vpop.permute.xlu0 %6401
        %6405 = vset.pattern.permute.xlu0 0
        %6406 = vperm.xlu0 %6405, %v5220
        %v6407 = vpop.permute.xlu0 %6406
        %6410 = vset.pattern.permute.xlu0 0
        %6411 = vperm.xlu0 %6410, %v5222
        %v6412 = vpop.permute.xlu0 %6411
        %6415 = vset.pattern.permute.xlu0 0
        %6416 = vperm.xlu0 %6415, %v5224
        %v6417 = vpop.permute.xlu0 %6416
        %6420 = vset.pattern.permute.xlu0 0
        %6421 = vperm.xlu0 %6420, %v5226
        %v6422 = vpop.permute.xlu0 %6421
        %6425 = vset.pattern.permute.xlu0 0
        %6426 = vperm.xlu0 %6425, %v5228
        %v6427 = vpop.permute.xlu0 %6426
        %6430 = vset.pattern.permute.xlu0 0
        %6431 = vperm.xlu0 %6430, %v5230
        %v6432 = vpop.permute.xlu0 %6431
        %6435 = vset.pattern.permute.xlu0 0
        %6436 = vperm.xlu0 %6435, %v5232
        %v6437 = vpop.permute.xlu0 %6436
        %6440 = vset.pattern.permute.xlu0 0
        %6441 = vperm.xlu0 %6440, %v5234
        %v6442 = vpop.permute.xlu0 %6441
        %6445 = vset.pattern.permute.xlu0 0
        %6446 = vperm.xlu0 %6445, %v5236
        %v6447 = vpop.permute.xlu0 %6446
        %6450 = vset.pattern.permute.xlu0 0
        %6451 = vperm.xlu0 %6450, %v5238
        %v6452 = vpop.permute.xlu0 %6451
        %6455 = vset.pattern.permute.xlu0 0
        %6456 = vperm.xlu0 %6455, %v5240
        %v6457 = vpop.permute.xlu0 %6456
        %6460 = vset.pattern.permute.xlu0 0
        %6461 = vperm.xlu0 %6460, %v5242
        %v6462 = vpop.permute.xlu0 %6461
        %6465 = vset.pattern.permute.xlu0 0
        %6466 = vperm.xlu0 %6465, %v5244
        %v6467 = vpop.permute.xlu0 %6466
        %6470 = vset.pattern.permute.xlu0 0
        %6471 = vperm.xlu0 %6470, %v5246
        %v6472 = vpop.permute.xlu0 %6471
        %6475 = vset.pattern.permute.xlu0 0
        %6476 = vperm.xlu0 %6475, %v5248
        %v6477 = vpop.permute.xlu0 %6476
        %6480 = vset.pattern.permute.xlu0 0
        %6481 = vperm.xlu0 %6480, %v5250
        %v6482 = vpop.permute.xlu0 %6481
        %6485 = vset.pattern.permute.xlu0 0
        %6486 = vperm.xlu0 %6485, %v5252
        %v6487 = vpop.permute.xlu0 %6486
        %6490 = vset.pattern.permute.xlu0 0
        %6491 = vperm.xlu0 %6490, %v5254
        %v6492 = vpop.permute.xlu0 %6491
        %6495 = vset.pattern.permute.xlu0 0
        %6496 = vperm.xlu0 %6495, %v5256
        %v6497 = vpop.permute.xlu0 %6496
        %6500 = vset.pattern.permute.xlu0 0
        %6501 = vperm.xlu0 %6500, %v5258
        %v6502 = vpop.permute.xlu0 %6501
        %6505 = vset.pattern.permute.xlu0 0
        %6506 = vperm.xlu0 %6505, %v5260
        %v6507 = vpop.permute.xlu0 %6506
        %6510 = vset.pattern.permute.xlu0 0
        %6511 = vperm.xlu0 %6510, %v5262
        %v6512 = vpop.permute.xlu0 %6511
        %6515 = vset.pattern.permute.xlu0 0
        %6516 = vperm.xlu0 %6515, %v5264
        %v6517 = vpop.permute.xlu0 %6516
        %6520 = vset.pattern.permute.xlu0 0
        %6521 = vperm.xlu0 %6520, %v5266
        %v6522 = vpop.permute.xlu0 %6521
        %6525 = vset.pattern.permute.xlu0 0
        %6526 = vperm.xlu0 %6525, %v5268
        %v6527 = vpop.permute.xlu0 %6526
        %6530 = vset.pattern.permute.xlu0 0
        %6531 = vperm.xlu0 %6530, %v5270
        %v6532 = vpop.permute.xlu0 %6531
        %6535 = vset.pattern.permute.xlu0 0
        %6536 = vperm.xlu0 %6535, %v5272
        %v6537 = vpop.permute.xlu0 %6536
        %6540 = vset.pattern.permute.xlu0 0
        %6541 = vperm.xlu0 %6540, %v5274
        %v6542 = vpop.permute.xlu0 %6541
        %6545 = vset.pattern.permute.xlu0 0
        %6546 = vperm.xlu0 %6545, %v5276
        %v6547 = vpop.permute.xlu0 %6546
        %6550 = vset.pattern.permute.xlu0 0
        %6551 = vperm.xlu0 %6550, %v5278
        %v6552 = vpop.permute.xlu0 %6551
        %6555 = vset.pattern.permute.xlu0 0
        %6556 = vperm.xlu0 %6555, %v5280
        %v6557 = vpop.permute.xlu0 %6556
        %6560 = vset.pattern.permute.xlu0 0
        %6561 = vperm.xlu0 %6560, %v5282
        %v6562 = vpop.permute.xlu0 %6561
        %6565 = vset.pattern.permute.xlu0 0
        %6566 = vperm.xlu0 %6565, %v5284
        %v6567 = vpop.permute.xlu0 %6566
        %6570 = vset.pattern.permute.xlu0 0
        %6571 = vperm.xlu0 %6570, %v5286
        %v6572 = vpop.permute.xlu0 %6571
        %6575 = vset.pattern.permute.xlu0 0
        %6576 = vperm.xlu0 %6575, %v5288
        %v6577 = vpop.permute.xlu0 %6576
        %6580 = vset.pattern.permute.xlu0 0
        %6581 = vperm.xlu0 %6580, %v5290
        %v6582 = vpop.permute.xlu0 %6581
        %6585 = vset.pattern.permute.xlu0 0
        %6586 = vperm.xlu0 %6585, %v5292
        %v6587 = vpop.permute.xlu0 %6586
        %6590 = vset.pattern.permute.xlu0 0
        %6591 = vperm.xlu0 %6590, %v5294
        %v6592 = vpop.permute.xlu0 %6591
        %6595 = vset.pattern.permute.xlu0 0
        %6596 = vperm.xlu0 %6595, %v5296
        %v6597 = vpop.permute.xlu0 %6596
        %6600 = vset.pattern.permute.xlu0 0
        %6601 = vperm.xlu0 %6600, %v5298
        %v6602 = vpop.permute.xlu0 %6601
        %6605 = vset.pattern.permute.xlu0 0
        %6606 = vperm.xlu0 %6605, %v5300
        %v6607 = vpop.permute.xlu0 %6606
        %6610 = vset.pattern.permute.xlu0 0
        %6611 = vperm.xlu0 %6610, %v5302
        %v6612 = vpop.permute.xlu0 %6611
        %6615 = vset.pattern.permute.xlu0 0
        %6616 = vperm.xlu0 %6615, %v5304
        %v6617 = vpop.permute.xlu0 %6616
        %6620 = vset.pattern.permute.xlu0 0
        %6621 = vperm.xlu0 %6620, %v5306
        %v6622 = vpop.permute.xlu0 %6621
        %6625 = vset.pattern.permute.xlu0 0
        %6626 = vperm.xlu0 %6625, %v5308
        %v6627 = vpop.permute.xlu0 %6626
        %6630 = vset.pattern.permute.xlu0 0
        %6631 = vperm.xlu0 %6630, %v5310
        %v6632 = vpop.permute.xlu0 %6631
        %6635 = vset.pattern.permute.xlu0 0
        %6636 = vperm.xlu0 %6635, %v5312
        %v6637 = vpop.permute.xlu0 %6636
        %6640 = vset.pattern.permute.xlu0 0
        %6641 = vperm.xlu0 %6640, %v5314
        %v6642 = vpop.permute.xlu0 %6641
        %6645 = vset.pattern.permute.xlu0 0
        %6646 = vperm.xlu0 %6645, %v5316
        %v6647 = vpop.permute.xlu0 %6646
        %6650 = vset.pattern.permute.xlu0 0
        %6651 = vperm.xlu0 %6650, %v5318
        %v6652 = vpop.permute.xlu0 %6651
        %6655 = vset.pattern.permute.xlu0 0
        %6656 = vperm.xlu0 %6655, %v5320
        %v6657 = vpop.permute.xlu0 %6656
        %6660 = vset.pattern.permute.xlu0 0
        %6661 = vperm.xlu0 %6660, %v5322
        %v6662 = vpop.permute.xlu0 %6661
        %6665 = vset.pattern.permute.xlu0 0
        %6666 = vperm.xlu0 %6665, %v5324
        %v6667 = vpop.permute.xlu0 %6666
        %v6669 = vmul.f32 %v6352, %v6285
        %v6670 = vmul.f32 %v6357, %v6286
        %v6671 = vmul.f32 %v6362, %v6287
        %v6672 = vmul.f32 %v6367, %v6288
        %v6673 = vmul.f32 %v6372, %v6289
        %v6674 = vmul.f32 %v6377, %v6290
        %v6675 = vmul.f32 %v6382, %v6291
        %v6676 = vmul.f32 %v6387, %v6292
        %v6677 = vmul.f32 %v6392, %v6293
        %v6678 = vmul.f32 %v6397, %v6294
        %v6679 = vmul.f32 %v6402, %v6295
        %v6680 = vmul.f32 %v6407, %v6296
        %v6681 = vmul.f32 %v6412, %v6297
        %v6682 = vmul.f32 %v6417, %v6298
        %v6683 = vmul.f32 %v6422, %v6299
        %v6684 = vmul.f32 %v6427, %v6300
        %v6685 = vmul.f32 %v6432, %v6301
        %v6686 = vmul.f32 %v6437, %v6302
        %v6687 = vmul.f32 %v6442, %v6303
        %v6688 = vmul.f32 %v6447, %v6304
        %v6689 = vmul.f32 %v6452, %v6305
        %v6690 = vmul.f32 %v6457, %v6306
        %v6691 = vmul.f32 %v6462, %v6307
        %v6692 = vmul.f32 %v6467, %v6308
        %v6693 = vmul.f32 %v6472, %v6309
        %v6694 = vmul.f32 %v6477, %v6310
        %v6695 = vmul.f32 %v6482, %v6311
        %v6696 = vmul.f32 %v6487, %v6312
        %v6697 = vmul.f32 %v6492, %v6313
        %v6698 = vmul.f32 %v6497, %v6314
        %v6699 = vmul.f32 %v6502, %v6315
        %v6700 = vmul.f32 %v6507, %v6316
        %v6701 = vmul.f32 %v6512, %v6317
        %v6702 = vmul.f32 %v6517, %v6318
        %v6703 = vmul.f32 %v6522, %v6319
        %v6704 = vmul.f32 %v6527, %v6320
        %v6705 = vmul.f32 %v6532, %v6321
        %v6706 = vmul.f32 %v6537, %v6322
        %v6707 = vmul.f32 %v6542, %v6323
        %v6708 = vmul.f32 %v6547, %v6324
        %v6709 = vmul.f32 %v6552, %v6325
        %v6710 = vmul.f32 %v6557, %v6326
        %v6711 = vmul.f32 %v6562, %v6327
        %v6712 = vmul.f32 %v6567, %v6328
        %v6713 = vmul.f32 %v6572, %v6329
        %v6714 = vmul.f32 %v6577, %v6330
        %v6715 = vmul.f32 %v6582, %v6331
        %v6716 = vmul.f32 %v6587, %v6332
        %v6717 = vmul.f32 %v6592, %v6333
        %v6718 = vmul.f32 %v6597, %v6334
        %v6719 = vmul.f32 %v6602, %v6335
        %v6720 = vmul.f32 %v6607, %v6336
        %v6721 = vmul.f32 %v6612, %v6337
        %v6722 = vmul.f32 %v6617, %v6338
        %v6723 = vmul.f32 %v6622, %v6339
        %v6724 = vmul.f32 %v6627, %v6340
        %v6725 = vmul.f32 %v6632, %v6341
        %v6726 = vmul.f32 %v6637, %v6342
        %v6727 = vmul.f32 %v6642, %v6343
        %v6728 = vmul.f32 %v6647, %v6344
        %v6729 = vmul.f32 %v6652, %v6345
        %v6730 = vmul.f32 %v6657, %v6346
        %v6731 = vmul.f32 %v6662, %v6347
        %v6732 = vmul.f32 %v6667, %v6348
        %6741 = vmatprep.subr.bf16.mxu0 0
        %6742 = vmatpush1.bf16.msra.mxu0 %v4265
        %6743 = vmatprep.subr.bf16.mxu0 0
        %6744 = vmatpush1.bf16.msra.mxu0 %v4266
        %6745 = vmatprep.subr.bf16.mxu0 0
        %6746 = vmatpush1.bf16.msra.mxu0 %v4267
        %6747 = vmatprep.subr.bf16.mxu0 0
        %6748 = vmatpush1.bf16.msra.mxu0 %v4268
        %6749 = vmatprep.subr.bf16.mxu0 0
        %6750 = vmatpush1.bf16.msra.mxu0 %v4269
        %6751 = vmatprep.subr.bf16.mxu0 0
        %6752 = vmatpush1.bf16.msra.mxu0 %v4270
        %6753 = vmatprep.subr.bf16.mxu0 0
        %6754 = vmatpush1.bf16.msra.mxu0 %v4271
        %6755 = vmatprep.subr.bf16.mxu0 0
        %6756 = vmatpush1.bf16.msra.mxu0 %v4272
        %6757 = vmatprep.subr.bf16.mxu0 0
        %6758 = vmatpush1.bf16.msra.mxu0 0
        %6759 = vmatprep.subr.bf16.mxu0 0
        %6760 = vmatpush1.bf16.msra.mxu0 0
        %6761 = vmatprep.subr.bf16.mxu0 0
        %6762 = vmatpush1.bf16.msra.mxu0 0
        %6763 = vmatprep.subr.bf16.mxu0 0
        %6764 = vmatpush1.bf16.msra.mxu0 0
        %6765 = vmatprep.subr.bf16.mxu0 0
        %6766 = vmatpush1.bf16.msra.mxu0 0
        %6767 = vmatprep.subr.bf16.mxu0 0
        %6768 = vmatpush1.bf16.msra.mxu0 0
        %6769 = vmatprep.subr.bf16.mxu0 0
        %6770 = vmatpush1.bf16.msra.mxu0 0
        %6771 = vmatprep.subr.bf16.mxu0 0
        %6772 = vmatpush1.bf16.msra.mxu0 0
        %6773 = vmatprep.mubr.bf16.mxu0 0
        %6774 = vmatmul.mubr.bf16.gmra.mrb[0].mxu0 %v5743
        %v6775 = vpop.f32.mrb[0].mxu0
        %v6776 = vadd.f32 0.0, %v6775
        %v6777 = vpop.f32.mrb[0].mxu0
        %v6778 = vpop.f32.mrb[0].mxu0
        %v6779 = vadd.f32 0.0, %v6778
        %v6780 = vpop.f32.mrb[0].mxu0
        %6781 = vmatprep.mubr.bf16.mxu0 0
        %6782 = vmatmul.mubr.bf16.gmra.mrb[0].mxu0 %v5746
        %v6783 = vpop.f32.mrb[0].mxu0
        %v6784 = vadd.f32 0.0, %v6783
        %v6785 = vpop.f32.mrb[0].mxu0
        %v6786 = vpop.f32.mrb[0].mxu0
        %v6787 = vadd.f32 0.0, %v6786
        %v6788 = vpop.f32.mrb[0].mxu0
        %6789 = vmatprep.mubr.bf16.mxu0 0
        %6790 = vmatmul.mubr.bf16.gmra.mrb[0].mxu0 %v5749
        %v6791 = vpop.f32.mrb[0].mxu0
        %v6792 = vadd.f32 0.0, %v6791
        %v6793 = vpop.f32.mrb[0].mxu0
        %v6794 = vpop.f32.mrb[0].mxu0
        %v6795 = vadd.f32 0.0, %v6794
        %v6796 = vpop.f32.mrb[0].mxu0
        %6797 = vmatprep.mubr.bf16.mxu0 0
        %6798 = vmatmul.mubr.bf16.gmra.mrb[0].mxu0 %v5752
        %v6799 = vpop.f32.mrb[0].mxu0
        %v6800 = vadd.f32 0.0, %v6799
        %v6801 = vpop.f32.mrb[0].mxu0
        %v6802 = vpop.f32.mrb[0].mxu0
        %v6803 = vadd.f32 0.0, %v6802
        %v6804 = vpop.f32.mrb[0].mxu0
        %6805 = vmatprep.mubr.bf16.mxu0 0
        %6806 = vmatmul.mubr.bf16.gmra.mrb[0].mxu0 %v5755
        %v6807 = vpop.f32.mrb[0].mxu0
        %v6808 = vadd.f32 0.0, %v6807
        %v6809 = vpop.f32.mrb[0].mxu0
        %v6810 = vpop.f32.mrb[0].mxu0
        %v6811 = vadd.f32 0.0, %v6810
        %v6812 = vpop.f32.mrb[0].mxu0
        %6813 = vmatprep.mubr.bf16.mxu0 0
        %6814 = vmatmul.mubr.bf16.gmra.mrb[0].mxu0 %v5758
        %v6815 = vpop.f32.mrb[0].mxu0
        %v6816 = vadd.f32 0.0, %v6815
        %v6817 = vpop.f32.mrb[0].mxu0
        %v6818 = vpop.f32.mrb[0].mxu0
        %v6819 = vadd.f32 0.0, %v6818
        %v6820 = vpop.f32.mrb[0].mxu0
        %6821 = vmatprep.mubr.bf16.mxu0 0
        %6822 = vmatmul.mubr.bf16.gmra.mrb[0].mxu0 %v5761
        %v6823 = vpop.f32.mrb[0].mxu0
        %v6824 = vadd.f32 0.0, %v6823
        %v6825 = vpop.f32.mrb[0].mxu0
        %v6826 = vpop.f32.mrb[0].mxu0
        %v6827 = vadd.f32 0.0, %v6826
        %v6828 = vpop.f32.mrb[0].mxu0
        %6829 = vmatprep.mubr.bf16.mxu0 0
        %6830 = vmatmul.mubr.bf16.gmra.mrb[0].mxu0 %v5764
        %v6831 = vpop.f32.mrb[0].mxu0
        %v6832 = vadd.f32 0.0, %v6831
        %v6833 = vpop.f32.mrb[0].mxu0
        %v6834 = vpop.f32.mrb[0].mxu0
        %v6835 = vadd.f32 0.0, %v6834
        %v6836 = vpop.f32.mrb[0].mxu0
        %6837 = vdwg.mxu0
        %6846 = vmatprep.subr.bf16.mxu0 0
        %6847 = vmatpush1.bf16.msra.mxu0 %v4426
        %6848 = vmatprep.subr.bf16.mxu0 0
        %6849 = vmatpush1.bf16.msra.mxu0 %v4427
        %6850 = vmatprep.subr.bf16.mxu0 0
        %6851 = vmatpush1.bf16.msra.mxu0 %v4428
        %6852 = vmatprep.subr.bf16.mxu0 0
        %6853 = vmatpush1.bf16.msra.mxu0 %v4429
        %6854 = vmatprep.subr.bf16.mxu0 0
        %6855 = vmatpush1.bf16.msra.mxu0 %v4430
        %6856 = vmatprep.subr.bf16.mxu0 0
        %6857 = vmatpush1.bf16.msra.mxu0 %v4431
        %6858 = vmatprep.subr.bf16.mxu0 0
        %6859 = vmatpush1.bf16.msra.mxu0 %v4432
        %6860 = vmatprep.subr.bf16.mxu0 0
        %6861 = vmatpush1.bf16.msra.mxu0 %v4433
        %6862 = vmatprep.subr.bf16.mxu0 0
        %6863 = vmatpush1.bf16.msra.mxu0 0
        %6864 = vmatprep.subr.bf16.mxu0 0
        %6865 = vmatpush1.bf16.msra.mxu0 0
        %6866 = vmatprep.subr.bf16.mxu0 0
        %6867 = vmatpush1.bf16.msra.mxu0 0
        %6868 = vmatprep.subr.bf16.mxu0 0
        %6869 = vmatpush1.bf16.msra.mxu0 0
        %6870 = vmatprep.subr.bf16.mxu0 0
        %6871 = vmatpush1.bf16.msra.mxu0 0
        %6872 = vmatprep.subr.bf16.mxu0 0
        %6873 = vmatpush1.bf16.msra.mxu0 0
        %6874 = vmatprep.subr.bf16.mxu0 0
        %6875 = vmatpush1.bf16.msra.mxu0 0
        %6876 = vmatprep.subr.bf16.mxu0 0
        %6877 = vmatpush1.bf16.msra.mxu0 0
        %6878 = vmatprep.mubr.bf16.mxu0 0
        %6879 = vmatmul.mubr.bf16.gmra.mrb[0].mxu0 %v5767
        %v6880 = vpop.f32.mrb[0].mxu0
        %v6881 = vadd.f32 0.0, %v6880
        %v6882 = vpop.f32.mrb[0].mxu0
        %v6883 = vpop.f32.mrb[0].mxu0
        %v6884 = vadd.f32 0.0, %v6883
        %v6885 = vpop.f32.mrb[0].mxu0
        %6886 = vmatprep.mubr.bf16.mxu0 0
        %6887 = vmatmul.mubr.bf16.gmra.mrb[0].mxu0 %v5770
        %v6888 = vpop.f32.mrb[0].mxu0
        %v6889 = vadd.f32 0.0, %v6888
        %v6890 = vpop.f32.mrb[0].mxu0
        %v6891 = vpop.f32.mrb[0].mxu0
        %v6892 = vadd.f32 0.0, %v6891
        %v6893 = vpop.f32.mrb[0].mxu0
        %6894 = vmatprep.mubr.bf16.mxu0 0
        %6895 = vmatmul.mubr.bf16.gmra.mrb[0].mxu0 %v5773
        %v6896 = vpop.f32.mrb[0].mxu0
        %v6897 = vadd.f32 0.0, %v6896
        %v6898 = vpop.f32.mrb[0].mxu0
        %v6899 = vpop.f32.mrb[0].mxu0
        %v6900 = vadd.f32 0.0, %v6899
        %v6901 = vpop.f32.mrb[0].mxu0
        %6902 = vmatprep.mubr.bf16.mxu0 0
        %6903 = vmatmul.mubr.bf16.gmra.mrb[0].mxu0 %v5776
        %v6904 = vpop.f32.mrb[0].mxu0
        %v6905 = vadd.f32 0.0, %v6904
        %v6906 = vpop.f32.mrb[0].mxu0
        %v6907 = vpop.f32.mrb[0].mxu0
        %v6908 = vadd.f32 0.0, %v6907
        %v6909 = vpop.f32.mrb[0].mxu0
        %6910 = vmatprep.mubr.bf16.mxu0 0
        %6911 = vmatmul.mubr.bf16.gmra.mrb[0].mxu0 %v5779
        %v6912 = vpop.f32.mrb[0].mxu0
        %v6913 = vadd.f32 0.0, %v6912
        %v6914 = vpop.f32.mrb[0].mxu0
        %v6915 = vpop.f32.mrb[0].mxu0
        %v6916 = vadd.f32 0.0, %v6915
        %v6917 = vpop.f32.mrb[0].mxu0
        %6918 = vmatprep.mubr.bf16.mxu0 0
        %6919 = vmatmul.mubr.bf16.gmra.mrb[0].mxu0 %v5782
        %v6920 = vpop.f32.mrb[0].mxu0
        %v6921 = vadd.f32 0.0, %v6920
        %v6922 = vpop.f32.mrb[0].mxu0
        %v6923 = vpop.f32.mrb[0].mxu0
        %v6924 = vadd.f32 0.0, %v6923
        %v6925 = vpop.f32.mrb[0].mxu0
        %6926 = vmatprep.mubr.bf16.mxu0 0
        %6927 = vmatmul.mubr.bf16.gmra.mrb[0].mxu0 %v5785
        %v6928 = vpop.f32.mrb[0].mxu0
        %v6929 = vadd.f32 0.0, %v6928
        %v6930 = vpop.f32.mrb[0].mxu0
        %v6931 = vpop.f32.mrb[0].mxu0
        %v6932 = vadd.f32 0.0, %v6931
        %v6933 = vpop.f32.mrb[0].mxu0
        %6934 = vmatprep.mubr.bf16.mxu0 0
        %6935 = vmatmul.mubr.bf16.gmra.mrb[0].mxu0 %v5788
        %v6936 = vpop.f32.mrb[0].mxu0
        %v6937 = vadd.f32 0.0, %v6936
        %v6938 = vpop.f32.mrb[0].mxu0
        %v6939 = vpop.f32.mrb[0].mxu0
        %v6940 = vadd.f32 0.0, %v6939
        %v6941 = vpop.f32.mrb[0].mxu0
        %6942 = vdwg.mxu0
        %6951 = vmatprep.subr.bf16.mxu0 0
        %6952 = vmatpush1.bf16.msra.mxu0 %v4587
        %6953 = vmatprep.subr.bf16.mxu0 0
        %6954 = vmatpush1.bf16.msra.mxu0 %v4588
        %6955 = vmatprep.subr.bf16.mxu0 0
        %6956 = vmatpush1.bf16.msra.mxu0 %v4589
        %6957 = vmatprep.subr.bf16.mxu0 0
        %6958 = vmatpush1.bf16.msra.mxu0 %v4590
        %6959 = vmatprep.subr.bf16.mxu0 0
        %6960 = vmatpush1.bf16.msra.mxu0 %v4591
        %6961 = vmatprep.subr.bf16.mxu0 0
        %6962 = vmatpush1.bf16.msra.mxu0 %v4592
        %6963 = vmatprep.subr.bf16.mxu0 0
        %6964 = vmatpush1.bf16.msra.mxu0 %v4593
        %6965 = vmatprep.subr.bf16.mxu0 0
        %6966 = vmatpush1.bf16.msra.mxu0 %v4594
        %6967 = vmatprep.subr.bf16.mxu0 0
        %6968 = vmatpush1.bf16.msra.mxu0 0
        %6969 = vmatprep.subr.bf16.mxu0 0
        %6970 = vmatpush1.bf16.msra.mxu0 0
        %6971 = vmatprep.subr.bf16.mxu0 0
        %6972 = vmatpush1.bf16.msra.mxu0 0
        %6973 = vmatprep.subr.bf16.mxu0 0
        %6974 = vmatpush1.bf16.msra.mxu0 0
        %6975 = vmatprep.subr.bf16.mxu0 0
        %6976 = vmatpush1.bf16.msra.mxu0 0
        %6977 = vmatprep.subr.bf16.mxu0 0
        %6978 = vmatpush1.bf16.msra.mxu0 0
        %6979 = vmatprep.subr.bf16.mxu0 0
        %6980 = vmatpush1.bf16.msra.mxu0 0
        %6981 = vmatprep.subr.bf16.mxu0 0
        %6982 = vmatpush1.bf16.msra.mxu0 0
        %6983 = vmatprep.mubr.bf16.mxu0 0
        %6984 = vmatmul.mubr.bf16.gmra.mrb[0].mxu0 %v5791
        %v6985 = vpop.f32.mrb[0].mxu0
        %v6986 = vadd.f32 0.0, %v6985
        %v6987 = vpop.f32.mrb[0].mxu0
        %v6988 = vpop.f32.mrb[0].mxu0
        %v6989 = vadd.f32 0.0, %v6988
        %v6990 = vpop.f32.mrb[0].mxu0
        %6991 = vmatprep.mubr.bf16.mxu0 0
        %6992 = vmatmul.mubr.bf16.gmra.mrb[0].mxu0 %v5794
        %v6993 = vpop.f32.mrb[0].mxu0
        %v6994 = vadd.f32 0.0, %v6993
        %v6995 = vpop.f32.mrb[0].mxu0
        %v6996 = vpop.f32.mrb[0].mxu0
        %v6997 = vadd.f32 0.0, %v6996
        %v6998 = vpop.f32.mrb[0].mxu0
        %6999 = vmatprep.mubr.bf16.mxu0 0
        %7000 = vmatmul.mubr.bf16.gmra.mrb[0].mxu0 %v5797
        %v7001 = vpop.f32.mrb[0].mxu0
        %v7002 = vadd.f32 0.0, %v7001
        %v7003 = vpop.f32.mrb[0].mxu0
        %v7004 = vpop.f32.mrb[0].mxu0
        %v7005 = vadd.f32 0.0, %v7004
        %v7006 = vpop.f32.mrb[0].mxu0
        %7007 = vmatprep.mubr.bf16.mxu0 0
        %7008 = vmatmul.mubr.bf16.gmra.mrb[0].mxu0 %v5800
        %v7009 = vpop.f32.mrb[0].mxu0
        %v7010 = vadd.f32 0.0, %v7009
        %v7011 = vpop.f32.mrb[0].mxu0
        %v7012 = vpop.f32.mrb[0].mxu0
        %v7013 = vadd.f32 0.0, %v7012
        %v7014 = vpop.f32.mrb[0].mxu0
        %7015 = vmatprep.mubr.bf16.mxu0 0
        %7016 = vmatmul.mubr.bf16.gmra.mrb[0].mxu0 %v5803
        %v7017 = vpop.f32.mrb[0].mxu0
        %v7018 = vadd.f32 0.0, %v7017
        %v7019 = vpop.f32.mrb[0].mxu0
        %v7020 = vpop.f32.mrb[0].mxu0
        %v7021 = vadd.f32 0.0, %v7020
        %v7022 = vpop.f32.mrb[0].mxu0
        %7023 = vmatprep.mubr.bf16.mxu0 0
        %7024 = vmatmul.mubr.bf16.gmra.mrb[0].mxu0 %v5806
        %v7025 = vpop.f32.mrb[0].mxu0
        %v7026 = vadd.f32 0.0, %v7025
        %v7027 = vpop.f32.mrb[0].mxu0
        %v7028 = vpop.f32.mrb[0].mxu0
        %v7029 = vadd.f32 0.0, %v7028
        %v7030 = vpop.f32.mrb[0].mxu0
        %7031 = vmatprep.mubr.bf16.mxu0 0
        %7032 = vmatmul.mubr.bf16.gmra.mrb[0].mxu0 %v5809
        %v7033 = vpop.f32.mrb[0].mxu0
        %v7034 = vadd.f32 0.0, %v7033
        %v7035 = vpop.f32.mrb[0].mxu0
        %v7036 = vpop.f32.mrb[0].mxu0
        %v7037 = vadd.f32 0.0, %v7036
        %v7038 = vpop.f32.mrb[0].mxu0
        %7039 = vmatprep.mubr.bf16.mxu0 0
        %7040 = vmatmul.mubr.bf16.gmra.mrb[0].mxu0 %v5812
        %v7041 = vpop.f32.mrb[0].mxu0
        %v7042 = vadd.f32 0.0, %v7041
        %v7043 = vpop.f32.mrb[0].mxu0
        %v7044 = vpop.f32.mrb[0].mxu0
        %v7045 = vadd.f32 0.0, %v7044
        %v7046 = vpop.f32.mrb[0].mxu0
        %7047 = vdwg.mxu0
        %7056 = vmatprep.subr.bf16.mxu0 0
        %7057 = vmatpush1.bf16.msra.mxu0 %v4748
        %7058 = vmatprep.subr.bf16.mxu0 0
        %7059 = vmatpush1.bf16.msra.mxu0 %v4749
        %7060 = vmatprep.subr.bf16.mxu0 0
        %7061 = vmatpush1.bf16.msra.mxu0 %v4750
        %7062 = vmatprep.subr.bf16.mxu0 0
        %7063 = vmatpush1.bf16.msra.mxu0 %v4751
        %7064 = vmatprep.subr.bf16.mxu0 0
        %7065 = vmatpush1.bf16.msra.mxu0 %v4752
        %7066 = vmatprep.subr.bf16.mxu0 0
        %7067 = vmatpush1.bf16.msra.mxu0 %v4753
        %7068 = vmatprep.subr.bf16.mxu0 0
        %7069 = vmatpush1.bf16.msra.mxu0 %v4754
        %7070 = vmatprep.subr.bf16.mxu0 0
        %7071 = vmatpush1.bf16.msra.mxu0 %v4755
        %7072 = vmatprep.subr.bf16.mxu0 0
        %7073 = vmatpush1.bf16.msra.mxu0 0
        %7074 = vmatprep.subr.bf16.mxu0 0
        %7075 = vmatpush1.bf16.msra.mxu0 0
        %7076 = vmatprep.subr.bf16.mxu0 0
        %7077 = vmatpush1.bf16.msra.mxu0 0
        %7078 = vmatprep.subr.bf16.mxu0 0
        %7079 = vmatpush1.bf16.msra.mxu0 0
        %7080 = vmatprep.subr.bf16.mxu0 0
        %7081 = vmatpush1.bf16.msra.mxu0 0
        %7082 = vmatprep.subr.bf16.mxu0 0
        %7083 = vmatpush1.bf16.msra.mxu0 0
        %7084 = vmatprep.subr.bf16.mxu0 0
        %7085 = vmatpush1.bf16.msra.mxu0 0
        %7086 = vmatprep.subr.bf16.mxu0 0
        %7087 = vmatpush1.bf16.msra.mxu0 0
        %7088 = vmatprep.mubr.bf16.mxu0 0
        %7089 = vmatmul.mubr.bf16.gmra.mrb[0].mxu0 %v5815
        %v7090 = vpop.f32.mrb[0].mxu0
        %v7091 = vadd.f32 0.0, %v7090
        %v7092 = vpop.f32.mrb[0].mxu0
        %v7093 = vpop.f32.mrb[0].mxu0
        %v7094 = vadd.f32 0.0, %v7093
        %v7095 = vpop.f32.mrb[0].mxu0
        %7096 = vmatprep.mubr.bf16.mxu0 0
        %7097 = vmatmul.mubr.bf16.gmra.mrb[0].mxu0 %v5818
        %v7098 = vpop.f32.mrb[0].mxu0
        %v7099 = vadd.f32 0.0, %v7098
        %v7100 = vpop.f32.mrb[0].mxu0
        %v7101 = vpop.f32.mrb[0].mxu0
        %v7102 = vadd.f32 0.0, %v7101
        %v7103 = vpop.f32.mrb[0].mxu0
        %7104 = vmatprep.mubr.bf16.mxu0 0
        %7105 = vmatmul.mubr.bf16.gmra.mrb[0].mxu0 %v5821
        %v7106 = vpop.f32.mrb[0].mxu0
        %v7107 = vadd.f32 0.0, %v7106
        %v7108 = vpop.f32.mrb[0].mxu0
        %v7109 = vpop.f32.mrb[0].mxu0
        %v7110 = vadd.f32 0.0, %v7109
        %v7111 = vpop.f32.mrb[0].mxu0
        %7112 = vmatprep.mubr.bf16.mxu0 0
        %7113 = vmatmul.mubr.bf16.gmra.mrb[0].mxu0 %v5824
        %v7114 = vpop.f32.mrb[0].mxu0
        %v7115 = vadd.f32 0.0, %v7114
        %v7116 = vpop.f32.mrb[0].mxu0
        %v7117 = vpop.f32.mrb[0].mxu0
        %v7118 = vadd.f32 0.0, %v7117
        %v7119 = vpop.f32.mrb[0].mxu0
        %7120 = vmatprep.mubr.bf16.mxu0 0
        %7121 = vmatmul.mubr.bf16.gmra.mrb[0].mxu0 %v5827
        %v7122 = vpop.f32.mrb[0].mxu0
        %v7123 = vadd.f32 0.0, %v7122
        %v7124 = vpop.f32.mrb[0].mxu0
        %v7125 = vpop.f32.mrb[0].mxu0
        %v7126 = vadd.f32 0.0, %v7125
        %v7127 = vpop.f32.mrb[0].mxu0
        %7128 = vmatprep.mubr.bf16.mxu0 0
        %7129 = vmatmul.mubr.bf16.gmra.mrb[0].mxu0 %v5830
        %v7130 = vpop.f32.mrb[0].mxu0
        %v7131 = vadd.f32 0.0, %v7130
        %v7132 = vpop.f32.mrb[0].mxu0
        %v7133 = vpop.f32.mrb[0].mxu0
        %v7134 = vadd.f32 0.0, %v7133
        %v7135 = vpop.f32.mrb[0].mxu0
        %7136 = vmatprep.mubr.bf16.mxu0 0
        %7137 = vmatmul.mubr.bf16.gmra.mrb[0].mxu0 %v5833
        %v7138 = vpop.f32.mrb[0].mxu0
        %v7139 = vadd.f32 0.0, %v7138
        %v7140 = vpop.f32.mrb[0].mxu0
        %v7141 = vpop.f32.mrb[0].mxu0
        %v7142 = vadd.f32 0.0, %v7141
        %v7143 = vpop.f32.mrb[0].mxu0
        %7144 = vmatprep.mubr.bf16.mxu0 0
        %7145 = vmatmul.mubr.bf16.gmra.mrb[0].mxu0 %v5836
        %v7146 = vpop.f32.mrb[0].mxu0
        %v7147 = vadd.f32 0.0, %v7146
        %v7148 = vpop.f32.mrb[0].mxu0
        %v7149 = vpop.f32.mrb[0].mxu0
        %v7150 = vadd.f32 0.0, %v7149
        %v7151 = vpop.f32.mrb[0].mxu0
        %7152 = vdwg.mxu0
        %v7153 = vadd.f32 %v6669, %v6776
        %v7154 = vadd.f32 %v6670, %v6779
        %v7155 = vadd.f32 %v6671, %v6784
        %v7156 = vadd.f32 %v6672, %v6787
        %v7157 = vadd.f32 %v6673, %v6792
        %v7158 = vadd.f32 %v6674, %v6795
        %v7159 = vadd.f32 %v6675, %v6800
        %v7160 = vadd.f32 %v6676, %v6803
        %v7161 = vadd.f32 %v6677, %v6808
        %v7162 = vadd.f32 %v6678, %v6811
        %v7163 = vadd.f32 %v6679, %v6816
        %v7164 = vadd.f32 %v6680, %v6819
        %v7165 = vadd.f32 %v6681, %v6824
        %v7166 = vadd.f32 %v6682, %v6827
        %v7167 = vadd.f32 %v6683, %v6832
        %v7168 = vadd.f32 %v6684, %v6835
        %v7169 = vadd.f32 %v6685, %v6881
        %v7170 = vadd.f32 %v6686, %v6884
        %v7171 = vadd.f32 %v6687, %v6889
        %v7172 = vadd.f32 %v6688, %v6892
        %v7173 = vadd.f32 %v6689, %v6897
        %v7174 = vadd.f32 %v6690, %v6900
        %v7175 = vadd.f32 %v6691, %v6905
        %v7176 = vadd.f32 %v6692, %v6908
        %v7177 = vadd.f32 %v6693, %v6913
        %v7178 = vadd.f32 %v6694, %v6916
        %v7179 = vadd.f32 %v6695, %v6921
        %v7180 = vadd.f32 %v6696, %v6924
        %v7181 = vadd.f32 %v6697, %v6929
        %v7182 = vadd.f32 %v6698, %v6932
        %v7183 = vadd.f32 %v6699, %v6937
        %v7184 = vadd.f32 %v6700, %v6940
        %v7185 = vadd.f32 %v6701, %v6986
        %v7186 = vadd.f32 %v6702, %v6989
        %v7187 = vadd.f32 %v6703, %v6994
        %v7188 = vadd.f32 %v6704, %v6997
        %v7189 = vadd.f32 %v6705, %v7002
        %v7190 = vadd.f32 %v6706, %v7005
        %v7191 = vadd.f32 %v6707, %v7010
        %v7192 = vadd.f32 %v6708, %v7013
        %v7193 = vadd.f32 %v6709, %v7018
        %v7194 = vadd.f32 %v6710, %v7021
        %v7195 = vadd.f32 %v6711, %v7026
        %v7196 = vadd.f32 %v6712, %v7029
        %v7197 = vadd.f32 %v6713, %v7034
        %v7198 = vadd.f32 %v6714, %v7037
        %v7199 = vadd.f32 %v6715, %v7042
        %v7200 = vadd.f32 %v6716, %v7045
        %v7201 = vadd.f32 %v6717, %v7091
        %v7202 = vadd.f32 %v6718, %v7094
        %v7203 = vadd.f32 %v6719, %v7099
        %v7204 = vadd.f32 %v6720, %v7102
        %v7205 = vadd.f32 %v6721, %v7107
        %v7206 = vadd.f32 %v6722, %v7110
        %v7207 = vadd.f32 %v6723, %v7115
        %v7208 = vadd.f32 %v6724, %v7118
        %v7209 = vadd.f32 %v6725, %v7123
        %v7210 = vadd.f32 %v6726, %v7126
        %v7211 = vadd.f32 %v6727, %v7131
        %v7212 = vadd.f32 %v6728, %v7134
        %v7213 = vadd.f32 %v6729, %v7139
        %v7214 = vadd.f32 %v6730, %v7142
        %v7215 = vadd.f32 %v6731, %v7147
        %v7216 = vadd.f32 %v6732, %v7150
        %7217 = vst.msk [vmem:[#allocation4] sm:$0xff] %vm879, %v7153
        %7218 = vst.msk [vmem:[#allocation4 + $0x8] sm:$0xff] %vm879, %v7154
        %7219 = vst.msk [vmem:[#allocation4 + $0x10] sm:$0xff] %vm879, %v7155
        %7220 = vst.msk [vmem:[#allocation4 + $0x18] sm:$0xff] %vm879, %v7156
        %7221 = vst.msk [vmem:[#allocation4 + $0x20] sm:$0xff] %vm879, %v7157
        %7222 = vst.msk [vmem:[#allocation4 + $0x28] sm:$0xff] %vm879, %v7158
        %7223 = vst.msk [vmem:[#allocation4 + $0x30] sm:$0xff] %vm879, %v7159
        %7224 = vst.msk [vmem:[#allocation4 + $0x38] sm:$0xff] %vm879, %v7160
        %7225 = vst.msk [vmem:[#allocation4 + $0x40] sm:$0xff] %vm879, %v7161
        %7226 = vst.msk [vmem:[#allocation4 + $0x48] sm:$0xff] %vm879, %v7162
        %7227 = vst.msk [vmem:[#allocation4 + $0x50] sm:$0xff] %vm879, %v7163
        %7228 = vst.msk [vmem:[#allocation4 + $0x58] sm:$0xff] %vm879, %v7164
        %7229 = vst.msk [vmem:[#allocation4 + $0x60] sm:$0xff] %vm879, %v7165
        %7230 = vst.msk [vmem:[#allocation4 + $0x68] sm:$0xff] %vm879, %v7166
        %7231 = vst.msk [vmem:[#allocation4 + $0x70] sm:$0xff] %vm879, %v7167
        %7232 = vst.msk [vmem:[#allocation4 + $0x78] sm:$0xff] %vm879, %v7168
        %7233 = vst.msk [vmem:[#allocation4 + $0x80] sm:$0xff] %vm879, %v7169
        %7234 = vst.msk [vmem:[#allocation4 + $0x88] sm:$0xff] %vm879, %v7170
        %7235 = vst.msk [vmem:[#allocation4 + $0x90] sm:$0xff] %vm879, %v7171
        %7236 = vst.msk [vmem:[#allocation4 + $0x98] sm:$0xff] %vm879, %v7172
        %7237 = vst.msk [vmem:[#allocation4 + $0xa0] sm:$0xff] %vm879, %v7173
        %7238 = vst.msk [vmem:[#allocation4 + $0xa8] sm:$0xff] %vm879, %v7174
        %7239 = vst.msk [vmem:[#allocation4 + $0xb0] sm:$0xff] %vm879, %v7175
        %7240 = vst.msk [vmem:[#allocation4 + $0xb8] sm:$0xff] %vm879, %v7176
        %7241 = vst.msk [vmem:[#allocation4 + $0xc0] sm:$0xff] %vm879, %v7177
        %7242 = vst.msk [vmem:[#allocation4 + $0xc8] sm:$0xff] %vm879, %v7178
        %7243 = vst.msk [vmem:[#allocation4 + $0xd0] sm:$0xff] %vm879, %v7179
        %7244 = vst.msk [vmem:[#allocation4 + $0xd8] sm:$0xff] %vm879, %v7180
        %7245 = vst.msk [vmem:[#allocation4 + $0xe0] sm:$0xff] %vm879, %v7181
        %7246 = vst.msk [vmem:[#allocation4 + $0xe8] sm:$0xff] %vm879, %v7182
        %7247 = vst.msk [vmem:[#allocation4 + $0xf0] sm:$0xff] %vm879, %v7183
        %7248 = vst.msk [vmem:[#allocation4 + $0xf8] sm:$0xff] %vm879, %v7184
        %7249 = vst.msk [vmem:[#allocation4 + $0x100] sm:$0xff] %vm879, %v7185
        %7250 = vst.msk [vmem:[#allocation4 + $0x108] sm:$0xff] %vm879, %v7186
        %7251 = vst.msk [vmem:[#allocation4 + $0x110] sm:$0xff] %vm879, %v7187
        %7252 = vst.msk [vmem:[#allocation4 + $0x118] sm:$0xff] %vm879, %v7188
        %7253 = vst.msk [vmem:[#allocation4 + $0x120] sm:$0xff] %vm879, %v7189
        %7254 = vst.msk [vmem:[#allocation4 + $0x128] sm:$0xff] %vm879, %v7190
        %7255 = vst.msk [vmem:[#allocation4 + $0x130] sm:$0xff] %vm879, %v7191
        %7256 = vst.msk [vmem:[#allocation4 + $0x138] sm:$0xff] %vm879, %v7192
        %7257 = vst.msk [vmem:[#allocation4 + $0x140] sm:$0xff] %vm879, %v7193
        %7258 = vst.msk [vmem:[#allocation4 + $0x148] sm:$0xff] %vm879, %v7194
        %7259 = vst.msk [vmem:[#allocation4 + $0x150] sm:$0xff] %vm879, %v7195
        %7260 = vst.msk [vmem:[#allocation4 + $0x158] sm:$0xff] %vm879, %v7196
        %7261 = vst.msk [vmem:[#allocation4 + $0x160] sm:$0xff] %vm879, %v7197
        %7262 = vst.msk [vmem:[#allocation4 + $0x168] sm:$0xff] %vm879, %v7198
        %7263 = vst.msk [vmem:[#allocation4 + $0x170] sm:$0xff] %vm879, %v7199
        %7264 = vst.msk [vmem:[#allocation4 + $0x178] sm:$0xff] %vm879, %v7200
        %7265 = vst.msk [vmem:[#allocation4 + $0x180] sm:$0xff] %vm879, %v7201
        %7266 = vst.msk [vmem:[#allocation4 + $0x188] sm:$0xff] %vm879, %v7202
        %7267 = vst.msk [vmem:[#allocation4 + $0x190] sm:$0xff] %vm879, %v7203
        %7268 = vst.msk [vmem:[#allocation4 + $0x198] sm:$0xff] %vm879, %v7204
        %7269 = vst.msk [vmem:[#allocation4 + $0x1a0] sm:$0xff] %vm879, %v7205
        %7270 = vst.msk [vmem:[#allocation4 + $0x1a8] sm:$0xff] %vm879, %v7206
        %7271 = vst.msk [vmem:[#allocation4 + $0x1b0] sm:$0xff] %vm879, %v7207
        %7272 = vst.msk [vmem:[#allocation4 + $0x1b8] sm:$0xff] %vm879, %v7208
        %7273 = vst.msk [vmem:[#allocation4 + $0x1c0] sm:$0xff] %vm879, %v7209
        %7274 = vst.msk [vmem:[#allocation4 + $0x1c8] sm:$0xff] %vm879, %v7210
        %7275 = vst.msk [vmem:[#allocation4 + $0x1d0] sm:$0xff] %vm879, %v7211
        %7276 = vst.msk [vmem:[#allocation4 + $0x1d8] sm:$0xff] %vm879, %v7212
        %7277 = vst.msk [vmem:[#allocation4 + $0x1e0] sm:$0xff] %vm879, %v7213
        %7278 = vst.msk [vmem:[#allocation4 + $0x1e8] sm:$0xff] %vm879, %v7214
        %7279 = vst.msk [vmem:[#allocation4 + $0x1f0] sm:$0xff] %vm879, %v7215
        %7280 = vst.msk [vmem:[#allocation4 + $0x1f8] sm:$0xff] %vm879, %v7216
        %7281 = vst.msk [vmem:[#allocation2] sm:$0xff] %vm3044, %v5069
        %7282 = vst.msk [vmem:[#allocation2 + $0x8] sm:$0xff] %vm3044, %v5070
        %7283 = vst.msk [vmem:[#allocation2 + $0x10] sm:$0xff] %vm3044, %v5071
        %7284 = vst.msk [vmem:[#allocation2 + $0x18] sm:$0xff] %vm3044, %v5072
        %7285 = vst.msk [vmem:[#allocation2 + $0x20] sm:$0xff] %vm3044, %v5073
        %7286 = vst.msk [vmem:[#allocation2 + $0x28] sm:$0xff] %vm3044, %v5074
        %7287 = vst.msk [vmem:[#allocation2 + $0x30] sm:$0xff] %vm3044, %v5075
        %7288 = vst.msk [vmem:[#allocation2 + $0x38] sm:$0xff] %vm3044, %v5076
        %7289 = vst.msk [vmem:[#allocation2 + $0x40] sm:$0xff] %vm3044, %v5077
        %7290 = vst.msk [vmem:[#allocation2 + $0x48] sm:$0xff] %vm3044, %v5078
        %7291 = vst.msk [vmem:[#allocation2 + $0x50] sm:$0xff] %vm3044, %v5079
        %7292 = vst.msk [vmem:[#allocation2 + $0x58] sm:$0xff] %vm3044, %v5080
        %7293 = vst.msk [vmem:[#allocation2 + $0x60] sm:$0xff] %vm3044, %v5081
        %7294 = vst.msk [vmem:[#allocation2 + $0x68] sm:$0xff] %vm3044, %v5082
        %7295 = vst.msk [vmem:[#allocation2 + $0x70] sm:$0xff] %vm3044, %v5083
        %7296 = vst.msk [vmem:[#allocation2 + $0x78] sm:$0xff] %vm3044, %v5084
        %7297 = vst.msk [vmem:[#allocation2 + $0x80] sm:$0xff] %vm3044, %v5085
        %7298 = vst.msk [vmem:[#allocation2 + $0x88] sm:$0xff] %vm3044, %v5086
        %7299 = vst.msk [vmem:[#allocation2 + $0x90] sm:$0xff] %vm3044, %v5087
        %7300 = vst.msk [vmem:[#allocation2 + $0x98] sm:$0xff] %vm3044, %v5088
        %7301 = vst.msk [vmem:[#allocation2 + $0xa0] sm:$0xff] %vm3044, %v5089
        %7302 = vst.msk [vmem:[#allocation2 + $0xa8] sm:$0xff] %vm3044, %v5090
        %7303 = vst.msk [vmem:[#allocation2 + $0xb0] sm:$0xff] %vm3044, %v5091
        %7304 = vst.msk [vmem:[#allocation2 + $0xb8] sm:$0xff] %vm3044, %v5092
        %7305 = vst.msk [vmem:[#allocation2 + $0xc0] sm:$0xff] %vm3044, %v5093
        %7306 = vst.msk [vmem:[#allocation2 + $0xc8] sm:$0xff] %vm3044, %v5094
        %7307 = vst.msk [vmem:[#allocation2 + $0xd0] sm:$0xff] %vm3044, %v5095
        %7308 = vst.msk [vmem:[#allocation2 + $0xd8] sm:$0xff] %vm3044, %v5096
        %7309 = vst.msk [vmem:[#allocation2 + $0xe0] sm:$0xff] %vm3044, %v5097
        %7310 = vst.msk [vmem:[#allocation2 + $0xe8] sm:$0xff] %vm3044, %v5098
        %7311 = vst.msk [vmem:[#allocation2 + $0xf0] sm:$0xff] %vm3044, %v5099
        %7312 = vst.msk [vmem:[#allocation2 + $0xf8] sm:$0xff] %vm3044, %v5100
        %7313 = vst.msk [vmem:[#allocation2 + $0x100] sm:$0xff] %vm3044, %v5101
        %7314 = vst.msk [vmem:[#allocation2 + $0x108] sm:$0xff] %vm3044, %v5102
        %7315 = vst.msk [vmem:[#allocation2 + $0x110] sm:$0xff] %vm3044, %v5103
        %7316 = vst.msk [vmem:[#allocation2 + $0x118] sm:$0xff] %vm3044, %v5104
        %7317 = vst.msk [vmem:[#allocation2 + $0x120] sm:$0xff] %vm3044, %v5105
        %7318 = vst.msk [vmem:[#allocation2 + $0x128] sm:$0xff] %vm3044, %v5106
        %7319 = vst.msk [vmem:[#allocation2 + $0x130] sm:$0xff] %vm3044, %v5107
        %7320 = vst.msk [vmem:[#allocation2 + $0x138] sm:$0xff] %vm3044, %v5108
        %7321 = vst.msk [vmem:[#allocation2 + $0x140] sm:$0xff] %vm3044, %v5109
        %7322 = vst.msk [vmem:[#allocation2 + $0x148] sm:$0xff] %vm3044, %v5110
        %7323 = vst.msk [vmem:[#allocation2 + $0x150] sm:$0xff] %vm3044, %v5111
        %7324 = vst.msk [vmem:[#allocation2 + $0x158] sm:$0xff] %vm3044, %v5112
        %7325 = vst.msk [vmem:[#allocation2 + $0x160] sm:$0xff] %vm3044, %v5113
        %7326 = vst.msk [vmem:[#allocation2 + $0x168] sm:$0xff] %vm3044, %v5114
        %7327 = vst.msk [vmem:[#allocation2 + $0x170] sm:$0xff] %vm3044, %v5115
        %7328 = vst.msk [vmem:[#allocation2 + $0x178] sm:$0xff] %vm3044, %v5116
        %7329 = vst.msk [vmem:[#allocation2 + $0x180] sm:$0xff] %vm3044, %v5117
        %7330 = vst.msk [vmem:[#allocation2 + $0x188] sm:$0xff] %vm3044, %v5118
        %7331 = vst.msk [vmem:[#allocation2 + $0x190] sm:$0xff] %vm3044, %v5119
        %7332 = vst.msk [vmem:[#allocation2 + $0x198] sm:$0xff] %vm3044, %v5120
        %7333 = vst.msk [vmem:[#allocation2 + $0x1a0] sm:$0xff] %vm3044, %v5121
        %7334 = vst.msk [vmem:[#allocation2 + $0x1a8] sm:$0xff] %vm3044, %v5122
        %7335 = vst.msk [vmem:[#allocation2 + $0x1b0] sm:$0xff] %vm3044, %v5123
        %7336 = vst.msk [vmem:[#allocation2 + $0x1b8] sm:$0xff] %vm3044, %v5124
        %7337 = vst.msk [vmem:[#allocation2 + $0x1c0] sm:$0xff] %vm3044, %v5125
        %7338 = vst.msk [vmem:[#allocation2 + $0x1c8] sm:$0xff] %vm3044, %v5126
        %7339 = vst.msk [vmem:[#allocation2 + $0x1d0] sm:$0xff] %vm3044, %v5127
        %7340 = vst.msk [vmem:[#allocation2 + $0x1d8] sm:$0xff] %vm3044, %v5128
        %7341 = vst.msk [vmem:[#allocation2 + $0x1e0] sm:$0xff] %vm3044, %v5129
        %7342 = vst.msk [vmem:[#allocation2 + $0x1e8] sm:$0xff] %vm3044, %v5130
        %7343 = vst.msk [vmem:[#allocation2 + $0x1f0] sm:$0xff] %vm3044, %v5131
        %7344 = vst.msk [vmem:[#allocation2 + $0x1f8] sm:$0xff] %vm3044, %v5132
        // Predicated region
        $region74: #{tpu_custom_call.1} parent=64 // pred_check
          %p7345 = pneg %p473
        $region75: #{tpu_custom_call.1} parent=64 // pred_check_branch
          %7347 = sbr.rel (%p7345) target = $region77
        $region76: #{tpu_custom_call.1} parent=64 // pred_region
          %v7348 = vld [vmem:[#allocation4] sm:$0xff]
          %v7349 = vld [vmem:[#allocation4 + $0x8] sm:$0xff]
          %v7350 = vld [vmem:[#allocation4 + $0x10] sm:$0xff]
          %v7351 = vld [vmem:[#allocation4 + $0x18] sm:$0xff]
          %v7352 = vld [vmem:[#allocation4 + $0x20] sm:$0xff]
          %v7353 = vld [vmem:[#allocation4 + $0x28] sm:$0xff]
          %v7354 = vld [vmem:[#allocation4 + $0x30] sm:$0xff]
          %v7355 = vld [vmem:[#allocation4 + $0x38] sm:$0xff]
          %v7356 = vld [vmem:[#allocation4 + $0x40] sm:$0xff]
          %v7357 = vld [vmem:[#allocation4 + $0x48] sm:$0xff]
          %v7358 = vld [vmem:[#allocation4 + $0x50] sm:$0xff]
          %v7359 = vld [vmem:[#allocation4 + $0x58] sm:$0xff]
          %v7360 = vld [vmem:[#allocation4 + $0x60] sm:$0xff]
          %v7361 = vld [vmem:[#allocation4 + $0x68] sm:$0xff]
          %v7362 = vld [vmem:[#allocation4 + $0x70] sm:$0xff]
          %v7363 = vld [vmem:[#allocation4 + $0x78] sm:$0xff]
          %v7364 = vld [vmem:[#allocation4 + $0x80] sm:$0xff]
          %v7365 = vld [vmem:[#allocation4 + $0x88] sm:$0xff]
          %v7366 = vld [vmem:[#allocation4 + $0x90] sm:$0xff]
          %v7367 = vld [vmem:[#allocation4 + $0x98] sm:$0xff]
          %v7368 = vld [vmem:[#allocation4 + $0xa0] sm:$0xff]
          %v7369 = vld [vmem:[#allocation4 + $0xa8] sm:$0xff]
          %v7370 = vld [vmem:[#allocation4 + $0xb0] sm:$0xff]
          %v7371 = vld [vmem:[#allocation4 + $0xb8] sm:$0xff]
          %v7372 = vld [vmem:[#allocation4 + $0xc0] sm:$0xff]
          %v7373 = vld [vmem:[#allocation4 + $0xc8] sm:$0xff]
          %v7374 = vld [vmem:[#allocation4 + $0xd0] sm:$0xff]
          %v7375 = vld [vmem:[#allocation4 + $0xd8] sm:$0xff]
          %v7376 = vld [vmem:[#allocation4 + $0xe0] sm:$0xff]
          %v7377 = vld [vmem:[#allocation4 + $0xe8] sm:$0xff]
          %v7378 = vld [vmem:[#allocation4 + $0xf0] sm:$0xff]
          %v7379 = vld [vmem:[#allocation4 + $0xf8] sm:$0xff]
          %v7380 = vld [vmem:[#allocation4 + $0x100] sm:$0xff]
          %v7381 = vld [vmem:[#allocation4 + $0x108] sm:$0xff]
          %v7382 = vld [vmem:[#allocation4 + $0x110] sm:$0xff]
          %v7383 = vld [vmem:[#allocation4 + $0x118] sm:$0xff]
          %v7384 = vld [vmem:[#allocation4 + $0x120] sm:$0xff]
          %v7385 = vld [vmem:[#allocation4 + $0x128] sm:$0xff]
          %v7386 = vld [vmem:[#allocation4 + $0x130] sm:$0xff]
          %v7387 = vld [vmem:[#allocation4 + $0x138] sm:$0xff]
          %v7388 = vld [vmem:[#allocation4 + $0x140] sm:$0xff]
          %v7389 = vld [vmem:[#allocation4 + $0x148] sm:$0xff]
          %v7390 = vld [vmem:[#allocation4 + $0x150] sm:$0xff]
          %v7391 = vld [vmem:[#allocation4 + $0x158] sm:$0xff]
          %v7392 = vld [vmem:[#allocation4 + $0x160] sm:$0xff]
          %v7393 = vld [vmem:[#allocation4 + $0x168] sm:$0xff]
          %v7394 = vld [vmem:[#allocation4 + $0x170] sm:$0xff]
          %v7395 = vld [vmem:[#allocation4 + $0x178] sm:$0xff]
          %v7396 = vld [vmem:[#allocation4 + $0x180] sm:$0xff]
          %v7397 = vld [vmem:[#allocation4 + $0x188] sm:$0xff]
          %v7398 = vld [vmem:[#allocation4 + $0x190] sm:$0xff]
          %v7399 = vld [vmem:[#allocation4 + $0x198] sm:$0xff]
          %v7400 = vld [vmem:[#allocation4 + $0x1a0] sm:$0xff]
          %v7401 = vld [vmem:[#allocation4 + $0x1a8] sm:$0xff]
          %v7402 = vld [vmem:[#allocation4 + $0x1b0] sm:$0xff]
          %v7403 = vld [vmem:[#allocation4 + $0x1b8] sm:$0xff]
          %v7404 = vld [vmem:[#allocation4 + $0x1c0] sm:$0xff]
          %v7405 = vld [vmem:[#allocation4 + $0x1c8] sm:$0xff]
          %v7406 = vld [vmem:[#allocation4 + $0x1d0] sm:$0xff]
          %v7407 = vld [vmem:[#allocation4 + $0x1d8] sm:$0xff]
          %v7408 = vld [vmem:[#allocation4 + $0x1e0] sm:$0xff]
          %v7409 = vld [vmem:[#allocation4 + $0x1e8] sm:$0xff]
          %v7410 = vld [vmem:[#allocation4 + $0x1f0] sm:$0xff]
          %v7411 = vld [vmem:[#allocation4 + $0x1f8] sm:$0xff]
          %v7412 = vld [vmem:[#allocation3] sm:$0xff]
          %v7413 = vld [vmem:[#allocation3 + $0x8] sm:$0xff]
          %v7414 = vld [vmem:[#allocation3 + $0x10] sm:$0xff]
          %v7415 = vld [vmem:[#allocation3 + $0x18] sm:$0xff]
          %v7416 = vld [vmem:[#allocation3 + $0x20] sm:$0xff]
          %v7417 = vld [vmem:[#allocation3 + $0x28] sm:$0xff]
          %v7418 = vld [vmem:[#allocation3 + $0x30] sm:$0xff]
          %v7419 = vld [vmem:[#allocation3 + $0x38] sm:$0xff]
          %v7420 = vld [vmem:[#allocation3 + $0x40] sm:$0xff]
          %v7421 = vld [vmem:[#allocation3 + $0x48] sm:$0xff]
          %v7422 = vld [vmem:[#allocation3 + $0x50] sm:$0xff]
          %v7423 = vld [vmem:[#allocation3 + $0x58] sm:$0xff]
          %v7424 = vld [vmem:[#allocation3 + $0x60] sm:$0xff]
          %v7425 = vld [vmem:[#allocation3 + $0x68] sm:$0xff]
          %v7426 = vld [vmem:[#allocation3 + $0x70] sm:$0xff]
          %v7427 = vld [vmem:[#allocation3 + $0x78] sm:$0xff]
          %v7428 = vld [vmem:[#allocation3 + $0x80] sm:$0xff]
          %v7429 = vld [vmem:[#allocation3 + $0x88] sm:$0xff]
          %v7430 = vld [vmem:[#allocation3 + $0x90] sm:$0xff]
          %v7431 = vld [vmem:[#allocation3 + $0x98] sm:$0xff]
          %v7432 = vld [vmem:[#allocation3 + $0xa0] sm:$0xff]
          %v7433 = vld [vmem:[#allocation3 + $0xa8] sm:$0xff]
          %v7434 = vld [vmem:[#allocation3 + $0xb0] sm:$0xff]
          %v7435 = vld [vmem:[#allocation3 + $0xb8] sm:$0xff]
          %v7436 = vld [vmem:[#allocation3 + $0xc0] sm:$0xff]
          %v7437 = vld [vmem:[#allocation3 + $0xc8] sm:$0xff]
          %v7438 = vld [vmem:[#allocation3 + $0xd0] sm:$0xff]
          %v7439 = vld [vmem:[#allocation3 + $0xd8] sm:$0xff]
          %v7440 = vld [vmem:[#allocation3 + $0xe0] sm:$0xff]
          %v7441 = vld [vmem:[#allocation3 + $0xe8] sm:$0xff]
          %v7442 = vld [vmem:[#allocation3 + $0xf0] sm:$0xff]
          %v7443 = vld [vmem:[#allocation3 + $0xf8] sm:$0xff]
          %v7444 = vld [vmem:[#allocation3 + $0x100] sm:$0xff]
          %v7445 = vld [vmem:[#allocation3 + $0x108] sm:$0xff]
          %v7446 = vld [vmem:[#allocation3 + $0x110] sm:$0xff]
          %v7447 = vld [vmem:[#allocation3 + $0x118] sm:$0xff]
          %v7448 = vld [vmem:[#allocation3 + $0x120] sm:$0xff]
          %v7449 = vld [vmem:[#allocation3 + $0x128] sm:$0xff]
          %v7450 = vld [vmem:[#allocation3 + $0x130] sm:$0xff]
          %v7451 = vld [vmem:[#allocation3 + $0x138] sm:$0xff]
          %v7452 = vld [vmem:[#allocation3 + $0x140] sm:$0xff]
          %v7453 = vld [vmem:[#allocation3 + $0x148] sm:$0xff]
          %v7454 = vld [vmem:[#allocation3 + $0x150] sm:$0xff]
          %v7455 = vld [vmem:[#allocation3 + $0x158] sm:$0xff]
          %v7456 = vld [vmem:[#allocation3 + $0x160] sm:$0xff]
          %v7457 = vld [vmem:[#allocation3 + $0x168] sm:$0xff]
          %v7458 = vld [vmem:[#allocation3 + $0x170] sm:$0xff]
          %v7459 = vld [vmem:[#allocation3 + $0x178] sm:$0xff]
          %v7460 = vld [vmem:[#allocation3 + $0x180] sm:$0xff]
          %v7461 = vld [vmem:[#allocation3 + $0x188] sm:$0xff]
          %v7462 = vld [vmem:[#allocation3 + $0x190] sm:$0xff]
          %v7463 = vld [vmem:[#allocation3 + $0x198] sm:$0xff]
          %v7464 = vld [vmem:[#allocation3 + $0x1a0] sm:$0xff]
          %v7465 = vld [vmem:[#allocation3 + $0x1a8] sm:$0xff]
          %v7466 = vld [vmem:[#allocation3 + $0x1b0] sm:$0xff]
          %v7467 = vld [vmem:[#allocation3 + $0x1b8] sm:$0xff]
          %v7468 = vld [vmem:[#allocation3 + $0x1c0] sm:$0xff]
          %v7469 = vld [vmem:[#allocation3 + $0x1c8] sm:$0xff]
          %v7470 = vld [vmem:[#allocation3 + $0x1d0] sm:$0xff]
          %v7471 = vld [vmem:[#allocation3 + $0x1d8] sm:$0xff]
          %v7472 = vld [vmem:[#allocation3 + $0x1e0] sm:$0xff]
          %v7473 = vld [vmem:[#allocation3 + $0x1e8] sm:$0xff]
          %v7474 = vld [vmem:[#allocation3 + $0x1f0] sm:$0xff]
          %v7475 = vld [vmem:[#allocation3 + $0x1f8] sm:$0xff]
          %7477 = vset.pattern.permute.xlu0 0
          %7478 = vperm.xlu0 %7477, %v7412
          %v7479 = vpop.permute.xlu0 %7478
          %7482 = vset.pattern.permute.xlu0 0
          %7483 = vperm.xlu0 %7482, %v7413
          %v7484 = vpop.permute.xlu0 %7483
          %7487 = vset.pattern.permute.xlu0 0
          %7488 = vperm.xlu0 %7487, %v7414
          %v7489 = vpop.permute.xlu0 %7488
          %7492 = vset.pattern.permute.xlu0 0
          %7493 = vperm.xlu0 %7492, %v7415
          %v7494 = vpop.permute.xlu0 %7493
          %7497 = vset.pattern.permute.xlu0 0
          %7498 = vperm.xlu0 %7497, %v7416
          %v7499 = vpop.permute.xlu0 %7498
          %7502 = vset.pattern.permute.xlu0 0
          %7503 = vperm.xlu0 %7502, %v7417
          %v7504 = vpop.permute.xlu0 %7503
          %7507 = vset.pattern.permute.xlu0 0
          %7508 = vperm.xlu0 %7507, %v7418
          %v7509 = vpop.permute.xlu0 %7508
          %7512 = vset.pattern.permute.xlu0 0
          %7513 = vperm.xlu0 %7512, %v7419
          %v7514 = vpop.permute.xlu0 %7513
          %7517 = vset.pattern.permute.xlu0 0
          %7518 = vperm.xlu0 %7517, %v7420
          %v7519 = vpop.permute.xlu0 %7518
          %7522 = vset.pattern.permute.xlu0 0
          %7523 = vperm.xlu0 %7522, %v7421
          %v7524 = vpop.permute.xlu0 %7523
          %7527 = vset.pattern.permute.xlu0 0
          %7528 = vperm.xlu0 %7527, %v7422
          %v7529 = vpop.permute.xlu0 %7528
          %7532 = vset.pattern.permute.xlu0 0
          %7533 = vperm.xlu0 %7532, %v7423
          %v7534 = vpop.permute.xlu0 %7533
          %7537 = vset.pattern.permute.xlu0 0
          %7538 = vperm.xlu0 %7537, %v7424
          %v7539 = vpop.permute.xlu0 %7538
          %7542 = vset.pattern.permute.xlu0 0
          %7543 = vperm.xlu0 %7542, %v7425
          %v7544 = vpop.permute.xlu0 %7543
          %7547 = vset.pattern.permute.xlu0 0
          %7548 = vperm.xlu0 %7547, %v7426
          %v7549 = vpop.permute.xlu0 %7548
          %7552 = vset.pattern.permute.xlu0 0
          %7553 = vperm.xlu0 %7552, %v7427
          %v7554 = vpop.permute.xlu0 %7553
          %7557 = vset.pattern.permute.xlu0 0
          %7558 = vperm.xlu0 %7557, %v7428
          %v7559 = vpop.permute.xlu0 %7558
          %7562 = vset.pattern.permute.xlu0 0
          %7563 = vperm.xlu0 %7562, %v7429
          %v7564 = vpop.permute.xlu0 %7563
          %7567 = vset.pattern.permute.xlu0 0
          %7568 = vperm.xlu0 %7567, %v7430
          %v7569 = vpop.permute.xlu0 %7568
          %7572 = vset.pattern.permute.xlu0 0
          %7573 = vperm.xlu0 %7572, %v7431
          %v7574 = vpop.permute.xlu0 %7573
          %7577 = vset.pattern.permute.xlu0 0
          %7578 = vperm.xlu0 %7577, %v7432
          %v7579 = vpop.permute.xlu0 %7578
          %7582 = vset.pattern.permute.xlu0 0
          %7583 = vperm.xlu0 %7582, %v7433
          %v7584 = vpop.permute.xlu0 %7583
          %7587 = vset.pattern.permute.xlu0 0
          %7588 = vperm.xlu0 %7587, %v7434
          %v7589 = vpop.permute.xlu0 %7588
          %7592 = vset.pattern.permute.xlu0 0
          %7593 = vperm.xlu0 %7592, %v7435
          %v7594 = vpop.permute.xlu0 %7593
          %7597 = vset.pattern.permute.xlu0 0
          %7598 = vperm.xlu0 %7597, %v7436
          %v7599 = vpop.permute.xlu0 %7598
          %7602 = vset.pattern.permute.xlu0 0
          %7603 = vperm.xlu0 %7602, %v7437
          %v7604 = vpop.permute.xlu0 %7603
          %7607 = vset.pattern.permute.xlu0 0
          %7608 = vperm.xlu0 %7607, %v7438
          %v7609 = vpop.permute.xlu0 %7608
          %7612 = vset.pattern.permute.xlu0 0
          %7613 = vperm.xlu0 %7612, %v7439
          %v7614 = vpop.permute.xlu0 %7613
          %7617 = vset.pattern.permute.xlu0 0
          %7618 = vperm.xlu0 %7617, %v7440
          %v7619 = vpop.permute.xlu0 %7618
          %7622 = vset.pattern.permute.xlu0 0
          %7623 = vperm.xlu0 %7622, %v7441
          %v7624 = vpop.permute.xlu0 %7623
          %7627 = vset.pattern.permute.xlu0 0
          %7628 = vperm.xlu0 %7627, %v7442
          %v7629 = vpop.permute.xlu0 %7628
          %7632 = vset.pattern.permute.xlu0 0
          %7633 = vperm.xlu0 %7632, %v7443
          %v7634 = vpop.permute.xlu0 %7633
          %7637 = vset.pattern.permute.xlu0 0
          %7638 = vperm.xlu0 %7637, %v7444
          %v7639 = vpop.permute.xlu0 %7638
          %7642 = vset.pattern.permute.xlu0 0
          %7643 = vperm.xlu0 %7642, %v7445
          %v7644 = vpop.permute.xlu0 %7643
          %7647 = vset.pattern.permute.xlu0 0
          %7648 = vperm.xlu0 %7647, %v7446
          %v7649 = vpop.permute.xlu0 %7648
          %7652 = vset.pattern.permute.xlu0 0
          %7653 = vperm.xlu0 %7652, %v7447
          %v7654 = vpop.permute.xlu0 %7653
          %7657 = vset.pattern.permute.xlu0 0
          %7658 = vperm.xlu0 %7657, %v7448
          %v7659 = vpop.permute.xlu0 %7658
          %7662 = vset.pattern.permute.xlu0 0
          %7663 = vperm.xlu0 %7662, %v7449
          %v7664 = vpop.permute.xlu0 %7663
          %7667 = vset.pattern.permute.xlu0 0
          %7668 = vperm.xlu0 %7667, %v7450
          %v7669 = vpop.permute.xlu0 %7668
          %7672 = vset.pattern.permute.xlu0 0
          %7673 = vperm.xlu0 %7672, %v7451
          %v7674 = vpop.permute.xlu0 %7673
          %7677 = vset.pattern.permute.xlu0 0
          %7678 = vperm.xlu0 %7677, %v7452
          %v7679 = vpop.permute.xlu0 %7678
          %7682 = vset.pattern.permute.xlu0 0
          %7683 = vperm.xlu0 %7682, %v7453
          %v7684 = vpop.permute.xlu0 %7683
          %7687 = vset.pattern.permute.xlu0 0
          %7688 = vperm.xlu0 %7687, %v7454
          %v7689 = vpop.permute.xlu0 %7688
          %7692 = vset.pattern.permute.xlu0 0
          %7693 = vperm.xlu0 %7692, %v7455
          %v7694 = vpop.permute.xlu0 %7693
          %7697 = vset.pattern.permute.xlu0 0
          %7698 = vperm.xlu0 %7697, %v7456
          %v7699 = vpop.permute.xlu0 %7698
          %7702 = vset.pattern.permute.xlu0 0
          %7703 = vperm.xlu0 %7702, %v7457
          %v7704 = vpop.permute.xlu0 %7703
          %7707 = vset.pattern.permute.xlu0 0
          %7708 = vperm.xlu0 %7707, %v7458
          %v7709 = vpop.permute.xlu0 %7708
          %7712 = vset.pattern.permute.xlu0 0
          %7713 = vperm.xlu0 %7712, %v7459
          %v7714 = vpop.permute.xlu0 %7713
          %7717 = vset.pattern.permute.xlu0 0
          %7718 = vperm.xlu0 %7717, %v7460
          %v7719 = vpop.permute.xlu0 %7718
          %7722 = vset.pattern.permute.xlu0 0
          %7723 = vperm.xlu0 %7722, %v7461
          %v7724 = vpop.permute.xlu0 %7723
          %7727 = vset.pattern.permute.xlu0 0
          %7728 = vperm.xlu0 %7727, %v7462
          %v7729 = vpop.permute.xlu0 %7728
          %7732 = vset.pattern.permute.xlu0 0
          %7733 = vperm.xlu0 %7732, %v7463
          %v7734 = vpop.permute.xlu0 %7733
          %7737 = vset.pattern.permute.xlu0 0
          %7738 = vperm.xlu0 %7737, %v7464
          %v7739 = vpop.permute.xlu0 %7738
          %7742 = vset.pattern.permute.xlu0 0
          %7743 = vperm.xlu0 %7742, %v7465
          %v7744 = vpop.permute.xlu0 %7743
          %7747 = vset.pattern.permute.xlu0 0
          %7748 = vperm.xlu0 %7747, %v7466
          %v7749 = vpop.permute.xlu0 %7748
          %7752 = vset.pattern.permute.xlu0 0
          %7753 = vperm.xlu0 %7752, %v7467
          %v7754 = vpop.permute.xlu0 %7753
          %7757 = vset.pattern.permute.xlu0 0
          %7758 = vperm.xlu0 %7757, %v7468
          %v7759 = vpop.permute.xlu0 %7758
          %7762 = vset.pattern.permute.xlu0 0
          %7763 = vperm.xlu0 %7762, %v7469
          %v7764 = vpop.permute.xlu0 %7763
          %7767 = vset.pattern.permute.xlu0 0
          %7768 = vperm.xlu0 %7767, %v7470
          %v7769 = vpop.permute.xlu0 %7768
          %7772 = vset.pattern.permute.xlu0 0
          %7773 = vperm.xlu0 %7772, %v7471
          %v7774 = vpop.permute.xlu0 %7773
          %7777 = vset.pattern.permute.xlu0 0
          %7778 = vperm.xlu0 %7777, %v7472
          %v7779 = vpop.permute.xlu0 %7778
          %7782 = vset.pattern.permute.xlu0 0
          %7783 = vperm.xlu0 %7782, %v7473
          %v7784 = vpop.permute.xlu0 %7783
          %7787 = vset.pattern.permute.xlu0 0
          %7788 = vperm.xlu0 %7787, %v7474
          %v7789 = vpop.permute.xlu0 %7788
          %7792 = vset.pattern.permute.xlu0 0
          %7793 = vperm.xlu0 %7792, %v7475
          %v7794 = vpop.permute.xlu0 %7793
          %v7796 = vrcp.pop %v7479
          %v7797 = vmul.f32 %v7348, %v7796
          %v7798 = vrcp.pop %v7484
          %v7799 = vmul.f32 %v7349, %v7798
          %v7800 = vrcp.pop %v7489
          %v7801 = vmul.f32 %v7350, %v7800
          %v7802 = vrcp.pop %v7494
          %v7803 = vmul.f32 %v7351, %v7802
          %v7804 = vrcp.pop %v7499
          %v7805 = vmul.f32 %v7352, %v7804
          %v7806 = vrcp.pop %v7504
          %v7807 = vmul.f32 %v7353, %v7806
          %v7808 = vrcp.pop %v7509
          %v7809 = vmul.f32 %v7354, %v7808
          %v7810 = vrcp.pop %v7514
          %v7811 = vmul.f32 %v7355, %v7810
          %v7812 = vrcp.pop %v7519
          %v7813 = vmul.f32 %v7356, %v7812
          %v7814 = vrcp.pop %v7524
          %v7815 = vmul.f32 %v7357, %v7814
          %v7816 = vrcp.pop %v7529
          %v7817 = vmul.f32 %v7358, %v7816
          %v7818 = vrcp.pop %v7534
          %v7819 = vmul.f32 %v7359, %v7818
          %v7820 = vrcp.pop %v7539
          %v7821 = vmul.f32 %v7360, %v7820
          %v7822 = vrcp.pop %v7544
          %v7823 = vmul.f32 %v7361, %v7822
          %v7824 = vrcp.pop %v7549
          %v7825 = vmul.f32 %v7362, %v7824
          %v7826 = vrcp.pop %v7554
          %v7827 = vmul.f32 %v7363, %v7826
          %v7828 = vrcp.pop %v7559
          %v7829 = vmul.f32 %v7364, %v7828
          %v7830 = vrcp.pop %v7564
          %v7831 = vmul.f32 %v7365, %v7830
          %v7832 = vrcp.pop %v7569
          %v7833 = vmul.f32 %v7366, %v7832
          %v7834 = vrcp.pop %v7574
          %v7835 = vmul.f32 %v7367, %v7834
          %v7836 = vrcp.pop %v7579
          %v7837 = vmul.f32 %v7368, %v7836
          %v7838 = vrcp.pop %v7584
          %v7839 = vmul.f32 %v7369, %v7838
          %v7840 = vrcp.pop %v7589
          %v7841 = vmul.f32 %v7370, %v7840
          %v7842 = vrcp.pop %v7594
          %v7843 = vmul.f32 %v7371, %v7842
          %v7844 = vrcp.pop %v7599
          %v7845 = vmul.f32 %v7372, %v7844
          %v7846 = vrcp.pop %v7604
          %v7847 = vmul.f32 %v7373, %v7846
          %v7848 = vrcp.pop %v7609
          %v7849 = vmul.f32 %v7374, %v7848
          %v7850 = vrcp.pop %v7614
          %v7851 = vmul.f32 %v7375, %v7850
          %v7852 = vrcp.pop %v7619
          %v7853 = vmul.f32 %v7376, %v7852
          %v7854 = vrcp.pop %v7624
          %v7855 = vmul.f32 %v7377, %v7854
          %v7856 = vrcp.pop %v7629
          %v7857 = vmul.f32 %v7378, %v7856
          %v7858 = vrcp.pop %v7634
          %v7859 = vmul.f32 %v7379, %v7858
          %v7860 = vrcp.pop %v7639
          %v7861 = vmul.f32 %v7380, %v7860
          %v7862 = vrcp.pop %v7644
          %v7863 = vmul.f32 %v7381, %v7862
          %v7864 = vrcp.pop %v7649
          %v7865 = vmul.f32 %v7382, %v7864
          %v7866 = vrcp.pop %v7654
          %v7867 = vmul.f32 %v7383, %v7866
          %v7868 = vrcp.pop %v7659
          %v7869 = vmul.f32 %v7384, %v7868
          %v7870 = vrcp.pop %v7664
          %v7871 = vmul.f32 %v7385, %v7870
          %v7872 = vrcp.pop %v7669
          %v7873 = vmul.f32 %v7386, %v7872
          %v7874 = vrcp.pop %v7674
          %v7875 = vmul.f32 %v7387, %v7874
          %v7876 = vrcp.pop %v7679
          %v7877 = vmul.f32 %v7388, %v7876
          %v7878 = vrcp.pop %v7684
          %v7879 = vmul.f32 %v7389, %v7878
          %v7880 = vrcp.pop %v7689
          %v7881 = vmul.f32 %v7390, %v7880
          %v7882 = vrcp.pop %v7694
          %v7883 = vmul.f32 %v7391, %v7882
          %v7884 = vrcp.pop %v7699
          %v7885 = vmul.f32 %v7392, %v7884
          %v7886 = vrcp.pop %v7704
          %v7887 = vmul.f32 %v7393, %v7886
          %v7888 = vrcp.pop %v7709
          %v7889 = vmul.f32 %v7394, %v7888
          %v7890 = vrcp.pop %v7714
          %v7891 = vmul.f32 %v7395, %v7890
          %v7892 = vrcp.pop %v7719
          %v7893 = vmul.f32 %v7396, %v7892
          %v7894 = vrcp.pop %v7724
          %v7895 = vmul.f32 %v7397, %v7894
          %v7896 = vrcp.pop %v7729
          %v7897 = vmul.f32 %v7398, %v7896
          %v7898 = vrcp.pop %v7734
          %v7899 = vmul.f32 %v7399, %v7898
          %v7900 = vrcp.pop %v7739
          %v7901 = vmul.f32 %v7400, %v7900
          %v7902 = vrcp.pop %v7744
          %v7903 = vmul.f32 %v7401, %v7902
          %v7904 = vrcp.pop %v7749
          %v7905 = vmul.f32 %v7402, %v7904
          %v7906 = vrcp.pop %v7754
          %v7907 = vmul.f32 %v7403, %v7906
          %v7908 = vrcp.pop %v7759
          %v7909 = vmul.f32 %v7404, %v7908
          %v7910 = vrcp.pop %v7764
          %v7911 = vmul.f32 %v7405, %v7910
          %v7912 = vrcp.pop %v7769
          %v7913 = vmul.f32 %v7406, %v7912
          %v7914 = vrcp.pop %v7774
          %v7915 = vmul.f32 %v7407, %v7914
          %v7916 = vrcp.pop %v7779
          %v7917 = vmul.f32 %v7408, %v7916
          %v7918 = vrcp.pop %v7784
          %v7919 = vmul.f32 %v7409, %v7918
          %v7920 = vrcp.pop %v7789
          %v7921 = vmul.f32 %v7410, %v7920
          %v7922 = vrcp.pop %v7794
          %v7923 = vmul.f32 %v7411, %v7922
          %7940 = vrot.lane.b32.xlu0 %v7829, 32
          %v7941 = vpop.permute.xlu0 %7940
          %7942 = vrot.lane.b32.xlu0 %v7831, 32
          %v7943 = vpop.permute.xlu0 %7942
          %7944 = vrot.lane.b32.xlu0 %v7833, 32
          %v7945 = vpop.permute.xlu0 %7944
          %7946 = vrot.lane.b32.xlu0 %v7835, 32
          %v7947 = vpop.permute.xlu0 %7946
          %7948 = vrot.lane.b32.xlu0 %v7837, 32
          %v7949 = vpop.permute.xlu0 %7948
          %7950 = vrot.lane.b32.xlu0 %v7839, 32
          %v7951 = vpop.permute.xlu0 %7950
          %7952 = vrot.lane.b32.xlu0 %v7841, 32
          %v7953 = vpop.permute.xlu0 %7952
          %7954 = vrot.lane.b32.xlu0 %v7843, 32
          %v7955 = vpop.permute.xlu0 %7954
          %7956 = vrot.lane.b32.xlu0 %v7845, 32
          %v7957 = vpop.permute.xlu0 %7956
          %7958 = vrot.lane.b32.xlu0 %v7847, 32
          %v7959 = vpop.permute.xlu0 %7958
          %7960 = vrot.lane.b32.xlu0 %v7849, 32
          %v7961 = vpop.permute.xlu0 %7960
          %7962 = vrot.lane.b32.xlu0 %v7851, 32
          %v7963 = vpop.permute.xlu0 %7962
          %7964 = vrot.lane.b32.xlu0 %v7853, 32
          %v7965 = vpop.permute.xlu0 %7964
          %7966 = vrot.lane.b32.xlu0 %v7855, 32
          %v7967 = vpop.permute.xlu0 %7966
          %7968 = vrot.lane.b32.xlu0 %v7857, 32
          %v7969 = vpop.permute.xlu0 %7968
          %7970 = vrot.lane.b32.xlu0 %v7859, 32
          %v7971 = vpop.permute.xlu0 %7970
          %8004 = vrot.lane.b32.xlu0 %v7861, 64
          %v8005 = vpop.permute.xlu0 %8004
          %8006 = vrot.lane.b32.xlu0 %v7863, 64
          %v8007 = vpop.permute.xlu0 %8006
          %8008 = vrot.lane.b32.xlu0 %v7865, 64
          %v8009 = vpop.permute.xlu0 %8008
          %8010 = vrot.lane.b32.xlu0 %v7867, 64
          %v8011 = vpop.permute.xlu0 %8010
          %8012 = vrot.lane.b32.xlu0 %v7869, 64
          %v8013 = vpop.permute.xlu0 %8012
          %8014 = vrot.lane.b32.xlu0 %v7871, 64
          %v8015 = vpop.permute.xlu0 %8014
          %8016 = vrot.lane.b32.xlu0 %v7873, 64
          %v8017 = vpop.permute.xlu0 %8016
          %8018 = vrot.lane.b32.xlu0 %v7875, 64
          %v8019 = vpop.permute.xlu0 %8018
          %8020 = vrot.lane.b32.xlu0 %v7877, 64
          %v8021 = vpop.permute.xlu0 %8020
          %8022 = vrot.lane.b32.xlu0 %v7879, 64
          %v8023 = vpop.permute.xlu0 %8022
          %8024 = vrot.lane.b32.xlu0 %v7881, 64
          %v8025 = vpop.permute.xlu0 %8024
          %8026 = vrot.lane.b32.xlu0 %v7883, 64
          %v8027 = vpop.permute.xlu0 %8026
          %8028 = vrot.lane.b32.xlu0 %v7885, 64
          %v8029 = vpop.permute.xlu0 %8028
          %8030 = vrot.lane.b32.xlu0 %v7887, 64
          %v8031 = vpop.permute.xlu0 %8030
          %8032 = vrot.lane.b32.xlu0 %v7889, 64
          %v8033 = vpop.permute.xlu0 %8032
          %8034 = vrot.lane.b32.xlu0 %v7891, 64
          %v8035 = vpop.permute.xlu0 %8034
          %8068 = vrot.lane.b32.xlu0 %v7893, 96
          %v8069 = vpop.permute.xlu0 %8068
          %8070 = vrot.lane.b32.xlu0 %v7895, 96
          %v8071 = vpop.permute.xlu0 %8070
          %8072 = vrot.lane.b32.xlu0 %v7897, 96
          %v8073 = vpop.permute.xlu0 %8072
          %8074 = vrot.lane.b32.xlu0 %v7899, 96
          %v8075 = vpop.permute.xlu0 %8074
          %8076 = vrot.lane.b32.xlu0 %v7901, 96
          %v8077 = vpop.permute.xlu0 %8076
          %8078 = vrot.lane.b32.xlu0 %v7903, 96
          %v8079 = vpop.permute.xlu0 %8078
          %8080 = vrot.lane.b32.xlu0 %v7905, 96
          %v8081 = vpop.permute.xlu0 %8080
          %8082 = vrot.lane.b32.xlu0 %v7907, 96
          %v8083 = vpop.permute.xlu0 %8082
          %8084 = vrot.lane.b32.xlu0 %v7909, 96
          %v8085 = vpop.permute.xlu0 %8084
          %8086 = vrot.lane.b32.xlu0 %v7911, 96
          %v8087 = vpop.permute.xlu0 %8086
          %8088 = vrot.lane.b32.xlu0 %v7913, 96
          %v8089 = vpop.permute.xlu0 %8088
          %8090 = vrot.lane.b32.xlu0 %v7915, 96
          %v8091 = vpop.permute.xlu0 %8090
          %8092 = vrot.lane.b32.xlu0 %v7917, 96
          %v8093 = vpop.permute.xlu0 %8092
          %8094 = vrot.lane.b32.xlu0 %v7919, 96
          %v8095 = vpop.permute.xlu0 %8094
          %8096 = vrot.lane.b32.xlu0 %v7921, 96
          %v8097 = vpop.permute.xlu0 %8096
          %8098 = vrot.lane.b32.xlu0 %v7923, 96
          %v8099 = vpop.permute.xlu0 %8098
          %v8116 = vsel %vm879, %v7797, %v7941
          %v8117 = vsel %vm879, %v7799, %v7943
          %v8118 = vsel %vm879, %v7801, %v7945
          %v8119 = vsel %vm879, %v7803, %v7947
          %v8120 = vsel %vm879, %v7805, %v7949
          %v8121 = vsel %vm879, %v7807, %v7951
          %v8122 = vsel %vm879, %v7809, %v7953
          %v8123 = vsel %vm879, %v7811, %v7955
          %v8124 = vsel %vm879, %v7813, %v7957
          %v8125 = vsel %vm879, %v7815, %v7959
          %v8126 = vsel %vm879, %v7817, %v7961
          %v8127 = vsel %vm879, %v7819, %v7963
          %v8128 = vsel %vm879, %v7821, %v7965
          %v8129 = vsel %vm879, %v7823, %v7967
          %v8130 = vsel %vm879, %v7825, %v7969
          %v8131 = vsel %vm879, %v7827, %v7971
          %vm8132 = vcmask 523264
          %v8133 = vsel %vm8132, %v8116, %v8005
          %v8134 = vsel %vm8132, %v8117, %v8007
          %v8135 = vsel %vm8132, %v8118, %v8009
          %v8136 = vsel %vm8132, %v8119, %v8011
          %v8137 = vsel %vm8132, %v8120, %v8013
          %v8138 = vsel %vm8132, %v8121, %v8015
          %v8139 = vsel %vm8132, %v8122, %v8017
          %v8140 = vsel %vm8132, %v8123, %v8019
          %v8141 = vsel %vm8132, %v8124, %v8021
          %v8142 = vsel %vm8132, %v8125, %v8023
          %v8143 = vsel %vm8132, %v8126, %v8025
          %v8144 = vsel %vm8132, %v8127, %v8027
          %v8145 = vsel %vm8132, %v8128, %v8029
          %v8146 = vsel %vm8132, %v8129, %v8031
          %v8147 = vsel %vm8132, %v8130, %v8033
          %v8148 = vsel %vm8132, %v8131, %v8035
          %vm8149 = vcmask 785408
          %v8150 = vsel %vm8149, %v8133, %v8069
          %v8151 = vsel %vm8149, %v8134, %v8071
          %v8152 = vsel %vm8149, %v8135, %v8073
          %v8153 = vsel %vm8149, %v8136, %v8075
          %v8154 = vsel %vm8149, %v8137, %v8077
          %v8155 = vsel %vm8149, %v8138, %v8079
          %v8156 = vsel %vm8149, %v8139, %v8081
          %v8157 = vsel %vm8149, %v8140, %v8083
          %v8158 = vsel %vm8149, %v8141, %v8085
          %v8159 = vsel %vm8149, %v8142, %v8087
          %v8160 = vsel %vm8149, %v8143, %v8089
          %v8161 = vsel %vm8149, %v8144, %v8091
          %v8162 = vsel %vm8149, %v8145, %v8093
          %v8163 = vsel %vm8149, %v8146, %v8095
          %v8164 = vsel %vm8149, %v8147, %v8097
          %v8165 = vsel %vm8149, %v8148, %v8099
          %8166 = vst [vmem:[%s463] sm:$0xff] %v8150
          %8167 = vst [vmem:[%s463 + $0x8] sm:$0xff] %v8151
          %8168 = vst [vmem:[%s463 + $0x10] sm:$0xff] %v8152
          %8169 = vst [vmem:[%s463 + $0x18] sm:$0xff] %v8153
          %8170 = vst [vmem:[%s463 + $0x20] sm:$0xff] %v8154
          %8171 = vst [vmem:[%s463 + $0x28] sm:$0xff] %v8155
          %8172 = vst [vmem:[%s463 + $0x30] sm:$0xff] %v8156
          %8173 = vst [vmem:[%s463 + $0x38] sm:$0xff] %v8157
          %8174 = vst [vmem:[%s463 + $0x40] sm:$0xff] %v8158
          %8175 = vst [vmem:[%s463 + $0x48] sm:$0xff] %v8159
          %8176 = vst [vmem:[%s463 + $0x50] sm:$0xff] %v8160
          %8177 = vst [vmem:[%s463 + $0x58] sm:$0xff] %v8161
          %8178 = vst [vmem:[%s463 + $0x60] sm:$0xff] %v8162
          %8179 = vst [vmem:[%s463 + $0x68] sm:$0xff] %v8163
          %8180 = vst [vmem:[%s463 + $0x70] sm:$0xff] %v8164
          %8181 = vst [vmem:[%s463 + $0x78] sm:$0xff] %v8165
        $region77: #{tpu_custom_call.1} parent=64 // pred_fallthru
          _
        %s8182 = sand.u32 %s88, 1
        %s8183 = scalar_lea.sflag [#allocation7], %s8182
        %s8184 = sand.u32 %s88, 1
        %s8185 = smul.addr %s8184, 128
        %s8186 = scalar_lea.vmem [#allocation6], %s8185
        // Predicated region
        $region78: #{tpu_custom_call.1} parent=64 // pred_check
          %p8187 = pneg %p98
        $region79: #{tpu_custom_call.1} parent=64 // pred_check_branch
          %8189 = sbr.rel (%p8187) target = $region81
        $region80: #{tpu_custom_call.1} parent=64 // pred_region
          %s8190 = smul.u32 16, %s20
          %s8192 = ssub.s32 2048, 2048
          %8193 = vsyncadd %s8183, %s8192
          %s8194 = smul.addr %s8190, 128
          %s8195 = scalar_lea.hbm %s2, %s8194
          %s8196 = sshll.u32 %s8186, 4
          %s8197 = int_to_ptr.vmem [resolvable:$true] %s8196
          %8202 = dma.vmem_to_hbm [thread:$0]  %s8197, 2048, %s8195, %s8183, 128, 128, 8
        $region81: #{tpu_custom_call.1} parent=64 // pred_fallthru
          _
      $region65: #{tpu_custom_call.1} parent=5 // pred_fallthru
        _
      %p8203 = scmp.le.s32.totalorder 2, %s11
      // Predicated region
      $region82: #{tpu_custom_call.1} parent=5 // pred_check
        %p8204 = pneg %p8203
      $region83: #{tpu_custom_call.1} parent=5 // pred_check_branch
        %8206 = sbr.rel (%p8204) target = $region85
      $region84: #{tpu_custom_call.1} parent=5 // pred_region
        %s8207 = ssub.s32 %s11, 2
        // Predicated region
        $region86: #{tpu_custom_call.1} parent=84 // pred_check
          %p8208 = pneg %p104
        $region87: #{tpu_custom_call.1} parent=84 // pred_check_branch
          %8210 = sbr.rel (%p8208) target = $region89
        $region88: #{tpu_custom_call.1} parent=84 // pred_region
          %s8211 = sand.u32 %s89, 1
          %s8212 = scalar_lea.sflag [#allocation7], %s8211
          %s8213 = sand.u32 %s89, 1
          %s8214 = smul.addr %s8213, 128
          %s8215 = scalar_lea.vmem [#allocation6], %s8214
          %8216 = dma.done %s8212, 2048
        $region89: #{tpu_custom_call.1} parent=84 // pred_fallthru
          _
      $region85: #{tpu_custom_call.1} parent=5 // pred_fallthru
        _
    $region6: #{tpu_custom_call.1} parent=1 // loop_footer
      %s15 = sadd.s32 1, %s11
    $region7: #{tpu_custom_call.1} parent=1 // loop_footer_branch
      %10 = sbr.rel target = $region3
    $region8: #{tpu_custom_call.1} parent=1 // loop_exit
      _
    %8217 = vsyncpa [#allocation7], 1
    %s8218 = scalar_lea.sflag [#allocation7], 1
    %8219 = vsyncpa %s8218, 1

</llo_original>
